<compile_context>
chip_gen: v7x
topology: tpu7x:2x2x1
jax: 0.10.0
libtpu: 0.0.40
codegen_flags: <defaults>
</compile_context>

<pallas_src>
import jax
import jax.numpy as jnp
from jax.experimental import pallas as pl
from jax.experimental.pallas import tpu as pltpu

BN_EPS = 1e-5
C_OUT = 64


def _round_up(v, m):
    return ((v + m - 1) // m) * m


def _batchnorm(y, gamma, beta):
    """BatchNorm2d training-mode statistics over the row axis (N*H*W rows)."""
    mean = jnp.mean(y, axis=0, keepdims=True)
    var = jnp.mean(jnp.square(y - mean), axis=0, keepdims=True)   # biased variance
    return (y - mean) * jax.lax.rsqrt(var + BN_EPS) * gamma + beta


def _elu(y):
    # exp is only evaluated on min(y, 0): no overflow for large positive y.
    return jnp.where(y > 0.0, y, jnp.exp(jnp.minimum(y, 0.0)) - 1.0)


# ------------------------------ forward pass --------------------------------

def net_forward(x_nchw, p):
    """Forward pass of Net.  x_nchw: (N, 3, H, W) float32; p: prepared params."""
    n, cin, h, w = x_nchw.shape
    h2, w2 = h // 2, w // 2
    cin_p = _round_up(cin, 8)
    cout = C_OUT
    num_classes = p["bl"].shape[-1]

    # Tiny host-side layout prep (a few KB, fused by XLA): NCHW -> NHWC so
    # channels sit on the 128-lane axis, zero-pad channels 3 -> 8, and add the
    # 1-pixel halo for the SAME conv.  All heavy layout work (im2col, pooling,
    # conv2 halo) happens on VMEM-resident data inside the kernel.
    xh = jnp.transpose(x_nchw, (0, 2, 3, 1))
    xh = jnp.pad(xh, ((0, 0), (1, 1), (1, 1), (0, cin_p - cin)))

    def feature_kernel(xp_ref, w1_ref, g1_ref, be1_ref, w2_ref, g2_ref, be2_ref,
                       o_ref, ph_scr, pp_scr):
        # ---- conv1 (3x3, SAME): 9 shifted (M, Cin) x (Cin, Cout) bf16 MXU dots.
        #      Conv bias omitted: cancelled exactly by batch-stats BN below.
        m1 = n * h * w
        acc1 = jnp.zeros((m1, cout), jnp.float32)
        for dy in range(3):
            for dx in range(3):
                tap = xp_ref[:, dy:dy + h, dx:dx + w, :]            # (n, h, w, cin_p)
                tap = tap.reshape(m1, cin_p).astype(jnp.bfloat16)
                acc1 = acc1 + jnp.dot(tap, w1_ref[dy * 3 + dx],
                                      preferred_element_type=jnp.float32)
        f1 = _elu(_batchnorm(acc1, g1_ref[...], be1_ref[...]))      # (m1, 64) f32

        # ---- MaxPool2d(2) fused into the epilogue (no HBM round trip):
        #      H-pairs via a free leading-dim split, W-pairs via stride-2
        #      sublane reads of a VMEM scratch.
        f1r = f1.reshape(n * h2, 2, w, cout)
        ph_scr[...] = jnp.maximum(f1r[:, 0], f1r[:, 1])             # (n*h2, w, 64)
        p1 = jnp.maximum(ph_scr[:, pl.ds(0, w2, 2), :],
                         ph_scr[:, pl.ds(1, w2, 2), :])             # (n*h2, w2, 64)

        # ---- conv2 input with 1-pixel zero halo, built directly in VMEM.
        pp_scr[...] = jnp.zeros_like(pp_scr)
        pp_scr[:, 1:h2 + 1, 1:w2 + 1, :] = p1.reshape(n, h2, w2, cout)

        # ---- conv2 (3x3, SAME): 9 shifted (M, 64) x (64, 64) bf16 MXU dots.
        m2 = n * h2 * w2
        acc2 = jnp.zeros((m2, cout), jnp.float32)
        for dy in range(3):
            for dx in range(3):
                tap = pp_scr[:, dy:dy + h2, dx:dx + w2, :]          # (n, h2, w2, 64)
                tap = tap.reshape(m2, cout).astype(jnp.bfloat16)
                acc2 = acc2 + jnp.dot(tap, w2_ref[dy * 3 + dx],
                                      preferred_element_type=jnp.float32)
        f2 = _elu(_batchnorm(acc2, g2_ref[...], be2_ref[...]))      # (m2, 64) f32
        o_ref[...] = f2.reshape(n, h2, w2, cout)

    # TODO(synk): at the implied 224x224 scale this single-invocation design would
    # need a grid over row tiles (cross-tile sum/sumsq BN accumulators with a
    # pl.when finalize) and dimension_semantics=("parallel",...) to use v7x's two
    # TensorCores / fit its 64 MiB VMEM; unnecessary at this toy size.
    f2 = pl.pallas_call(
        feature_kernel,
        out_shape=jax.ShapeDtypeStruct((n, h2, w2, cout), jnp.float32),
        in_specs=[pl.BlockSpec(memory_space=pltpu.MemorySpace.VMEM)] * 7,
        out_specs=pl.BlockSpec(memory_space=pltpu.MemorySpace.VMEM),
        scratch_shapes=[
            pltpu.VMEM((n * h2, w, cout), jnp.float32),             # H-pooled rows
            pltpu.VMEM((n, h2 + 2, w2 + 2, cout), jnp.float32),     # padded conv2 in
        ],
    )(xh, p["w1"], p["g1"], p["be1"], p["w2"], p["g2"], p["be2"])

    # nn.Flatten: free row-major reshape.  The NCHW (c,h,w) flatten ordering is
    # folded into p["wl"] at prepare_params time, so no runtime transpose.
    flat = f2.reshape(n, h2 * w2 * cout)

    def linear_kernel(x_ref, wl_ref, bl_ref, o_ref):
        o_ref[...] = (jnp.dot(x_ref[...].astype(jnp.bfloat16), wl_ref[...],
                              preferred_element_type=jnp.float32) + bl_ref[...])

    logits = pl.pallas_call(
        linear_kernel,
        out_shape=jax.ShapeDtypeStruct((n, num_classes), jnp.float32),
        in_specs=[pl.BlockSpec(memory_space=pltpu.MemorySpace.VMEM)] * 3,
        out_specs=pl.BlockSpec(memory_space=pltpu.MemorySpace.VMEM),
    )(flat, p["wl"], p["bl"])
    return logits


# --------------------------- parameter preparation --------------------------

def init_params(key, h, w, num_classes):
    """Raw parameters in PyTorch layouts (conv OIHW, linear (K, F))."""
    h2, w2 = h // 2, w // 2
    feat = C_OUT * h2 * w2
    ks = jax.random.split(key, 10)
    return {
        "w1": 0.1 * jax.random.normal(ks[0], (C_OUT, 3, 3, 3), jnp.float32),
        "b1": 0.1 * jax.random.normal(ks[1], (C_OUT,), jnp.float32),   # unused: cancelled by BN
        "g1": 1.0 + 0.1 * jax.random.normal(ks[2], (C_OUT,), jnp.float32),
        "be1": 0.1 * jax.random.normal(ks[3], (C_OUT,), jnp.float32),
        "w2": 0.05 * jax.random.normal(ks[4], (C_OUT, C_OUT, 3, 3), jnp.float32),
        "b2": 0.1 * jax.random.normal(ks[5], (C_OUT,), jnp.float32),   # unused: cancelled by BN
        "g2": 1.0 + 0.1 * jax.random.normal(ks[6], (C_OUT,), jnp.float32),
        "be2": 0.1 * jax.random.normal(ks[7], (C_OUT,), jnp.float32),
        "wl": 0.01 * jax.random.normal(ks[8], (num_classes, feat), jnp.float32),
        "bl": 0.01 * jax.random.normal(ks[9], (num_classes,), jnp.float32),
    }


def prepare_params(raw, h, w):
    """One-time host-side layout folding (outside the jitted forward).

    - conv weights -> (9, Cin_pad, Cout) bf16 tap matrices (kh-major, kw, cin).
    - conv biases dropped: cancelled exactly by batch-statistics BatchNorm.
    - linear weight: NCHW-flatten permutation folded in, pre-transposed to
      (F, num_classes), bf16.
    """
    cin = raw["w1"].shape[1]
    cin_p = _round_up(cin, 8)
    h2, w2 = h // 2, w // 2
    cout = C_OUT

    w1 = jnp.transpose(raw["w1"], (2, 3, 1, 0)).reshape(9, cin, cout)
    w1 = jnp.pad(w1, ((0, 0), (0, cin_p - cin), (0, 0))).astype(jnp.bfloat16)
    w2c = jnp.transpose(raw["w2"], (2, 3, 1, 0)).reshape(9, cout, cout)
    w2c = w2c.astype(jnp.bfloat16)

    k = raw["wl"].shape[0]
    wl = raw["wl"].reshape(k, cout, h2, w2)                 # (K, C, H2, W2)
    wl = jnp.transpose(wl, (0, 2, 3, 1)).reshape(k, h2 * w2 * cout)
    wl = jnp.transpose(wl).astype(jnp.bfloat16)             # (F, K)

    return {
        "w1": w1, "g1": raw["g1"].reshape(1, cout), "be1": raw["be1"].reshape(1, cout),
        "w2": w2c, "g2": raw["g2"].reshape(1, cout), "be2": raw["be2"].reshape(1, cout),
        "wl": wl, "bl": raw["bl"].reshape(1, -1),
    }


# ----------------------------------- main ------------------------------------

if __name__ == "__main__":
    N, C, H, W = 2, 3, 16, 16
    NUM_CLASSES = 10

    key = jax.random.PRNGKey(0)
    kx, kp = jax.random.split(key)
    x = jax.random.normal(kx, (N, C, H, W), jnp.float32)          # NCHW like PyTorch
    raw_params = init_params(kp, H, W, NUM_CLASSES)
    params = prepare_params(raw_params, H, W)

    out = jax.jit(net_forward)(x, params)
    out = jax.block_until_ready(out)
    assert out.shape == (N, NUM_CLASSES)
    assert bool(jnp.all(jnp.isfinite(out)))
    print("KERNEL_OK")
</pallas_src>

<mosaic_0001>
module attributes {stable_mosaic.version = 11 : i64} {
  func.func @feature_kernel(%arg0: memref<2x18x18x8xf32, #tpu.memory_space<vmem>>, %arg1: memref<9x8x64xbf16, #tpu.memory_space<vmem>>, %arg2: memref<1x64xf32, #tpu.memory_space<vmem>>, %arg3: memref<1x64xf32, #tpu.memory_space<vmem>>, %arg4: memref<9x64x64xbf16, #tpu.memory_space<vmem>>, %arg5: memref<1x64xf32, #tpu.memory_space<vmem>>, %arg6: memref<1x64xf32, #tpu.memory_space<vmem>>, %arg7: memref<2x8x8x64xf32, #tpu.memory_space<vmem>>, %arg8: memref<16x16x64xf32, #tpu.memory_space<vmem>>, %arg9: memref<2x10x10x64xf32, #tpu.memory_space<vmem>>) attributes {dimension_semantics = [], scalar_prefetch = 0 : i64, scratch_operands = 2 : i64, tpu.core_type = #tpu.core_type<tc>} {
    %cst = arith.constant 0.000000e+00 : f32
    %0 = vector.broadcast %cst : f32 to vector<512x64xf32>
    %c0 = arith.constant 0 : index
    %c0_0 = arith.constant 0 : index
    %c0_1 = arith.constant 0 : index
    %c0_2 = arith.constant 0 : index
    %1 = vector.load %arg0[%c0, %c0_0, %c0_1, %c0_2] : memref<2x18x18x8xf32, #tpu.memory_space<vmem>>, vector<2x16x16x8xf32>
    %2 = vector.shape_cast %1 : vector<2x16x16x8xf32> to vector<512x8xf32>
    %3 = arith.truncf %2 : vector<512x8xf32> to vector<512x8xbf16>
    %c0_3 = arith.constant 0 : index
    %c0_4 = arith.constant 0 : index
    %c0_5 = arith.constant 0 : index
    %4 = vector.load %arg1[%c0_3, %c0_4, %c0_5] : memref<9x8x64xbf16, #tpu.memory_space<vmem>>, vector<1x8x64xbf16>
    %5 = vector.shape_cast %4 : vector<1x8x64xbf16> to vector<8x64xbf16>
    %cst_6 = arith.constant dense<0.000000e+00> : vector<512x64xf32>
    %6 = tpu.matmul %3, %5, %cst_6 {dimension_numbers = #tpu.dot_dimension_numbers<[1], [0], [0], [1], [0, 0, 1, 1], [], []>} : vector<512x8xbf16>, vector<8x64xbf16>, vector<512x64xf32> -> vector<512x64xf32>
    %7 = arith.addf %0, %6 : vector<512x64xf32>
    %c0_7 = arith.constant 0 : index
    %c0_8 = arith.constant 0 : index
    %c1 = arith.constant 1 : index
    %c0_9 = arith.constant 0 : index
    %8 = vector.load %arg0[%c0_7, %c0_8, %c1, %c0_9] : memref<2x18x18x8xf32, #tpu.memory_space<vmem>>, vector<2x16x16x8xf32>
    %9 = vector.shape_cast %8 : vector<2x16x16x8xf32> to vector<512x8xf32>
    %10 = arith.truncf %9 : vector<512x8xf32> to vector<512x8xbf16>
    %c1_10 = arith.constant 1 : index
    %c0_11 = arith.constant 0 : index
    %c0_12 = arith.constant 0 : index
    %11 = vector.load %arg1[%c1_10, %c0_11, %c0_12] : memref<9x8x64xbf16, #tpu.memory_space<vmem>>, vector<1x8x64xbf16>
    %12 = vector.shape_cast %11 : vector<1x8x64xbf16> to vector<8x64xbf16>
    %cst_13 = arith.constant dense<0.000000e+00> : vector<512x64xf32>
    %13 = tpu.matmul %10, %12, %cst_13 {dimension_numbers = #tpu.dot_dimension_numbers<[1], [0], [0], [1], [0, 0, 1, 1], [], []>} : vector<512x8xbf16>, vector<8x64xbf16>, vector<512x64xf32> -> vector<512x64xf32>
    %14 = arith.addf %7, %13 : vector<512x64xf32>
    %c0_14 = arith.constant 0 : index
    %c0_15 = arith.constant 0 : index
    %c2 = arith.constant 2 : index
    %c0_16 = arith.constant 0 : index
    %15 = vector.load %arg0[%c0_14, %c0_15, %c2, %c0_16] : memref<2x18x18x8xf32, #tpu.memory_space<vmem>>, vector<2x16x16x8xf32>
    %16 = vector.shape_cast %15 : vector<2x16x16x8xf32> to vector<512x8xf32>
    %17 = arith.truncf %16 : vector<512x8xf32> to vector<512x8xbf16>
    %c2_17 = arith.constant 2 : index
    %c0_18 = arith.constant 0 : index
    %c0_19 = arith.constant 0 : index
    %18 = vector.load %arg1[%c2_17, %c0_18, %c0_19] : memref<9x8x64xbf16, #tpu.memory_space<vmem>>, vector<1x8x64xbf16>
    %19 = vector.shape_cast %18 : vector<1x8x64xbf16> to vector<8x64xbf16>
    %cst_20 = arith.constant dense<0.000000e+00> : vector<512x64xf32>
    %20 = tpu.matmul %17, %19, %cst_20 {dimension_numbers = #tpu.dot_dimension_numbers<[1], [0], [0], [1], [0, 0, 1, 1], [], []>} : vector<512x8xbf16>, vector<8x64xbf16>, vector<512x64xf32> -> vector<512x64xf32>
    %21 = arith.addf %14, %20 : vector<512x64xf32>
    %c0_21 = arith.constant 0 : index
    %c1_22 = arith.constant 1 : index
    %c0_23 = arith.constant 0 : index
    %c0_24 = arith.constant 0 : index
    %22 = vector.load %arg0[%c0_21, %c1_22, %c0_23, %c0_24] : memref<2x18x18x8xf32, #tpu.memory_space<vmem>>, vector<2x16x16x8xf32>
    %23 = vector.shape_cast %22 : vector<2x16x16x8xf32> to vector<512x8xf32>
    %24 = arith.truncf %23 : vector<512x8xf32> to vector<512x8xbf16>
    %c3 = arith.constant 3 : index
    %c0_25 = arith.constant 0 : index
    %c0_26 = arith.constant 0 : index
    %25 = vector.load %arg1[%c3, %c0_25, %c0_26] : memref<9x8x64xbf16, #tpu.memory_space<vmem>>, vector<1x8x64xbf16>
    %26 = vector.shape_cast %25 : vector<1x8x64xbf16> to vector<8x64xbf16>
    %cst_27 = arith.constant dense<0.000000e+00> : vector<512x64xf32>
    %27 = tpu.matmul %24, %26, %cst_27 {dimension_numbers = #tpu.dot_dimension_numbers<[1], [0], [0], [1], [0, 0, 1, 1], [], []>} : vector<512x8xbf16>, vector<8x64xbf16>, vector<512x64xf32> -> vector<512x64xf32>
    %28 = arith.addf %21, %27 : vector<512x64xf32>
    %c0_28 = arith.constant 0 : index
    %c1_29 = arith.constant 1 : index
    %c1_30 = arith.constant 1 : index
    %c0_31 = arith.constant 0 : index
    %29 = vector.load %arg0[%c0_28, %c1_29, %c1_30, %c0_31] : memref<2x18x18x8xf32, #tpu.memory_space<vmem>>, vector<2x16x16x8xf32>
    %30 = vector.shape_cast %29 : vector<2x16x16x8xf32> to vector<512x8xf32>
    %31 = arith.truncf %30 : vector<512x8xf32> to vector<512x8xbf16>
    %c4 = arith.constant 4 : index
    %c0_32 = arith.constant 0 : index
    %c0_33 = arith.constant 0 : index
    %32 = vector.load %arg1[%c4, %c0_32, %c0_33] : memref<9x8x64xbf16, #tpu.memory_space<vmem>>, vector<1x8x64xbf16>
    %33 = vector.shape_cast %32 : vector<1x8x64xbf16> to vector<8x64xbf16>
    %cst_34 = arith.constant dense<0.000000e+00> : vector<512x64xf32>
    %34 = tpu.matmul %31, %33, %cst_34 {dimension_numbers = #tpu.dot_dimension_numbers<[1], [0], [0], [1], [0, 0, 1, 1], [], []>} : vector<512x8xbf16>, vector<8x64xbf16>, vector<512x64xf32> -> vector<512x64xf32>
    %35 = arith.addf %28, %34 : vector<512x64xf32>
    %c0_35 = arith.constant 0 : index
    %c1_36 = arith.constant 1 : index
    %c2_37 = arith.constant 2 : index
    %c0_38 = arith.constant 0 : index
    %36 = vector.load %arg0[%c0_35, %c1_36, %c2_37, %c0_38] : memref<2x18x18x8xf32, #tpu.memory_space<vmem>>, vector<2x16x16x8xf32>
    %37 = vector.shape_cast %36 : vector<2x16x16x8xf32> to vector<512x8xf32>
    %38 = arith.truncf %37 : vector<512x8xf32> to vector<512x8xbf16>
    %c5 = arith.constant 5 : index
    %c0_39 = arith.constant 0 : index
    %c0_40 = arith.constant 0 : index
    %39 = vector.load %arg1[%c5, %c0_39, %c0_40] : memref<9x8x64xbf16, #tpu.memory_space<vmem>>, vector<1x8x64xbf16>
    %40 = vector.shape_cast %39 : vector<1x8x64xbf16> to vector<8x64xbf16>
    %cst_41 = arith.constant dense<0.000000e+00> : vector<512x64xf32>
    %41 = tpu.matmul %38, %40, %cst_41 {dimension_numbers = #tpu.dot_dimension_numbers<[1], [0], [0], [1], [0, 0, 1, 1], [], []>} : vector<512x8xbf16>, vector<8x64xbf16>, vector<512x64xf32> -> vector<512x64xf32>
    %42 = arith.addf %35, %41 : vector<512x64xf32>
    %c0_42 = arith.constant 0 : index
    %c2_43 = arith.constant 2 : index
    %c0_44 = arith.constant 0 : index
    %c0_45 = arith.constant 0 : index
    %43 = vector.load %arg0[%c0_42, %c2_43, %c0_44, %c0_45] : memref<2x18x18x8xf32, #tpu.memory_space<vmem>>, vector<2x16x16x8xf32>
    %44 = vector.shape_cast %43 : vector<2x16x16x8xf32> to vector<512x8xf32>
    %45 = arith.truncf %44 : vector<512x8xf32> to vector<512x8xbf16>
    %c6 = arith.constant 6 : index
    %c0_46 = arith.constant 0 : index
    %c0_47 = arith.constant 0 : index
    %46 = vector.load %arg1[%c6, %c0_46, %c0_47] : memref<9x8x64xbf16, #tpu.memory_space<vmem>>, vector<1x8x64xbf16>
    %47 = vector.shape_cast %46 : vector<1x8x64xbf16> to vector<8x64xbf16>
    %cst_48 = arith.constant dense<0.000000e+00> : vector<512x64xf32>
    %48 = tpu.matmul %45, %47, %cst_48 {dimension_numbers = #tpu.dot_dimension_numbers<[1], [0], [0], [1], [0, 0, 1, 1], [], []>} : vector<512x8xbf16>, vector<8x64xbf16>, vector<512x64xf32> -> vector<512x64xf32>
    %49 = arith.addf %42, %48 : vector<512x64xf32>
    %c0_49 = arith.constant 0 : index
    %c2_50 = arith.constant 2 : index
    %c1_51 = arith.constant 1 : index
    %c0_52 = arith.constant 0 : index
    %50 = vector.load %arg0[%c0_49, %c2_50, %c1_51, %c0_52] : memref<2x18x18x8xf32, #tpu.memory_space<vmem>>, vector<2x16x16x8xf32>
    %51 = vector.shape_cast %50 : vector<2x16x16x8xf32> to vector<512x8xf32>
    %52 = arith.truncf %51 : vector<512x8xf32> to vector<512x8xbf16>
    %c7 = arith.constant 7 : index
    %c0_53 = arith.constant 0 : index
    %c0_54 = arith.constant 0 : index
    %53 = vector.load %arg1[%c7, %c0_53, %c0_54] : memref<9x8x64xbf16, #tpu.memory_space<vmem>>, vector<1x8x64xbf16>
    %54 = vector.shape_cast %53 : vector<1x8x64xbf16> to vector<8x64xbf16>
    %cst_55 = arith.constant dense<0.000000e+00> : vector<512x64xf32>
    %55 = tpu.matmul %52, %54, %cst_55 {dimension_numbers = #tpu.dot_dimension_numbers<[1], [0], [0], [1], [0, 0, 1, 1], [], []>} : vector<512x8xbf16>, vector<8x64xbf16>, vector<512x64xf32> -> vector<512x64xf32>
    %56 = arith.addf %49, %55 : vector<512x64xf32>
    %c0_56 = arith.constant 0 : index
    %c2_57 = arith.constant 2 : index
    %c2_58 = arith.constant 2 : index
    %c0_59 = arith.constant 0 : index
    %57 = vector.load %arg0[%c0_56, %c2_57, %c2_58, %c0_59] : memref<2x18x18x8xf32, #tpu.memory_space<vmem>>, vector<2x16x16x8xf32>
    %58 = vector.shape_cast %57 : vector<2x16x16x8xf32> to vector<512x8xf32>
    %59 = arith.truncf %58 : vector<512x8xf32> to vector<512x8xbf16>
    %c8 = arith.constant 8 : index
    %c0_60 = arith.constant 0 : index
    %c0_61 = arith.constant 0 : index
    %60 = vector.load %arg1[%c8, %c0_60, %c0_61] : memref<9x8x64xbf16, #tpu.memory_space<vmem>>, vector<1x8x64xbf16>
    %61 = vector.shape_cast %60 : vector<1x8x64xbf16> to vector<8x64xbf16>
    %cst_62 = arith.constant dense<0.000000e+00> : vector<512x64xf32>
    %62 = tpu.matmul %59, %61, %cst_62 {dimension_numbers = #tpu.dot_dimension_numbers<[1], [0], [0], [1], [0, 0, 1, 1], [], []>} : vector<512x8xbf16>, vector<8x64xbf16>, vector<512x64xf32> -> vector<512x64xf32>
    %63 = arith.addf %56, %62 : vector<512x64xf32>
    %c0_63 = arith.constant 0 : index
    %c0_64 = arith.constant 0 : index
    %64 = vector.load %arg2[%c0_63, %c0_64] : memref<1x64xf32, #tpu.memory_space<vmem>>, vector<1x64xf32>
    %c0_65 = arith.constant 0 : index
    %c0_66 = arith.constant 0 : index
    %65 = vector.load %arg3[%c0_65, %c0_66] : memref<1x64xf32, #tpu.memory_space<vmem>>, vector<1x64xf32>
    %cst_67 = arith.constant dense<0.000000e+00> : vector<64xf32>
    %66 = vector.multi_reduction <add>, %63, %cst_67 [0] : vector<512x64xf32> to vector<64xf32>
    %67 = vector.shape_cast %66 : vector<64xf32> to vector<1x64xf32>
    %cst_68 = arith.constant 5.120000e+02 : f32
    %68 = vector.broadcast %cst_68 : f32 to vector<1x64xf32>
    %69 = arith.divf %67, %68 : vector<1x64xf32>
    %70 = vector.broadcast %69 : vector<1x64xf32> to vector<512x64xf32>
    %71 = arith.subf %63, %70 : vector<512x64xf32>
    %72 = arith.mulf %71, %71 : vector<512x64xf32>
    %cst_69 = arith.constant dense<0.000000e+00> : vector<64xf32>
    %73 = vector.multi_reduction <add>, %72, %cst_69 [0] : vector<512x64xf32> to vector<64xf32>
    %74 = vector.shape_cast %73 : vector<64xf32> to vector<1x64xf32>
    %cst_70 = arith.constant 5.120000e+02 : f32
    %75 = vector.broadcast %cst_70 : f32 to vector<1x64xf32>
    %76 = arith.divf %74, %75 : vector<1x64xf32>
    %77 = vector.broadcast %69 : vector<1x64xf32> to vector<512x64xf32>
    %78 = arith.subf %63, %77 : vector<512x64xf32>
    %cst_71 = arith.constant 9.99999974E-6 : f32
    %79 = vector.broadcast %cst_71 : f32 to vector<1x64xf32>
    %80 = arith.addf %76, %79 : vector<1x64xf32>
    %81 = math.rsqrt %80 : vector<1x64xf32>
    %82 = vector.broadcast %81 : vector<1x64xf32> to vector<512x64xf32>
    %83 = arith.mulf %78, %82 : vector<512x64xf32>
    %84 = vector.broadcast %64 : vector<1x64xf32> to vector<512x64xf32>
    %85 = arith.mulf %83, %84 : vector<512x64xf32>
    %86 = vector.broadcast %65 : vector<1x64xf32> to vector<512x64xf32>
    %87 = arith.addf %85, %86 : vector<512x64xf32>
    %cst_72 = arith.constant 0.000000e+00 : f32
    %88 = vector.broadcast %cst_72 : f32 to vector<512x64xf32>
    %89 = arith.cmpf ogt, %87, %88 : vector<512x64xf32>
    %cst_73 = arith.constant 0.000000e+00 : f32
    %90 = vector.broadcast %cst_73 : f32 to vector<512x64xf32>
    %91 = arith.minimumf %87, %90 : vector<512x64xf32>
    %92 = math.exp %91 : vector<512x64xf32>
    %cst_74 = arith.constant 1.000000e+00 : f32
    %93 = vector.broadcast %cst_74 : f32 to vector<512x64xf32>
    %94 = arith.subf %92, %93 : vector<512x64xf32>
    %95 = arith.select %89, %87, %94 : vector<512x64xi1>, vector<512x64xf32>
    %96 = vector.shape_cast %95 : vector<512x64xf32> to vector<16x2x16x64xf32>
    %97 = vector.extract_strided_slice %96 {offsets = [0, 0, 0, 0], sizes = [16, 1, 16, 64], strides = [1, 1, 1, 1]} : vector<16x2x16x64xf32> to vector<16x1x16x64xf32>
    %98 = vector.shape_cast %97 : vector<16x1x16x64xf32> to vector<16x16x64xf32>
    %99 = vector.extract_strided_slice %96 {offsets = [0, 1, 0, 0], sizes = [16, 1, 16, 64], strides = [1, 1, 1, 1]} : vector<16x2x16x64xf32> to vector<16x1x16x64xf32>
    %100 = vector.shape_cast %99 : vector<16x1x16x64xf32> to vector<16x16x64xf32>
    %101 = arith.maximumf %98, %100 : vector<16x16x64xf32>
    %c0_75 = arith.constant 0 : index
    %c0_76 = arith.constant 0 : index
    %c0_77 = arith.constant 0 : index
    %102 = vector.load %arg8[%c0_75, %c0_76, %c0_77] : memref<16x16x64xf32, #tpu.memory_space<vmem>>, vector<16x16x64xf32>
    tpu.vector_store %arg8[%c0_75, %c0_76, %c0_77], %101 {strides = array<i32>} : memref<16x16x64xf32, #tpu.memory_space<vmem>>, vector<16x16x64xf32>,
    %c0_78 = arith.constant 0 : index
    %c0_79 = arith.constant 0 : index
    %c0_80 = arith.constant 0 : index
    %103 = tpu.strided_load %arg8[%c0_78, %c0_79, %c0_80] {strides = array<i32: 1, 2, 1>} : memref<16x16x64xf32, #tpu.memory_space<vmem>>, vector<16x8x64xf32>
    %c0_81 = arith.constant 0 : index
    %c1_82 = arith.constant 1 : index
    %c0_83 = arith.constant 0 : index
    %104 = tpu.strided_load %arg8[%c0_81, %c1_82, %c0_83] {strides = array<i32: 1, 2, 1>} : memref<16x16x64xf32, #tpu.memory_space<vmem>>, vector<16x8x64xf32>
    %105 = arith.maximumf %103, %104 : vector<16x8x64xf32>
    %cst_84 = arith.constant 0.000000e+00 : f32
    %106 = vector.broadcast %cst_84 : f32 to vector<2x10x10x64xf32>
    %c0_85 = arith.constant 0 : index
    %c0_86 = arith.constant 0 : index
    %c0_87 = arith.constant 0 : index
    %c0_88 = arith.constant 0 : index
    %107 = vector.load %arg9[%c0_85, %c0_86, %c0_87, %c0_88] : memref<2x10x10x64xf32, #tpu.memory_space<vmem>>, vector<2x10x10x64xf32>
    tpu.vector_store %arg9[%c0_85, %c0_86, %c0_87, %c0_88], %106 {strides = array<i32>} : memref<2x10x10x64xf32, #tpu.memory_space<vmem>>, vector<2x10x10x64xf32>,
    %108 = vector.shape_cast %105 : vector<16x8x64xf32> to vector<2x8x8x64xf32>
    %c0_89 = arith.constant 0 : index
    %c1_90 = arith.constant 1 : index
    %c1_91 = arith.constant 1 : index
    %c0_92 = arith.constant 0 : index
    %109 = vector.load %arg9[%c0_89, %c1_90, %c1_91, %c0_92] : memref<2x10x10x64xf32, #tpu.memory_space<vmem>>, vector<2x8x8x64xf32>
    tpu.vector_store %arg9[%c0_89, %c1_90, %c1_91, %c0_92], %108 {strides = array<i32>} : memref<2x10x10x64xf32, #tpu.memory_space<vmem>>, vector<2x8x8x64xf32>,
    %cst_93 = arith.constant 0.000000e+00 : f32
    %110 = vector.broadcast %cst_93 : f32 to vector<128x64xf32>
    %c0_94 = arith.constant 0 : index
    %c0_95 = arith.constant 0 : index
    %c0_96 = arith.constant 0 : index
    %c0_97 = arith.constant 0 : index
    %111 = vector.load %arg9[%c0_94, %c0_95, %c0_96, %c0_97] : memref<2x10x10x64xf32, #tpu.memory_space<vmem>>, vector<2x8x8x64xf32>
    %112 = vector.shape_cast %111 : vector<2x8x8x64xf32> to vector<128x64xf32>
    %113 = arith.truncf %112 : vector<128x64xf32> to vector<128x64xbf16>
    %c0_98 = arith.constant 0 : index
    %c0_99 = arith.constant 0 : index
    %c0_100 = arith.constant 0 : index
    %114 = vector.load %arg4[%c0_98, %c0_99, %c0_100] : memref<9x64x64xbf16, #tpu.memory_space<vmem>>, vector<1x64x64xbf16>
    %115 = vector.shape_cast %114 : vector<1x64x64xbf16> to vector<64x64xbf16>
    %cst_101 = arith.constant dense<0.000000e+00> : vector<128x64xf32>
    %116 = tpu.matmul %113, %115, %cst_101 {dimension_numbers = #tpu.dot_dimension_numbers<[1], [0], [0], [1], [0, 0, 1, 1], [], []>} : vector<128x64xbf16>, vector<64x64xbf16>, vector<128x64xf32> -> vector<128x64xf32>
    %117 = arith.addf %110, %116 : vector<128x64xf32>
    %c0_102 = arith.constant 0 : index
    %c0_103 = arith.constant 0 : index
    %c1_104 = arith.constant 1 : index
    %c0_105 = arith.constant 0 : index
    %118 = vector.load %arg9[%c0_102, %c0_103, %c1_104, %c0_105] : memref<2x10x10x64xf32, #tpu.memory_space<vmem>>, vector<2x8x8x64xf32>
    %119 = vector.shape_cast %118 : vector<2x8x8x64xf32> to vector<128x64xf32>
    %120 = arith.truncf %119 : vector<128x64xf32> to vector<128x64xbf16>
    %c1_106 = arith.constant 1 : index
    %c0_107 = arith.constant 0 : index
    %c0_108 = arith.constant 0 : index
    %121 = vector.load %arg4[%c1_106, %c0_107, %c0_108] : memref<9x64x64xbf16, #tpu.memory_space<vmem>>, vector<1x64x64xbf16>
    %122 = vector.shape_cast %121 : vector<1x64x64xbf16> to vector<64x64xbf16>
    %cst_109 = arith.constant dense<0.000000e+00> : vector<128x64xf32>
    %123 = tpu.matmul %120, %122, %cst_109 {dimension_numbers = #tpu.dot_dimension_numbers<[1], [0], [0], [1], [0, 0, 1, 1], [], []>} : vector<128x64xbf16>, vector<64x64xbf16>, vector<128x64xf32> -> vector<128x64xf32>
    %124 = arith.addf %117, %123 : vector<128x64xf32>
    %c0_110 = arith.constant 0 : index
    %c0_111 = arith.constant 0 : index
    %c2_112 = arith.constant 2 : index
    %c0_113 = arith.constant 0 : index
    %125 = vector.load %arg9[%c0_110, %c0_111, %c2_112, %c0_113] : memref<2x10x10x64xf32, #tpu.memory_space<vmem>>, vector<2x8x8x64xf32>
    %126 = vector.shape_cast %125 : vector<2x8x8x64xf32> to vector<128x64xf32>
    %127 = arith.truncf %126 : vector<128x64xf32> to vector<128x64xbf16>
    %c2_114 = arith.constant 2 : index
    %c0_115 = arith.constant 0 : index
    %c0_116 = arith.constant 0 : index
    %128 = vector.load %arg4[%c2_114, %c0_115, %c0_116] : memref<9x64x64xbf16, #tpu.memory_space<vmem>>, vector<1x64x64xbf16>
    %129 = vector.shape_cast %128 : vector<1x64x64xbf16> to vector<64x64xbf16>
    %cst_117 = arith.constant dense<0.000000e+00> : vector<128x64xf32>
    %130 = tpu.matmul %127, %129, %cst_117 {dimension_numbers = #tpu.dot_dimension_numbers<[1], [0], [0], [1], [0, 0, 1, 1], [], []>} : vector<128x64xbf16>, vector<64x64xbf16>, vector<128x64xf32> -> vector<128x64xf32>
    %131 = arith.addf %124, %130 : vector<128x64xf32>
    %c0_118 = arith.constant 0 : index
    %c1_119 = arith.constant 1 : index
    %c0_120 = arith.constant 0 : index
    %c0_121 = arith.constant 0 : index
    %132 = vector.load %arg9[%c0_118, %c1_119, %c0_120, %c0_121] : memref<2x10x10x64xf32, #tpu.memory_space<vmem>>, vector<2x8x8x64xf32>
    %133 = vector.shape_cast %132 : vector<2x8x8x64xf32> to vector<128x64xf32>
    %134 = arith.truncf %133 : vector<128x64xf32> to vector<128x64xbf16>
    %c3_122 = arith.constant 3 : index
    %c0_123 = arith.constant 0 : index
    %c0_124 = arith.constant 0 : index
    %135 = vector.load %arg4[%c3_122, %c0_123, %c0_124] : memref<9x64x64xbf16, #tpu.memory_space<vmem>>, vector<1x64x64xbf16>
    %136 = vector.shape_cast %135 : vector<1x64x64xbf16> to vector<64x64xbf16>
    %cst_125 = arith.constant dense<0.000000e+00> : vector<128x64xf32>
    %137 = tpu.matmul %134, %136, %cst_125 {dimension_numbers = #tpu.dot_dimension_numbers<[1], [0], [0], [1], [0, 0, 1, 1], [], []>} : vector<128x64xbf16>, vector<64x64xbf16>, vector<128x64xf32> -> vector<128x64xf32>
    %138 = arith.addf %131, %137 : vector<128x64xf32>
    %c0_126 = arith.constant 0 : index
    %c1_127 = arith.constant 1 : index
    %c1_128 = arith.constant 1 : index
    %c0_129 = arith.constant 0 : index
    %139 = vector.load %arg9[%c0_126, %c1_127, %c1_128, %c0_129] : memref<2x10x10x64xf32, #tpu.memory_space<vmem>>, vector<2x8x8x64xf32>
    %140 = vector.shape_cast %139 : vector<2x8x8x64xf32> to vector<128x64xf32>
    %141 = arith.truncf %140 : vector<128x64xf32> to vector<128x64xbf16>
    %c4_130 = arith.constant 4 : index
    %c0_131 = arith.constant 0 : index
    %c0_132 = arith.constant 0 : index
    %142 = vector.load %arg4[%c4_130, %c0_131, %c0_132] : memref<9x64x64xbf16, #tpu.memory_space<vmem>>, vector<1x64x64xbf16>
    %143 = vector.shape_cast %142 : vector<1x64x64xbf16> to vector<64x64xbf16>
    %cst_133 = arith.constant dense<0.000000e+00> : vector<128x64xf32>
    %144 = tpu.matmul %141, %143, %cst_133 {dimension_numbers = #tpu.dot_dimension_numbers<[1], [0], [0], [1], [0, 0, 1, 1], [], []>} : vector<128x64xbf16>, vector<64x64xbf16>, vector<128x64xf32> -> vector<128x64xf32>
    %145 = arith.addf %138, %144 : vector<128x64xf32>
    %c0_134 = arith.constant 0 : index
    %c1_135 = arith.constant 1 : index
    %c2_136 = arith.constant 2 : index
    %c0_137 = arith.constant 0 : index
    %146 = vector.load %arg9[%c0_134, %c1_135, %c2_136, %c0_137] : memref<2x10x10x64xf32, #tpu.memory_space<vmem>>, vector<2x8x8x64xf32>
    %147 = vector.shape_cast %146 : vector<2x8x8x64xf32> to vector<128x64xf32>
    %148 = arith.truncf %147 : vector<128x64xf32> to vector<128x64xbf16>
    %c5_138 = arith.constant 5 : index
    %c0_139 = arith.constant 0 : index
    %c0_140 = arith.constant 0 : index
    %149 = vector.load %arg4[%c5_138, %c0_139, %c0_140] : memref<9x64x64xbf16, #tpu.memory_space<vmem>>, vector<1x64x64xbf16>
    %150 = vector.shape_cast %149 : vector<1x64x64xbf16> to vector<64x64xbf16>
    %cst_141 = arith.constant dense<0.000000e+00> : vector<128x64xf32>
    %151 = tpu.matmul %148, %150, %cst_141 {dimension_numbers = #tpu.dot_dimension_numbers<[1], [0], [0], [1], [0, 0, 1, 1], [], []>} : vector<128x64xbf16>, vector<64x64xbf16>, vector<128x64xf32> -> vector<128x64xf32>
    %152 = arith.addf %145, %151 : vector<128x64xf32>
    %c0_142 = arith.constant 0 : index
    %c2_143 = arith.constant 2 : index
    %c0_144 = arith.constant 0 : index
    %c0_145 = arith.constant 0 : index
    %153 = vector.load %arg9[%c0_142, %c2_143, %c0_144, %c0_145] : memref<2x10x10x64xf32, #tpu.memory_space<vmem>>, vector<2x8x8x64xf32>
    %154 = vector.shape_cast %153 : vector<2x8x8x64xf32> to vector<128x64xf32>
    %155 = arith.truncf %154 : vector<128x64xf32> to vector<128x64xbf16>
    %c6_146 = arith.constant 6 : index
    %c0_147 = arith.constant 0 : index
    %c0_148 = arith.constant 0 : index
    %156 = vector.load %arg4[%c6_146, %c0_147, %c0_148] : memref<9x64x64xbf16, #tpu.memory_space<vmem>>, vector<1x64x64xbf16>
    %157 = vector.shape_cast %156 : vector<1x64x64xbf16> to vector<64x64xbf16>
    %cst_149 = arith.constant dense<0.000000e+00> : vector<128x64xf32>
    %158 = tpu.matmul %155, %157, %cst_149 {dimension_numbers = #tpu.dot_dimension_numbers<[1], [0], [0], [1], [0, 0, 1, 1], [], []>} : vector<128x64xbf16>, vector<64x64xbf16>, vector<128x64xf32> -> vector<128x64xf32>
    %159 = arith.addf %152, %158 : vector<128x64xf32>
    %c0_150 = arith.constant 0 : index
    %c2_151 = arith.constant 2 : index
    %c1_152 = arith.constant 1 : index
    %c0_153 = arith.constant 0 : index
    %160 = vector.load %arg9[%c0_150, %c2_151, %c1_152, %c0_153] : memref<2x10x10x64xf32, #tpu.memory_space<vmem>>, vector<2x8x8x64xf32>
    %161 = vector.shape_cast %160 : vector<2x8x8x64xf32> to vector<128x64xf32>
    %162 = arith.truncf %161 : vector<128x64xf32> to vector<128x64xbf16>
    %c7_154 = arith.constant 7 : index
    %c0_155 = arith.constant 0 : index
    %c0_156 = arith.constant 0 : index
    %163 = vector.load %arg4[%c7_154, %c0_155, %c0_156] : memref<9x64x64xbf16, #tpu.memory_space<vmem>>, vector<1x64x64xbf16>
    %164 = vector.shape_cast %163 : vector<1x64x64xbf16> to vector<64x64xbf16>
    %cst_157 = arith.constant dense<0.000000e+00> : vector<128x64xf32>
    %165 = tpu.matmul %162, %164, %cst_157 {dimension_numbers = #tpu.dot_dimension_numbers<[1], [0], [0], [1], [0, 0, 1, 1], [], []>} : vector<128x64xbf16>, vector<64x64xbf16>, vector<128x64xf32> -> vector<128x64xf32>
    %166 = arith.addf %159, %165 : vector<128x64xf32>
    %c0_158 = arith.constant 0 : index
    %c2_159 = arith.constant 2 : index
    %c2_160 = arith.constant 2 : index
    %c0_161 = arith.constant 0 : index
    %167 = vector.load %arg9[%c0_158, %c2_159, %c2_160, %c0_161] : memref<2x10x10x64xf32, #tpu.memory_space<vmem>>, vector<2x8x8x64xf32>
    %168 = vector.shape_cast %167 : vector<2x8x8x64xf32> to vector<128x64xf32>
    %169 = arith.truncf %168 : vector<128x64xf32> to vector<128x64xbf16>
    %c8_162 = arith.constant 8 : index
    %c0_163 = arith.constant 0 : index
    %c0_164 = arith.constant 0 : index
    %170 = vector.load %arg4[%c8_162, %c0_163, %c0_164] : memref<9x64x64xbf16, #tpu.memory_space<vmem>>, vector<1x64x64xbf16>
    %171 = vector.shape_cast %170 : vector<1x64x64xbf16> to vector<64x64xbf16>
    %cst_165 = arith.constant dense<0.000000e+00> : vector<128x64xf32>
    %172 = tpu.matmul %169, %171, %cst_165 {dimension_numbers = #tpu.dot_dimension_numbers<[1], [0], [0], [1], [0, 0, 1, 1], [], []>} : vector<128x64xbf16>, vector<64x64xbf16>, vector<128x64xf32> -> vector<128x64xf32>
    %173 = arith.addf %166, %172 : vector<128x64xf32>
    %c0_166 = arith.constant 0 : index
    %c0_167 = arith.constant 0 : index
    %174 = vector.load %arg5[%c0_166, %c0_167] : memref<1x64xf32, #tpu.memory_space<vmem>>, vector<1x64xf32>
    %c0_168 = arith.constant 0 : index
    %c0_169 = arith.constant 0 : index
    %175 = vector.load %arg6[%c0_168, %c0_169] : memref<1x64xf32, #tpu.memory_space<vmem>>, vector<1x64xf32>
    %cst_170 = arith.constant dense<0.000000e+00> : vector<64xf32>
    %176 = vector.multi_reduction <add>, %173, %cst_170 [0] : vector<128x64xf32> to vector<64xf32>
    %177 = vector.shape_cast %176 : vector<64xf32> to vector<1x64xf32>
    %cst_171 = arith.constant 1.280000e+02 : f32
    %178 = vector.broadcast %cst_171 : f32 to vector<1x64xf32>
    %179 = arith.divf %177, %178 : vector<1x64xf32>
    %180 = vector.broadcast %179 : vector<1x64xf32> to vector<128x64xf32>
    %181 = arith.subf %173, %180 : vector<128x64xf32>
    %182 = arith.mulf %181, %181 : vector<128x64xf32>
    %cst_172 = arith.constant dense<0.000000e+00> : vector<64xf32>
    %183 = vector.multi_reduction <add>, %182, %cst_172 [0] : vector<128x64xf32> to vector<64xf32>
    %184 = vector.shape_cast %183 : vector<64xf32> to vector<1x64xf32>
    %cst_173 = arith.constant 1.280000e+02 : f32
    %185 = vector.broadcast %cst_173 : f32 to vector<1x64xf32>
    %186 = arith.divf %184, %185 : vector<1x64xf32>
    %187 = vector.broadcast %179 : vector<1x64xf32> to vector<128x64xf32>
    %188 = arith.subf %173, %187 : vector<128x64xf32>
    %cst_174 = arith.constant 9.99999974E-6 : f32
    %189 = vector.broadcast %cst_174 : f32 to vector<1x64xf32>
    %190 = arith.addf %186, %189 : vector<1x64xf32>
    %191 = math.rsqrt %190 : vector<1x64xf32>
    %192 = vector.broadcast %191 : vector<1x64xf32> to vector<128x64xf32>
    %193 = arith.mulf %188, %192 : vector<128x64xf32>
    %194 = vector.broadcast %174 : vector<1x64xf32> to vector<128x64xf32>
    %195 = arith.mulf %193, %194 : vector<128x64xf32>
    %196 = vector.broadcast %175 : vector<1x64xf32> to vector<128x64xf32>
    %197 = arith.addf %195, %196 : vector<128x64xf32>
    %cst_175 = arith.constant 0.000000e+00 : f32
    %198 = vector.broadcast %cst_175 : f32 to vector<128x64xf32>
    %199 = arith.cmpf ogt, %197, %198 : vector<128x64xf32>
    %cst_176 = arith.constant 0.000000e+00 : f32
    %200 = vector.broadcast %cst_176 : f32 to vector<128x64xf32>
    %201 = arith.minimumf %197, %200 : vector<128x64xf32>
    %202 = math.exp %201 : vector<128x64xf32>
    %cst_177 = arith.constant 1.000000e+00 : f32
    %203 = vector.broadcast %cst_177 : f32 to vector<128x64xf32>
    %204 = arith.subf %202, %203 : vector<128x64xf32>
    %205 = arith.select %199, %197, %204 : vector<128x64xi1>, vector<128x64xf32>
    %206 = vector.shape_cast %205 : vector<128x64xf32> to vector<2x8x8x64xf32>
    %c0_178 = arith.constant 0 : index
    %c0_179 = arith.constant 0 : index
    %c0_180 = arith.constant 0 : index
    %c0_181 = arith.constant 0 : index
    %207 = vector.load %arg7[%c0_178, %c0_179, %c0_180, %c0_181] : memref<2x8x8x64xf32, #tpu.memory_space<vmem>>, vector<2x8x8x64xf32>
    tpu.vector_store %arg7[%c0_178, %c0_179, %c0_180, %c0_181], %206 {strides = array<i32>} : memref<2x8x8x64xf32, #tpu.memory_space<vmem>>, vector<2x8x8x64xf32>,
    return
  }
}

module attributes {stable_mosaic.version = 11 : i64} {
  func.func @linear_kernel(%arg0: memref<2x4096xf32, #tpu.memory_space<vmem>>, %arg1: memref<4096x10xbf16, #tpu.memory_space<vmem>>, %arg2: memref<1x10xf32, #tpu.memory_space<vmem>>, %arg3: memref<2x10xf32, #tpu.memory_space<vmem>>) attributes {dimension_semantics = [], scalar_prefetch = 0 : i64, scratch_operands = 0 : i64, tpu.core_type = #tpu.core_type<tc>} {
    %c0 = arith.constant 0 : index
    %c0_0 = arith.constant 0 : index
    %0 = vector.load %arg0[%c0, %c0_0] : memref<2x4096xf32, #tpu.memory_space<vmem>>, vector<2x4096xf32>
    %1 = arith.truncf %0 : vector<2x4096xf32> to vector<2x4096xbf16>
    %c0_1 = arith.constant 0 : index
    %c0_2 = arith.constant 0 : index
    %2 = vector.load %arg1[%c0_1, %c0_2] : memref<4096x10xbf16, #tpu.memory_space<vmem>>, vector<4096x10xbf16>
    %cst = arith.constant dense<0.000000e+00> : vector<2x10xf32>
    %3 = tpu.matmul %1, %2, %cst {dimension_numbers = #tpu.dot_dimension_numbers<[1], [0], [0], [1], [0, 0, 1, 1], [], []>} : vector<2x4096xbf16>, vector<4096x10xbf16>, vector<2x10xf32> -> vector<2x10xf32>
    %c0_3 = arith.constant 0 : index
    %c0_4 = arith.constant 0 : index
    %4 = vector.load %arg2[%c0_3, %c0_4] : memref<1x10xf32, #tpu.memory_space<vmem>>, vector<1x10xf32>
    %5 = vector.broadcast %4 : vector<1x10xf32> to vector<2x10xf32>
    %6 = arith.addf %3, %5 : vector<2x10xf32>
    %c0_5 = arith.constant 0 : index
    %c0_6 = arith.constant 0 : index
    %7 = vector.load %arg3[%c0_5, %c0_6] : memref<2x10xf32, #tpu.memory_space<vmem>>, vector<2x10xf32>
    tpu.vector_store %arg3[%c0_5, %c0_6], %6 {strides = array<i32>} : memref<2x10xf32, #tpu.memory_space<vmem>>, vector<2x10xf32>,
    return
  }
}

</mosaic_0001>

<llo_original>
// kernel: net_forward.3
$region0: #{net_forward.3}
  #allocation0 [shape = 'u32[]', space=smem, size = 0x4, offset = 0x4, fixed_abs, tag = 'smem constant byte address 0x4 - core index']
  #allocation1 [shape = 'u32[144,128]{1,0:T(1,128)}', space=vmem, size = 0x12000, scoped, tag = 'internal scratch']
  %s0 = inlined_call_operand.vmem [shape: f32[2,4096], index: 0, kind: input, shape index: {}]
  %s1 = inlined_call_operand.vmem [shape: bf16[4096,10], index: 1, kind: input, shape index: {}]
  %s2 = inlined_call_operand.vmem [shape: f32[1,10], index: 2, kind: input, shape index: {}]
  %s3 = inlined_call_operand.hbm [shape: f32[2,10], index: 3, kind: output, shape index: {}]
  %s4 = sld [smem:[#allocation0]]
  $region22: #{net_forward.3} parent=0
    _
  %s6 = ssub.s32 1, %s4
  %s7 = scalar_select 0, %s6, %s4
  $region1: #{net_forward.3} parent=0
    #allocation2 [shape = 'u8[1024]{0}', space=vmem, size = 0x400, scoped, tag = 'output window, operand 0, single buffered']
    #allocation3 [shape = 's32[1]{0}', space=sflag, size = 0x4, scoped, tag = 'scoped memory for net_forward.3']
    %8 = vsyncpa [#allocation3], 0
    // Predicated region
    $region2: #{net_forward.3} parent=1 // pred_check
      _
    $region3: #{net_forward.3} parent=1 // pred_check_branch
      %10 = sbr.rel (0) target = $region5
    $region4: #{net_forward.3} parent=1 // pred_region
      _
    $region5: #{net_forward.3} parent=1 // pred_fallthru
      _
    // Predicated region
    $region6: #{net_forward.3} parent=1 // pred_check
      _
    $region7: #{net_forward.3} parent=1 // pred_check_branch
      %12 = sbr.rel (0) target = $region9
    $region8: #{net_forward.3} parent=1 // pred_region
      _
    $region9: #{net_forward.3} parent=1 // pred_fallthru
      _
    // Predicated region
    $region10: #{net_forward.3} parent=1 // pred_check
      _
    $region11: #{net_forward.3} parent=1 // pred_check_branch
      %14 = sbr.rel (0) target = $region13
    $region12: #{net_forward.3} parent=1 // pred_region
      _
    $region13: #{net_forward.3} parent=1 // pred_fallthru
      _
    %v16 = vld [vmem:[%s0] sm:$0xff]
    %v17 = vld [vmem:[%s0 + $0x8] sm:$0xff]
    %v18 = vld [vmem:[%s0 + $0x10] sm:$0xff]
    %v19 = vld [vmem:[%s0 + $0x18] sm:$0xff]
    %v20 = vld [vmem:[%s0 + $0x20] sm:$0xff]
    %v21 = vld [vmem:[%s0 + $0x28] sm:$0xff]
    %v22 = vld [vmem:[%s0 + $0x30] sm:$0xff]
    %v23 = vld [vmem:[%s0 + $0x38] sm:$0xff]
    %v32 = vcombine.high %v16, %v16
    %v34 = vunpack.c.l.s4 1983009808
    %v35 = vunpack.c.0.s8 %v34
    %v36 = vlaneseq
    %v37 = vshrl.u32 %v36, 7
    %v38 = vsub.s32 %v35, %v37
    %v39 = vrot.slane %v16, %v38
    %v41 = vunpack.c.l.s4 1983009808
    %v42 = vunpack.c.0.s8 %v41
    %v43 = vlaneseq
    %v44 = vshrl.u32 %v43, 7
    %v45 = vsub.s32 %v42, %v44
    %v46 = vrot.slane %v32, %v45
    %v47 = vcombine.high %v39, %v39
    %v48 = vcombine.high %v46, %v46
    %v49 = vcombine.high %v17, %v17
    %v51 = vunpack.c.l.s4 1983009808
    %v52 = vunpack.c.0.s8 %v51
    %v53 = vlaneseq
    %v54 = vshrl.u32 %v53, 7
    %v55 = vsub.s32 %v52, %v54
    %v56 = vrot.slane %v17, %v55
    %v58 = vunpack.c.l.s4 1983009808
    %v59 = vunpack.c.0.s8 %v58
    %v60 = vlaneseq
    %v61 = vshrl.u32 %v60, 7
    %v62 = vsub.s32 %v59, %v61
    %v63 = vrot.slane %v49, %v62
    %v64 = vcombine.high %v56, %v56
    %v65 = vcombine.high %v63, %v63
    %v66 = vcombine.high %v18, %v18
    %v68 = vunpack.c.l.s4 1983009808
    %v69 = vunpack.c.0.s8 %v68
    %v70 = vlaneseq
    %v71 = vshrl.u32 %v70, 7
    %v72 = vsub.s32 %v69, %v71
    %v73 = vrot.slane %v18, %v72
    %v75 = vunpack.c.l.s4 1983009808
    %v76 = vunpack.c.0.s8 %v75
    %v77 = vlaneseq
    %v78 = vshrl.u32 %v77, 7
    %v79 = vsub.s32 %v76, %v78
    %v80 = vrot.slane %v66, %v79
    %v81 = vcombine.high %v73, %v73
    %v82 = vcombine.high %v80, %v80
    %v83 = vcombine.high %v19, %v19
    %v85 = vunpack.c.l.s4 1983009808
    %v86 = vunpack.c.0.s8 %v85
    %v87 = vlaneseq
    %v88 = vshrl.u32 %v87, 7
    %v89 = vsub.s32 %v86, %v88
    %v90 = vrot.slane %v19, %v89
    %v92 = vunpack.c.l.s4 1983009808
    %v93 = vunpack.c.0.s8 %v92
    %v94 = vlaneseq
    %v95 = vshrl.u32 %v94, 7
    %v96 = vsub.s32 %v93, %v95
    %v97 = vrot.slane %v83, %v96
    %v98 = vcombine.high %v90, %v90
    %v99 = vcombine.high %v97, %v97
    %v100 = vcombine.high %v20, %v20
    %v102 = vunpack.c.l.s4 1983009808
    %v103 = vunpack.c.0.s8 %v102
    %v104 = vlaneseq
    %v105 = vshrl.u32 %v104, 7
    %v106 = vsub.s32 %v103, %v105
    %v107 = vrot.slane %v20, %v106
    %v109 = vunpack.c.l.s4 1983009808
    %v110 = vunpack.c.0.s8 %v109
    %v111 = vlaneseq
    %v112 = vshrl.u32 %v111, 7
    %v113 = vsub.s32 %v110, %v112
    %v114 = vrot.slane %v100, %v113
    %v115 = vcombine.high %v107, %v107
    %v116 = vcombine.high %v114, %v114
    %v117 = vcombine.high %v21, %v21
    %v119 = vunpack.c.l.s4 1983009808
    %v120 = vunpack.c.0.s8 %v119
    %v121 = vlaneseq
    %v122 = vshrl.u32 %v121, 7
    %v123 = vsub.s32 %v120, %v122
    %v124 = vrot.slane %v21, %v123
    %v126 = vunpack.c.l.s4 1983009808
    %v127 = vunpack.c.0.s8 %v126
    %v128 = vlaneseq
    %v129 = vshrl.u32 %v128, 7
    %v130 = vsub.s32 %v127, %v129
    %v131 = vrot.slane %v117, %v130
    %v132 = vcombine.high %v124, %v124
    %v133 = vcombine.high %v131, %v131
    %v134 = vcombine.high %v22, %v22
    %v136 = vunpack.c.l.s4 1983009808
    %v137 = vunpack.c.0.s8 %v136
    %v138 = vlaneseq
    %v139 = vshrl.u32 %v138, 7
    %v140 = vsub.s32 %v137, %v139
    %v141 = vrot.slane %v22, %v140
    %v143 = vunpack.c.l.s4 1983009808
    %v144 = vunpack.c.0.s8 %v143
    %v145 = vlaneseq
    %v146 = vshrl.u32 %v145, 7
    %v147 = vsub.s32 %v144, %v146
    %v148 = vrot.slane %v134, %v147
    %v149 = vcombine.high %v141, %v141
    %v150 = vcombine.high %v148, %v148
    %v151 = vcombine.high %v23, %v23
    %v153 = vunpack.c.l.s4 1983009808
    %v154 = vunpack.c.0.s8 %v153
    %v155 = vlaneseq
    %v156 = vshrl.u32 %v155, 7
    %v157 = vsub.s32 %v154, %v156
    %v158 = vrot.slane %v23, %v157
    %v160 = vunpack.c.l.s4 1983009808
    %v161 = vunpack.c.0.s8 %v160
    %v162 = vlaneseq
    %v163 = vshrl.u32 %v162, 7
    %v164 = vsub.s32 %v161, %v163
    %v165 = vrot.slane %v151, %v164
    %v166 = vcombine.high %v158, %v158
    %v167 = vcombine.high %v165, %v165
    %v200 = vpack.c.bf16 %v39, %v39
    %v201 = vpack.c.bf16 %v47, %v47
    %v202 = vpack.c.bf16 %v46, %v46
    %v203 = vpack.c.bf16 %v48, %v48
    %v204 = vpack.c.bf16 %v56, %v56
    %v205 = vpack.c.bf16 %v64, %v64
    %v206 = vpack.c.bf16 %v63, %v63
    %v207 = vpack.c.bf16 %v65, %v65
    %v208 = vpack.c.bf16 %v73, %v73
    %v209 = vpack.c.bf16 %v81, %v81
    %v210 = vpack.c.bf16 %v80, %v80
    %v211 = vpack.c.bf16 %v82, %v82
    %v212 = vpack.c.bf16 %v90, %v90
    %v213 = vpack.c.bf16 %v98, %v98
    %v214 = vpack.c.bf16 %v97, %v97
    %v215 = vpack.c.bf16 %v99, %v99
    %v216 = vpack.c.bf16 %v107, %v107
    %v217 = vpack.c.bf16 %v115, %v115
    %v218 = vpack.c.bf16 %v114, %v114
    %v219 = vpack.c.bf16 %v116, %v116
    %v220 = vpack.c.bf16 %v124, %v124
    %v221 = vpack.c.bf16 %v132, %v132
    %v222 = vpack.c.bf16 %v131, %v131
    %v223 = vpack.c.bf16 %v133, %v133
    %v224 = vpack.c.bf16 %v141, %v141
    %v225 = vpack.c.bf16 %v149, %v149
    %v226 = vpack.c.bf16 %v148, %v148
    %v227 = vpack.c.bf16 %v150, %v150
    %v228 = vpack.c.bf16 %v158, %v158
    %v229 = vpack.c.bf16 %v166, %v166
    %v230 = vpack.c.bf16 %v165, %v165
    %v231 = vpack.c.bf16 %v167, %v167
    %v232 = vld [vmem:[%s1] sm:$0xf]
    %v233 = vld [vmem:[%s1 + $0x4] sm:$0xf]
    %v234 = vld [vmem:[%s1 + $0x8] sm:$0xf]
    %v235 = vld [vmem:[%s1 + $0xc] sm:$0xf]
    %v236 = vld [vmem:[%s1 + $0x10] sm:$0xf]
    %v237 = vld [vmem:[%s1 + $0x14] sm:$0xf]
    %v238 = vld [vmem:[%s1 + $0x18] sm:$0xf]
    %v239 = vld [vmem:[%s1 + $0x1c] sm:$0xf]
    %v240 = vld [vmem:[%s1 + $0x20] sm:$0xf]
    %v241 = vld [vmem:[%s1 + $0x24] sm:$0xf]
    %v242 = vld [vmem:[%s1 + $0x28] sm:$0xf]
    %v243 = vld [vmem:[%s1 + $0x2c] sm:$0xf]
    %v244 = vld [vmem:[%s1 + $0x30] sm:$0xf]
    %v245 = vld [vmem:[%s1 + $0x34] sm:$0xf]
    %v246 = vld [vmem:[%s1 + $0x38] sm:$0xf]
    %v247 = vld [vmem:[%s1 + $0x3c] sm:$0xf]
    %v248 = vld [vmem:[%s1 + $0x40] sm:$0xf]
    %v249 = vld [vmem:[%s1 + $0x44] sm:$0xf]
    %v250 = vld [vmem:[%s1 + $0x48] sm:$0xf]
    %v251 = vld [vmem:[%s1 + $0x4c] sm:$0xf]
    %v252 = vld [vmem:[%s1 + $0x50] sm:$0xf]
    %v253 = vld [vmem:[%s1 + $0x54] sm:$0xf]
    %v254 = vld [vmem:[%s1 + $0x58] sm:$0xf]
    %v255 = vld [vmem:[%s1 + $0x5c] sm:$0xf]
    %v256 = vld [vmem:[%s1 + $0x60] sm:$0xf]
    %v257 = vld [vmem:[%s1 + $0x64] sm:$0xf]
    %v258 = vld [vmem:[%s1 + $0x68] sm:$0xf]
    %v259 = vld [vmem:[%s1 + $0x6c] sm:$0xf]
    %v260 = vld [vmem:[%s1 + $0x70] sm:$0xf]
    %v261 = vld [vmem:[%s1 + $0x74] sm:$0xf]
    %v262 = vld [vmem:[%s1 + $0x78] sm:$0xf]
    %v263 = vld [vmem:[%s1 + $0x7c] sm:$0xf]
    %v264 = vld [vmem:[%s1 + $0x80] sm:$0xf]
    %v265 = vld [vmem:[%s1 + $0x84] sm:$0xf]
    %v266 = vld [vmem:[%s1 + $0x88] sm:$0xf]
    %v267 = vld [vmem:[%s1 + $0x8c] sm:$0xf]
    %v268 = vld [vmem:[%s1 + $0x90] sm:$0xf]
    %v269 = vld [vmem:[%s1 + $0x94] sm:$0xf]
    %v270 = vld [vmem:[%s1 + $0x98] sm:$0xf]
    %v271 = vld [vmem:[%s1 + $0x9c] sm:$0xf]
    %v272 = vld [vmem:[%s1 + $0xa0] sm:$0xf]
    %v273 = vld [vmem:[%s1 + $0xa4] sm:$0xf]
    %v274 = vld [vmem:[%s1 + $0xa8] sm:$0xf]
    %v275 = vld [vmem:[%s1 + $0xac] sm:$0xf]
    %v276 = vld [vmem:[%s1 + $0xb0] sm:$0xf]
    %v277 = vld [vmem:[%s1 + $0xb4] sm:$0xf]
    %v278 = vld [vmem:[%s1 + $0xb8] sm:$0xf]
    %v279 = vld [vmem:[%s1 + $0xbc] sm:$0xf]
    %v280 = vld [vmem:[%s1 + $0xc0] sm:$0xf]
    %v281 = vld [vmem:[%s1 + $0xc4] sm:$0xf]
    %v282 = vld [vmem:[%s1 + $0xc8] sm:$0xf]
    %v283 = vld [vmem:[%s1 + $0xcc] sm:$0xf]
    %v284 = vld [vmem:[%s1 + $0xd0] sm:$0xf]
    %v285 = vld [vmem:[%s1 + $0xd4] sm:$0xf]
    %v286 = vld [vmem:[%s1 + $0xd8] sm:$0xf]
    %v287 = vld [vmem:[%s1 + $0xdc] sm:$0xf]
    %v288 = vld [vmem:[%s1 + $0xe0] sm:$0xf]
    %v289 = vld [vmem:[%s1 + $0xe4] sm:$0xf]
    %v290 = vld [vmem:[%s1 + $0xe8] sm:$0xf]
    %v291 = vld [vmem:[%s1 + $0xec] sm:$0xf]
    %v292 = vld [vmem:[%s1 + $0xf0] sm:$0xf]
    %v293 = vld [vmem:[%s1 + $0xf4] sm:$0xf]
    %v294 = vld [vmem:[%s1 + $0xf8] sm:$0xf]
    %v295 = vld [vmem:[%s1 + $0xfc] sm:$0xf]
    %v296 = vld [vmem:[%s1 + $0x100] sm:$0xf]
    %v297 = vld [vmem:[%s1 + $0x104] sm:$0xf]
    %v298 = vld [vmem:[%s1 + $0x108] sm:$0xf]
    %v299 = vld [vmem:[%s1 + $0x10c] sm:$0xf]
    %v300 = vld [vmem:[%s1 + $0x110] sm:$0xf]
    %v301 = vld [vmem:[%s1 + $0x114] sm:$0xf]
    %v302 = vld [vmem:[%s1 + $0x118] sm:$0xf]
    %v303 = vld [vmem:[%s1 + $0x11c] sm:$0xf]
    %v304 = vld [vmem:[%s1 + $0x120] sm:$0xf]
    %v305 = vld [vmem:[%s1 + $0x124] sm:$0xf]
    %v306 = vld [vmem:[%s1 + $0x128] sm:$0xf]
    %v307 = vld [vmem:[%s1 + $0x12c] sm:$0xf]
    %v308 = vld [vmem:[%s1 + $0x130] sm:$0xf]
    %v309 = vld [vmem:[%s1 + $0x134] sm:$0xf]
    %v310 = vld [vmem:[%s1 + $0x138] sm:$0xf]
    %v311 = vld [vmem:[%s1 + $0x13c] sm:$0xf]
    %v312 = vld [vmem:[%s1 + $0x140] sm:$0xf]
    %v313 = vld [vmem:[%s1 + $0x144] sm:$0xf]
    %v314 = vld [vmem:[%s1 + $0x148] sm:$0xf]
    %v315 = vld [vmem:[%s1 + $0x14c] sm:$0xf]
    %v316 = vld [vmem:[%s1 + $0x150] sm:$0xf]
    %v317 = vld [vmem:[%s1 + $0x154] sm:$0xf]
    %v318 = vld [vmem:[%s1 + $0x158] sm:$0xf]
    %v319 = vld [vmem:[%s1 + $0x15c] sm:$0xf]
    %v320 = vld [vmem:[%s1 + $0x160] sm:$0xf]
    %v321 = vld [vmem:[%s1 + $0x164] sm:$0xf]
    %v322 = vld [vmem:[%s1 + $0x168] sm:$0xf]
    %v323 = vld [vmem:[%s1 + $0x16c] sm:$0xf]
    %v324 = vld [vmem:[%s1 + $0x170] sm:$0xf]
    %v325 = vld [vmem:[%s1 + $0x174] sm:$0xf]
    %v326 = vld [vmem:[%s1 + $0x178] sm:$0xf]
    %v327 = vld [vmem:[%s1 + $0x17c] sm:$0xf]
    %v328 = vld [vmem:[%s1 + $0x180] sm:$0xf]
    %v329 = vld [vmem:[%s1 + $0x184] sm:$0xf]
    %v330 = vld [vmem:[%s1 + $0x188] sm:$0xf]
    %v331 = vld [vmem:[%s1 + $0x18c] sm:$0xf]
    %v332 = vld [vmem:[%s1 + $0x190] sm:$0xf]
    %v333 = vld [vmem:[%s1 + $0x194] sm:$0xf]
    %v334 = vld [vmem:[%s1 + $0x198] sm:$0xf]
    %v335 = vld [vmem:[%s1 + $0x19c] sm:$0xf]
    %v336 = vld [vmem:[%s1 + $0x1a0] sm:$0xf]
    %v337 = vld [vmem:[%s1 + $0x1a4] sm:$0xf]
    %v338 = vld [vmem:[%s1 + $0x1a8] sm:$0xf]
    %v339 = vld [vmem:[%s1 + $0x1ac] sm:$0xf]
    %v340 = vld [vmem:[%s1 + $0x1b0] sm:$0xf]
    %v341 = vld [vmem:[%s1 + $0x1b4] sm:$0xf]
    %v342 = vld [vmem:[%s1 + $0x1b8] sm:$0xf]
    %v343 = vld [vmem:[%s1 + $0x1bc] sm:$0xf]
    %v344 = vld [vmem:[%s1 + $0x1c0] sm:$0xf]
    %v345 = vld [vmem:[%s1 + $0x1c4] sm:$0xf]
    %v346 = vld [vmem:[%s1 + $0x1c8] sm:$0xf]
    %v347 = vld [vmem:[%s1 + $0x1cc] sm:$0xf]
    %v348 = vld [vmem:[%s1 + $0x1d0] sm:$0xf]
    %v349 = vld [vmem:[%s1 + $0x1d4] sm:$0xf]
    %v350 = vld [vmem:[%s1 + $0x1d8] sm:$0xf]
    %v351 = vld [vmem:[%s1 + $0x1dc] sm:$0xf]
    %v352 = vld [vmem:[%s1 + $0x1e0] sm:$0xf]
    %v353 = vld [vmem:[%s1 + $0x1e4] sm:$0xf]
    %v354 = vld [vmem:[%s1 + $0x1e8] sm:$0xf]
    %v355 = vld [vmem:[%s1 + $0x1ec] sm:$0xf]
    %v356 = vld [vmem:[%s1 + $0x1f0] sm:$0xf]
    %v357 = vld [vmem:[%s1 + $0x1f4] sm:$0xf]
    %v358 = vld [vmem:[%s1 + $0x1f8] sm:$0xf]
    %v359 = vld [vmem:[%s1 + $0x1fc] sm:$0xf]
    %v360 = vld [vmem:[%s1 + $0x200] sm:$0xf]
    %v361 = vld [vmem:[%s1 + $0x204] sm:$0xf]
    %v362 = vld [vmem:[%s1 + $0x208] sm:$0xf]
    %v363 = vld [vmem:[%s1 + $0x20c] sm:$0xf]
    %v364 = vld [vmem:[%s1 + $0x210] sm:$0xf]
    %v365 = vld [vmem:[%s1 + $0x214] sm:$0xf]
    %v366 = vld [vmem:[%s1 + $0x218] sm:$0xf]
    %v367 = vld [vmem:[%s1 + $0x21c] sm:$0xf]
    %v368 = vld [vmem:[%s1 + $0x220] sm:$0xf]
    %v369 = vld [vmem:[%s1 + $0x224] sm:$0xf]
    %v370 = vld [vmem:[%s1 + $0x228] sm:$0xf]
    %v371 = vld [vmem:[%s1 + $0x22c] sm:$0xf]
    %v372 = vld [vmem:[%s1 + $0x230] sm:$0xf]
    %v373 = vld [vmem:[%s1 + $0x234] sm:$0xf]
    %v374 = vld [vmem:[%s1 + $0x238] sm:$0xf]
    %v375 = vld [vmem:[%s1 + $0x23c] sm:$0xf]
    %v376 = vld [vmem:[%s1 + $0x240] sm:$0xf]
    %v377 = vld [vmem:[%s1 + $0x244] sm:$0xf]
    %v378 = vld [vmem:[%s1 + $0x248] sm:$0xf]
    %v379 = vld [vmem:[%s1 + $0x24c] sm:$0xf]
    %v380 = vld [vmem:[%s1 + $0x250] sm:$0xf]
    %v381 = vld [vmem:[%s1 + $0x254] sm:$0xf]
    %v382 = vld [vmem:[%s1 + $0x258] sm:$0xf]
    %v383 = vld [vmem:[%s1 + $0x25c] sm:$0xf]
    %v384 = vld [vmem:[%s1 + $0x260] sm:$0xf]
    %v385 = vld [vmem:[%s1 + $0x264] sm:$0xf]
    %v386 = vld [vmem:[%s1 + $0x268] sm:$0xf]
    %v387 = vld [vmem:[%s1 + $0x26c] sm:$0xf]
    %v388 = vld [vmem:[%s1 + $0x270] sm:$0xf]
    %v389 = vld [vmem:[%s1 + $0x274] sm:$0xf]
    %v390 = vld [vmem:[%s1 + $0x278] sm:$0xf]
    %v391 = vld [vmem:[%s1 + $0x27c] sm:$0xf]
    %v392 = vld [vmem:[%s1 + $0x280] sm:$0xf]
    %v393 = vld [vmem:[%s1 + $0x284] sm:$0xf]
    %v394 = vld [vmem:[%s1 + $0x288] sm:$0xf]
    %v395 = vld [vmem:[%s1 + $0x28c] sm:$0xf]
    %v396 = vld [vmem:[%s1 + $0x290] sm:$0xf]
    %v397 = vld [vmem:[%s1 + $0x294] sm:$0xf]
    %v398 = vld [vmem:[%s1 + $0x298] sm:$0xf]
    %v399 = vld [vmem:[%s1 + $0x29c] sm:$0xf]
    %v400 = vld [vmem:[%s1 + $0x2a0] sm:$0xf]
    %v401 = vld [vmem:[%s1 + $0x2a4] sm:$0xf]
    %v402 = vld [vmem:[%s1 + $0x2a8] sm:$0xf]
    %v403 = vld [vmem:[%s1 + $0x2ac] sm:$0xf]
    %v404 = vld [vmem:[%s1 + $0x2b0] sm:$0xf]
    %v405 = vld [vmem:[%s1 + $0x2b4] sm:$0xf]
    %v406 = vld [vmem:[%s1 + $0x2b8] sm:$0xf]
    %v407 = vld [vmem:[%s1 + $0x2bc] sm:$0xf]
    %v408 = vld [vmem:[%s1 + $0x2c0] sm:$0xf]
    %v409 = vld [vmem:[%s1 + $0x2c4] sm:$0xf]
    %v410 = vld [vmem:[%s1 + $0x2c8] sm:$0xf]
    %v411 = vld [vmem:[%s1 + $0x2cc] sm:$0xf]
    %v412 = vld [vmem:[%s1 + $0x2d0] sm:$0xf]
    %v413 = vld [vmem:[%s1 + $0x2d4] sm:$0xf]
    %v414 = vld [vmem:[%s1 + $0x2d8] sm:$0xf]
    %v415 = vld [vmem:[%s1 + $0x2dc] sm:$0xf]
    %v416 = vld [vmem:[%s1 + $0x2e0] sm:$0xf]
    %v417 = vld [vmem:[%s1 + $0x2e4] sm:$0xf]
    %v418 = vld [vmem:[%s1 + $0x2e8] sm:$0xf]
    %v419 = vld [vmem:[%s1 + $0x2ec] sm:$0xf]
    %v420 = vld [vmem:[%s1 + $0x2f0] sm:$0xf]
    %v421 = vld [vmem:[%s1 + $0x2f4] sm:$0xf]
    %v422 = vld [vmem:[%s1 + $0x2f8] sm:$0xf]
    %v423 = vld [vmem:[%s1 + $0x2fc] sm:$0xf]
    %v424 = vld [vmem:[%s1 + $0x300] sm:$0xf]
    %v425 = vld [vmem:[%s1 + $0x304] sm:$0xf]
    %v426 = vld [vmem:[%s1 + $0x308] sm:$0xf]
    %v427 = vld [vmem:[%s1 + $0x30c] sm:$0xf]
    %v428 = vld [vmem:[%s1 + $0x310] sm:$0xf]
    %v429 = vld [vmem:[%s1 + $0x314] sm:$0xf]
    %v430 = vld [vmem:[%s1 + $0x318] sm:$0xf]
    %v431 = vld [vmem:[%s1 + $0x31c] sm:$0xf]
    %v432 = vld [vmem:[%s1 + $0x320] sm:$0xf]
    %v433 = vld [vmem:[%s1 + $0x324] sm:$0xf]
    %v434 = vld [vmem:[%s1 + $0x328] sm:$0xf]
    %v435 = vld [vmem:[%s1 + $0x32c] sm:$0xf]
    %v436 = vld [vmem:[%s1 + $0x330] sm:$0xf]
    %v437 = vld [vmem:[%s1 + $0x334] sm:$0xf]
    %v438 = vld [vmem:[%s1 + $0x338] sm:$0xf]
    %v439 = vld [vmem:[%s1 + $0x33c] sm:$0xf]
    %v440 = vld [vmem:[%s1 + $0x340] sm:$0xf]
    %v441 = vld [vmem:[%s1 + $0x344] sm:$0xf]
    %v442 = vld [vmem:[%s1 + $0x348] sm:$0xf]
    %v443 = vld [vmem:[%s1 + $0x34c] sm:$0xf]
    %v444 = vld [vmem:[%s1 + $0x350] sm:$0xf]
    %v445 = vld [vmem:[%s1 + $0x354] sm:$0xf]
    %v446 = vld [vmem:[%s1 + $0x358] sm:$0xf]
    %v447 = vld [vmem:[%s1 + $0x35c] sm:$0xf]
    %v448 = vld [vmem:[%s1 + $0x360] sm:$0xf]
    %v449 = vld [vmem:[%s1 + $0x364] sm:$0xf]
    %v450 = vld [vmem:[%s1 + $0x368] sm:$0xf]
    %v451 = vld [vmem:[%s1 + $0x36c] sm:$0xf]
    %v452 = vld [vmem:[%s1 + $0x370] sm:$0xf]
    %v453 = vld [vmem:[%s1 + $0x374] sm:$0xf]
    %v454 = vld [vmem:[%s1 + $0x378] sm:$0xf]
    %v455 = vld [vmem:[%s1 + $0x37c] sm:$0xf]
    %v456 = vld [vmem:[%s1 + $0x380] sm:$0xf]
    %v457 = vld [vmem:[%s1 + $0x384] sm:$0xf]
    %v458 = vld [vmem:[%s1 + $0x388] sm:$0xf]
    %v459 = vld [vmem:[%s1 + $0x38c] sm:$0xf]
    %v460 = vld [vmem:[%s1 + $0x390] sm:$0xf]
    %v461 = vld [vmem:[%s1 + $0x394] sm:$0xf]
    %v462 = vld [vmem:[%s1 + $0x398] sm:$0xf]
    %v463 = vld [vmem:[%s1 + $0x39c] sm:$0xf]
    %v464 = vld [vmem:[%s1 + $0x3a0] sm:$0xf]
    %v465 = vld [vmem:[%s1 + $0x3a4] sm:$0xf]
    %v466 = vld [vmem:[%s1 + $0x3a8] sm:$0xf]
    %v467 = vld [vmem:[%s1 + $0x3ac] sm:$0xf]
    %v468 = vld [vmem:[%s1 + $0x3b0] sm:$0xf]
    %v469 = vld [vmem:[%s1 + $0x3b4] sm:$0xf]
    %v470 = vld [vmem:[%s1 + $0x3b8] sm:$0xf]
    %v471 = vld [vmem:[%s1 + $0x3bc] sm:$0xf]
    %v472 = vld [vmem:[%s1 + $0x3c0] sm:$0xf]
    %v473 = vld [vmem:[%s1 + $0x3c4] sm:$0xf]
    %v474 = vld [vmem:[%s1 + $0x3c8] sm:$0xf]
    %v475 = vld [vmem:[%s1 + $0x3cc] sm:$0xf]
    %v476 = vld [vmem:[%s1 + $0x3d0] sm:$0xf]
    %v477 = vld [vmem:[%s1 + $0x3d4] sm:$0xf]
    %v478 = vld [vmem:[%s1 + $0x3d8] sm:$0xf]
    %v479 = vld [vmem:[%s1 + $0x3dc] sm:$0xf]
    %v480 = vld [vmem:[%s1 + $0x3e0] sm:$0xf]
    %v481 = vld [vmem:[%s1 + $0x3e4] sm:$0xf]
    %v482 = vld [vmem:[%s1 + $0x3e8] sm:$0xf]
    %v483 = vld [vmem:[%s1 + $0x3ec] sm:$0xf]
    %v484 = vld [vmem:[%s1 + $0x3f0] sm:$0xf]
    %v485 = vld [vmem:[%s1 + $0x3f4] sm:$0xf]
    %v486 = vld [vmem:[%s1 + $0x3f8] sm:$0xf]
    %v487 = vld [vmem:[%s1 + $0x3fc] sm:$0xf]
    %v488 = vld [vmem:[%s1 + $0x400] sm:$0xf]
    %v489 = vld [vmem:[%s1 + $0x404] sm:$0xf]
    %v490 = vld [vmem:[%s1 + $0x408] sm:$0xf]
    %v491 = vld [vmem:[%s1 + $0x40c] sm:$0xf]
    %v492 = vld [vmem:[%s1 + $0x410] sm:$0xf]
    %v493 = vld [vmem:[%s1 + $0x414] sm:$0xf]
    %v494 = vld [vmem:[%s1 + $0x418] sm:$0xf]
    %v495 = vld [vmem:[%s1 + $0x41c] sm:$0xf]
    %v496 = vld [vmem:[%s1 + $0x420] sm:$0xf]
    %v497 = vld [vmem:[%s1 + $0x424] sm:$0xf]
    %v498 = vld [vmem:[%s1 + $0x428] sm:$0xf]
    %v499 = vld [vmem:[%s1 + $0x42c] sm:$0xf]
    %v500 = vld [vmem:[%s1 + $0x430] sm:$0xf]
    %v501 = vld [vmem:[%s1 + $0x434] sm:$0xf]
    %v502 = vld [vmem:[%s1 + $0x438] sm:$0xf]
    %v503 = vld [vmem:[%s1 + $0x43c] sm:$0xf]
    %v504 = vld [vmem:[%s1 + $0x440] sm:$0xf]
    %v505 = vld [vmem:[%s1 + $0x444] sm:$0xf]
    %v506 = vld [vmem:[%s1 + $0x448] sm:$0xf]
    %v507 = vld [vmem:[%s1 + $0x44c] sm:$0xf]
    %v508 = vld [vmem:[%s1 + $0x450] sm:$0xf]
    %v509 = vld [vmem:[%s1 + $0x454] sm:$0xf]
    %v510 = vld [vmem:[%s1 + $0x458] sm:$0xf]
    %v511 = vld [vmem:[%s1 + $0x45c] sm:$0xf]
    %v512 = vld [vmem:[%s1 + $0x460] sm:$0xf]
    %v513 = vld [vmem:[%s1 + $0x464] sm:$0xf]
    %v514 = vld [vmem:[%s1 + $0x468] sm:$0xf]
    %v515 = vld [vmem:[%s1 + $0x46c] sm:$0xf]
    %v516 = vld [vmem:[%s1 + $0x470] sm:$0xf]
    %v517 = vld [vmem:[%s1 + $0x474] sm:$0xf]
    %v518 = vld [vmem:[%s1 + $0x478] sm:$0xf]
    %v519 = vld [vmem:[%s1 + $0x47c] sm:$0xf]
    %v520 = vld [vmem:[%s1 + $0x480] sm:$0xf]
    %v521 = vld [vmem:[%s1 + $0x484] sm:$0xf]
    %v522 = vld [vmem:[%s1 + $0x488] sm:$0xf]
    %v523 = vld [vmem:[%s1 + $0x48c] sm:$0xf]
    %v524 = vld [vmem:[%s1 + $0x490] sm:$0xf]
    %v525 = vld [vmem:[%s1 + $0x494] sm:$0xf]
    %v526 = vld [vmem:[%s1 + $0x498] sm:$0xf]
    %v527 = vld [vmem:[%s1 + $0x49c] sm:$0xf]
    %v528 = vld [vmem:[%s1 + $0x4a0] sm:$0xf]
    %v529 = vld [vmem:[%s1 + $0x4a4] sm:$0xf]
    %v530 = vld [vmem:[%s1 + $0x4a8] sm:$0xf]
    %v531 = vld [vmem:[%s1 + $0x4ac] sm:$0xf]
    %v532 = vld [vmem:[%s1 + $0x4b0] sm:$0xf]
    %v533 = vld [vmem:[%s1 + $0x4b4] sm:$0xf]
    %v534 = vld [vmem:[%s1 + $0x4b8] sm:$0xf]
    %v535 = vld [vmem:[%s1 + $0x4bc] sm:$0xf]
    %v536 = vld [vmem:[%s1 + $0x4c0] sm:$0xf]
    %v537 = vld [vmem:[%s1 + $0x4c4] sm:$0xf]
    %v538 = vld [vmem:[%s1 + $0x4c8] sm:$0xf]
    %v539 = vld [vmem:[%s1 + $0x4cc] sm:$0xf]
    %v540 = vld [vmem:[%s1 + $0x4d0] sm:$0xf]
    %v541 = vld [vmem:[%s1 + $0x4d4] sm:$0xf]
    %v542 = vld [vmem:[%s1 + $0x4d8] sm:$0xf]
    %v543 = vld [vmem:[%s1 + $0x4dc] sm:$0xf]
    %v544 = vld [vmem:[%s1 + $0x4e0] sm:$0xf]
    %v545 = vld [vmem:[%s1 + $0x4e4] sm:$0xf]
    %v546 = vld [vmem:[%s1 + $0x4e8] sm:$0xf]
    %v547 = vld [vmem:[%s1 + $0x4ec] sm:$0xf]
    %v548 = vld [vmem:[%s1 + $0x4f0] sm:$0xf]
    %v549 = vld [vmem:[%s1 + $0x4f4] sm:$0xf]
    %v550 = vld [vmem:[%s1 + $0x4f8] sm:$0xf]
    %v551 = vld [vmem:[%s1 + $0x4fc] sm:$0xf]
    %v552 = vld [vmem:[%s1 + $0x500] sm:$0xf]
    %v553 = vld [vmem:[%s1 + $0x504] sm:$0xf]
    %v554 = vld [vmem:[%s1 + $0x508] sm:$0xf]
    %v555 = vld [vmem:[%s1 + $0x50c] sm:$0xf]
    %v556 = vld [vmem:[%s1 + $0x510] sm:$0xf]
    %v557 = vld [vmem:[%s1 + $0x514] sm:$0xf]
    %v558 = vld [vmem:[%s1 + $0x518] sm:$0xf]
    %v559 = vld [vmem:[%s1 + $0x51c] sm:$0xf]
    %v560 = vld [vmem:[%s1 + $0x520] sm:$0xf]
    %v561 = vld [vmem:[%s1 + $0x524] sm:$0xf]
    %v562 = vld [vmem:[%s1 + $0x528] sm:$0xf]
    %v563 = vld [vmem:[%s1 + $0x52c] sm:$0xf]
    %v564 = vld [vmem:[%s1 + $0x530] sm:$0xf]
    %v565 = vld [vmem:[%s1 + $0x534] sm:$0xf]
    %v566 = vld [vmem:[%s1 + $0x538] sm:$0xf]
    %v567 = vld [vmem:[%s1 + $0x53c] sm:$0xf]
    %v568 = vld [vmem:[%s1 + $0x540] sm:$0xf]
    %v569 = vld [vmem:[%s1 + $0x544] sm:$0xf]
    %v570 = vld [vmem:[%s1 + $0x548] sm:$0xf]
    %v571 = vld [vmem:[%s1 + $0x54c] sm:$0xf]
    %v572 = vld [vmem:[%s1 + $0x550] sm:$0xf]
    %v573 = vld [vmem:[%s1 + $0x554] sm:$0xf]
    %v574 = vld [vmem:[%s1 + $0x558] sm:$0xf]
    %v575 = vld [vmem:[%s1 + $0x55c] sm:$0xf]
    %v576 = vld [vmem:[%s1 + $0x560] sm:$0xf]
    %v577 = vld [vmem:[%s1 + $0x564] sm:$0xf]
    %v578 = vld [vmem:[%s1 + $0x568] sm:$0xf]
    %v579 = vld [vmem:[%s1 + $0x56c] sm:$0xf]
    %v580 = vld [vmem:[%s1 + $0x570] sm:$0xf]
    %v581 = vld [vmem:[%s1 + $0x574] sm:$0xf]
    %v582 = vld [vmem:[%s1 + $0x578] sm:$0xf]
    %v583 = vld [vmem:[%s1 + $0x57c] sm:$0xf]
    %v584 = vld [vmem:[%s1 + $0x580] sm:$0xf]
    %v585 = vld [vmem:[%s1 + $0x584] sm:$0xf]
    %v586 = vld [vmem:[%s1 + $0x588] sm:$0xf]
    %v587 = vld [vmem:[%s1 + $0x58c] sm:$0xf]
    %v588 = vld [vmem:[%s1 + $0x590] sm:$0xf]
    %v589 = vld [vmem:[%s1 + $0x594] sm:$0xf]
    %v590 = vld [vmem:[%s1 + $0x598] sm:$0xf]
    %v591 = vld [vmem:[%s1 + $0x59c] sm:$0xf]
    %v592 = vld [vmem:[%s1 + $0x5a0] sm:$0xf]
    %v593 = vld [vmem:[%s1 + $0x5a4] sm:$0xf]
    %v594 = vld [vmem:[%s1 + $0x5a8] sm:$0xf]
    %v595 = vld [vmem:[%s1 + $0x5ac] sm:$0xf]
    %v596 = vld [vmem:[%s1 + $0x5b0] sm:$0xf]
    %v597 = vld [vmem:[%s1 + $0x5b4] sm:$0xf]
    %v598 = vld [vmem:[%s1 + $0x5b8] sm:$0xf]
    %v599 = vld [vmem:[%s1 + $0x5bc] sm:$0xf]
    %v600 = vld [vmem:[%s1 + $0x5c0] sm:$0xf]
    %v601 = vld [vmem:[%s1 + $0x5c4] sm:$0xf]
    %v602 = vld [vmem:[%s1 + $0x5c8] sm:$0xf]
    %v603 = vld [vmem:[%s1 + $0x5cc] sm:$0xf]
    %v604 = vld [vmem:[%s1 + $0x5d0] sm:$0xf]
    %v605 = vld [vmem:[%s1 + $0x5d4] sm:$0xf]
    %v606 = vld [vmem:[%s1 + $0x5d8] sm:$0xf]
    %v607 = vld [vmem:[%s1 + $0x5dc] sm:$0xf]
    %v608 = vld [vmem:[%s1 + $0x5e0] sm:$0xf]
    %v609 = vld [vmem:[%s1 + $0x5e4] sm:$0xf]
    %v610 = vld [vmem:[%s1 + $0x5e8] sm:$0xf]
    %v611 = vld [vmem:[%s1 + $0x5ec] sm:$0xf]
    %v612 = vld [vmem:[%s1 + $0x5f0] sm:$0xf]
    %v613 = vld [vmem:[%s1 + $0x5f4] sm:$0xf]
    %v614 = vld [vmem:[%s1 + $0x5f8] sm:$0xf]
    %v615 = vld [vmem:[%s1 + $0x5fc] sm:$0xf]
    %v616 = vld [vmem:[%s1 + $0x600] sm:$0xf]
    %v617 = vld [vmem:[%s1 + $0x604] sm:$0xf]
    %v618 = vld [vmem:[%s1 + $0x608] sm:$0xf]
    %v619 = vld [vmem:[%s1 + $0x60c] sm:$0xf]
    %v620 = vld [vmem:[%s1 + $0x610] sm:$0xf]
    %v621 = vld [vmem:[%s1 + $0x614] sm:$0xf]
    %v622 = vld [vmem:[%s1 + $0x618] sm:$0xf]
    %v623 = vld [vmem:[%s1 + $0x61c] sm:$0xf]
    %v624 = vld [vmem:[%s1 + $0x620] sm:$0xf]
    %v625 = vld [vmem:[%s1 + $0x624] sm:$0xf]
    %v626 = vld [vmem:[%s1 + $0x628] sm:$0xf]
    %v627 = vld [vmem:[%s1 + $0x62c] sm:$0xf]
    %v628 = vld [vmem:[%s1 + $0x630] sm:$0xf]
    %v629 = vld [vmem:[%s1 + $0x634] sm:$0xf]
    %v630 = vld [vmem:[%s1 + $0x638] sm:$0xf]
    %v631 = vld [vmem:[%s1 + $0x63c] sm:$0xf]
    %v632 = vld [vmem:[%s1 + $0x640] sm:$0xf]
    %v633 = vld [vmem:[%s1 + $0x644] sm:$0xf]
    %v634 = vld [vmem:[%s1 + $0x648] sm:$0xf]
    %v635 = vld [vmem:[%s1 + $0x64c] sm:$0xf]
    %v636 = vld [vmem:[%s1 + $0x650] sm:$0xf]
    %v637 = vld [vmem:[%s1 + $0x654] sm:$0xf]
    %v638 = vld [vmem:[%s1 + $0x658] sm:$0xf]
    %v639 = vld [vmem:[%s1 + $0x65c] sm:$0xf]
    %v640 = vld [vmem:[%s1 + $0x660] sm:$0xf]
    %v641 = vld [vmem:[%s1 + $0x664] sm:$0xf]
    %v642 = vld [vmem:[%s1 + $0x668] sm:$0xf]
    %v643 = vld [vmem:[%s1 + $0x66c] sm:$0xf]
    %v644 = vld [vmem:[%s1 + $0x670] sm:$0xf]
    %v645 = vld [vmem:[%s1 + $0x674] sm:$0xf]
    %v646 = vld [vmem:[%s1 + $0x678] sm:$0xf]
    %v647 = vld [vmem:[%s1 + $0x67c] sm:$0xf]
    %v648 = vld [vmem:[%s1 + $0x680] sm:$0xf]
    %v649 = vld [vmem:[%s1 + $0x684] sm:$0xf]
    %v650 = vld [vmem:[%s1 + $0x688] sm:$0xf]
    %v651 = vld [vmem:[%s1 + $0x68c] sm:$0xf]
    %v652 = vld [vmem:[%s1 + $0x690] sm:$0xf]
    %v653 = vld [vmem:[%s1 + $0x694] sm:$0xf]
    %v654 = vld [vmem:[%s1 + $0x698] sm:$0xf]
    %v655 = vld [vmem:[%s1 + $0x69c] sm:$0xf]
    %v656 = vld [vmem:[%s1 + $0x6a0] sm:$0xf]
    %v657 = vld [vmem:[%s1 + $0x6a4] sm:$0xf]
    %v658 = vld [vmem:[%s1 + $0x6a8] sm:$0xf]
    %v659 = vld [vmem:[%s1 + $0x6ac] sm:$0xf]
    %v660 = vld [vmem:[%s1 + $0x6b0] sm:$0xf]
    %v661 = vld [vmem:[%s1 + $0x6b4] sm:$0xf]
    %v662 = vld [vmem:[%s1 + $0x6b8] sm:$0xf]
    %v663 = vld [vmem:[%s1 + $0x6bc] sm:$0xf]
    %v664 = vld [vmem:[%s1 + $0x6c0] sm:$0xf]
    %v665 = vld [vmem:[%s1 + $0x6c4] sm:$0xf]
    %v666 = vld [vmem:[%s1 + $0x6c8] sm:$0xf]
    %v667 = vld [vmem:[%s1 + $0x6cc] sm:$0xf]
    %v668 = vld [vmem:[%s1 + $0x6d0] sm:$0xf]
    %v669 = vld [vmem:[%s1 + $0x6d4] sm:$0xf]
    %v670 = vld [vmem:[%s1 + $0x6d8] sm:$0xf]
    %v671 = vld [vmem:[%s1 + $0x6dc] sm:$0xf]
    %v672 = vld [vmem:[%s1 + $0x6e0] sm:$0xf]
    %v673 = vld [vmem:[%s1 + $0x6e4] sm:$0xf]
    %v674 = vld [vmem:[%s1 + $0x6e8] sm:$0xf]
    %v675 = vld [vmem:[%s1 + $0x6ec] sm:$0xf]
    %v676 = vld [vmem:[%s1 + $0x6f0] sm:$0xf]
    %v677 = vld [vmem:[%s1 + $0x6f4] sm:$0xf]
    %v678 = vld [vmem:[%s1 + $0x6f8] sm:$0xf]
    %v679 = vld [vmem:[%s1 + $0x6fc] sm:$0xf]
    %v680 = vld [vmem:[%s1 + $0x700] sm:$0xf]
    %v681 = vld [vmem:[%s1 + $0x704] sm:$0xf]
    %v682 = vld [vmem:[%s1 + $0x708] sm:$0xf]
    %v683 = vld [vmem:[%s1 + $0x70c] sm:$0xf]
    %v684 = vld [vmem:[%s1 + $0x710] sm:$0xf]
    %v685 = vld [vmem:[%s1 + $0x714] sm:$0xf]
    %v686 = vld [vmem:[%s1 + $0x718] sm:$0xf]
    %v687 = vld [vmem:[%s1 + $0x71c] sm:$0xf]
    %v688 = vld [vmem:[%s1 + $0x720] sm:$0xf]
    %v689 = vld [vmem:[%s1 + $0x724] sm:$0xf]
    %v690 = vld [vmem:[%s1 + $0x728] sm:$0xf]
    %v691 = vld [vmem:[%s1 + $0x72c] sm:$0xf]
    %v692 = vld [vmem:[%s1 + $0x730] sm:$0xf]
    %v693 = vld [vmem:[%s1 + $0x734] sm:$0xf]
    %v694 = vld [vmem:[%s1 + $0x738] sm:$0xf]
    %v695 = vld [vmem:[%s1 + $0x73c] sm:$0xf]
    %v696 = vld [vmem:[%s1 + $0x740] sm:$0xf]
    %v697 = vld [vmem:[%s1 + $0x744] sm:$0xf]
    %v698 = vld [vmem:[%s1 + $0x748] sm:$0xf]
    %v699 = vld [vmem:[%s1 + $0x74c] sm:$0xf]
    %v700 = vld [vmem:[%s1 + $0x750] sm:$0xf]
    %v701 = vld [vmem:[%s1 + $0x754] sm:$0xf]
    %v702 = vld [vmem:[%s1 + $0x758] sm:$0xf]
    %v703 = vld [vmem:[%s1 + $0x75c] sm:$0xf]
    %v704 = vld [vmem:[%s1 + $0x760] sm:$0xf]
    %v705 = vld [vmem:[%s1 + $0x764] sm:$0xf]
    %v706 = vld [vmem:[%s1 + $0x768] sm:$0xf]
    %v707 = vld [vmem:[%s1 + $0x76c] sm:$0xf]
    %v708 = vld [vmem:[%s1 + $0x770] sm:$0xf]
    %v709 = vld [vmem:[%s1 + $0x774] sm:$0xf]
    %v710 = vld [vmem:[%s1 + $0x778] sm:$0xf]
    %v711 = vld [vmem:[%s1 + $0x77c] sm:$0xf]
    %v712 = vld [vmem:[%s1 + $0x780] sm:$0xf]
    %v713 = vld [vmem:[%s1 + $0x784] sm:$0xf]
    %v714 = vld [vmem:[%s1 + $0x788] sm:$0xf]
    %v715 = vld [vmem:[%s1 + $0x78c] sm:$0xf]
    %v716 = vld [vmem:[%s1 + $0x790] sm:$0xf]
    %v717 = vld [vmem:[%s1 + $0x794] sm:$0xf]
    %v718 = vld [vmem:[%s1 + $0x798] sm:$0xf]
    %v719 = vld [vmem:[%s1 + $0x79c] sm:$0xf]
    %v720 = vld [vmem:[%s1 + $0x7a0] sm:$0xf]
    %v721 = vld [vmem:[%s1 + $0x7a4] sm:$0xf]
    %v722 = vld [vmem:[%s1 + $0x7a8] sm:$0xf]
    %v723 = vld [vmem:[%s1 + $0x7ac] sm:$0xf]
    %v724 = vld [vmem:[%s1 + $0x7b0] sm:$0xf]
    %v725 = vld [vmem:[%s1 + $0x7b4] sm:$0xf]
    %v726 = vld [vmem:[%s1 + $0x7b8] sm:$0xf]
    %v727 = vld [vmem:[%s1 + $0x7bc] sm:$0xf]
    %v728 = vld [vmem:[%s1 + $0x7c0] sm:$0xf]
    %v729 = vld [vmem:[%s1 + $0x7c4] sm:$0xf]
    %v730 = vld [vmem:[%s1 + $0x7c8] sm:$0xf]
    %v731 = vld [vmem:[%s1 + $0x7cc] sm:$0xf]
    %v732 = vld [vmem:[%s1 + $0x7d0] sm:$0xf]
    %v733 = vld [vmem:[%s1 + $0x7d4] sm:$0xf]
    %v734 = vld [vmem:[%s1 + $0x7d8] sm:$0xf]
    %v735 = vld [vmem:[%s1 + $0x7dc] sm:$0xf]
    %v736 = vld [vmem:[%s1 + $0x7e0] sm:$0xf]
    %v737 = vld [vmem:[%s1 + $0x7e4] sm:$0xf]
    %v738 = vld [vmem:[%s1 + $0x7e8] sm:$0xf]
    %v739 = vld [vmem:[%s1 + $0x7ec] sm:$0xf]
    %v740 = vld [vmem:[%s1 + $0x7f0] sm:$0xf]
    %v741 = vld [vmem:[%s1 + $0x7f4] sm:$0xf]
    %v742 = vld [vmem:[%s1 + $0x7f8] sm:$0xf]
    %v743 = vld [vmem:[%s1 + $0x7fc] sm:$0xf]
    %v744 = vld [vmem:[%s2] sm:$0x1]
    %v746 = vlaneseq
    %v747 = vshrl.u32 %v746, 7
    %v748 = vsub.s32 0, %v747
    %v749 = vrot.slane %v744, %v748
    %v1263 = vunpack.c.l.b16 %v232
    %v1264 = vunpack.c.l.b16 %v233
    %v1265 = vunpack.c.l.b16 %v234
    %v1266 = vunpack.c.l.b16 %v235
    %v1267 = vunpack.c.l.b16 %v236
    %v1268 = vunpack.c.l.b16 %v237
    %v1269 = vunpack.c.l.b16 %v238
    %v1270 = vunpack.c.l.b16 %v239
    %v1271 = vunpack.c.l.b16 %v240
    %v1272 = vunpack.c.l.b16 %v241
    %v1273 = vunpack.c.l.b16 %v242
    %v1274 = vunpack.c.l.b16 %v243
    %v1275 = vunpack.c.l.b16 %v244
    %v1276 = vunpack.c.l.b16 %v245
    %v1277 = vunpack.c.l.b16 %v246
    %v1278 = vunpack.c.l.b16 %v247
    %v1279 = vunpack.c.l.b16 %v248
    %v1280 = vunpack.c.l.b16 %v249
    %v1281 = vunpack.c.l.b16 %v250
    %v1282 = vunpack.c.l.b16 %v251
    %v1283 = vunpack.c.l.b16 %v252
    %v1284 = vunpack.c.l.b16 %v253
    %v1285 = vunpack.c.l.b16 %v254
    %v1286 = vunpack.c.l.b16 %v255
    %v1287 = vunpack.c.l.b16 %v256
    %v1288 = vunpack.c.l.b16 %v257
    %v1289 = vunpack.c.l.b16 %v258
    %v1290 = vunpack.c.l.b16 %v259
    %v1291 = vunpack.c.l.b16 %v260
    %v1292 = vunpack.c.l.b16 %v261
    %v1293 = vunpack.c.l.b16 %v262
    %v1294 = vunpack.c.l.b16 %v263
    %v1295 = vunpack.c.l.b16 %v264
    %v1296 = vunpack.c.l.b16 %v265
    %v1297 = vunpack.c.l.b16 %v266
    %v1298 = vunpack.c.l.b16 %v267
    %v1299 = vunpack.c.l.b16 %v268
    %v1300 = vunpack.c.l.b16 %v269
    %v1301 = vunpack.c.l.b16 %v270
    %v1302 = vunpack.c.l.b16 %v271
    %v1303 = vunpack.c.l.b16 %v272
    %v1304 = vunpack.c.l.b16 %v273
    %v1305 = vunpack.c.l.b16 %v274
    %v1306 = vunpack.c.l.b16 %v275
    %v1307 = vunpack.c.l.b16 %v276
    %v1308 = vunpack.c.l.b16 %v277
    %v1309 = vunpack.c.l.b16 %v278
    %v1310 = vunpack.c.l.b16 %v279
    %v1311 = vunpack.c.l.b16 %v280
    %v1312 = vunpack.c.l.b16 %v281
    %v1313 = vunpack.c.l.b16 %v282
    %v1314 = vunpack.c.l.b16 %v283
    %v1315 = vunpack.c.l.b16 %v284
    %v1316 = vunpack.c.l.b16 %v285
    %v1317 = vunpack.c.l.b16 %v286
    %v1318 = vunpack.c.l.b16 %v287
    %v1319 = vunpack.c.l.b16 %v288
    %v1320 = vunpack.c.l.b16 %v289
    %v1321 = vunpack.c.l.b16 %v290
    %v1322 = vunpack.c.l.b16 %v291
    %v1323 = vunpack.c.l.b16 %v292
    %v1324 = vunpack.c.l.b16 %v293
    %v1325 = vunpack.c.l.b16 %v294
    %v1326 = vunpack.c.l.b16 %v295
    %v1327 = vunpack.c.l.b16 %v296
    %v1328 = vunpack.c.l.b16 %v297
    %v1329 = vunpack.c.l.b16 %v298
    %v1330 = vunpack.c.l.b16 %v299
    %v1331 = vunpack.c.l.b16 %v300
    %v1332 = vunpack.c.l.b16 %v301
    %v1333 = vunpack.c.l.b16 %v302
    %v1334 = vunpack.c.l.b16 %v303
    %v1335 = vunpack.c.l.b16 %v304
    %v1336 = vunpack.c.l.b16 %v305
    %v1337 = vunpack.c.l.b16 %v306
    %v1338 = vunpack.c.l.b16 %v307
    %v1339 = vunpack.c.l.b16 %v308
    %v1340 = vunpack.c.l.b16 %v309
    %v1341 = vunpack.c.l.b16 %v310
    %v1342 = vunpack.c.l.b16 %v311
    %v1343 = vunpack.c.l.b16 %v312
    %v1344 = vunpack.c.l.b16 %v313
    %v1345 = vunpack.c.l.b16 %v314
    %v1346 = vunpack.c.l.b16 %v315
    %v1347 = vunpack.c.l.b16 %v316
    %v1348 = vunpack.c.l.b16 %v317
    %v1349 = vunpack.c.l.b16 %v318
    %v1350 = vunpack.c.l.b16 %v319
    %v1351 = vunpack.c.l.b16 %v320
    %v1352 = vunpack.c.l.b16 %v321
    %v1353 = vunpack.c.l.b16 %v322
    %v1354 = vunpack.c.l.b16 %v323
    %v1355 = vunpack.c.l.b16 %v324
    %v1356 = vunpack.c.l.b16 %v325
    %v1357 = vunpack.c.l.b16 %v326
    %v1358 = vunpack.c.l.b16 %v327
    %v1359 = vunpack.c.l.b16 %v328
    %v1360 = vunpack.c.l.b16 %v329
    %v1361 = vunpack.c.l.b16 %v330
    %v1362 = vunpack.c.l.b16 %v331
    %v1363 = vunpack.c.l.b16 %v332
    %v1364 = vunpack.c.l.b16 %v333
    %v1365 = vunpack.c.l.b16 %v334
    %v1366 = vunpack.c.l.b16 %v335
    %v1367 = vunpack.c.l.b16 %v336
    %v1368 = vunpack.c.l.b16 %v337
    %v1369 = vunpack.c.l.b16 %v338
    %v1370 = vunpack.c.l.b16 %v339
    %v1371 = vunpack.c.l.b16 %v340
    %v1372 = vunpack.c.l.b16 %v341
    %v1373 = vunpack.c.l.b16 %v342
    %v1374 = vunpack.c.l.b16 %v343
    %v1375 = vunpack.c.l.b16 %v344
    %v1376 = vunpack.c.l.b16 %v345
    %v1377 = vunpack.c.l.b16 %v346
    %v1378 = vunpack.c.l.b16 %v347
    %v1379 = vunpack.c.l.b16 %v348
    %v1380 = vunpack.c.l.b16 %v349
    %v1381 = vunpack.c.l.b16 %v350
    %v1382 = vunpack.c.l.b16 %v351
    %v1383 = vunpack.c.l.b16 %v352
    %v1384 = vunpack.c.l.b16 %v353
    %v1385 = vunpack.c.l.b16 %v354
    %v1386 = vunpack.c.l.b16 %v355
    %v1387 = vunpack.c.l.b16 %v356
    %v1388 = vunpack.c.l.b16 %v357
    %v1389 = vunpack.c.l.b16 %v358
    %v1390 = vunpack.c.l.b16 %v359
    %v1391 = vunpack.c.l.b16 %v360
    %v1392 = vunpack.c.l.b16 %v361
    %v1393 = vunpack.c.l.b16 %v362
    %v1394 = vunpack.c.l.b16 %v363
    %v1395 = vunpack.c.l.b16 %v364
    %v1396 = vunpack.c.l.b16 %v365
    %v1397 = vunpack.c.l.b16 %v366
    %v1398 = vunpack.c.l.b16 %v367
    %v1399 = vunpack.c.l.b16 %v368
    %v1400 = vunpack.c.l.b16 %v369
    %v1401 = vunpack.c.l.b16 %v370
    %v1402 = vunpack.c.l.b16 %v371
    %v1403 = vunpack.c.l.b16 %v372
    %v1404 = vunpack.c.l.b16 %v373
    %v1405 = vunpack.c.l.b16 %v374
    %v1406 = vunpack.c.l.b16 %v375
    %v1407 = vunpack.c.l.b16 %v376
    %v1408 = vunpack.c.l.b16 %v377
    %v1409 = vunpack.c.l.b16 %v378
    %v1410 = vunpack.c.l.b16 %v379
    %v1411 = vunpack.c.l.b16 %v380
    %v1412 = vunpack.c.l.b16 %v381
    %v1413 = vunpack.c.l.b16 %v382
    %v1414 = vunpack.c.l.b16 %v383
    %v1415 = vunpack.c.l.b16 %v384
    %v1416 = vunpack.c.l.b16 %v385
    %v1417 = vunpack.c.l.b16 %v386
    %v1418 = vunpack.c.l.b16 %v387
    %v1419 = vunpack.c.l.b16 %v388
    %v1420 = vunpack.c.l.b16 %v389
    %v1421 = vunpack.c.l.b16 %v390
    %v1422 = vunpack.c.l.b16 %v391
    %v1423 = vunpack.c.l.b16 %v392
    %v1424 = vunpack.c.l.b16 %v393
    %v1425 = vunpack.c.l.b16 %v394
    %v1426 = vunpack.c.l.b16 %v395
    %v1427 = vunpack.c.l.b16 %v396
    %v1428 = vunpack.c.l.b16 %v397
    %v1429 = vunpack.c.l.b16 %v398
    %v1430 = vunpack.c.l.b16 %v399
    %v1431 = vunpack.c.l.b16 %v400
    %v1432 = vunpack.c.l.b16 %v401
    %v1433 = vunpack.c.l.b16 %v402
    %v1434 = vunpack.c.l.b16 %v403
    %v1435 = vunpack.c.l.b16 %v404
    %v1436 = vunpack.c.l.b16 %v405
    %v1437 = vunpack.c.l.b16 %v406
    %v1438 = vunpack.c.l.b16 %v407
    %v1439 = vunpack.c.l.b16 %v408
    %v1440 = vunpack.c.l.b16 %v409
    %v1441 = vunpack.c.l.b16 %v410
    %v1442 = vunpack.c.l.b16 %v411
    %v1443 = vunpack.c.l.b16 %v412
    %v1444 = vunpack.c.l.b16 %v413
    %v1445 = vunpack.c.l.b16 %v414
    %v1446 = vunpack.c.l.b16 %v415
    %v1447 = vunpack.c.l.b16 %v416
    %v1448 = vunpack.c.l.b16 %v417
    %v1449 = vunpack.c.l.b16 %v418
    %v1450 = vunpack.c.l.b16 %v419
    %v1451 = vunpack.c.l.b16 %v420
    %v1452 = vunpack.c.l.b16 %v421
    %v1453 = vunpack.c.l.b16 %v422
    %v1454 = vunpack.c.l.b16 %v423
    %v1455 = vunpack.c.l.b16 %v424
    %v1456 = vunpack.c.l.b16 %v425
    %v1457 = vunpack.c.l.b16 %v426
    %v1458 = vunpack.c.l.b16 %v427
    %v1459 = vunpack.c.l.b16 %v428
    %v1460 = vunpack.c.l.b16 %v429
    %v1461 = vunpack.c.l.b16 %v430
    %v1462 = vunpack.c.l.b16 %v431
    %v1463 = vunpack.c.l.b16 %v432
    %v1464 = vunpack.c.l.b16 %v433
    %v1465 = vunpack.c.l.b16 %v434
    %v1466 = vunpack.c.l.b16 %v435
    %v1467 = vunpack.c.l.b16 %v436
    %v1468 = vunpack.c.l.b16 %v437
    %v1469 = vunpack.c.l.b16 %v438
    %v1470 = vunpack.c.l.b16 %v439
    %v1471 = vunpack.c.l.b16 %v440
    %v1472 = vunpack.c.l.b16 %v441
    %v1473 = vunpack.c.l.b16 %v442
    %v1474 = vunpack.c.l.b16 %v443
    %v1475 = vunpack.c.l.b16 %v444
    %v1476 = vunpack.c.l.b16 %v445
    %v1477 = vunpack.c.l.b16 %v446
    %v1478 = vunpack.c.l.b16 %v447
    %v1479 = vunpack.c.l.b16 %v448
    %v1480 = vunpack.c.l.b16 %v449
    %v1481 = vunpack.c.l.b16 %v450
    %v1482 = vunpack.c.l.b16 %v451
    %v1483 = vunpack.c.l.b16 %v452
    %v1484 = vunpack.c.l.b16 %v453
    %v1485 = vunpack.c.l.b16 %v454
    %v1486 = vunpack.c.l.b16 %v455
    %v1487 = vunpack.c.l.b16 %v456
    %v1488 = vunpack.c.l.b16 %v457
    %v1489 = vunpack.c.l.b16 %v458
    %v1490 = vunpack.c.l.b16 %v459
    %v1491 = vunpack.c.l.b16 %v460
    %v1492 = vunpack.c.l.b16 %v461
    %v1493 = vunpack.c.l.b16 %v462
    %v1494 = vunpack.c.l.b16 %v463
    %v1495 = vunpack.c.l.b16 %v464
    %v1496 = vunpack.c.l.b16 %v465
    %v1497 = vunpack.c.l.b16 %v466
    %v1498 = vunpack.c.l.b16 %v467
    %v1499 = vunpack.c.l.b16 %v468
    %v1500 = vunpack.c.l.b16 %v469
    %v1501 = vunpack.c.l.b16 %v470
    %v1502 = vunpack.c.l.b16 %v471
    %v1503 = vunpack.c.l.b16 %v472
    %v1504 = vunpack.c.l.b16 %v473
    %v1505 = vunpack.c.l.b16 %v474
    %v1506 = vunpack.c.l.b16 %v475
    %v1507 = vunpack.c.l.b16 %v476
    %v1508 = vunpack.c.l.b16 %v477
    %v1509 = vunpack.c.l.b16 %v478
    %v1510 = vunpack.c.l.b16 %v479
    %v1511 = vunpack.c.l.b16 %v480
    %v1512 = vunpack.c.l.b16 %v481
    %v1513 = vunpack.c.l.b16 %v482
    %v1514 = vunpack.c.l.b16 %v483
    %v1515 = vunpack.c.l.b16 %v484
    %v1516 = vunpack.c.l.b16 %v485
    %v1517 = vunpack.c.l.b16 %v486
    %v1518 = vunpack.c.l.b16 %v487
    %v1519 = vunpack.c.l.b16 %v488
    %v1520 = vunpack.c.l.b16 %v489
    %v1521 = vunpack.c.l.b16 %v490
    %v1522 = vunpack.c.l.b16 %v491
    %v1523 = vunpack.c.l.b16 %v492
    %v1524 = vunpack.c.l.b16 %v493
    %v1525 = vunpack.c.l.b16 %v494
    %v1526 = vunpack.c.l.b16 %v495
    %v1527 = vunpack.c.l.b16 %v496
    %v1528 = vunpack.c.l.b16 %v497
    %v1529 = vunpack.c.l.b16 %v498
    %v1530 = vunpack.c.l.b16 %v499
    %v1531 = vunpack.c.l.b16 %v500
    %v1532 = vunpack.c.l.b16 %v501
    %v1533 = vunpack.c.l.b16 %v502
    %v1534 = vunpack.c.l.b16 %v503
    %v1535 = vunpack.c.l.b16 %v504
    %v1536 = vunpack.c.l.b16 %v505
    %v1537 = vunpack.c.l.b16 %v506
    %v1538 = vunpack.c.l.b16 %v507
    %v1539 = vunpack.c.l.b16 %v508
    %v1540 = vunpack.c.l.b16 %v509
    %v1541 = vunpack.c.l.b16 %v510
    %v1542 = vunpack.c.l.b16 %v511
    %v1543 = vunpack.c.l.b16 %v512
    %v1544 = vunpack.c.l.b16 %v513
    %v1545 = vunpack.c.l.b16 %v514
    %v1546 = vunpack.c.l.b16 %v515
    %v1547 = vunpack.c.l.b16 %v516
    %v1548 = vunpack.c.l.b16 %v517
    %v1549 = vunpack.c.l.b16 %v518
    %v1550 = vunpack.c.l.b16 %v519
    %v1551 = vunpack.c.l.b16 %v520
    %v1552 = vunpack.c.l.b16 %v521
    %v1553 = vunpack.c.l.b16 %v522
    %v1554 = vunpack.c.l.b16 %v523
    %v1555 = vunpack.c.l.b16 %v524
    %v1556 = vunpack.c.l.b16 %v525
    %v1557 = vunpack.c.l.b16 %v526
    %v1558 = vunpack.c.l.b16 %v527
    %v1559 = vunpack.c.l.b16 %v528
    %v1560 = vunpack.c.l.b16 %v529
    %v1561 = vunpack.c.l.b16 %v530
    %v1562 = vunpack.c.l.b16 %v531
    %v1563 = vunpack.c.l.b16 %v532
    %v1564 = vunpack.c.l.b16 %v533
    %v1565 = vunpack.c.l.b16 %v534
    %v1566 = vunpack.c.l.b16 %v535
    %v1567 = vunpack.c.l.b16 %v536
    %v1568 = vunpack.c.l.b16 %v537
    %v1569 = vunpack.c.l.b16 %v538
    %v1570 = vunpack.c.l.b16 %v539
    %v1571 = vunpack.c.l.b16 %v540
    %v1572 = vunpack.c.l.b16 %v541
    %v1573 = vunpack.c.l.b16 %v542
    %v1574 = vunpack.c.l.b16 %v543
    %v1575 = vunpack.c.l.b16 %v544
    %v1576 = vunpack.c.l.b16 %v545
    %v1577 = vunpack.c.l.b16 %v546
    %v1578 = vunpack.c.l.b16 %v547
    %v1579 = vunpack.c.l.b16 %v548
    %v1580 = vunpack.c.l.b16 %v549
    %v1581 = vunpack.c.l.b16 %v550
    %v1582 = vunpack.c.l.b16 %v551
    %v1583 = vunpack.c.l.b16 %v552
    %v1584 = vunpack.c.l.b16 %v553
    %v1585 = vunpack.c.l.b16 %v554
    %v1586 = vunpack.c.l.b16 %v555
    %v1587 = vunpack.c.l.b16 %v556
    %v1588 = vunpack.c.l.b16 %v557
    %v1589 = vunpack.c.l.b16 %v558
    %v1590 = vunpack.c.l.b16 %v559
    %v1591 = vunpack.c.l.b16 %v560
    %v1592 = vunpack.c.l.b16 %v561
    %v1593 = vunpack.c.l.b16 %v562
    %v1594 = vunpack.c.l.b16 %v563
    %v1595 = vunpack.c.l.b16 %v564
    %v1596 = vunpack.c.l.b16 %v565
    %v1597 = vunpack.c.l.b16 %v566
    %v1598 = vunpack.c.l.b16 %v567
    %v1599 = vunpack.c.l.b16 %v568
    %v1600 = vunpack.c.l.b16 %v569
    %v1601 = vunpack.c.l.b16 %v570
    %v1602 = vunpack.c.l.b16 %v571
    %v1603 = vunpack.c.l.b16 %v572
    %v1604 = vunpack.c.l.b16 %v573
    %v1605 = vunpack.c.l.b16 %v574
    %v1606 = vunpack.c.l.b16 %v575
    %v1607 = vunpack.c.l.b16 %v576
    %v1608 = vunpack.c.l.b16 %v577
    %v1609 = vunpack.c.l.b16 %v578
    %v1610 = vunpack.c.l.b16 %v579
    %v1611 = vunpack.c.l.b16 %v580
    %v1612 = vunpack.c.l.b16 %v581
    %v1613 = vunpack.c.l.b16 %v582
    %v1614 = vunpack.c.l.b16 %v583
    %v1615 = vunpack.c.l.b16 %v584
    %v1616 = vunpack.c.l.b16 %v585
    %v1617 = vunpack.c.l.b16 %v586
    %v1618 = vunpack.c.l.b16 %v587
    %v1619 = vunpack.c.l.b16 %v588
    %v1620 = vunpack.c.l.b16 %v589
    %v1621 = vunpack.c.l.b16 %v590
    %v1622 = vunpack.c.l.b16 %v591
    %v1623 = vunpack.c.l.b16 %v592
    %v1624 = vunpack.c.l.b16 %v593
    %v1625 = vunpack.c.l.b16 %v594
    %v1626 = vunpack.c.l.b16 %v595
    %v1627 = vunpack.c.l.b16 %v596
    %v1628 = vunpack.c.l.b16 %v597
    %v1629 = vunpack.c.l.b16 %v598
    %v1630 = vunpack.c.l.b16 %v599
    %v1631 = vunpack.c.l.b16 %v600
    %v1632 = vunpack.c.l.b16 %v601
    %v1633 = vunpack.c.l.b16 %v602
    %v1634 = vunpack.c.l.b16 %v603
    %v1635 = vunpack.c.l.b16 %v604
    %v1636 = vunpack.c.l.b16 %v605
    %v1637 = vunpack.c.l.b16 %v606
    %v1638 = vunpack.c.l.b16 %v607
    %v1639 = vunpack.c.l.b16 %v608
    %v1640 = vunpack.c.l.b16 %v609
    %v1641 = vunpack.c.l.b16 %v610
    %v1642 = vunpack.c.l.b16 %v611
    %v1643 = vunpack.c.l.b16 %v612
    %v1644 = vunpack.c.l.b16 %v613
    %v1645 = vunpack.c.l.b16 %v614
    %v1646 = vunpack.c.l.b16 %v615
    %v1647 = vunpack.c.l.b16 %v616
    %v1648 = vunpack.c.l.b16 %v617
    %v1649 = vunpack.c.l.b16 %v618
    %v1650 = vunpack.c.l.b16 %v619
    %v1651 = vunpack.c.l.b16 %v620
    %v1652 = vunpack.c.l.b16 %v621
    %v1653 = vunpack.c.l.b16 %v622
    %v1654 = vunpack.c.l.b16 %v623
    %v1655 = vunpack.c.l.b16 %v624
    %v1656 = vunpack.c.l.b16 %v625
    %v1657 = vunpack.c.l.b16 %v626
    %v1658 = vunpack.c.l.b16 %v627
    %v1659 = vunpack.c.l.b16 %v628
    %v1660 = vunpack.c.l.b16 %v629
    %v1661 = vunpack.c.l.b16 %v630
    %v1662 = vunpack.c.l.b16 %v631
    %v1663 = vunpack.c.l.b16 %v632
    %v1664 = vunpack.c.l.b16 %v633
    %v1665 = vunpack.c.l.b16 %v634
    %v1666 = vunpack.c.l.b16 %v635
    %v1667 = vunpack.c.l.b16 %v636
    %v1668 = vunpack.c.l.b16 %v637
    %v1669 = vunpack.c.l.b16 %v638
    %v1670 = vunpack.c.l.b16 %v639
    %v1671 = vunpack.c.l.b16 %v640
    %v1672 = vunpack.c.l.b16 %v641
    %v1673 = vunpack.c.l.b16 %v642
    %v1674 = vunpack.c.l.b16 %v643
    %v1675 = vunpack.c.l.b16 %v644
    %v1676 = vunpack.c.l.b16 %v645
    %v1677 = vunpack.c.l.b16 %v646
    %v1678 = vunpack.c.l.b16 %v647
    %v1679 = vunpack.c.l.b16 %v648
    %v1680 = vunpack.c.l.b16 %v649
    %v1681 = vunpack.c.l.b16 %v650
    %v1682 = vunpack.c.l.b16 %v651
    %v1683 = vunpack.c.l.b16 %v652
    %v1684 = vunpack.c.l.b16 %v653
    %v1685 = vunpack.c.l.b16 %v654
    %v1686 = vunpack.c.l.b16 %v655
    %v1687 = vunpack.c.l.b16 %v656
    %v1688 = vunpack.c.l.b16 %v657
    %v1689 = vunpack.c.l.b16 %v658
    %v1690 = vunpack.c.l.b16 %v659
    %v1691 = vunpack.c.l.b16 %v660
    %v1692 = vunpack.c.l.b16 %v661
    %v1693 = vunpack.c.l.b16 %v662
    %v1694 = vunpack.c.l.b16 %v663
    %v1695 = vunpack.c.l.b16 %v664
    %v1696 = vunpack.c.l.b16 %v665
    %v1697 = vunpack.c.l.b16 %v666
    %v1698 = vunpack.c.l.b16 %v667
    %v1699 = vunpack.c.l.b16 %v668
    %v1700 = vunpack.c.l.b16 %v669
    %v1701 = vunpack.c.l.b16 %v670
    %v1702 = vunpack.c.l.b16 %v671
    %v1703 = vunpack.c.l.b16 %v672
    %v1704 = vunpack.c.l.b16 %v673
    %v1705 = vunpack.c.l.b16 %v674
    %v1706 = vunpack.c.l.b16 %v675
    %v1707 = vunpack.c.l.b16 %v676
    %v1708 = vunpack.c.l.b16 %v677
    %v1709 = vunpack.c.l.b16 %v678
    %v1710 = vunpack.c.l.b16 %v679
    %v1711 = vunpack.c.l.b16 %v680
    %v1712 = vunpack.c.l.b16 %v681
    %v1713 = vunpack.c.l.b16 %v682
    %v1714 = vunpack.c.l.b16 %v683
    %v1715 = vunpack.c.l.b16 %v684
    %v1716 = vunpack.c.l.b16 %v685
    %v1717 = vunpack.c.l.b16 %v686
    %v1718 = vunpack.c.l.b16 %v687
    %v1719 = vunpack.c.l.b16 %v688
    %v1720 = vunpack.c.l.b16 %v689
    %v1721 = vunpack.c.l.b16 %v690
    %v1722 = vunpack.c.l.b16 %v691
    %v1723 = vunpack.c.l.b16 %v692
    %v1724 = vunpack.c.l.b16 %v693
    %v1725 = vunpack.c.l.b16 %v694
    %v1726 = vunpack.c.l.b16 %v695
    %v1727 = vunpack.c.l.b16 %v696
    %v1728 = vunpack.c.l.b16 %v697
    %v1729 = vunpack.c.l.b16 %v698
    %v1730 = vunpack.c.l.b16 %v699
    %v1731 = vunpack.c.l.b16 %v700
    %v1732 = vunpack.c.l.b16 %v701
    %v1733 = vunpack.c.l.b16 %v702
    %v1734 = vunpack.c.l.b16 %v703
    %v1735 = vunpack.c.l.b16 %v704
    %v1736 = vunpack.c.l.b16 %v705
    %v1737 = vunpack.c.l.b16 %v706
    %v1738 = vunpack.c.l.b16 %v707
    %v1739 = vunpack.c.l.b16 %v708
    %v1740 = vunpack.c.l.b16 %v709
    %v1741 = vunpack.c.l.b16 %v710
    %v1742 = vunpack.c.l.b16 %v711
    %v1743 = vunpack.c.l.b16 %v712
    %v1744 = vunpack.c.l.b16 %v713
    %v1745 = vunpack.c.l.b16 %v714
    %v1746 = vunpack.c.l.b16 %v715
    %v1747 = vunpack.c.l.b16 %v716
    %v1748 = vunpack.c.l.b16 %v717
    %v1749 = vunpack.c.l.b16 %v718
    %v1750 = vunpack.c.l.b16 %v719
    %v1751 = vunpack.c.l.b16 %v720
    %v1752 = vunpack.c.l.b16 %v721
    %v1753 = vunpack.c.l.b16 %v722
    %v1754 = vunpack.c.l.b16 %v723
    %v1755 = vunpack.c.l.b16 %v724
    %v1756 = vunpack.c.l.b16 %v725
    %v1757 = vunpack.c.l.b16 %v726
    %v1758 = vunpack.c.l.b16 %v727
    %v1759 = vunpack.c.l.b16 %v728
    %v1760 = vunpack.c.l.b16 %v729
    %v1761 = vunpack.c.l.b16 %v730
    %v1762 = vunpack.c.l.b16 %v731
    %v1763 = vunpack.c.l.b16 %v732
    %v1764 = vunpack.c.l.b16 %v733
    %v1765 = vunpack.c.l.b16 %v734
    %v1766 = vunpack.c.l.b16 %v735
    %v1767 = vunpack.c.l.b16 %v736
    %v1768 = vunpack.c.l.b16 %v737
    %v1769 = vunpack.c.l.b16 %v738
    %v1770 = vunpack.c.l.b16 %v739
    %v1771 = vunpack.c.l.b16 %v740
    %v1772 = vunpack.c.l.b16 %v741
    %v1773 = vunpack.c.l.b16 %v742
    %v1774 = vunpack.c.l.b16 %v743
    %v1775 = vpack.c.b16 %v1264, %v1263
    %v1776 = vpack.c.b16 %v1266, %v1265
    %v1777 = vpack.c.b16 %v1268, %v1267
    %v1778 = vpack.c.b16 %v1270, %v1269
    %v1779 = vpack.c.b16 %v1272, %v1271
    %v1780 = vpack.c.b16 %v1274, %v1273
    %v1781 = vpack.c.b16 %v1276, %v1275
    %v1782 = vpack.c.b16 %v1278, %v1277
    %v1783 = vpack.c.b16 %v1280, %v1279
    %v1784 = vpack.c.b16 %v1282, %v1281
    %v1785 = vpack.c.b16 %v1284, %v1283
    %v1786 = vpack.c.b16 %v1286, %v1285
    %v1787 = vpack.c.b16 %v1288, %v1287
    %v1788 = vpack.c.b16 %v1290, %v1289
    %v1789 = vpack.c.b16 %v1292, %v1291
    %v1790 = vpack.c.b16 %v1294, %v1293
    %v1791 = vpack.c.b16 %v1296, %v1295
    %v1792 = vpack.c.b16 %v1298, %v1297
    %v1793 = vpack.c.b16 %v1300, %v1299
    %v1794 = vpack.c.b16 %v1302, %v1301
    %v1795 = vpack.c.b16 %v1304, %v1303
    %v1796 = vpack.c.b16 %v1306, %v1305
    %v1797 = vpack.c.b16 %v1308, %v1307
    %v1798 = vpack.c.b16 %v1310, %v1309
    %v1799 = vpack.c.b16 %v1312, %v1311
    %v1800 = vpack.c.b16 %v1314, %v1313
    %v1801 = vpack.c.b16 %v1316, %v1315
    %v1802 = vpack.c.b16 %v1318, %v1317
    %v1803 = vpack.c.b16 %v1320, %v1319
    %v1804 = vpack.c.b16 %v1322, %v1321
    %v1805 = vpack.c.b16 %v1324, %v1323
    %v1806 = vpack.c.b16 %v1326, %v1325
    %v1807 = vpack.c.b16 %v1328, %v1327
    %v1808 = vpack.c.b16 %v1330, %v1329
    %v1809 = vpack.c.b16 %v1332, %v1331
    %v1810 = vpack.c.b16 %v1334, %v1333
    %v1811 = vpack.c.b16 %v1336, %v1335
    %v1812 = vpack.c.b16 %v1338, %v1337
    %v1813 = vpack.c.b16 %v1340, %v1339
    %v1814 = vpack.c.b16 %v1342, %v1341
    %v1815 = vpack.c.b16 %v1344, %v1343
    %v1816 = vpack.c.b16 %v1346, %v1345
    %v1817 = vpack.c.b16 %v1348, %v1347
    %v1818 = vpack.c.b16 %v1350, %v1349
    %v1819 = vpack.c.b16 %v1352, %v1351
    %v1820 = vpack.c.b16 %v1354, %v1353
    %v1821 = vpack.c.b16 %v1356, %v1355
    %v1822 = vpack.c.b16 %v1358, %v1357
    %v1823 = vpack.c.b16 %v1360, %v1359
    %v1824 = vpack.c.b16 %v1362, %v1361
    %v1825 = vpack.c.b16 %v1364, %v1363
    %v1826 = vpack.c.b16 %v1366, %v1365
    %v1827 = vpack.c.b16 %v1368, %v1367
    %v1828 = vpack.c.b16 %v1370, %v1369
    %v1829 = vpack.c.b16 %v1372, %v1371
    %v1830 = vpack.c.b16 %v1374, %v1373
    %v1831 = vpack.c.b16 %v1376, %v1375
    %v1832 = vpack.c.b16 %v1378, %v1377
    %v1833 = vpack.c.b16 %v1380, %v1379
    %v1834 = vpack.c.b16 %v1382, %v1381
    %v1835 = vpack.c.b16 %v1384, %v1383
    %v1836 = vpack.c.b16 %v1386, %v1385
    %v1837 = vpack.c.b16 %v1388, %v1387
    %v1838 = vpack.c.b16 %v1390, %v1389
    %v1839 = vpack.c.b16 %v1392, %v1391
    %v1840 = vpack.c.b16 %v1394, %v1393
    %v1841 = vpack.c.b16 %v1396, %v1395
    %v1842 = vpack.c.b16 %v1398, %v1397
    %v1843 = vpack.c.b16 %v1400, %v1399
    %v1844 = vpack.c.b16 %v1402, %v1401
    %v1845 = vpack.c.b16 %v1404, %v1403
    %v1846 = vpack.c.b16 %v1406, %v1405
    %v1847 = vpack.c.b16 %v1408, %v1407
    %v1848 = vpack.c.b16 %v1410, %v1409
    %v1849 = vpack.c.b16 %v1412, %v1411
    %v1850 = vpack.c.b16 %v1414, %v1413
    %v1851 = vpack.c.b16 %v1416, %v1415
    %v1852 = vpack.c.b16 %v1418, %v1417
    %v1853 = vpack.c.b16 %v1420, %v1419
    %v1854 = vpack.c.b16 %v1422, %v1421
    %v1855 = vpack.c.b16 %v1424, %v1423
    %v1856 = vpack.c.b16 %v1426, %v1425
    %v1857 = vpack.c.b16 %v1428, %v1427
    %v1858 = vpack.c.b16 %v1430, %v1429
    %v1859 = vpack.c.b16 %v1432, %v1431
    %v1860 = vpack.c.b16 %v1434, %v1433
    %v1861 = vpack.c.b16 %v1436, %v1435
    %v1862 = vpack.c.b16 %v1438, %v1437
    %v1863 = vpack.c.b16 %v1440, %v1439
    %v1864 = vpack.c.b16 %v1442, %v1441
    %v1865 = vpack.c.b16 %v1444, %v1443
    %v1866 = vpack.c.b16 %v1446, %v1445
    %v1867 = vpack.c.b16 %v1448, %v1447
    %v1868 = vpack.c.b16 %v1450, %v1449
    %v1869 = vpack.c.b16 %v1452, %v1451
    %v1870 = vpack.c.b16 %v1454, %v1453
    %v1871 = vpack.c.b16 %v1456, %v1455
    %v1872 = vpack.c.b16 %v1458, %v1457
    %v1873 = vpack.c.b16 %v1460, %v1459
    %v1874 = vpack.c.b16 %v1462, %v1461
    %v1875 = vpack.c.b16 %v1464, %v1463
    %v1876 = vpack.c.b16 %v1466, %v1465
    %v1877 = vpack.c.b16 %v1468, %v1467
    %v1878 = vpack.c.b16 %v1470, %v1469
    %v1879 = vpack.c.b16 %v1472, %v1471
    %v1880 = vpack.c.b16 %v1474, %v1473
    %v1881 = vpack.c.b16 %v1476, %v1475
    %v1882 = vpack.c.b16 %v1478, %v1477
    %v1883 = vpack.c.b16 %v1480, %v1479
    %v1884 = vpack.c.b16 %v1482, %v1481
    %v1885 = vpack.c.b16 %v1484, %v1483
    %v1886 = vpack.c.b16 %v1486, %v1485
    %v1887 = vpack.c.b16 %v1488, %v1487
    %v1888 = vpack.c.b16 %v1490, %v1489
    %v1889 = vpack.c.b16 %v1492, %v1491
    %v1890 = vpack.c.b16 %v1494, %v1493
    %v1891 = vpack.c.b16 %v1496, %v1495
    %v1892 = vpack.c.b16 %v1498, %v1497
    %v1893 = vpack.c.b16 %v1500, %v1499
    %v1894 = vpack.c.b16 %v1502, %v1501
    %v1895 = vpack.c.b16 %v1504, %v1503
    %v1896 = vpack.c.b16 %v1506, %v1505
    %v1897 = vpack.c.b16 %v1508, %v1507
    %v1898 = vpack.c.b16 %v1510, %v1509
    %v1899 = vpack.c.b16 %v1512, %v1511
    %v1900 = vpack.c.b16 %v1514, %v1513
    %v1901 = vpack.c.b16 %v1516, %v1515
    %v1902 = vpack.c.b16 %v1518, %v1517
    %v1903 = vpack.c.b16 %v1520, %v1519
    %v1904 = vpack.c.b16 %v1522, %v1521
    %v1905 = vpack.c.b16 %v1524, %v1523
    %v1906 = vpack.c.b16 %v1526, %v1525
    %v1907 = vpack.c.b16 %v1528, %v1527
    %v1908 = vpack.c.b16 %v1530, %v1529
    %v1909 = vpack.c.b16 %v1532, %v1531
    %v1910 = vpack.c.b16 %v1534, %v1533
    %v1911 = vpack.c.b16 %v1536, %v1535
    %v1912 = vpack.c.b16 %v1538, %v1537
    %v1913 = vpack.c.b16 %v1540, %v1539
    %v1914 = vpack.c.b16 %v1542, %v1541
    %v1915 = vpack.c.b16 %v1544, %v1543
    %v1916 = vpack.c.b16 %v1546, %v1545
    %v1917 = vpack.c.b16 %v1548, %v1547
    %v1918 = vpack.c.b16 %v1550, %v1549
    %v1919 = vpack.c.b16 %v1552, %v1551
    %v1920 = vpack.c.b16 %v1554, %v1553
    %v1921 = vpack.c.b16 %v1556, %v1555
    %v1922 = vpack.c.b16 %v1558, %v1557
    %v1923 = vpack.c.b16 %v1560, %v1559
    %v1924 = vpack.c.b16 %v1562, %v1561
    %v1925 = vpack.c.b16 %v1564, %v1563
    %v1926 = vpack.c.b16 %v1566, %v1565
    %v1927 = vpack.c.b16 %v1568, %v1567
    %v1928 = vpack.c.b16 %v1570, %v1569
    %v1929 = vpack.c.b16 %v1572, %v1571
    %v1930 = vpack.c.b16 %v1574, %v1573
    %v1931 = vpack.c.b16 %v1576, %v1575
    %v1932 = vpack.c.b16 %v1578, %v1577
    %v1933 = vpack.c.b16 %v1580, %v1579
    %v1934 = vpack.c.b16 %v1582, %v1581
    %v1935 = vpack.c.b16 %v1584, %v1583
    %v1936 = vpack.c.b16 %v1586, %v1585
    %v1937 = vpack.c.b16 %v1588, %v1587
    %v1938 = vpack.c.b16 %v1590, %v1589
    %v1939 = vpack.c.b16 %v1592, %v1591
    %v1940 = vpack.c.b16 %v1594, %v1593
    %v1941 = vpack.c.b16 %v1596, %v1595
    %v1942 = vpack.c.b16 %v1598, %v1597
    %v1943 = vpack.c.b16 %v1600, %v1599
    %v1944 = vpack.c.b16 %v1602, %v1601
    %v1945 = vpack.c.b16 %v1604, %v1603
    %v1946 = vpack.c.b16 %v1606, %v1605
    %v1947 = vpack.c.b16 %v1608, %v1607
    %v1948 = vpack.c.b16 %v1610, %v1609
    %v1949 = vpack.c.b16 %v1612, %v1611
    %v1950 = vpack.c.b16 %v1614, %v1613
    %v1951 = vpack.c.b16 %v1616, %v1615
    %v1952 = vpack.c.b16 %v1618, %v1617
    %v1953 = vpack.c.b16 %v1620, %v1619
    %v1954 = vpack.c.b16 %v1622, %v1621
    %v1955 = vpack.c.b16 %v1624, %v1623
    %v1956 = vpack.c.b16 %v1626, %v1625
    %v1957 = vpack.c.b16 %v1628, %v1627
    %v1958 = vpack.c.b16 %v1630, %v1629
    %v1959 = vpack.c.b16 %v1632, %v1631
    %v1960 = vpack.c.b16 %v1634, %v1633
    %v1961 = vpack.c.b16 %v1636, %v1635
    %v1962 = vpack.c.b16 %v1638, %v1637
    %v1963 = vpack.c.b16 %v1640, %v1639
    %v1964 = vpack.c.b16 %v1642, %v1641
    %v1965 = vpack.c.b16 %v1644, %v1643
    %v1966 = vpack.c.b16 %v1646, %v1645
    %v1967 = vpack.c.b16 %v1648, %v1647
    %v1968 = vpack.c.b16 %v1650, %v1649
    %v1969 = vpack.c.b16 %v1652, %v1651
    %v1970 = vpack.c.b16 %v1654, %v1653
    %v1971 = vpack.c.b16 %v1656, %v1655
    %v1972 = vpack.c.b16 %v1658, %v1657
    %v1973 = vpack.c.b16 %v1660, %v1659
    %v1974 = vpack.c.b16 %v1662, %v1661
    %v1975 = vpack.c.b16 %v1664, %v1663
    %v1976 = vpack.c.b16 %v1666, %v1665
    %v1977 = vpack.c.b16 %v1668, %v1667
    %v1978 = vpack.c.b16 %v1670, %v1669
    %v1979 = vpack.c.b16 %v1672, %v1671
    %v1980 = vpack.c.b16 %v1674, %v1673
    %v1981 = vpack.c.b16 %v1676, %v1675
    %v1982 = vpack.c.b16 %v1678, %v1677
    %v1983 = vpack.c.b16 %v1680, %v1679
    %v1984 = vpack.c.b16 %v1682, %v1681
    %v1985 = vpack.c.b16 %v1684, %v1683
    %v1986 = vpack.c.b16 %v1686, %v1685
    %v1987 = vpack.c.b16 %v1688, %v1687
    %v1988 = vpack.c.b16 %v1690, %v1689
    %v1989 = vpack.c.b16 %v1692, %v1691
    %v1990 = vpack.c.b16 %v1694, %v1693
    %v1991 = vpack.c.b16 %v1696, %v1695
    %v1992 = vpack.c.b16 %v1698, %v1697
    %v1993 = vpack.c.b16 %v1700, %v1699
    %v1994 = vpack.c.b16 %v1702, %v1701
    %v1995 = vpack.c.b16 %v1704, %v1703
    %v1996 = vpack.c.b16 %v1706, %v1705
    %v1997 = vpack.c.b16 %v1708, %v1707
    %v1998 = vpack.c.b16 %v1710, %v1709
    %v1999 = vpack.c.b16 %v1712, %v1711
    %v2000 = vpack.c.b16 %v1714, %v1713
    %v2001 = vpack.c.b16 %v1716, %v1715
    %v2002 = vpack.c.b16 %v1718, %v1717
    %v2003 = vpack.c.b16 %v1720, %v1719
    %v2004 = vpack.c.b16 %v1722, %v1721
    %v2005 = vpack.c.b16 %v1724, %v1723
    %v2006 = vpack.c.b16 %v1726, %v1725
    %v2007 = vpack.c.b16 %v1728, %v1727
    %v2008 = vpack.c.b16 %v1730, %v1729
    %v2009 = vpack.c.b16 %v1732, %v1731
    %v2010 = vpack.c.b16 %v1734, %v1733
    %v2011 = vpack.c.b16 %v1736, %v1735
    %v2012 = vpack.c.b16 %v1738, %v1737
    %v2013 = vpack.c.b16 %v1740, %v1739
    %v2014 = vpack.c.b16 %v1742, %v1741
    %v2015 = vpack.c.b16 %v1744, %v1743
    %v2016 = vpack.c.b16 %v1746, %v1745
    %v2017 = vpack.c.b16 %v1748, %v1747
    %v2018 = vpack.c.b16 %v1750, %v1749
    %v2019 = vpack.c.b16 %v1752, %v1751
    %v2020 = vpack.c.b16 %v1754, %v1753
    %v2021 = vpack.c.b16 %v1756, %v1755
    %v2022 = vpack.c.b16 %v1758, %v1757
    %v2023 = vpack.c.b16 %v1760, %v1759
    %v2024 = vpack.c.b16 %v1762, %v1761
    %v2025 = vpack.c.b16 %v1764, %v1763
    %v2026 = vpack.c.b16 %v1766, %v1765
    %v2027 = vpack.c.b16 %v1768, %v1767
    %v2028 = vpack.c.b16 %v1770, %v1769
    %v2029 = vpack.c.b16 %v1772, %v1771
    %v2030 = vpack.c.b16 %v1774, %v1773
    %2287 = vmatprep.subr.bf16.mxu0 0
    %2288 = vmatpush1.bf16.msra.mxu0 %v1775
    %2289 = vmatprep.subr.bf16.mxu0 0
    %2290 = vmatpush1.bf16.msra.mxu0 %v1776
    %2291 = vmatprep.subr.bf16.mxu0 0
    %2292 = vmatpush1.bf16.msra.mxu0 %v1777
    %2293 = vmatprep.subr.bf16.mxu0 0
    %2294 = vmatpush1.bf16.msra.mxu0 %v1778
    %2295 = vmatprep.subr.bf16.mxu0 0
    %2296 = vmatpush1.bf16.msra.mxu0 %v1779
    %2297 = vmatprep.subr.bf16.mxu0 0
    %2298 = vmatpush1.bf16.msra.mxu0 %v1780
    %2299 = vmatprep.subr.bf16.mxu0 0
    %2300 = vmatpush1.bf16.msra.mxu0 %v1781
    %2301 = vmatprep.subr.bf16.mxu0 0
    %2302 = vmatpush1.bf16.msra.mxu0 %v1782
    %2303 = vmatprep.subr.bf16.mxu0 0
    %2304 = vmatpush1.bf16.msra.mxu0 %v1783
    %2305 = vmatprep.subr.bf16.mxu0 0
    %2306 = vmatpush1.bf16.msra.mxu0 %v1784
    %2307 = vmatprep.subr.bf16.mxu0 0
    %2308 = vmatpush1.bf16.msra.mxu0 %v1785
    %2309 = vmatprep.subr.bf16.mxu0 0
    %2310 = vmatpush1.bf16.msra.mxu0 %v1786
    %2311 = vmatprep.subr.bf16.mxu0 0
    %2312 = vmatpush1.bf16.msra.mxu0 %v1787
    %2313 = vmatprep.subr.bf16.mxu0 0
    %2314 = vmatpush1.bf16.msra.mxu0 %v1788
    %2315 = vmatprep.subr.bf16.mxu0 0
    %2316 = vmatpush1.bf16.msra.mxu0 %v1789
    %2317 = vmatprep.subr.bf16.mxu0 0
    %2318 = vmatpush1.bf16.msra.mxu0 %v1790
    %2319 = vmatprep.mubr.bf16.mxu0 %v201
    %2320 = vmatmul.mubr.bf16.gmra.mrb[0].mxu0 %v200
    %v2321 = vpop.f32.mrb[0].mxu0
    %v2322 = vadd.f32 %v749, %v2321
    %v2323 = vpop.f32.mrb[0].mxu0
    %v2324 = vpop.f32.mrb[0].mxu0
    %v2325 = vpop.f32.mrb[0].mxu0
    %2326 = vdwg.mxu0
    %2327 = vmatprep.subr.bf16.mxu0 0
    %2328 = vmatpush1.bf16.msra.mxu0 %v1791
    %2329 = vmatprep.subr.bf16.mxu0 0
    %2330 = vmatpush1.bf16.msra.mxu0 %v1792
    %2331 = vmatprep.subr.bf16.mxu0 0
    %2332 = vmatpush1.bf16.msra.mxu0 %v1793
    %2333 = vmatprep.subr.bf16.mxu0 0
    %2334 = vmatpush1.bf16.msra.mxu0 %v1794
    %2335 = vmatprep.subr.bf16.mxu0 0
    %2336 = vmatpush1.bf16.msra.mxu0 %v1795
    %2337 = vmatprep.subr.bf16.mxu0 0
    %2338 = vmatpush1.bf16.msra.mxu0 %v1796
    %2339 = vmatprep.subr.bf16.mxu0 0
    %2340 = vmatpush1.bf16.msra.mxu0 %v1797
    %2341 = vmatprep.subr.bf16.mxu0 0
    %2342 = vmatpush1.bf16.msra.mxu0 %v1798
    %2343 = vmatprep.subr.bf16.mxu0 0
    %2344 = vmatpush1.bf16.msra.mxu0 %v1799
    %2345 = vmatprep.subr.bf16.mxu0 0
    %2346 = vmatpush1.bf16.msra.mxu0 %v1800
    %2347 = vmatprep.subr.bf16.mxu0 0
    %2348 = vmatpush1.bf16.msra.mxu0 %v1801
    %2349 = vmatprep.subr.bf16.mxu0 0
    %2350 = vmatpush1.bf16.msra.mxu0 %v1802
    %2351 = vmatprep.subr.bf16.mxu0 0
    %2352 = vmatpush1.bf16.msra.mxu0 %v1803
    %2353 = vmatprep.subr.bf16.mxu0 0
    %2354 = vmatpush1.bf16.msra.mxu0 %v1804
    %2355 = vmatprep.subr.bf16.mxu0 0
    %2356 = vmatpush1.bf16.msra.mxu0 %v1805
    %2357 = vmatprep.subr.bf16.mxu0 0
    %2358 = vmatpush1.bf16.msra.mxu0 %v1806
    %2359 = vmatprep.mubr.bf16.mxu0 %v203
    %2360 = vmatmul.mubr.bf16.gmra.mrb[0].mxu0 %v202
    %v2361 = vpop.f32.mrb[0].mxu0
    %v2362 = vadd.f32 %v2322, %v2361
    %v2363 = vpop.f32.mrb[0].mxu0
    %v2364 = vpop.f32.mrb[0].mxu0
    %v2365 = vpop.f32.mrb[0].mxu0
    %2366 = vdwg.mxu0
    %2367 = vmatprep.subr.bf16.mxu0 0
    %2368 = vmatpush1.bf16.msra.mxu0 %v1807
    %2369 = vmatprep.subr.bf16.mxu0 0
    %2370 = vmatpush1.bf16.msra.mxu0 %v1808
    %2371 = vmatprep.subr.bf16.mxu0 0
    %2372 = vmatpush1.bf16.msra.mxu0 %v1809
    %2373 = vmatprep.subr.bf16.mxu0 0
    %2374 = vmatpush1.bf16.msra.mxu0 %v1810
    %2375 = vmatprep.subr.bf16.mxu0 0
    %2376 = vmatpush1.bf16.msra.mxu0 %v1811
    %2377 = vmatprep.subr.bf16.mxu0 0
    %2378 = vmatpush1.bf16.msra.mxu0 %v1812
    %2379 = vmatprep.subr.bf16.mxu0 0
    %2380 = vmatpush1.bf16.msra.mxu0 %v1813
    %2381 = vmatprep.subr.bf16.mxu0 0
    %2382 = vmatpush1.bf16.msra.mxu0 %v1814
    %2383 = vmatprep.subr.bf16.mxu0 0
    %2384 = vmatpush1.bf16.msra.mxu0 %v1815
    %2385 = vmatprep.subr.bf16.mxu0 0
    %2386 = vmatpush1.bf16.msra.mxu0 %v1816
    %2387 = vmatprep.subr.bf16.mxu0 0
    %2388 = vmatpush1.bf16.msra.mxu0 %v1817
    %2389 = vmatprep.subr.bf16.mxu0 0
    %2390 = vmatpush1.bf16.msra.mxu0 %v1818
    %2391 = vmatprep.subr.bf16.mxu0 0
    %2392 = vmatpush1.bf16.msra.mxu0 %v1819
    %2393 = vmatprep.subr.bf16.mxu0 0
    %2394 = vmatpush1.bf16.msra.mxu0 %v1820
    %2395 = vmatprep.subr.bf16.mxu0 0
    %2396 = vmatpush1.bf16.msra.mxu0 %v1821
    %2397 = vmatprep.subr.bf16.mxu0 0
    %2398 = vmatpush1.bf16.msra.mxu0 %v1822
    %2399 = vmatprep.mubr.bf16.mxu0 %v205
    %2400 = vmatmul.mubr.bf16.gmra.mrb[0].mxu0 %v204
    %v2401 = vpop.f32.mrb[0].mxu0
    %v2402 = vadd.f32 %v2362, %v2401
    %v2403 = vpop.f32.mrb[0].mxu0
    %v2404 = vpop.f32.mrb[0].mxu0
    %v2405 = vpop.f32.mrb[0].mxu0
    %2406 = vdwg.mxu0
    %2407 = vmatprep.subr.bf16.mxu0 0
    %2408 = vmatpush1.bf16.msra.mxu0 %v1823
    %2409 = vmatprep.subr.bf16.mxu0 0
    %2410 = vmatpush1.bf16.msra.mxu0 %v1824
    %2411 = vmatprep.subr.bf16.mxu0 0
    %2412 = vmatpush1.bf16.msra.mxu0 %v1825
    %2413 = vmatprep.subr.bf16.mxu0 0
    %2414 = vmatpush1.bf16.msra.mxu0 %v1826
    %2415 = vmatprep.subr.bf16.mxu0 0
    %2416 = vmatpush1.bf16.msra.mxu0 %v1827
    %2417 = vmatprep.subr.bf16.mxu0 0
    %2418 = vmatpush1.bf16.msra.mxu0 %v1828
    %2419 = vmatprep.subr.bf16.mxu0 0
    %2420 = vmatpush1.bf16.msra.mxu0 %v1829
    %2421 = vmatprep.subr.bf16.mxu0 0
    %2422 = vmatpush1.bf16.msra.mxu0 %v1830
    %2423 = vmatprep.subr.bf16.mxu0 0
    %2424 = vmatpush1.bf16.msra.mxu0 %v1831
    %2425 = vmatprep.subr.bf16.mxu0 0
    %2426 = vmatpush1.bf16.msra.mxu0 %v1832
    %2427 = vmatprep.subr.bf16.mxu0 0
    %2428 = vmatpush1.bf16.msra.mxu0 %v1833
    %2429 = vmatprep.subr.bf16.mxu0 0
    %2430 = vmatpush1.bf16.msra.mxu0 %v1834
    %2431 = vmatprep.subr.bf16.mxu0 0
    %2432 = vmatpush1.bf16.msra.mxu0 %v1835
    %2433 = vmatprep.subr.bf16.mxu0 0
    %2434 = vmatpush1.bf16.msra.mxu0 %v1836
    %2435 = vmatprep.subr.bf16.mxu0 0
    %2436 = vmatpush1.bf16.msra.mxu0 %v1837
    %2437 = vmatprep.subr.bf16.mxu0 0
    %2438 = vmatpush1.bf16.msra.mxu0 %v1838
    %2439 = vmatprep.mubr.bf16.mxu0 %v207
    %2440 = vmatmul.mubr.bf16.gmra.mrb[0].mxu0 %v206
    %v2441 = vpop.f32.mrb[0].mxu0
    %v2442 = vadd.f32 %v2402, %v2441
    %v2443 = vpop.f32.mrb[0].mxu0
    %v2444 = vpop.f32.mrb[0].mxu0
    %v2445 = vpop.f32.mrb[0].mxu0
    %2446 = vdwg.mxu0
    %2447 = vmatprep.subr.bf16.mxu0 0
    %2448 = vmatpush1.bf16.msra.mxu0 %v1839
    %2449 = vmatprep.subr.bf16.mxu0 0
    %2450 = vmatpush1.bf16.msra.mxu0 %v1840
    %2451 = vmatprep.subr.bf16.mxu0 0
    %2452 = vmatpush1.bf16.msra.mxu0 %v1841
    %2453 = vmatprep.subr.bf16.mxu0 0
    %2454 = vmatpush1.bf16.msra.mxu0 %v1842
    %2455 = vmatprep.subr.bf16.mxu0 0
    %2456 = vmatpush1.bf16.msra.mxu0 %v1843
    %2457 = vmatprep.subr.bf16.mxu0 0
    %2458 = vmatpush1.bf16.msra.mxu0 %v1844
    %2459 = vmatprep.subr.bf16.mxu0 0
    %2460 = vmatpush1.bf16.msra.mxu0 %v1845
    %2461 = vmatprep.subr.bf16.mxu0 0
    %2462 = vmatpush1.bf16.msra.mxu0 %v1846
    %2463 = vmatprep.subr.bf16.mxu0 0
    %2464 = vmatpush1.bf16.msra.mxu0 %v1847
    %2465 = vmatprep.subr.bf16.mxu0 0
    %2466 = vmatpush1.bf16.msra.mxu0 %v1848
    %2467 = vmatprep.subr.bf16.mxu0 0
    %2468 = vmatpush1.bf16.msra.mxu0 %v1849
    %2469 = vmatprep.subr.bf16.mxu0 0
    %2470 = vmatpush1.bf16.msra.mxu0 %v1850
    %2471 = vmatprep.subr.bf16.mxu0 0
    %2472 = vmatpush1.bf16.msra.mxu0 %v1851
    %2473 = vmatprep.subr.bf16.mxu0 0
    %2474 = vmatpush1.bf16.msra.mxu0 %v1852
    %2475 = vmatprep.subr.bf16.mxu0 0
    %2476 = vmatpush1.bf16.msra.mxu0 %v1853
    %2477 = vmatprep.subr.bf16.mxu0 0
    %2478 = vmatpush1.bf16.msra.mxu0 %v1854
    %2479 = vmatprep.mubr.bf16.mxu0 %v209
    %2480 = vmatmul.mubr.bf16.gmra.mrb[0].mxu0 %v208
    %v2481 = vpop.f32.mrb[0].mxu0
    %v2482 = vadd.f32 %v2442, %v2481
    %v2483 = vpop.f32.mrb[0].mxu0
    %v2484 = vpop.f32.mrb[0].mxu0
    %v2485 = vpop.f32.mrb[0].mxu0
    %2486 = vdwg.mxu0
    %2487 = vmatprep.subr.bf16.mxu0 0
    %2488 = vmatpush1.bf16.msra.mxu0 %v1855
    %2489 = vmatprep.subr.bf16.mxu0 0
    %2490 = vmatpush1.bf16.msra.mxu0 %v1856
    %2491 = vmatprep.subr.bf16.mxu0 0
    %2492 = vmatpush1.bf16.msra.mxu0 %v1857
    %2493 = vmatprep.subr.bf16.mxu0 0
    %2494 = vmatpush1.bf16.msra.mxu0 %v1858
    %2495 = vmatprep.subr.bf16.mxu0 0
    %2496 = vmatpush1.bf16.msra.mxu0 %v1859
    %2497 = vmatprep.subr.bf16.mxu0 0
    %2498 = vmatpush1.bf16.msra.mxu0 %v1860
    %2499 = vmatprep.subr.bf16.mxu0 0
    %2500 = vmatpush1.bf16.msra.mxu0 %v1861
    %2501 = vmatprep.subr.bf16.mxu0 0
    %2502 = vmatpush1.bf16.msra.mxu0 %v1862
    %2503 = vmatprep.subr.bf16.mxu0 0
    %2504 = vmatpush1.bf16.msra.mxu0 %v1863
    %2505 = vmatprep.subr.bf16.mxu0 0
    %2506 = vmatpush1.bf16.msra.mxu0 %v1864
    %2507 = vmatprep.subr.bf16.mxu0 0
    %2508 = vmatpush1.bf16.msra.mxu0 %v1865
    %2509 = vmatprep.subr.bf16.mxu0 0
    %2510 = vmatpush1.bf16.msra.mxu0 %v1866
    %2511 = vmatprep.subr.bf16.mxu0 0
    %2512 = vmatpush1.bf16.msra.mxu0 %v1867
    %2513 = vmatprep.subr.bf16.mxu0 0
    %2514 = vmatpush1.bf16.msra.mxu0 %v1868
    %2515 = vmatprep.subr.bf16.mxu0 0
    %2516 = vmatpush1.bf16.msra.mxu0 %v1869
    %2517 = vmatprep.subr.bf16.mxu0 0
    %2518 = vmatpush1.bf16.msra.mxu0 %v1870
    %2519 = vmatprep.mubr.bf16.mxu0 %v211
    %2520 = vmatmul.mubr.bf16.gmra.mrb[0].mxu0 %v210
    %v2521 = vpop.f32.mrb[0].mxu0
    %v2522 = vadd.f32 %v2482, %v2521
    %v2523 = vpop.f32.mrb[0].mxu0
    %v2524 = vpop.f32.mrb[0].mxu0
    %v2525 = vpop.f32.mrb[0].mxu0
    %2526 = vdwg.mxu0
    %2527 = vmatprep.subr.bf16.mxu0 0
    %2528 = vmatpush1.bf16.msra.mxu0 %v1871
    %2529 = vmatprep.subr.bf16.mxu0 0
    %2530 = vmatpush1.bf16.msra.mxu0 %v1872
    %2531 = vmatprep.subr.bf16.mxu0 0
    %2532 = vmatpush1.bf16.msra.mxu0 %v1873
    %2533 = vmatprep.subr.bf16.mxu0 0
    %2534 = vmatpush1.bf16.msra.mxu0 %v1874
    %2535 = vmatprep.subr.bf16.mxu0 0
    %2536 = vmatpush1.bf16.msra.mxu0 %v1875
    %2537 = vmatprep.subr.bf16.mxu0 0
    %2538 = vmatpush1.bf16.msra.mxu0 %v1876
    %2539 = vmatprep.subr.bf16.mxu0 0
    %2540 = vmatpush1.bf16.msra.mxu0 %v1877
    %2541 = vmatprep.subr.bf16.mxu0 0
    %2542 = vmatpush1.bf16.msra.mxu0 %v1878
    %2543 = vmatprep.subr.bf16.mxu0 0
    %2544 = vmatpush1.bf16.msra.mxu0 %v1879
    %2545 = vmatprep.subr.bf16.mxu0 0
    %2546 = vmatpush1.bf16.msra.mxu0 %v1880
    %2547 = vmatprep.subr.bf16.mxu0 0
    %2548 = vmatpush1.bf16.msra.mxu0 %v1881
    %2549 = vmatprep.subr.bf16.mxu0 0
    %2550 = vmatpush1.bf16.msra.mxu0 %v1882
    %2551 = vmatprep.subr.bf16.mxu0 0
    %2552 = vmatpush1.bf16.msra.mxu0 %v1883
    %2553 = vmatprep.subr.bf16.mxu0 0
    %2554 = vmatpush1.bf16.msra.mxu0 %v1884
    %2555 = vmatprep.subr.bf16.mxu0 0
    %2556 = vmatpush1.bf16.msra.mxu0 %v1885
    %2557 = vmatprep.subr.bf16.mxu0 0
    %2558 = vmatpush1.bf16.msra.mxu0 %v1886
    %2559 = vmatprep.mubr.bf16.mxu0 %v213
    %2560 = vmatmul.mubr.bf16.gmra.mrb[0].mxu0 %v212
    %v2561 = vpop.f32.mrb[0].mxu0
    %v2562 = vadd.f32 %v2522, %v2561
    %v2563 = vpop.f32.mrb[0].mxu0
    %v2564 = vpop.f32.mrb[0].mxu0
    %v2565 = vpop.f32.mrb[0].mxu0
    %2566 = vdwg.mxu0
    %2567 = vmatprep.subr.bf16.mxu0 0
    %2568 = vmatpush1.bf16.msra.mxu0 %v1887
    %2569 = vmatprep.subr.bf16.mxu0 0
    %2570 = vmatpush1.bf16.msra.mxu0 %v1888
    %2571 = vmatprep.subr.bf16.mxu0 0
    %2572 = vmatpush1.bf16.msra.mxu0 %v1889
    %2573 = vmatprep.subr.bf16.mxu0 0
    %2574 = vmatpush1.bf16.msra.mxu0 %v1890
    %2575 = vmatprep.subr.bf16.mxu0 0
    %2576 = vmatpush1.bf16.msra.mxu0 %v1891
    %2577 = vmatprep.subr.bf16.mxu0 0
    %2578 = vmatpush1.bf16.msra.mxu0 %v1892
    %2579 = vmatprep.subr.bf16.mxu0 0
    %2580 = vmatpush1.bf16.msra.mxu0 %v1893
    %2581 = vmatprep.subr.bf16.mxu0 0
    %2582 = vmatpush1.bf16.msra.mxu0 %v1894
    %2583 = vmatprep.subr.bf16.mxu0 0
    %2584 = vmatpush1.bf16.msra.mxu0 %v1895
    %2585 = vmatprep.subr.bf16.mxu0 0
    %2586 = vmatpush1.bf16.msra.mxu0 %v1896
    %2587 = vmatprep.subr.bf16.mxu0 0
    %2588 = vmatpush1.bf16.msra.mxu0 %v1897
    %2589 = vmatprep.subr.bf16.mxu0 0
    %2590 = vmatpush1.bf16.msra.mxu0 %v1898
    %2591 = vmatprep.subr.bf16.mxu0 0
    %2592 = vmatpush1.bf16.msra.mxu0 %v1899
    %2593 = vmatprep.subr.bf16.mxu0 0
    %2594 = vmatpush1.bf16.msra.mxu0 %v1900
    %2595 = vmatprep.subr.bf16.mxu0 0
    %2596 = vmatpush1.bf16.msra.mxu0 %v1901
    %2597 = vmatprep.subr.bf16.mxu0 0
    %2598 = vmatpush1.bf16.msra.mxu0 %v1902
    %2599 = vmatprep.mubr.bf16.mxu0 %v215
    %2600 = vmatmul.mubr.bf16.gmra.mrb[0].mxu0 %v214
    %v2601 = vpop.f32.mrb[0].mxu0
    %v2602 = vadd.f32 %v2562, %v2601
    %v2603 = vpop.f32.mrb[0].mxu0
    %v2604 = vpop.f32.mrb[0].mxu0
    %v2605 = vpop.f32.mrb[0].mxu0
    %2606 = vdwg.mxu0
    %2607 = vmatprep.subr.bf16.mxu0 0
    %2608 = vmatpush1.bf16.msra.mxu0 %v1903
    %2609 = vmatprep.subr.bf16.mxu0 0
    %2610 = vmatpush1.bf16.msra.mxu0 %v1904
    %2611 = vmatprep.subr.bf16.mxu0 0
    %2612 = vmatpush1.bf16.msra.mxu0 %v1905
    %2613 = vmatprep.subr.bf16.mxu0 0
    %2614 = vmatpush1.bf16.msra.mxu0 %v1906
    %2615 = vmatprep.subr.bf16.mxu0 0
    %2616 = vmatpush1.bf16.msra.mxu0 %v1907
    %2617 = vmatprep.subr.bf16.mxu0 0
    %2618 = vmatpush1.bf16.msra.mxu0 %v1908
    %2619 = vmatprep.subr.bf16.mxu0 0
    %2620 = vmatpush1.bf16.msra.mxu0 %v1909
    %2621 = vmatprep.subr.bf16.mxu0 0
    %2622 = vmatpush1.bf16.msra.mxu0 %v1910
    %2623 = vmatprep.subr.bf16.mxu0 0
    %2624 = vmatpush1.bf16.msra.mxu0 %v1911
    %2625 = vmatprep.subr.bf16.mxu0 0
    %2626 = vmatpush1.bf16.msra.mxu0 %v1912
    %2627 = vmatprep.subr.bf16.mxu0 0
    %2628 = vmatpush1.bf16.msra.mxu0 %v1913
    %2629 = vmatprep.subr.bf16.mxu0 0
    %2630 = vmatpush1.bf16.msra.mxu0 %v1914
    %2631 = vmatprep.subr.bf16.mxu0 0
    %2632 = vmatpush1.bf16.msra.mxu0 %v1915
    %2633 = vmatprep.subr.bf16.mxu0 0
    %2634 = vmatpush1.bf16.msra.mxu0 %v1916
    %2635 = vmatprep.subr.bf16.mxu0 0
    %2636 = vmatpush1.bf16.msra.mxu0 %v1917
    %2637 = vmatprep.subr.bf16.mxu0 0
    %2638 = vmatpush1.bf16.msra.mxu0 %v1918
    %2639 = vmatprep.mubr.bf16.mxu0 %v217
    %2640 = vmatmul.mubr.bf16.gmra.mrb[0].mxu0 %v216
    %v2641 = vpop.f32.mrb[0].mxu0
    %v2642 = vadd.f32 %v2602, %v2641
    %v2643 = vpop.f32.mrb[0].mxu0
    %v2644 = vpop.f32.mrb[0].mxu0
    %v2645 = vpop.f32.mrb[0].mxu0
    %2646 = vdwg.mxu0
    %2647 = vmatprep.subr.bf16.mxu0 0
    %2648 = vmatpush1.bf16.msra.mxu0 %v1919
    %2649 = vmatprep.subr.bf16.mxu0 0
    %2650 = vmatpush1.bf16.msra.mxu0 %v1920
    %2651 = vmatprep.subr.bf16.mxu0 0
    %2652 = vmatpush1.bf16.msra.mxu0 %v1921
    %2653 = vmatprep.subr.bf16.mxu0 0
    %2654 = vmatpush1.bf16.msra.mxu0 %v1922
    %2655 = vmatprep.subr.bf16.mxu0 0
    %2656 = vmatpush1.bf16.msra.mxu0 %v1923
    %2657 = vmatprep.subr.bf16.mxu0 0
    %2658 = vmatpush1.bf16.msra.mxu0 %v1924
    %2659 = vmatprep.subr.bf16.mxu0 0
    %2660 = vmatpush1.bf16.msra.mxu0 %v1925
    %2661 = vmatprep.subr.bf16.mxu0 0
    %2662 = vmatpush1.bf16.msra.mxu0 %v1926
    %2663 = vmatprep.subr.bf16.mxu0 0
    %2664 = vmatpush1.bf16.msra.mxu0 %v1927
    %2665 = vmatprep.subr.bf16.mxu0 0
    %2666 = vmatpush1.bf16.msra.mxu0 %v1928
    %2667 = vmatprep.subr.bf16.mxu0 0
    %2668 = vmatpush1.bf16.msra.mxu0 %v1929
    %2669 = vmatprep.subr.bf16.mxu0 0
    %2670 = vmatpush1.bf16.msra.mxu0 %v1930
    %2671 = vmatprep.subr.bf16.mxu0 0
    %2672 = vmatpush1.bf16.msra.mxu0 %v1931
    %2673 = vmatprep.subr.bf16.mxu0 0
    %2674 = vmatpush1.bf16.msra.mxu0 %v1932
    %2675 = vmatprep.subr.bf16.mxu0 0
    %2676 = vmatpush1.bf16.msra.mxu0 %v1933
    %2677 = vmatprep.subr.bf16.mxu0 0
    %2678 = vmatpush1.bf16.msra.mxu0 %v1934
    %2679 = vmatprep.mubr.bf16.mxu0 %v219
    %2680 = vmatmul.mubr.bf16.gmra.mrb[0].mxu0 %v218
    %v2681 = vpop.f32.mrb[0].mxu0
    %v2682 = vadd.f32 %v2642, %v2681
    %v2683 = vpop.f32.mrb[0].mxu0
    %v2684 = vpop.f32.mrb[0].mxu0
    %v2685 = vpop.f32.mrb[0].mxu0
    %2686 = vdwg.mxu0
    %2687 = vmatprep.subr.bf16.mxu0 0
    %2688 = vmatpush1.bf16.msra.mxu0 %v1935
    %2689 = vmatprep.subr.bf16.mxu0 0
    %2690 = vmatpush1.bf16.msra.mxu0 %v1936
    %2691 = vmatprep.subr.bf16.mxu0 0
    %2692 = vmatpush1.bf16.msra.mxu0 %v1937
    %2693 = vmatprep.subr.bf16.mxu0 0
    %2694 = vmatpush1.bf16.msra.mxu0 %v1938
    %2695 = vmatprep.subr.bf16.mxu0 0
    %2696 = vmatpush1.bf16.msra.mxu0 %v1939
    %2697 = vmatprep.subr.bf16.mxu0 0
    %2698 = vmatpush1.bf16.msra.mxu0 %v1940
    %2699 = vmatprep.subr.bf16.mxu0 0
    %2700 = vmatpush1.bf16.msra.mxu0 %v1941
    %2701 = vmatprep.subr.bf16.mxu0 0
    %2702 = vmatpush1.bf16.msra.mxu0 %v1942
    %2703 = vmatprep.subr.bf16.mxu0 0
    %2704 = vmatpush1.bf16.msra.mxu0 %v1943
    %2705 = vmatprep.subr.bf16.mxu0 0
    %2706 = vmatpush1.bf16.msra.mxu0 %v1944
    %2707 = vmatprep.subr.bf16.mxu0 0
    %2708 = vmatpush1.bf16.msra.mxu0 %v1945
    %2709 = vmatprep.subr.bf16.mxu0 0
    %2710 = vmatpush1.bf16.msra.mxu0 %v1946
    %2711 = vmatprep.subr.bf16.mxu0 0
    %2712 = vmatpush1.bf16.msra.mxu0 %v1947
    %2713 = vmatprep.subr.bf16.mxu0 0
    %2714 = vmatpush1.bf16.msra.mxu0 %v1948
    %2715 = vmatprep.subr.bf16.mxu0 0
    %2716 = vmatpush1.bf16.msra.mxu0 %v1949
    %2717 = vmatprep.subr.bf16.mxu0 0
    %2718 = vmatpush1.bf16.msra.mxu0 %v1950
    %2719 = vmatprep.mubr.bf16.mxu0 %v221
    %2720 = vmatmul.mubr.bf16.gmra.mrb[0].mxu0 %v220
    %v2721 = vpop.f32.mrb[0].mxu0
    %v2722 = vadd.f32 %v2682, %v2721
    %v2723 = vpop.f32.mrb[0].mxu0
    %v2724 = vpop.f32.mrb[0].mxu0
    %v2725 = vpop.f32.mrb[0].mxu0
    %2726 = vdwg.mxu0
    %2727 = vmatprep.subr.bf16.mxu0 0
    %2728 = vmatpush1.bf16.msra.mxu0 %v1951
    %2729 = vmatprep.subr.bf16.mxu0 0
    %2730 = vmatpush1.bf16.msra.mxu0 %v1952
    %2731 = vmatprep.subr.bf16.mxu0 0
    %2732 = vmatpush1.bf16.msra.mxu0 %v1953
    %2733 = vmatprep.subr.bf16.mxu0 0
    %2734 = vmatpush1.bf16.msra.mxu0 %v1954
    %2735 = vmatprep.subr.bf16.mxu0 0
    %2736 = vmatpush1.bf16.msra.mxu0 %v1955
    %2737 = vmatprep.subr.bf16.mxu0 0
    %2738 = vmatpush1.bf16.msra.mxu0 %v1956
    %2739 = vmatprep.subr.bf16.mxu0 0
    %2740 = vmatpush1.bf16.msra.mxu0 %v1957
    %2741 = vmatprep.subr.bf16.mxu0 0
    %2742 = vmatpush1.bf16.msra.mxu0 %v1958
    %2743 = vmatprep.subr.bf16.mxu0 0
    %2744 = vmatpush1.bf16.msra.mxu0 %v1959
    %2745 = vmatprep.subr.bf16.mxu0 0
    %2746 = vmatpush1.bf16.msra.mxu0 %v1960
    %2747 = vmatprep.subr.bf16.mxu0 0
    %2748 = vmatpush1.bf16.msra.mxu0 %v1961
    %2749 = vmatprep.subr.bf16.mxu0 0
    %2750 = vmatpush1.bf16.msra.mxu0 %v1962
    %2751 = vmatprep.subr.bf16.mxu0 0
    %2752 = vmatpush1.bf16.msra.mxu0 %v1963
    %2753 = vmatprep.subr.bf16.mxu0 0
    %2754 = vmatpush1.bf16.msra.mxu0 %v1964
    %2755 = vmatprep.subr.bf16.mxu0 0
    %2756 = vmatpush1.bf16.msra.mxu0 %v1965
    %2757 = vmatprep.subr.bf16.mxu0 0
    %2758 = vmatpush1.bf16.msra.mxu0 %v1966
    %2759 = vmatprep.mubr.bf16.mxu0 %v223
    %2760 = vmatmul.mubr.bf16.gmra.mrb[0].mxu0 %v222
    %v2761 = vpop.f32.mrb[0].mxu0
    %v2762 = vadd.f32 %v2722, %v2761
    %v2763 = vpop.f32.mrb[0].mxu0
    %v2764 = vpop.f32.mrb[0].mxu0
    %v2765 = vpop.f32.mrb[0].mxu0
    %2766 = vdwg.mxu0
    %2767 = vmatprep.subr.bf16.mxu0 0
    %2768 = vmatpush1.bf16.msra.mxu0 %v1967
    %2769 = vmatprep.subr.bf16.mxu0 0
    %2770 = vmatpush1.bf16.msra.mxu0 %v1968
    %2771 = vmatprep.subr.bf16.mxu0 0
    %2772 = vmatpush1.bf16.msra.mxu0 %v1969
    %2773 = vmatprep.subr.bf16.mxu0 0
    %2774 = vmatpush1.bf16.msra.mxu0 %v1970
    %2775 = vmatprep.subr.bf16.mxu0 0
    %2776 = vmatpush1.bf16.msra.mxu0 %v1971
    %2777 = vmatprep.subr.bf16.mxu0 0
    %2778 = vmatpush1.bf16.msra.mxu0 %v1972
    %2779 = vmatprep.subr.bf16.mxu0 0
    %2780 = vmatpush1.bf16.msra.mxu0 %v1973
    %2781 = vmatprep.subr.bf16.mxu0 0
    %2782 = vmatpush1.bf16.msra.mxu0 %v1974
    %2783 = vmatprep.subr.bf16.mxu0 0
    %2784 = vmatpush1.bf16.msra.mxu0 %v1975
    %2785 = vmatprep.subr.bf16.mxu0 0
    %2786 = vmatpush1.bf16.msra.mxu0 %v1976
    %2787 = vmatprep.subr.bf16.mxu0 0
    %2788 = vmatpush1.bf16.msra.mxu0 %v1977
    %2789 = vmatprep.subr.bf16.mxu0 0
    %2790 = vmatpush1.bf16.msra.mxu0 %v1978
    %2791 = vmatprep.subr.bf16.mxu0 0
    %2792 = vmatpush1.bf16.msra.mxu0 %v1979
    %2793 = vmatprep.subr.bf16.mxu0 0
    %2794 = vmatpush1.bf16.msra.mxu0 %v1980
    %2795 = vmatprep.subr.bf16.mxu0 0
    %2796 = vmatpush1.bf16.msra.mxu0 %v1981
    %2797 = vmatprep.subr.bf16.mxu0 0
    %2798 = vmatpush1.bf16.msra.mxu0 %v1982
    %2799 = vmatprep.mubr.bf16.mxu0 %v225
    %2800 = vmatmul.mubr.bf16.gmra.mrb[0].mxu0 %v224
    %v2801 = vpop.f32.mrb[0].mxu0
    %v2802 = vadd.f32 %v2762, %v2801
    %v2803 = vpop.f32.mrb[0].mxu0
    %v2804 = vpop.f32.mrb[0].mxu0
    %v2805 = vpop.f32.mrb[0].mxu0
    %2806 = vdwg.mxu0
    %2807 = vmatprep.subr.bf16.mxu0 0
    %2808 = vmatpush1.bf16.msra.mxu0 %v1983
    %2809 = vmatprep.subr.bf16.mxu0 0
    %2810 = vmatpush1.bf16.msra.mxu0 %v1984
    %2811 = vmatprep.subr.bf16.mxu0 0
    %2812 = vmatpush1.bf16.msra.mxu0 %v1985
    %2813 = vmatprep.subr.bf16.mxu0 0
    %2814 = vmatpush1.bf16.msra.mxu0 %v1986
    %2815 = vmatprep.subr.bf16.mxu0 0
    %2816 = vmatpush1.bf16.msra.mxu0 %v1987
    %2817 = vmatprep.subr.bf16.mxu0 0
    %2818 = vmatpush1.bf16.msra.mxu0 %v1988
    %2819 = vmatprep.subr.bf16.mxu0 0
    %2820 = vmatpush1.bf16.msra.mxu0 %v1989
    %2821 = vmatprep.subr.bf16.mxu0 0
    %2822 = vmatpush1.bf16.msra.mxu0 %v1990
    %2823 = vmatprep.subr.bf16.mxu0 0
    %2824 = vmatpush1.bf16.msra.mxu0 %v1991
    %2825 = vmatprep.subr.bf16.mxu0 0
    %2826 = vmatpush1.bf16.msra.mxu0 %v1992
    %2827 = vmatprep.subr.bf16.mxu0 0
    %2828 = vmatpush1.bf16.msra.mxu0 %v1993
    %2829 = vmatprep.subr.bf16.mxu0 0
    %2830 = vmatpush1.bf16.msra.mxu0 %v1994
    %2831 = vmatprep.subr.bf16.mxu0 0
    %2832 = vmatpush1.bf16.msra.mxu0 %v1995
    %2833 = vmatprep.subr.bf16.mxu0 0
    %2834 = vmatpush1.bf16.msra.mxu0 %v1996
    %2835 = vmatprep.subr.bf16.mxu0 0
    %2836 = vmatpush1.bf16.msra.mxu0 %v1997
    %2837 = vmatprep.subr.bf16.mxu0 0
    %2838 = vmatpush1.bf16.msra.mxu0 %v1998
    %2839 = vmatprep.mubr.bf16.mxu0 %v227
    %2840 = vmatmul.mubr.bf16.gmra.mrb[0].mxu0 %v226
    %v2841 = vpop.f32.mrb[0].mxu0
    %v2842 = vadd.f32 %v2802, %v2841
    %v2843 = vpop.f32.mrb[0].mxu0
    %v2844 = vpop.f32.mrb[0].mxu0
    %v2845 = vpop.f32.mrb[0].mxu0
    %2846 = vdwg.mxu0
    %2847 = vmatprep.subr.bf16.mxu0 0
    %2848 = vmatpush1.bf16.msra.mxu0 %v1999
    %2849 = vmatprep.subr.bf16.mxu0 0
    %2850 = vmatpush1.bf16.msra.mxu0 %v2000
    %2851 = vmatprep.subr.bf16.mxu0 0
    %2852 = vmatpush1.bf16.msra.mxu0 %v2001
    %2853 = vmatprep.subr.bf16.mxu0 0
    %2854 = vmatpush1.bf16.msra.mxu0 %v2002
    %2855 = vmatprep.subr.bf16.mxu0 0
    %2856 = vmatpush1.bf16.msra.mxu0 %v2003
    %2857 = vmatprep.subr.bf16.mxu0 0
    %2858 = vmatpush1.bf16.msra.mxu0 %v2004
    %2859 = vmatprep.subr.bf16.mxu0 0
    %2860 = vmatpush1.bf16.msra.mxu0 %v2005
    %2861 = vmatprep.subr.bf16.mxu0 0
    %2862 = vmatpush1.bf16.msra.mxu0 %v2006
    %2863 = vmatprep.subr.bf16.mxu0 0
    %2864 = vmatpush1.bf16.msra.mxu0 %v2007
    %2865 = vmatprep.subr.bf16.mxu0 0
    %2866 = vmatpush1.bf16.msra.mxu0 %v2008
    %2867 = vmatprep.subr.bf16.mxu0 0
    %2868 = vmatpush1.bf16.msra.mxu0 %v2009
    %2869 = vmatprep.subr.bf16.mxu0 0
    %2870 = vmatpush1.bf16.msra.mxu0 %v2010
    %2871 = vmatprep.subr.bf16.mxu0 0
    %2872 = vmatpush1.bf16.msra.mxu0 %v2011
    %2873 = vmatprep.subr.bf16.mxu0 0
    %2874 = vmatpush1.bf16.msra.mxu0 %v2012
    %2875 = vmatprep.subr.bf16.mxu0 0
    %2876 = vmatpush1.bf16.msra.mxu0 %v2013
    %2877 = vmatprep.subr.bf16.mxu0 0
    %2878 = vmatpush1.bf16.msra.mxu0 %v2014
    %2879 = vmatprep.mubr.bf16.mxu0 %v229
    %2880 = vmatmul.mubr.bf16.gmra.mrb[0].mxu0 %v228
    %v2881 = vpop.f32.mrb[0].mxu0
    %v2882 = vadd.f32 %v2842, %v2881
    %v2883 = vpop.f32.mrb[0].mxu0
    %v2884 = vpop.f32.mrb[0].mxu0
    %v2885 = vpop.f32.mrb[0].mxu0
    %2886 = vdwg.mxu0
    %2887 = vmatprep.subr.bf16.mxu0 0
    %2888 = vmatpush1.bf16.msra.mxu0 %v2015
    %2889 = vmatprep.subr.bf16.mxu0 0
    %2890 = vmatpush1.bf16.msra.mxu0 %v2016
    %2891 = vmatprep.subr.bf16.mxu0 0
    %2892 = vmatpush1.bf16.msra.mxu0 %v2017
    %2893 = vmatprep.subr.bf16.mxu0 0
    %2894 = vmatpush1.bf16.msra.mxu0 %v2018
    %2895 = vmatprep.subr.bf16.mxu0 0
    %2896 = vmatpush1.bf16.msra.mxu0 %v2019
    %2897 = vmatprep.subr.bf16.mxu0 0
    %2898 = vmatpush1.bf16.msra.mxu0 %v2020
    %2899 = vmatprep.subr.bf16.mxu0 0
    %2900 = vmatpush1.bf16.msra.mxu0 %v2021
    %2901 = vmatprep.subr.bf16.mxu0 0
    %2902 = vmatpush1.bf16.msra.mxu0 %v2022
    %2903 = vmatprep.subr.bf16.mxu0 0
    %2904 = vmatpush1.bf16.msra.mxu0 %v2023
    %2905 = vmatprep.subr.bf16.mxu0 0
    %2906 = vmatpush1.bf16.msra.mxu0 %v2024
    %2907 = vmatprep.subr.bf16.mxu0 0
    %2908 = vmatpush1.bf16.msra.mxu0 %v2025
    %2909 = vmatprep.subr.bf16.mxu0 0
    %2910 = vmatpush1.bf16.msra.mxu0 %v2026
    %2911 = vmatprep.subr.bf16.mxu0 0
    %2912 = vmatpush1.bf16.msra.mxu0 %v2027
    %2913 = vmatprep.subr.bf16.mxu0 0
    %2914 = vmatpush1.bf16.msra.mxu0 %v2028
    %2915 = vmatprep.subr.bf16.mxu0 0
    %2916 = vmatpush1.bf16.msra.mxu0 %v2029
    %2917 = vmatprep.subr.bf16.mxu0 0
    %2918 = vmatpush1.bf16.msra.mxu0 %v2030
    %2919 = vmatprep.mubr.bf16.mxu0 %v231
    %2920 = vmatmul.mubr.bf16.gmra.mrb[0].mxu0 %v230
    %v2921 = vpop.f32.mrb[0].mxu0
    %v2922 = vadd.f32 %v2882, %v2921
    %v2923 = vpop.f32.mrb[0].mxu0
    %v2924 = vpop.f32.mrb[0].mxu0
    %v2925 = vpop.f32.mrb[0].mxu0
    %2926 = vdwg.mxu0
    %vm2927 = vcmask 74752
    %2928 = vst.msk [vmem:[#allocation2] sm:$0x3] %vm2927, %v2922
    // Predicated region
    $region14: #{net_forward.3} parent=1 // pred_check
      _
    $region15: #{net_forward.3} parent=1 // pred_check_branch
      %2930 = sbr.rel (0) target = $region17
    $region16: #{net_forward.3} parent=1 // pred_region
      %s2932 = ssub.s32 32, 32
      %2933 = vsyncadd [#allocation3], %s2932
      %s2935 = sshll.u32 [#allocation2], 4
      %s2936 = int_to_ptr.vmem [resolvable:$true] %s2935
      %2938 = dma.vmem_to_hbm [thread:$0]  %s2936, 32, %s3, [#allocation3]
    $region17: #{net_forward.3} parent=1 // pred_fallthru
      _
    // Predicated region
    $region18: #{net_forward.3} parent=1 // pred_check
      _
    $region19: #{net_forward.3} parent=1 // pred_check_branch
      %2940 = sbr.rel (0) target = $region21
    $region20: #{net_forward.3} parent=1 // pred_region
      %2941 = dma.done [#allocation3], 32
    $region21: #{net_forward.3} parent=1 // pred_fallthru
      _
    %2942 = vsyncpa [#allocation3], 1

// kernel: net_forward.2
$region0: #{net_forward.2}
  #allocation0 [shape = 'u32[]', space=smem, size = 0x4, offset = 0x4, fixed_abs, tag = 'smem constant byte address 0x4 - core index']
  #allocation1 [shape = 'u32[144,128]{1,0:T(1,128)}', space=vmem, size = 0x12000, scoped, tag = 'internal scratch']
  #allocation2 [shape = 'f32[16,16,64]{2,1,0:T(8,128)}', space=vmem, size = 0x20000, scoped, tag = 'scratch operand']
  #allocation3 [shape = 'f32[2,10,10,64]{3,2,1,0:T(8,128)}', space=vmem, size = 0x28000, scoped, tag = 'scratch operand']
  %s0 = inlined_call_operand.vmem [shape: f32[2,18,18,8], index: 0, kind: input, shape index: {}]
  %s1 = inlined_call_operand.vmem [shape: bf16[9,8,64], index: 1, kind: input, shape index: {}]
  %s2 = inlined_call_operand.vmem [shape: f32[1,64], index: 2, kind: input, shape index: {}]
  %s3 = inlined_call_operand.vmem [shape: f32[1,64], index: 3, kind: input, shape index: {}]
  %s4 = inlined_call_operand.vmem [shape: bf16[9,64,64], index: 4, kind: input, shape index: {}]
  %s5 = inlined_call_operand.vmem [shape: f32[1,64], index: 5, kind: input, shape index: {}]
  %s6 = inlined_call_operand.vmem [shape: f32[1,64], index: 6, kind: input, shape index: {}]
  %s7 = inlined_call_operand.vmem [shape: f32[2,8,8,64], index: 7, kind: output, shape index: {}]
  %s8 = sld [smem:[#allocation0]]
  $region38: #{net_forward.2} parent=0
    _
  %s10 = ssub.s32 1, %s8
  %s11 = scalar_select 0, %s10, %s8
  // Predicated region
  $region2: #{net_forward.2} parent=0 // pred_check
    _
  $region3: #{net_forward.2} parent=0 // pred_check_branch
    %13 = sbr.rel (0) target = $region5
  $region4: #{net_forward.2} parent=0 // pred_region
    _
  $region5: #{net_forward.2} parent=0 // pred_fallthru
    _
  // Predicated region
  $region6: #{net_forward.2} parent=0 // pred_check
    _
  $region7: #{net_forward.2} parent=0 // pred_check_branch
    %15 = sbr.rel (0) target = $region9
  $region8: #{net_forward.2} parent=0 // pred_region
    _
  $region9: #{net_forward.2} parent=0 // pred_fallthru
    _
  // Predicated region
  $region10: #{net_forward.2} parent=0 // pred_check
    _
  $region11: #{net_forward.2} parent=0 // pred_check_branch
    %17 = sbr.rel (0) target = $region13
  $region12: #{net_forward.2} parent=0 // pred_region
    _
  $region13: #{net_forward.2} parent=0 // pred_fallthru
    _
  // Predicated region
  $region14: #{net_forward.2} parent=0 // pred_check
    _
  $region15: #{net_forward.2} parent=0 // pred_check_branch
    %19 = sbr.rel (0) target = $region17
  $region16: #{net_forward.2} parent=0 // pred_region
    _
  $region17: #{net_forward.2} parent=0 // pred_fallthru
    _
  // Predicated region
  $region18: #{net_forward.2} parent=0 // pred_check
    _
  $region19: #{net_forward.2} parent=0 // pred_check_branch
    %21 = sbr.rel (0) target = $region21
  $region20: #{net_forward.2} parent=0 // pred_region
    _
  $region21: #{net_forward.2} parent=0 // pred_fallthru
    _
  // Predicated region
  $region22: #{net_forward.2} parent=0 // pred_check
    _
  $region23: #{net_forward.2} parent=0 // pred_check_branch
    %23 = sbr.rel (0) target = $region25
  $region24: #{net_forward.2} parent=0 // pred_region
    _
  $region25: #{net_forward.2} parent=0 // pred_fallthru
    _
  // Predicated region
  $region26: #{net_forward.2} parent=0 // pred_check
    _
  $region27: #{net_forward.2} parent=0 // pred_check_branch
    %25 = sbr.rel (0) target = $region29
  $region28: #{net_forward.2} parent=0 // pred_region
    _
  $region29: #{net_forward.2} parent=0 // pred_fallthru
    _
  %v27 = vld [vmem:[%s0] sm:$0xff]
  %v28 = vld [vmem:[%s0 + $0x8] sm:$0xff]
  %v29 = vld [vmem:[%s0 + $0x18] sm:$0xff]
  %v30 = vld [vmem:[%s0 + $0x20] sm:$0xff]
  %v31 = vld [vmem:[%s0 + $0x30] sm:$0xff]
  %v32 = vld [vmem:[%s0 + $0x38] sm:$0xff]
  %v33 = vld [vmem:[%s0 + $0x48] sm:$0xff]
  %v34 = vld [vmem:[%s0 + $0x50] sm:$0xff]
  %v35 = vld [vmem:[%s0 + $0x60] sm:$0xff]
  %v36 = vld [vmem:[%s0 + $0x68] sm:$0xff]
  %v37 = vld [vmem:[%s0 + $0x78] sm:$0xff]
  %v38 = vld [vmem:[%s0 + $0x80] sm:$0xff]
  %v39 = vld [vmem:[%s0 + $0x90] sm:$0xff]
  %v40 = vld [vmem:[%s0 + $0x98] sm:$0xff]
  %v41 = vld [vmem:[%s0 + $0xa8] sm:$0xff]
  %v42 = vld [vmem:[%s0 + $0xb0] sm:$0xff]
  %v43 = vld [vmem:[%s0 + $0xc0] sm:$0xff]
  %v44 = vld [vmem:[%s0 + $0xc8] sm:$0xff]
  %v45 = vld [vmem:[%s0 + $0xd8] sm:$0xff]
  %v46 = vld [vmem:[%s0 + $0xe0] sm:$0xff]
  %v47 = vld [vmem:[%s0 + $0xf0] sm:$0xff]
  %v48 = vld [vmem:[%s0 + $0xf8] sm:$0xff]
  %v49 = vld [vmem:[%s0 + $0x108] sm:$0xff]
  %v50 = vld [vmem:[%s0 + $0x110] sm:$0xff]
  %v51 = vld [vmem:[%s0 + $0x120] sm:$0xff]
  %v52 = vld [vmem:[%s0 + $0x128] sm:$0xff]
  %v53 = vld [vmem:[%s0 + $0x138] sm:$0xff]
  %v54 = vld [vmem:[%s0 + $0x140] sm:$0xff]
  %v55 = vld [vmem:[%s0 + $0x150] sm:$0xff]
  %v56 = vld [vmem:[%s0 + $0x158] sm:$0xff]
  %v57 = vld [vmem:[%s0 + $0x168] sm:$0xff]
  %v58 = vld [vmem:[%s0 + $0x170] sm:$0xff]
  %v59 = vld [vmem:[%s0 + $0x1b0] sm:$0xff]
  %v60 = vld [vmem:[%s0 + $0x1b8] sm:$0xff]
  %v61 = vld [vmem:[%s0 + $0x1c8] sm:$0xff]
  %v62 = vld [vmem:[%s0 + $0x1d0] sm:$0xff]
  %v63 = vld [vmem:[%s0 + $0x1e0] sm:$0xff]
  %v64 = vld [vmem:[%s0 + $0x1e8] sm:$0xff]
  %v65 = vld [vmem:[%s0 + $0x1f8] sm:$0xff]
  %v66 = vld [vmem:[%s0 + $0x200] sm:$0xff]
  %v67 = vld [vmem:[%s0 + $0x210] sm:$0xff]
  %v68 = vld [vmem:[%s0 + $0x218] sm:$0xff]
  %v69 = vld [vmem:[%s0 + $0x228] sm:$0xff]
  %v70 = vld [vmem:[%s0 + $0x230] sm:$0xff]
  %v71 = vld [vmem:[%s0 + $0x240] sm:$0xff]
  %v72 = vld [vmem:[%s0 + $0x248] sm:$0xff]
  %v73 = vld [vmem:[%s0 + $0x258] sm:$0xff]
  %v74 = vld [vmem:[%s0 + $0x260] sm:$0xff]
  %v75 = vld [vmem:[%s0 + $0x270] sm:$0xff]
  %v76 = vld [vmem:[%s0 + $0x278] sm:$0xff]
  %v77 = vld [vmem:[%s0 + $0x288] sm:$0xff]
  %v78 = vld [vmem:[%s0 + $0x290] sm:$0xff]
  %v79 = vld [vmem:[%s0 + $0x2a0] sm:$0xff]
  %v80 = vld [vmem:[%s0 + $0x2a8] sm:$0xff]
  %v81 = vld [vmem:[%s0 + $0x2b8] sm:$0xff]
  %v82 = vld [vmem:[%s0 + $0x2c0] sm:$0xff]
  %v83 = vld [vmem:[%s0 + $0x2d0] sm:$0xff]
  %v84 = vld [vmem:[%s0 + $0x2d8] sm:$0xff]
  %v85 = vld [vmem:[%s0 + $0x2e8] sm:$0xff]
  %v86 = vld [vmem:[%s0 + $0x2f0] sm:$0xff]
  %v87 = vld [vmem:[%s0 + $0x300] sm:$0xff]
  %v88 = vld [vmem:[%s0 + $0x308] sm:$0xff]
  %v89 = vld [vmem:[%s0 + $0x318] sm:$0xff]
  %v90 = vld [vmem:[%s0 + $0x320] sm:$0xff]
  %v91 = vpack.c.bf16 %v28, %v27
  %v92 = vpack.c.bf16 %v30, %v29
  %v93 = vpack.c.bf16 %v32, %v31
  %v94 = vpack.c.bf16 %v34, %v33
  %v95 = vpack.c.bf16 %v36, %v35
  %v96 = vpack.c.bf16 %v38, %v37
  %v97 = vpack.c.bf16 %v40, %v39
  %v98 = vpack.c.bf16 %v42, %v41
  %v99 = vpack.c.bf16 %v44, %v43
  %v100 = vpack.c.bf16 %v46, %v45
  %v101 = vpack.c.bf16 %v48, %v47
  %v102 = vpack.c.bf16 %v50, %v49
  %v103 = vpack.c.bf16 %v52, %v51
  %v104 = vpack.c.bf16 %v54, %v53
  %v105 = vpack.c.bf16 %v56, %v55
  %v106 = vpack.c.bf16 %v58, %v57
  %v107 = vpack.c.bf16 %v60, %v59
  %v108 = vpack.c.bf16 %v62, %v61
  %v109 = vpack.c.bf16 %v64, %v63
  %v110 = vpack.c.bf16 %v66, %v65
  %v111 = vpack.c.bf16 %v68, %v67
  %v112 = vpack.c.bf16 %v70, %v69
  %v113 = vpack.c.bf16 %v72, %v71
  %v114 = vpack.c.bf16 %v74, %v73
  %v115 = vpack.c.bf16 %v76, %v75
  %v116 = vpack.c.bf16 %v78, %v77
  %v117 = vpack.c.bf16 %v80, %v79
  %v118 = vpack.c.bf16 %v82, %v81
  %v119 = vpack.c.bf16 %v84, %v83
  %v120 = vpack.c.bf16 %v86, %v85
  %v121 = vpack.c.bf16 %v88, %v87
  %v122 = vpack.c.bf16 %v90, %v89
  %v123 = vld [vmem:[%s1] sm:$0xf]
  %v124 = vld [vmem:[%s0 + $0x1] sm:$0xff]
  %v125 = vld [vmem:[%s0 + $0x9] sm:$0xff]
  %v126 = vld [vmem:[%s0 + $0x19] sm:$0xff]
  %v127 = vld [vmem:[%s0 + $0x21] sm:$0xff]
  %v128 = vld [vmem:[%s0 + $0x31] sm:$0xff]
  %v129 = vld [vmem:[%s0 + $0x39] sm:$0xff]
  %v130 = vld [vmem:[%s0 + $0x49] sm:$0xff]
  %v131 = vld [vmem:[%s0 + $0x51] sm:$0xff]
  %v132 = vld [vmem:[%s0 + $0x61] sm:$0xff]
  %v133 = vld [vmem:[%s0 + $0x69] sm:$0xff]
  %v134 = vld [vmem:[%s0 + $0x79] sm:$0xff]
  %v135 = vld [vmem:[%s0 + $0x81] sm:$0xff]
  %v136 = vld [vmem:[%s0 + $0x91] sm:$0xff]
  %v137 = vld [vmem:[%s0 + $0x99] sm:$0xff]
  %v138 = vld [vmem:[%s0 + $0xa9] sm:$0xff]
  %v139 = vld [vmem:[%s0 + $0xb1] sm:$0xff]
  %v140 = vld [vmem:[%s0 + $0xc1] sm:$0xff]
  %v141 = vld [vmem:[%s0 + $0xc9] sm:$0xff]
  %v142 = vld [vmem:[%s0 + $0xd9] sm:$0xff]
  %v143 = vld [vmem:[%s0 + $0xe1] sm:$0xff]
  %v144 = vld [vmem:[%s0 + $0xf1] sm:$0xff]
  %v145 = vld [vmem:[%s0 + $0xf9] sm:$0xff]
  %v146 = vld [vmem:[%s0 + $0x109] sm:$0xff]
  %v147 = vld [vmem:[%s0 + $0x111] sm:$0xff]
  %v148 = vld [vmem:[%s0 + $0x121] sm:$0xff]
  %v149 = vld [vmem:[%s0 + $0x129] sm:$0xff]
  %v150 = vld [vmem:[%s0 + $0x139] sm:$0xff]
  %v151 = vld [vmem:[%s0 + $0x141] sm:$0xff]
  %v152 = vld [vmem:[%s0 + $0x151] sm:$0xff]
  %v153 = vld [vmem:[%s0 + $0x159] sm:$0xff]
  %v154 = vld [vmem:[%s0 + $0x169] sm:$0xff]
  %v155 = vld [vmem:[%s0 + $0x171] sm:$0xff]
  %v156 = vld [vmem:[%s0 + $0x1b1] sm:$0xff]
  %v157 = vld [vmem:[%s0 + $0x1b9] sm:$0xff]
  %v158 = vld [vmem:[%s0 + $0x1c9] sm:$0xff]
  %v159 = vld [vmem:[%s0 + $0x1d1] sm:$0xff]
  %v160 = vld [vmem:[%s0 + $0x1e1] sm:$0xff]
  %v161 = vld [vmem:[%s0 + $0x1e9] sm:$0xff]
  %v162 = vld [vmem:[%s0 + $0x1f9] sm:$0xff]
  %v163 = vld [vmem:[%s0 + $0x201] sm:$0xff]
  %v164 = vld [vmem:[%s0 + $0x211] sm:$0xff]
  %v165 = vld [vmem:[%s0 + $0x219] sm:$0xff]
  %v166 = vld [vmem:[%s0 + $0x229] sm:$0xff]
  %v167 = vld [vmem:[%s0 + $0x231] sm:$0xff]
  %v168 = vld [vmem:[%s0 + $0x241] sm:$0xff]
  %v169 = vld [vmem:[%s0 + $0x249] sm:$0xff]
  %v170 = vld [vmem:[%s0 + $0x259] sm:$0xff]
  %v171 = vld [vmem:[%s0 + $0x261] sm:$0xff]
  %v172 = vld [vmem:[%s0 + $0x271] sm:$0xff]
  %v173 = vld [vmem:[%s0 + $0x279] sm:$0xff]
  %v174 = vld [vmem:[%s0 + $0x289] sm:$0xff]
  %v175 = vld [vmem:[%s0 + $0x291] sm:$0xff]
  %v176 = vld [vmem:[%s0 + $0x2a1] sm:$0xff]
  %v177 = vld [vmem:[%s0 + $0x2a9] sm:$0xff]
  %v178 = vld [vmem:[%s0 + $0x2b9] sm:$0xff]
  %v179 = vld [vmem:[%s0 + $0x2c1] sm:$0xff]
  %v180 = vld [vmem:[%s0 + $0x2d1] sm:$0xff]
  %v181 = vld [vmem:[%s0 + $0x2d9] sm:$0xff]
  %v182 = vld [vmem:[%s0 + $0x2e9] sm:$0xff]
  %v183 = vld [vmem:[%s0 + $0x2f1] sm:$0xff]
  %v184 = vld [vmem:[%s0 + $0x301] sm:$0xff]
  %v185 = vld [vmem:[%s0 + $0x309] sm:$0xff]
  %v186 = vld [vmem:[%s0 + $0x319] sm:$0xff]
  %v187 = vld [vmem:[%s0 + $0x321] sm:$0xff]
  %v188 = vpack.c.bf16 %v125, %v124
  %v189 = vpack.c.bf16 %v127, %v126
  %v190 = vpack.c.bf16 %v129, %v128
  %v191 = vpack.c.bf16 %v131, %v130
  %v192 = vpack.c.bf16 %v133, %v132
  %v193 = vpack.c.bf16 %v135, %v134
  %v194 = vpack.c.bf16 %v137, %v136
  %v195 = vpack.c.bf16 %v139, %v138
  %v196 = vpack.c.bf16 %v141, %v140
  %v197 = vpack.c.bf16 %v143, %v142
  %v198 = vpack.c.bf16 %v145, %v144
  %v199 = vpack.c.bf16 %v147, %v146
  %v200 = vpack.c.bf16 %v149, %v148
  %v201 = vpack.c.bf16 %v151, %v150
  %v202 = vpack.c.bf16 %v153, %v152
  %v203 = vpack.c.bf16 %v155, %v154
  %v204 = vpack.c.bf16 %v157, %v156
  %v205 = vpack.c.bf16 %v159, %v158
  %v206 = vpack.c.bf16 %v161, %v160
  %v207 = vpack.c.bf16 %v163, %v162
  %v208 = vpack.c.bf16 %v165, %v164
  %v209 = vpack.c.bf16 %v167, %v166
  %v210 = vpack.c.bf16 %v169, %v168
  %v211 = vpack.c.bf16 %v171, %v170
  %v212 = vpack.c.bf16 %v173, %v172
  %v213 = vpack.c.bf16 %v175, %v174
  %v214 = vpack.c.bf16 %v177, %v176
  %v215 = vpack.c.bf16 %v179, %v178
  %v216 = vpack.c.bf16 %v181, %v180
  %v217 = vpack.c.bf16 %v183, %v182
  %v218 = vpack.c.bf16 %v185, %v184
  %v219 = vpack.c.bf16 %v187, %v186
  %s220 = scalar_lea.vmem %s1, 4
  %v221 = vld [vmem:[%s220] sm:$0xf]
  %vm222 = vcmask 64512
  %v224 = vsel %vm222, %v188, 0
  %v227 = vsel %vm222, %v189, 0
  %v230 = vsel %vm222, %v190, 0
  %v233 = vsel %vm222, %v191, 0
  %v236 = vsel %vm222, %v192, 0
  %v239 = vsel %vm222, %v193, 0
  %v242 = vsel %vm222, %v194, 0
  %v245 = vsel %vm222, %v195, 0
  %v248 = vsel %vm222, %v196, 0
  %v251 = vsel %vm222, %v197, 0
  %v254 = vsel %vm222, %v198, 0
  %v257 = vsel %vm222, %v199, 0
  %v260 = vsel %vm222, %v200, 0
  %v263 = vsel %vm222, %v201, 0
  %v266 = vsel %vm222, %v202, 0
  %v269 = vsel %vm222, %v203, 0
  %v272 = vsel %vm222, %v204, 0
  %v275 = vsel %vm222, %v205, 0
  %v278 = vsel %vm222, %v206, 0
  %v281 = vsel %vm222, %v207, 0
  %v284 = vsel %vm222, %v208, 0
  %v287 = vsel %vm222, %v209, 0
  %v290 = vsel %vm222, %v210, 0
  %v293 = vsel %vm222, %v211, 0
  %v296 = vsel %vm222, %v212, 0
  %v299 = vsel %vm222, %v213, 0
  %v302 = vsel %vm222, %v214, 0
  %v305 = vsel %vm222, %v215, 0
  %v308 = vsel %vm222, %v216, 0
  %v311 = vsel %vm222, %v217, 0
  %v314 = vsel %vm222, %v218, 0
  %v317 = vsel %vm222, %v219, 0
  %vm319 = vcmask 1043456
  %v321 = vsel %vm319, %v221, 0
  %323 = vmatprep.subr.bf16.mxu0 0
  %324 = vmatpush1.bf16.msra.mxu0 %v321
  %325 = vmatprep.subr.bf16.mxu0 0
  %326 = vmatpush1.bf16.msra.mxu0 0
  %327 = vmatprep.subr.bf16.mxu0 0
  %328 = vmatpush1.bf16.msra.mxu0 0
  %329 = vmatprep.subr.bf16.mxu0 0
  %330 = vmatpush1.bf16.msra.mxu0 0
  %331 = vmatprep.subr.bf16.mxu0 0
  %332 = vmatpush1.bf16.msra.mxu0 0
  %333 = vmatprep.subr.bf16.mxu0 0
  %334 = vmatpush1.bf16.msra.mxu0 0
  %335 = vmatprep.subr.bf16.mxu0 0
  %336 = vmatpush1.bf16.msra.mxu0 0
  %337 = vmatprep.subr.bf16.mxu0 0
  %338 = vmatpush1.bf16.msra.mxu0 0
  %339 = vmatprep.subr.bf16.mxu0 0
  %340 = vmatpush1.bf16.msra.mxu0 0
  %341 = vmatprep.subr.bf16.mxu0 0
  %342 = vmatpush1.bf16.msra.mxu0 0
  %343 = vmatprep.subr.bf16.mxu0 0
  %344 = vmatpush1.bf16.msra.mxu0 0
  %345 = vmatprep.subr.bf16.mxu0 0
  %346 = vmatpush1.bf16.msra.mxu0 0
  %347 = vmatprep.subr.bf16.mxu0 0
  %348 = vmatpush1.bf16.msra.mxu0 0
  %349 = vmatprep.subr.bf16.mxu0 0
  %350 = vmatpush1.bf16.msra.mxu0 0
  %351 = vmatprep.subr.bf16.mxu0 0
  %352 = vmatpush1.bf16.msra.mxu0 0
  %353 = vmatprep.subr.bf16.mxu0 0
  %354 = vmatpush1.bf16.msra.mxu0 0
  %355 = vmatprep.mubr.bf16.mxu0 0
  %356 = vmatmul.mubr.bf16.gmra.mrb[0].mxu0 %v224
  %v357 = vpop.f32.mrb[0].mxu0
  %v358 = vadd.f32 0.0, %v357
  %v359 = vpop.f32.mrb[0].mxu0
  %v360 = vpop.f32.mrb[0].mxu0
  %v361 = vadd.f32 0.0, %v360
  %v362 = vpop.f32.mrb[0].mxu0
  %363 = vmatprep.mubr.bf16.mxu0 0
  %364 = vmatmul.mubr.bf16.gmra.mrb[0].mxu0 %v227
  %v365 = vpop.f32.mrb[0].mxu0
  %v366 = vadd.f32 0.0, %v365
  %v367 = vpop.f32.mrb[0].mxu0
  %v368 = vpop.f32.mrb[0].mxu0
  %v369 = vadd.f32 0.0, %v368
  %v370 = vpop.f32.mrb[0].mxu0
  %371 = vmatprep.mubr.bf16.mxu0 0
  %372 = vmatmul.mubr.bf16.gmra.mrb[0].mxu0 %v230
  %v373 = vpop.f32.mrb[0].mxu0
  %v374 = vadd.f32 0.0, %v373
  %v375 = vpop.f32.mrb[0].mxu0
  %v376 = vpop.f32.mrb[0].mxu0
  %v377 = vadd.f32 0.0, %v376
  %v378 = vpop.f32.mrb[0].mxu0
  %379 = vmatprep.mubr.bf16.mxu0 0
  %380 = vmatmul.mubr.bf16.gmra.mrb[0].mxu0 %v233
  %v381 = vpop.f32.mrb[0].mxu0
  %v382 = vadd.f32 0.0, %v381
  %v383 = vpop.f32.mrb[0].mxu0
  %v384 = vpop.f32.mrb[0].mxu0
  %v385 = vadd.f32 0.0, %v384
  %v386 = vpop.f32.mrb[0].mxu0
  %387 = vmatprep.mubr.bf16.mxu0 0
  %388 = vmatmul.mubr.bf16.gmra.mrb[0].mxu0 %v236
  %v389 = vpop.f32.mrb[0].mxu0
  %v390 = vadd.f32 0.0, %v389
  %v391 = vpop.f32.mrb[0].mxu0
  %v392 = vpop.f32.mrb[0].mxu0
  %v393 = vadd.f32 0.0, %v392
  %v394 = vpop.f32.mrb[0].mxu0
  %395 = vmatprep.mubr.bf16.mxu0 0
  %396 = vmatmul.mubr.bf16.gmra.mrb[0].mxu0 %v239
  %v397 = vpop.f32.mrb[0].mxu0
  %v398 = vadd.f32 0.0, %v397
  %v399 = vpop.f32.mrb[0].mxu0
  %v400 = vpop.f32.mrb[0].mxu0
  %v401 = vadd.f32 0.0, %v400
  %v402 = vpop.f32.mrb[0].mxu0
  %403 = vmatprep.mubr.bf16.mxu0 0
  %404 = vmatmul.mubr.bf16.gmra.mrb[0].mxu0 %v242
  %v405 = vpop.f32.mrb[0].mxu0
  %v406 = vadd.f32 0.0, %v405
  %v407 = vpop.f32.mrb[0].mxu0
  %v408 = vpop.f32.mrb[0].mxu0
  %v409 = vadd.f32 0.0, %v408
  %v410 = vpop.f32.mrb[0].mxu0
  %411 = vmatprep.mubr.bf16.mxu0 0
  %412 = vmatmul.mubr.bf16.gmra.mrb[0].mxu0 %v245
  %v413 = vpop.f32.mrb[0].mxu0
  %v414 = vadd.f32 0.0, %v413
  %v415 = vpop.f32.mrb[0].mxu0
  %v416 = vpop.f32.mrb[0].mxu0
  %v417 = vadd.f32 0.0, %v416
  %v418 = vpop.f32.mrb[0].mxu0
  %419 = vmatprep.mubr.bf16.mxu0 0
  %420 = vmatmul.mubr.bf16.gmra.mrb[0].mxu0 %v248
  %v421 = vpop.f32.mrb[0].mxu0
  %v422 = vadd.f32 0.0, %v421
  %v423 = vpop.f32.mrb[0].mxu0
  %v424 = vpop.f32.mrb[0].mxu0
  %v425 = vadd.f32 0.0, %v424
  %v426 = vpop.f32.mrb[0].mxu0
  %427 = vmatprep.mubr.bf16.mxu0 0
  %428 = vmatmul.mubr.bf16.gmra.mrb[0].mxu0 %v251
  %v429 = vpop.f32.mrb[0].mxu0
  %v430 = vadd.f32 0.0, %v429
  %v431 = vpop.f32.mrb[0].mxu0
  %v432 = vpop.f32.mrb[0].mxu0
  %v433 = vadd.f32 0.0, %v432
  %v434 = vpop.f32.mrb[0].mxu0
  %435 = vmatprep.mubr.bf16.mxu0 0
  %436 = vmatmul.mubr.bf16.gmra.mrb[0].mxu0 %v254
  %v437 = vpop.f32.mrb[0].mxu0
  %v438 = vadd.f32 0.0, %v437
  %v439 = vpop.f32.mrb[0].mxu0
  %v440 = vpop.f32.mrb[0].mxu0
  %v441 = vadd.f32 0.0, %v440
  %v442 = vpop.f32.mrb[0].mxu0
  %443 = vmatprep.mubr.bf16.mxu0 0
  %444 = vmatmul.mubr.bf16.gmra.mrb[0].mxu0 %v257
  %v445 = vpop.f32.mrb[0].mxu0
  %v446 = vadd.f32 0.0, %v445
  %v447 = vpop.f32.mrb[0].mxu0
  %v448 = vpop.f32.mrb[0].mxu0
  %v449 = vadd.f32 0.0, %v448
  %v450 = vpop.f32.mrb[0].mxu0
  %451 = vmatprep.mubr.bf16.mxu0 0
  %452 = vmatmul.mubr.bf16.gmra.mrb[0].mxu0 %v260
  %v453 = vpop.f32.mrb[0].mxu0
  %v454 = vadd.f32 0.0, %v453
  %v455 = vpop.f32.mrb[0].mxu0
  %v456 = vpop.f32.mrb[0].mxu0
  %v457 = vadd.f32 0.0, %v456
  %v458 = vpop.f32.mrb[0].mxu0
  %459 = vmatprep.mubr.bf16.mxu0 0
  %460 = vmatmul.mubr.bf16.gmra.mrb[0].mxu0 %v263
  %v461 = vpop.f32.mrb[0].mxu0
  %v462 = vadd.f32 0.0, %v461
  %v463 = vpop.f32.mrb[0].mxu0
  %v464 = vpop.f32.mrb[0].mxu0
  %v465 = vadd.f32 0.0, %v464
  %v466 = vpop.f32.mrb[0].mxu0
  %467 = vmatprep.mubr.bf16.mxu0 0
  %468 = vmatmul.mubr.bf16.gmra.mrb[0].mxu0 %v266
  %v469 = vpop.f32.mrb[0].mxu0
  %v470 = vadd.f32 0.0, %v469
  %v471 = vpop.f32.mrb[0].mxu0
  %v472 = vpop.f32.mrb[0].mxu0
  %v473 = vadd.f32 0.0, %v472
  %v474 = vpop.f32.mrb[0].mxu0
  %475 = vmatprep.mubr.bf16.mxu0 0
  %476 = vmatmul.mubr.bf16.gmra.mrb[0].mxu0 %v269
  %v477 = vpop.f32.mrb[0].mxu0
  %v478 = vadd.f32 0.0, %v477
  %v479 = vpop.f32.mrb[0].mxu0
  %v480 = vpop.f32.mrb[0].mxu0
  %v481 = vadd.f32 0.0, %v480
  %v482 = vpop.f32.mrb[0].mxu0
  %483 = vmatprep.mubr.bf16.mxu0 0
  %484 = vmatmul.mubr.bf16.gmra.mrb[0].mxu0 %v272
  %v485 = vpop.f32.mrb[0].mxu0
  %v486 = vadd.f32 0.0, %v485
  %v487 = vpop.f32.mrb[0].mxu0
  %v488 = vpop.f32.mrb[0].mxu0
  %v489 = vadd.f32 0.0, %v488
  %v490 = vpop.f32.mrb[0].mxu0
  %491 = vmatprep.mubr.bf16.mxu0 0
  %492 = vmatmul.mubr.bf16.gmra.mrb[0].mxu0 %v275
  %v493 = vpop.f32.mrb[0].mxu0
  %v494 = vadd.f32 0.0, %v493
  %v495 = vpop.f32.mrb[0].mxu0
  %v496 = vpop.f32.mrb[0].mxu0
  %v497 = vadd.f32 0.0, %v496
  %v498 = vpop.f32.mrb[0].mxu0
  %499 = vmatprep.mubr.bf16.mxu0 0
  %500 = vmatmul.mubr.bf16.gmra.mrb[0].mxu0 %v278
  %v501 = vpop.f32.mrb[0].mxu0
  %v502 = vadd.f32 0.0, %v501
  %v503 = vpop.f32.mrb[0].mxu0
  %v504 = vpop.f32.mrb[0].mxu0
  %v505 = vadd.f32 0.0, %v504
  %v506 = vpop.f32.mrb[0].mxu0
  %507 = vmatprep.mubr.bf16.mxu0 0
  %508 = vmatmul.mubr.bf16.gmra.mrb[0].mxu0 %v281
  %v509 = vpop.f32.mrb[0].mxu0
  %v510 = vadd.f32 0.0, %v509
  %v511 = vpop.f32.mrb[0].mxu0
  %v512 = vpop.f32.mrb[0].mxu0
  %v513 = vadd.f32 0.0, %v512
  %v514 = vpop.f32.mrb[0].mxu0
  %515 = vmatprep.mubr.bf16.mxu0 0
  %516 = vmatmul.mubr.bf16.gmra.mrb[0].mxu0 %v284
  %v517 = vpop.f32.mrb[0].mxu0
  %v518 = vadd.f32 0.0, %v517
  %v519 = vpop.f32.mrb[0].mxu0
  %v520 = vpop.f32.mrb[0].mxu0
  %v521 = vadd.f32 0.0, %v520
  %v522 = vpop.f32.mrb[0].mxu0
  %523 = vmatprep.mubr.bf16.mxu0 0
  %524 = vmatmul.mubr.bf16.gmra.mrb[0].mxu0 %v287
  %v525 = vpop.f32.mrb[0].mxu0
  %v526 = vadd.f32 0.0, %v525
  %v527 = vpop.f32.mrb[0].mxu0
  %v528 = vpop.f32.mrb[0].mxu0
  %v529 = vadd.f32 0.0, %v528
  %v530 = vpop.f32.mrb[0].mxu0
  %531 = vmatprep.mubr.bf16.mxu0 0
  %532 = vmatmul.mubr.bf16.gmra.mrb[0].mxu0 %v290
  %v533 = vpop.f32.mrb[0].mxu0
  %v534 = vadd.f32 0.0, %v533
  %v535 = vpop.f32.mrb[0].mxu0
  %v536 = vpop.f32.mrb[0].mxu0
  %v537 = vadd.f32 0.0, %v536
  %v538 = vpop.f32.mrb[0].mxu0
  %539 = vmatprep.mubr.bf16.mxu0 0
  %540 = vmatmul.mubr.bf16.gmra.mrb[0].mxu0 %v293
  %v541 = vpop.f32.mrb[0].mxu0
  %v542 = vadd.f32 0.0, %v541
  %v543 = vpop.f32.mrb[0].mxu0
  %v544 = vpop.f32.mrb[0].mxu0
  %v545 = vadd.f32 0.0, %v544
  %v546 = vpop.f32.mrb[0].mxu0
  %547 = vmatprep.mubr.bf16.mxu0 0
  %548 = vmatmul.mubr.bf16.gmra.mrb[0].mxu0 %v296
  %v549 = vpop.f32.mrb[0].mxu0
  %v550 = vadd.f32 0.0, %v549
  %v551 = vpop.f32.mrb[0].mxu0
  %v552 = vpop.f32.mrb[0].mxu0
  %v553 = vadd.f32 0.0, %v552
  %v554 = vpop.f32.mrb[0].mxu0
  %555 = vmatprep.mubr.bf16.mxu0 0
  %556 = vmatmul.mubr.bf16.gmra.mrb[0].mxu0 %v299
  %v557 = vpop.f32.mrb[0].mxu0
  %v558 = vadd.f32 0.0, %v557
  %v559 = vpop.f32.mrb[0].mxu0
  %v560 = vpop.f32.mrb[0].mxu0
  %v561 = vadd.f32 0.0, %v560
  %v562 = vpop.f32.mrb[0].mxu0
  %563 = vmatprep.mubr.bf16.mxu0 0
  %564 = vmatmul.mubr.bf16.gmra.mrb[0].mxu0 %v302
  %v565 = vpop.f32.mrb[0].mxu0
  %v566 = vadd.f32 0.0, %v565
  %v567 = vpop.f32.mrb[0].mxu0
  %v568 = vpop.f32.mrb[0].mxu0
  %v569 = vadd.f32 0.0, %v568
  %v570 = vpop.f32.mrb[0].mxu0
  %571 = vmatprep.mubr.bf16.mxu0 0
  %572 = vmatmul.mubr.bf16.gmra.mrb[0].mxu0 %v305
  %v573 = vpop.f32.mrb[0].mxu0
  %v574 = vadd.f32 0.0, %v573
  %v575 = vpop.f32.mrb[0].mxu0
  %v576 = vpop.f32.mrb[0].mxu0
  %v577 = vadd.f32 0.0, %v576
  %v578 = vpop.f32.mrb[0].mxu0
  %579 = vmatprep.mubr.bf16.mxu0 0
  %580 = vmatmul.mubr.bf16.gmra.mrb[0].mxu0 %v308
  %v581 = vpop.f32.mrb[0].mxu0
  %v582 = vadd.f32 0.0, %v581
  %v583 = vpop.f32.mrb[0].mxu0
  %v584 = vpop.f32.mrb[0].mxu0
  %v585 = vadd.f32 0.0, %v584
  %v586 = vpop.f32.mrb[0].mxu0
  %587 = vmatprep.mubr.bf16.mxu0 0
  %588 = vmatmul.mubr.bf16.gmra.mrb[0].mxu0 %v311
  %v589 = vpop.f32.mrb[0].mxu0
  %v590 = vadd.f32 0.0, %v589
  %v591 = vpop.f32.mrb[0].mxu0
  %v592 = vpop.f32.mrb[0].mxu0
  %v593 = vadd.f32 0.0, %v592
  %v594 = vpop.f32.mrb[0].mxu0
  %595 = vmatprep.mubr.bf16.mxu0 0
  %596 = vmatmul.mubr.bf16.gmra.mrb[0].mxu0 %v314
  %v597 = vpop.f32.mrb[0].mxu0
  %v598 = vadd.f32 0.0, %v597
  %v599 = vpop.f32.mrb[0].mxu0
  %v600 = vpop.f32.mrb[0].mxu0
  %v601 = vadd.f32 0.0, %v600
  %v602 = vpop.f32.mrb[0].mxu0
  %603 = vmatprep.mubr.bf16.mxu0 0
  %604 = vmatmul.mubr.bf16.gmra.mrb[0].mxu0 %v317
  %v605 = vpop.f32.mrb[0].mxu0
  %v606 = vadd.f32 0.0, %v605
  %v607 = vpop.f32.mrb[0].mxu0
  %v608 = vpop.f32.mrb[0].mxu0
  %v609 = vadd.f32 0.0, %v608
  %v610 = vpop.f32.mrb[0].mxu0
  %611 = vdwg.mxu0
  %v613 = vsel %vm222, %v91, 0
  %v616 = vsel %vm222, %v92, 0
  %v619 = vsel %vm222, %v93, 0
  %v622 = vsel %vm222, %v94, 0
  %v625 = vsel %vm222, %v95, 0
  %v628 = vsel %vm222, %v96, 0
  %v631 = vsel %vm222, %v97, 0
  %v634 = vsel %vm222, %v98, 0
  %v637 = vsel %vm222, %v99, 0
  %v640 = vsel %vm222, %v100, 0
  %v643 = vsel %vm222, %v101, 0
  %v646 = vsel %vm222, %v102, 0
  %v649 = vsel %vm222, %v103, 0
  %v652 = vsel %vm222, %v104, 0
  %v655 = vsel %vm222, %v105, 0
  %v658 = vsel %vm222, %v106, 0
  %v661 = vsel %vm222, %v107, 0
  %v664 = vsel %vm222, %v108, 0
  %v667 = vsel %vm222, %v109, 0
  %v670 = vsel %vm222, %v110, 0
  %v673 = vsel %vm222, %v111, 0
  %v676 = vsel %vm222, %v112, 0
  %v679 = vsel %vm222, %v113, 0
  %v682 = vsel %vm222, %v114, 0
  %v685 = vsel %vm222, %v115, 0
  %v688 = vsel %vm222, %v116, 0
  %v691 = vsel %vm222, %v117, 0
  %v694 = vsel %vm222, %v118, 0
  %v697 = vsel %vm222, %v119, 0
  %v700 = vsel %vm222, %v120, 0
  %v703 = vsel %vm222, %v121, 0
  %v706 = vsel %vm222, %v122, 0
  %v709 = vsel %vm319, %v123, 0
  %711 = vmatprep.subr.bf16.mxu0 0
  %712 = vmatpush1.bf16.msra.mxu0 %v709
  %713 = vmatprep.subr.bf16.mxu0 0
  %714 = vmatpush1.bf16.msra.mxu0 0
  %715 = vmatprep.subr.bf16.mxu0 0
  %716 = vmatpush1.bf16.msra.mxu0 0
  %717 = vmatprep.subr.bf16.mxu0 0
  %718 = vmatpush1.bf16.msra.mxu0 0
  %719 = vmatprep.subr.bf16.mxu0 0
  %720 = vmatpush1.bf16.msra.mxu0 0
  %721 = vmatprep.subr.bf16.mxu0 0
  %722 = vmatpush1.bf16.msra.mxu0 0
  %723 = vmatprep.subr.bf16.mxu0 0
  %724 = vmatpush1.bf16.msra.mxu0 0
  %725 = vmatprep.subr.bf16.mxu0 0
  %726 = vmatpush1.bf16.msra.mxu0 0
  %727 = vmatprep.subr.bf16.mxu0 0
  %728 = vmatpush1.bf16.msra.mxu0 0
  %729 = vmatprep.subr.bf16.mxu0 0
  %730 = vmatpush1.bf16.msra.mxu0 0
  %731 = vmatprep.subr.bf16.mxu0 0
  %732 = vmatpush1.bf16.msra.mxu0 0
  %733 = vmatprep.subr.bf16.mxu0 0
  %734 = vmatpush1.bf16.msra.mxu0 0
  %735 = vmatprep.subr.bf16.mxu0 0
  %736 = vmatpush1.bf16.msra.mxu0 0
  %737 = vmatprep.subr.bf16.mxu0 0
  %738 = vmatpush1.bf16.msra.mxu0 0
  %739 = vmatprep.subr.bf16.mxu0 0
  %740 = vmatpush1.bf16.msra.mxu0 0
  %741 = vmatprep.subr.bf16.mxu0 0
  %742 = vmatpush1.bf16.msra.mxu0 0
  %743 = vmatprep.mubr.bf16.mxu0 0
  %744 = vmatmul.mubr.bf16.gmra.mrb[0].mxu0 %v613
  %v745 = vpop.f32.mrb[0].mxu0
  %v746 = vadd.f32 %v358, %v745
  %v747 = vpop.f32.mrb[0].mxu0
  %v748 = vpop.f32.mrb[0].mxu0
  %v749 = vadd.f32 %v361, %v748
  %v750 = vpop.f32.mrb[0].mxu0
  %751 = vmatprep.mubr.bf16.mxu0 0
  %752 = vmatmul.mubr.bf16.gmra.mrb[0].mxu0 %v616
  %v753 = vpop.f32.mrb[0].mxu0
  %v754 = vadd.f32 %v366, %v753
  %v755 = vpop.f32.mrb[0].mxu0
  %v756 = vpop.f32.mrb[0].mxu0
  %v757 = vadd.f32 %v369, %v756
  %v758 = vpop.f32.mrb[0].mxu0
  %759 = vmatprep.mubr.bf16.mxu0 0
  %760 = vmatmul.mubr.bf16.gmra.mrb[0].mxu0 %v619
  %v761 = vpop.f32.mrb[0].mxu0
  %v762 = vadd.f32 %v374, %v761
  %v763 = vpop.f32.mrb[0].mxu0
  %v764 = vpop.f32.mrb[0].mxu0
  %v765 = vadd.f32 %v377, %v764
  %v766 = vpop.f32.mrb[0].mxu0
  %767 = vmatprep.mubr.bf16.mxu0 0
  %768 = vmatmul.mubr.bf16.gmra.mrb[0].mxu0 %v622
  %v769 = vpop.f32.mrb[0].mxu0
  %v770 = vadd.f32 %v382, %v769
  %v771 = vpop.f32.mrb[0].mxu0
  %v772 = vpop.f32.mrb[0].mxu0
  %v773 = vadd.f32 %v385, %v772
  %v774 = vpop.f32.mrb[0].mxu0
  %775 = vmatprep.mubr.bf16.mxu0 0
  %776 = vmatmul.mubr.bf16.gmra.mrb[0].mxu0 %v625
  %v777 = vpop.f32.mrb[0].mxu0
  %v778 = vadd.f32 %v390, %v777
  %v779 = vpop.f32.mrb[0].mxu0
  %v780 = vpop.f32.mrb[0].mxu0
  %v781 = vadd.f32 %v393, %v780
  %v782 = vpop.f32.mrb[0].mxu0
  %783 = vmatprep.mubr.bf16.mxu0 0
  %784 = vmatmul.mubr.bf16.gmra.mrb[0].mxu0 %v628
  %v785 = vpop.f32.mrb[0].mxu0
  %v786 = vadd.f32 %v398, %v785
  %v787 = vpop.f32.mrb[0].mxu0
  %v788 = vpop.f32.mrb[0].mxu0
  %v789 = vadd.f32 %v401, %v788
  %v790 = vpop.f32.mrb[0].mxu0
  %791 = vmatprep.mubr.bf16.mxu0 0
  %792 = vmatmul.mubr.bf16.gmra.mrb[0].mxu0 %v631
  %v793 = vpop.f32.mrb[0].mxu0
  %v794 = vadd.f32 %v406, %v793
  %v795 = vpop.f32.mrb[0].mxu0
  %v796 = vpop.f32.mrb[0].mxu0
  %v797 = vadd.f32 %v409, %v796
  %v798 = vpop.f32.mrb[0].mxu0
  %799 = vmatprep.mubr.bf16.mxu0 0
  %800 = vmatmul.mubr.bf16.gmra.mrb[0].mxu0 %v634
  %v801 = vpop.f32.mrb[0].mxu0
  %v802 = vadd.f32 %v414, %v801
  %v803 = vpop.f32.mrb[0].mxu0
  %v804 = vpop.f32.mrb[0].mxu0
  %v805 = vadd.f32 %v417, %v804
  %v806 = vpop.f32.mrb[0].mxu0
  %807 = vmatprep.mubr.bf16.mxu0 0
  %808 = vmatmul.mubr.bf16.gmra.mrb[0].mxu0 %v637
  %v809 = vpop.f32.mrb[0].mxu0
  %v810 = vadd.f32 %v422, %v809
  %v811 = vpop.f32.mrb[0].mxu0
  %v812 = vpop.f32.mrb[0].mxu0
  %v813 = vadd.f32 %v425, %v812
  %v814 = vpop.f32.mrb[0].mxu0
  %815 = vmatprep.mubr.bf16.mxu0 0
  %816 = vmatmul.mubr.bf16.gmra.mrb[0].mxu0 %v640
  %v817 = vpop.f32.mrb[0].mxu0
  %v818 = vadd.f32 %v430, %v817
  %v819 = vpop.f32.mrb[0].mxu0
  %v820 = vpop.f32.mrb[0].mxu0
  %v821 = vadd.f32 %v433, %v820
  %v822 = vpop.f32.mrb[0].mxu0
  %823 = vmatprep.mubr.bf16.mxu0 0
  %824 = vmatmul.mubr.bf16.gmra.mrb[0].mxu0 %v643
  %v825 = vpop.f32.mrb[0].mxu0
  %v826 = vadd.f32 %v438, %v825
  %v827 = vpop.f32.mrb[0].mxu0
  %v828 = vpop.f32.mrb[0].mxu0
  %v829 = vadd.f32 %v441, %v828
  %v830 = vpop.f32.mrb[0].mxu0
  %831 = vmatprep.mubr.bf16.mxu0 0
  %832 = vmatmul.mubr.bf16.gmra.mrb[0].mxu0 %v646
  %v833 = vpop.f32.mrb[0].mxu0
  %v834 = vadd.f32 %v446, %v833
  %v835 = vpop.f32.mrb[0].mxu0
  %v836 = vpop.f32.mrb[0].mxu0
  %v837 = vadd.f32 %v449, %v836
  %v838 = vpop.f32.mrb[0].mxu0
  %839 = vmatprep.mubr.bf16.mxu0 0
  %840 = vmatmul.mubr.bf16.gmra.mrb[0].mxu0 %v649
  %v841 = vpop.f32.mrb[0].mxu0
  %v842 = vadd.f32 %v454, %v841
  %v843 = vpop.f32.mrb[0].mxu0
  %v844 = vpop.f32.mrb[0].mxu0
  %v845 = vadd.f32 %v457, %v844
  %v846 = vpop.f32.mrb[0].mxu0
  %847 = vmatprep.mubr.bf16.mxu0 0
  %848 = vmatmul.mubr.bf16.gmra.mrb[0].mxu0 %v652
  %v849 = vpop.f32.mrb[0].mxu0
  %v850 = vadd.f32 %v462, %v849
  %v851 = vpop.f32.mrb[0].mxu0
  %v852 = vpop.f32.mrb[0].mxu0
  %v853 = vadd.f32 %v465, %v852
  %v854 = vpop.f32.mrb[0].mxu0
  %855 = vmatprep.mubr.bf16.mxu0 0
  %856 = vmatmul.mubr.bf16.gmra.mrb[0].mxu0 %v655
  %v857 = vpop.f32.mrb[0].mxu0
  %v858 = vadd.f32 %v470, %v857
  %v859 = vpop.f32.mrb[0].mxu0
  %v860 = vpop.f32.mrb[0].mxu0
  %v861 = vadd.f32 %v473, %v860
  %v862 = vpop.f32.mrb[0].mxu0
  %863 = vmatprep.mubr.bf16.mxu0 0
  %864 = vmatmul.mubr.bf16.gmra.mrb[0].mxu0 %v658
  %v865 = vpop.f32.mrb[0].mxu0
  %v866 = vadd.f32 %v478, %v865
  %v867 = vpop.f32.mrb[0].mxu0
  %v868 = vpop.f32.mrb[0].mxu0
  %v869 = vadd.f32 %v481, %v868
  %v870 = vpop.f32.mrb[0].mxu0
  %871 = vmatprep.mubr.bf16.mxu0 0
  %872 = vmatmul.mubr.bf16.gmra.mrb[0].mxu0 %v661
  %v873 = vpop.f32.mrb[0].mxu0
  %v874 = vadd.f32 %v486, %v873
  %v875 = vpop.f32.mrb[0].mxu0
  %v876 = vpop.f32.mrb[0].mxu0
  %v877 = vadd.f32 %v489, %v876
  %v878 = vpop.f32.mrb[0].mxu0
  %879 = vmatprep.mubr.bf16.mxu0 0
  %880 = vmatmul.mubr.bf16.gmra.mrb[0].mxu0 %v664
  %v881 = vpop.f32.mrb[0].mxu0
  %v882 = vadd.f32 %v494, %v881
  %v883 = vpop.f32.mrb[0].mxu0
  %v884 = vpop.f32.mrb[0].mxu0
  %v885 = vadd.f32 %v497, %v884
  %v886 = vpop.f32.mrb[0].mxu0
  %887 = vmatprep.mubr.bf16.mxu0 0
  %888 = vmatmul.mubr.bf16.gmra.mrb[0].mxu0 %v667
  %v889 = vpop.f32.mrb[0].mxu0
  %v890 = vadd.f32 %v502, %v889
  %v891 = vpop.f32.mrb[0].mxu0
  %v892 = vpop.f32.mrb[0].mxu0
  %v893 = vadd.f32 %v505, %v892
  %v894 = vpop.f32.mrb[0].mxu0
  %895 = vmatprep.mubr.bf16.mxu0 0
  %896 = vmatmul.mubr.bf16.gmra.mrb[0].mxu0 %v670
  %v897 = vpop.f32.mrb[0].mxu0
  %v898 = vadd.f32 %v510, %v897
  %v899 = vpop.f32.mrb[0].mxu0
  %v900 = vpop.f32.mrb[0].mxu0
  %v901 = vadd.f32 %v513, %v900
  %v902 = vpop.f32.mrb[0].mxu0
  %903 = vmatprep.mubr.bf16.mxu0 0
  %904 = vmatmul.mubr.bf16.gmra.mrb[0].mxu0 %v673
  %v905 = vpop.f32.mrb[0].mxu0
  %v906 = vadd.f32 %v518, %v905
  %v907 = vpop.f32.mrb[0].mxu0
  %v908 = vpop.f32.mrb[0].mxu0
  %v909 = vadd.f32 %v521, %v908
  %v910 = vpop.f32.mrb[0].mxu0
  %911 = vmatprep.mubr.bf16.mxu0 0
  %912 = vmatmul.mubr.bf16.gmra.mrb[0].mxu0 %v676
  %v913 = vpop.f32.mrb[0].mxu0
  %v914 = vadd.f32 %v526, %v913
  %v915 = vpop.f32.mrb[0].mxu0
  %v916 = vpop.f32.mrb[0].mxu0
  %v917 = vadd.f32 %v529, %v916
  %v918 = vpop.f32.mrb[0].mxu0
  %919 = vmatprep.mubr.bf16.mxu0 0
  %920 = vmatmul.mubr.bf16.gmra.mrb[0].mxu0 %v679
  %v921 = vpop.f32.mrb[0].mxu0
  %v922 = vadd.f32 %v534, %v921
  %v923 = vpop.f32.mrb[0].mxu0
  %v924 = vpop.f32.mrb[0].mxu0
  %v925 = vadd.f32 %v537, %v924
  %v926 = vpop.f32.mrb[0].mxu0
  %927 = vmatprep.mubr.bf16.mxu0 0
  %928 = vmatmul.mubr.bf16.gmra.mrb[0].mxu0 %v682
  %v929 = vpop.f32.mrb[0].mxu0
  %v930 = vadd.f32 %v542, %v929
  %v931 = vpop.f32.mrb[0].mxu0
  %v932 = vpop.f32.mrb[0].mxu0
  %v933 = vadd.f32 %v545, %v932
  %v934 = vpop.f32.mrb[0].mxu0
  %935 = vmatprep.mubr.bf16.mxu0 0
  %936 = vmatmul.mubr.bf16.gmra.mrb[0].mxu0 %v685
  %v937 = vpop.f32.mrb[0].mxu0
  %v938 = vadd.f32 %v550, %v937
  %v939 = vpop.f32.mrb[0].mxu0
  %v940 = vpop.f32.mrb[0].mxu0
  %v941 = vadd.f32 %v553, %v940
  %v942 = vpop.f32.mrb[0].mxu0
  %943 = vmatprep.mubr.bf16.mxu0 0
  %944 = vmatmul.mubr.bf16.gmra.mrb[0].mxu0 %v688
  %v945 = vpop.f32.mrb[0].mxu0
  %v946 = vadd.f32 %v558, %v945
  %v947 = vpop.f32.mrb[0].mxu0
  %v948 = vpop.f32.mrb[0].mxu0
  %v949 = vadd.f32 %v561, %v948
  %v950 = vpop.f32.mrb[0].mxu0
  %951 = vmatprep.mubr.bf16.mxu0 0
  %952 = vmatmul.mubr.bf16.gmra.mrb[0].mxu0 %v691
  %v953 = vpop.f32.mrb[0].mxu0
  %v954 = vadd.f32 %v566, %v953
  %v955 = vpop.f32.mrb[0].mxu0
  %v956 = vpop.f32.mrb[0].mxu0
  %v957 = vadd.f32 %v569, %v956
  %v958 = vpop.f32.mrb[0].mxu0
  %959 = vmatprep.mubr.bf16.mxu0 0
  %960 = vmatmul.mubr.bf16.gmra.mrb[0].mxu0 %v694
  %v961 = vpop.f32.mrb[0].mxu0
  %v962 = vadd.f32 %v574, %v961
  %v963 = vpop.f32.mrb[0].mxu0
  %v964 = vpop.f32.mrb[0].mxu0
  %v965 = vadd.f32 %v577, %v964
  %v966 = vpop.f32.mrb[0].mxu0
  %967 = vmatprep.mubr.bf16.mxu0 0
  %968 = vmatmul.mubr.bf16.gmra.mrb[0].mxu0 %v697
  %v969 = vpop.f32.mrb[0].mxu0
  %v970 = vadd.f32 %v582, %v969
  %v971 = vpop.f32.mrb[0].mxu0
  %v972 = vpop.f32.mrb[0].mxu0
  %v973 = vadd.f32 %v585, %v972
  %v974 = vpop.f32.mrb[0].mxu0
  %975 = vmatprep.mubr.bf16.mxu0 0
  %976 = vmatmul.mubr.bf16.gmra.mrb[0].mxu0 %v700
  %v977 = vpop.f32.mrb[0].mxu0
  %v978 = vadd.f32 %v590, %v977
  %v979 = vpop.f32.mrb[0].mxu0
  %v980 = vpop.f32.mrb[0].mxu0
  %v981 = vadd.f32 %v593, %v980
  %v982 = vpop.f32.mrb[0].mxu0
  %983 = vmatprep.mubr.bf16.mxu0 0
  %984 = vmatmul.mubr.bf16.gmra.mrb[0].mxu0 %v703
  %v985 = vpop.f32.mrb[0].mxu0
  %v986 = vadd.f32 %v598, %v985
  %v987 = vpop.f32.mrb[0].mxu0
  %v988 = vpop.f32.mrb[0].mxu0
  %v989 = vadd.f32 %v601, %v988
  %v990 = vpop.f32.mrb[0].mxu0
  %991 = vmatprep.mubr.bf16.mxu0 0
  %992 = vmatmul.mubr.bf16.gmra.mrb[0].mxu0 %v706
  %v993 = vpop.f32.mrb[0].mxu0
  %v994 = vadd.f32 %v606, %v993
  %v995 = vpop.f32.mrb[0].mxu0
  %v996 = vpop.f32.mrb[0].mxu0
  %v997 = vadd.f32 %v609, %v996
  %v998 = vpop.f32.mrb[0].mxu0
  %999 = vdwg.mxu0
  %v1000 = vld [vmem:[%s0 + $0x2] sm:$0xff]
  %v1001 = vld [vmem:[%s0 + $0xa] sm:$0xff]
  %v1002 = vld [vmem:[%s0 + $0x1a] sm:$0xff]
  %v1003 = vld [vmem:[%s0 + $0x22] sm:$0xff]
  %v1004 = vld [vmem:[%s0 + $0x32] sm:$0xff]
  %v1005 = vld [vmem:[%s0 + $0x3a] sm:$0xff]
  %v1006 = vld [vmem:[%s0 + $0x4a] sm:$0xff]
  %v1007 = vld [vmem:[%s0 + $0x52] sm:$0xff]
  %v1008 = vld [vmem:[%s0 + $0x62] sm:$0xff]
  %v1009 = vld [vmem:[%s0 + $0x6a] sm:$0xff]
  %v1010 = vld [vmem:[%s0 + $0x7a] sm:$0xff]
  %v1011 = vld [vmem:[%s0 + $0x82] sm:$0xff]
  %v1012 = vld [vmem:[%s0 + $0x92] sm:$0xff]
  %v1013 = vld [vmem:[%s0 + $0x9a] sm:$0xff]
  %v1014 = vld [vmem:[%s0 + $0xaa] sm:$0xff]
  %v1015 = vld [vmem:[%s0 + $0xb2] sm:$0xff]
  %v1016 = vld [vmem:[%s0 + $0xc2] sm:$0xff]
  %v1017 = vld [vmem:[%s0 + $0xca] sm:$0xff]
  %v1018 = vld [vmem:[%s0 + $0xda] sm:$0xff]
  %v1019 = vld [vmem:[%s0 + $0xe2] sm:$0xff]
  %v1020 = vld [vmem:[%s0 + $0xf2] sm:$0xff]
  %v1021 = vld [vmem:[%s0 + $0xfa] sm:$0xff]
  %v1022 = vld [vmem:[%s0 + $0x10a] sm:$0xff]
  %v1023 = vld [vmem:[%s0 + $0x112] sm:$0xff]
  %v1024 = vld [vmem:[%s0 + $0x122] sm:$0xff]
  %v1025 = vld [vmem:[%s0 + $0x12a] sm:$0xff]
  %v1026 = vld [vmem:[%s0 + $0x13a] sm:$0xff]
  %v1027 = vld [vmem:[%s0 + $0x142] sm:$0xff]
  %v1028 = vld [vmem:[%s0 + $0x152] sm:$0xff]
  %v1029 = vld [vmem:[%s0 + $0x15a] sm:$0xff]
  %v1030 = vld [vmem:[%s0 + $0x16a] sm:$0xff]
  %v1031 = vld [vmem:[%s0 + $0x172] sm:$0xff]
  %v1032 = vld [vmem:[%s0 + $0x1b2] sm:$0xff]
  %v1033 = vld [vmem:[%s0 + $0x1ba] sm:$0xff]
  %v1034 = vld [vmem:[%s0 + $0x1ca] sm:$0xff]
  %v1035 = vld [vmem:[%s0 + $0x1d2] sm:$0xff]
  %v1036 = vld [vmem:[%s0 + $0x1e2] sm:$0xff]
  %v1037 = vld [vmem:[%s0 + $0x1ea] sm:$0xff]
  %v1038 = vld [vmem:[%s0 + $0x1fa] sm:$0xff]
  %v1039 = vld [vmem:[%s0 + $0x202] sm:$0xff]
  %v1040 = vld [vmem:[%s0 + $0x212] sm:$0xff]
  %v1041 = vld [vmem:[%s0 + $0x21a] sm:$0xff]
  %v1042 = vld [vmem:[%s0 + $0x22a] sm:$0xff]
  %v1043 = vld [vmem:[%s0 + $0x232] sm:$0xff]
  %v1044 = vld [vmem:[%s0 + $0x242] sm:$0xff]
  %v1045 = vld [vmem:[%s0 + $0x24a] sm:$0xff]
  %v1046 = vld [vmem:[%s0 + $0x25a] sm:$0xff]
  %v1047 = vld [vmem:[%s0 + $0x262] sm:$0xff]
  %v1048 = vld [vmem:[%s0 + $0x272] sm:$0xff]
  %v1049 = vld [vmem:[%s0 + $0x27a] sm:$0xff]
  %v1050 = vld [vmem:[%s0 + $0x28a] sm:$0xff]
  %v1051 = vld [vmem:[%s0 + $0x292] sm:$0xff]
  %v1052 = vld [vmem:[%s0 + $0x2a2] sm:$0xff]
  %v1053 = vld [vmem:[%s0 + $0x2aa] sm:$0xff]
  %v1054 = vld [vmem:[%s0 + $0x2ba] sm:$0xff]
  %v1055 = vld [vmem:[%s0 + $0x2c2] sm:$0xff]
  %v1056 = vld [vmem:[%s0 + $0x2d2] sm:$0xff]
  %v1057 = vld [vmem:[%s0 + $0x2da] sm:$0xff]
  %v1058 = vld [vmem:[%s0 + $0x2ea] sm:$0xff]
  %v1059 = vld [vmem:[%s0 + $0x2f2] sm:$0xff]
  %v1060 = vld [vmem:[%s0 + $0x302] sm:$0xff]
  %v1061 = vld [vmem:[%s0 + $0x30a] sm:$0xff]
  %v1062 = vld [vmem:[%s0 + $0x31a] sm:$0xff]
  %v1063 = vld [vmem:[%s0 + $0x322] sm:$0xff]
  %v1064 = vpack.c.bf16 %v1001, %v1000
  %v1065 = vpack.c.bf16 %v1003, %v1002
  %v1066 = vpack.c.bf16 %v1005, %v1004
  %v1067 = vpack.c.bf16 %v1007, %v1006
  %v1068 = vpack.c.bf16 %v1009, %v1008
  %v1069 = vpack.c.bf16 %v1011, %v1010
  %v1070 = vpack.c.bf16 %v1013, %v1012
  %v1071 = vpack.c.bf16 %v1015, %v1014
  %v1072 = vpack.c.bf16 %v1017, %v1016
  %v1073 = vpack.c.bf16 %v1019, %v1018
  %v1074 = vpack.c.bf16 %v1021, %v1020
  %v1075 = vpack.c.bf16 %v1023, %v1022
  %v1076 = vpack.c.bf16 %v1025, %v1024
  %v1077 = vpack.c.bf16 %v1027, %v1026
  %v1078 = vpack.c.bf16 %v1029, %v1028
  %v1079 = vpack.c.bf16 %v1031, %v1030
  %v1080 = vpack.c.bf16 %v1033, %v1032
  %v1081 = vpack.c.bf16 %v1035, %v1034
  %v1082 = vpack.c.bf16 %v1037, %v1036
  %v1083 = vpack.c.bf16 %v1039, %v1038
  %v1084 = vpack.c.bf16 %v1041, %v1040
  %v1085 = vpack.c.bf16 %v1043, %v1042
  %v1086 = vpack.c.bf16 %v1045, %v1044
  %v1087 = vpack.c.bf16 %v1047, %v1046
  %v1088 = vpack.c.bf16 %v1049, %v1048
  %v1089 = vpack.c.bf16 %v1051, %v1050
  %v1090 = vpack.c.bf16 %v1053, %v1052
  %v1091 = vpack.c.bf16 %v1055, %v1054
  %v1092 = vpack.c.bf16 %v1057, %v1056
  %v1093 = vpack.c.bf16 %v1059, %v1058
  %v1094 = vpack.c.bf16 %v1061, %v1060
  %v1095 = vpack.c.bf16 %v1063, %v1062
  %s1096 = scalar_lea.vmem %s1, 8
  %v1097 = vld [vmem:[%s1096] sm:$0xf]
  %v1099 = vsel %vm222, %v1064, 0
  %v1102 = vsel %vm222, %v1065, 0
  %v1105 = vsel %vm222, %v1066, 0
  %v1108 = vsel %vm222, %v1067, 0
  %v1111 = vsel %vm222, %v1068, 0
  %v1114 = vsel %vm222, %v1069, 0
  %v1117 = vsel %vm222, %v1070, 0
  %v1120 = vsel %vm222, %v1071, 0
  %v1123 = vsel %vm222, %v1072, 0
  %v1126 = vsel %vm222, %v1073, 0
  %v1129 = vsel %vm222, %v1074, 0
  %v1132 = vsel %vm222, %v1075, 0
  %v1135 = vsel %vm222, %v1076, 0
  %v1138 = vsel %vm222, %v1077, 0
  %v1141 = vsel %vm222, %v1078, 0
  %v1144 = vsel %vm222, %v1079, 0
  %v1147 = vsel %vm222, %v1080, 0
  %v1150 = vsel %vm222, %v1081, 0
  %v1153 = vsel %vm222, %v1082, 0
  %v1156 = vsel %vm222, %v1083, 0
  %v1159 = vsel %vm222, %v1084, 0
  %v1162 = vsel %vm222, %v1085, 0
  %v1165 = vsel %vm222, %v1086, 0
  %v1168 = vsel %vm222, %v1087, 0
  %v1171 = vsel %vm222, %v1088, 0
  %v1174 = vsel %vm222, %v1089, 0
  %v1177 = vsel %vm222, %v1090, 0
  %v1180 = vsel %vm222, %v1091, 0
  %v1183 = vsel %vm222, %v1092, 0
  %v1186 = vsel %vm222, %v1093, 0
  %v1189 = vsel %vm222, %v1094, 0
  %v1192 = vsel %vm222, %v1095, 0
  %v1195 = vsel %vm319, %v1097, 0
  %1197 = vmatprep.subr.bf16.mxu0 0
  %1198 = vmatpush1.bf16.msra.mxu0 %v1195
  %1199 = vmatprep.subr.bf16.mxu0 0
  %1200 = vmatpush1.bf16.msra.mxu0 0
  %1201 = vmatprep.subr.bf16.mxu0 0
  %1202 = vmatpush1.bf16.msra.mxu0 0
  %1203 = vmatprep.subr.bf16.mxu0 0
  %1204 = vmatpush1.bf16.msra.mxu0 0
  %1205 = vmatprep.subr.bf16.mxu0 0
  %1206 = vmatpush1.bf16.msra.mxu0 0
  %1207 = vmatprep.subr.bf16.mxu0 0
  %1208 = vmatpush1.bf16.msra.mxu0 0
  %1209 = vmatprep.subr.bf16.mxu0 0
  %1210 = vmatpush1.bf16.msra.mxu0 0
  %1211 = vmatprep.subr.bf16.mxu0 0
  %1212 = vmatpush1.bf16.msra.mxu0 0
  %1213 = vmatprep.subr.bf16.mxu0 0
  %1214 = vmatpush1.bf16.msra.mxu0 0
  %1215 = vmatprep.subr.bf16.mxu0 0
  %1216 = vmatpush1.bf16.msra.mxu0 0
  %1217 = vmatprep.subr.bf16.mxu0 0
  %1218 = vmatpush1.bf16.msra.mxu0 0
  %1219 = vmatprep.subr.bf16.mxu0 0
  %1220 = vmatpush1.bf16.msra.mxu0 0
  %1221 = vmatprep.subr.bf16.mxu0 0
  %1222 = vmatpush1.bf16.msra.mxu0 0
  %1223 = vmatprep.subr.bf16.mxu0 0
  %1224 = vmatpush1.bf16.msra.mxu0 0
  %1225 = vmatprep.subr.bf16.mxu0 0
  %1226 = vmatpush1.bf16.msra.mxu0 0
  %1227 = vmatprep.subr.bf16.mxu0 0
  %1228 = vmatpush1.bf16.msra.mxu0 0
  %1229 = vmatprep.mubr.bf16.mxu0 0
  %1230 = vmatmul.mubr.bf16.gmra.mrb[0].mxu0 %v1099
  %v1231 = vpop.f32.mrb[0].mxu0
  %v1232 = vadd.f32 0.0, %v1231
  %v1233 = vpop.f32.mrb[0].mxu0
  %v1234 = vpop.f32.mrb[0].mxu0
  %v1235 = vadd.f32 0.0, %v1234
  %v1236 = vpop.f32.mrb[0].mxu0
  %1237 = vmatprep.mubr.bf16.mxu0 0
  %1238 = vmatmul.mubr.bf16.gmra.mrb[0].mxu0 %v1102
  %v1239 = vpop.f32.mrb[0].mxu0
  %v1240 = vadd.f32 0.0, %v1239
  %v1241 = vpop.f32.mrb[0].mxu0
  %v1242 = vpop.f32.mrb[0].mxu0
  %v1243 = vadd.f32 0.0, %v1242
  %v1244 = vpop.f32.mrb[0].mxu0
  %1245 = vmatprep.mubr.bf16.mxu0 0
  %1246 = vmatmul.mubr.bf16.gmra.mrb[0].mxu0 %v1105
  %v1247 = vpop.f32.mrb[0].mxu0
  %v1248 = vadd.f32 0.0, %v1247
  %v1249 = vpop.f32.mrb[0].mxu0
  %v1250 = vpop.f32.mrb[0].mxu0
  %v1251 = vadd.f32 0.0, %v1250
  %v1252 = vpop.f32.mrb[0].mxu0
  %1253 = vmatprep.mubr.bf16.mxu0 0
  %1254 = vmatmul.mubr.bf16.gmra.mrb[0].mxu0 %v1108
  %v1255 = vpop.f32.mrb[0].mxu0
  %v1256 = vadd.f32 0.0, %v1255
  %v1257 = vpop.f32.mrb[0].mxu0
  %v1258 = vpop.f32.mrb[0].mxu0
  %v1259 = vadd.f32 0.0, %v1258
  %v1260 = vpop.f32.mrb[0].mxu0
  %1261 = vmatprep.mubr.bf16.mxu0 0
  %1262 = vmatmul.mubr.bf16.gmra.mrb[0].mxu0 %v1111
  %v1263 = vpop.f32.mrb[0].mxu0
  %v1264 = vadd.f32 0.0, %v1263
  %v1265 = vpop.f32.mrb[0].mxu0
  %v1266 = vpop.f32.mrb[0].mxu0
  %v1267 = vadd.f32 0.0, %v1266
  %v1268 = vpop.f32.mrb[0].mxu0
  %1269 = vmatprep.mubr.bf16.mxu0 0
  %1270 = vmatmul.mubr.bf16.gmra.mrb[0].mxu0 %v1114
  %v1271 = vpop.f32.mrb[0].mxu0
  %v1272 = vadd.f32 0.0, %v1271
  %v1273 = vpop.f32.mrb[0].mxu0
  %v1274 = vpop.f32.mrb[0].mxu0
  %v1275 = vadd.f32 0.0, %v1274
  %v1276 = vpop.f32.mrb[0].mxu0
  %1277 = vmatprep.mubr.bf16.mxu0 0
  %1278 = vmatmul.mubr.bf16.gmra.mrb[0].mxu0 %v1117
  %v1279 = vpop.f32.mrb[0].mxu0
  %v1280 = vadd.f32 0.0, %v1279
  %v1281 = vpop.f32.mrb[0].mxu0
  %v1282 = vpop.f32.mrb[0].mxu0
  %v1283 = vadd.f32 0.0, %v1282
  %v1284 = vpop.f32.mrb[0].mxu0
  %1285 = vmatprep.mubr.bf16.mxu0 0
  %1286 = vmatmul.mubr.bf16.gmra.mrb[0].mxu0 %v1120
  %v1287 = vpop.f32.mrb[0].mxu0
  %v1288 = vadd.f32 0.0, %v1287
  %v1289 = vpop.f32.mrb[0].mxu0
  %v1290 = vpop.f32.mrb[0].mxu0
  %v1291 = vadd.f32 0.0, %v1290
  %v1292 = vpop.f32.mrb[0].mxu0
  %1293 = vmatprep.mubr.bf16.mxu0 0
  %1294 = vmatmul.mubr.bf16.gmra.mrb[0].mxu0 %v1123
  %v1295 = vpop.f32.mrb[0].mxu0
  %v1296 = vadd.f32 0.0, %v1295
  %v1297 = vpop.f32.mrb[0].mxu0
  %v1298 = vpop.f32.mrb[0].mxu0
  %v1299 = vadd.f32 0.0, %v1298
  %v1300 = vpop.f32.mrb[0].mxu0
  %1301 = vmatprep.mubr.bf16.mxu0 0
  %1302 = vmatmul.mubr.bf16.gmra.mrb[0].mxu0 %v1126
  %v1303 = vpop.f32.mrb[0].mxu0
  %v1304 = vadd.f32 0.0, %v1303
  %v1305 = vpop.f32.mrb[0].mxu0
  %v1306 = vpop.f32.mrb[0].mxu0
  %v1307 = vadd.f32 0.0, %v1306
  %v1308 = vpop.f32.mrb[0].mxu0
  %1309 = vmatprep.mubr.bf16.mxu0 0
  %1310 = vmatmul.mubr.bf16.gmra.mrb[0].mxu0 %v1129
  %v1311 = vpop.f32.mrb[0].mxu0
  %v1312 = vadd.f32 0.0, %v1311
  %v1313 = vpop.f32.mrb[0].mxu0
  %v1314 = vpop.f32.mrb[0].mxu0
  %v1315 = vadd.f32 0.0, %v1314
  %v1316 = vpop.f32.mrb[0].mxu0
  %1317 = vmatprep.mubr.bf16.mxu0 0
  %1318 = vmatmul.mubr.bf16.gmra.mrb[0].mxu0 %v1132
  %v1319 = vpop.f32.mrb[0].mxu0
  %v1320 = vadd.f32 0.0, %v1319
  %v1321 = vpop.f32.mrb[0].mxu0
  %v1322 = vpop.f32.mrb[0].mxu0
  %v1323 = vadd.f32 0.0, %v1322
  %v1324 = vpop.f32.mrb[0].mxu0
  %1325 = vmatprep.mubr.bf16.mxu0 0
  %1326 = vmatmul.mubr.bf16.gmra.mrb[0].mxu0 %v1135
  %v1327 = vpop.f32.mrb[0].mxu0
  %v1328 = vadd.f32 0.0, %v1327
  %v1329 = vpop.f32.mrb[0].mxu0
  %v1330 = vpop.f32.mrb[0].mxu0
  %v1331 = vadd.f32 0.0, %v1330
  %v1332 = vpop.f32.mrb[0].mxu0
  %1333 = vmatprep.mubr.bf16.mxu0 0
  %1334 = vmatmul.mubr.bf16.gmra.mrb[0].mxu0 %v1138
  %v1335 = vpop.f32.mrb[0].mxu0
  %v1336 = vadd.f32 0.0, %v1335
  %v1337 = vpop.f32.mrb[0].mxu0
  %v1338 = vpop.f32.mrb[0].mxu0
  %v1339 = vadd.f32 0.0, %v1338
  %v1340 = vpop.f32.mrb[0].mxu0
  %1341 = vmatprep.mubr.bf16.mxu0 0
  %1342 = vmatmul.mubr.bf16.gmra.mrb[0].mxu0 %v1141
  %v1343 = vpop.f32.mrb[0].mxu0
  %v1344 = vadd.f32 0.0, %v1343
  %v1345 = vpop.f32.mrb[0].mxu0
  %v1346 = vpop.f32.mrb[0].mxu0
  %v1347 = vadd.f32 0.0, %v1346
  %v1348 = vpop.f32.mrb[0].mxu0
  %1349 = vmatprep.mubr.bf16.mxu0 0
  %1350 = vmatmul.mubr.bf16.gmra.mrb[0].mxu0 %v1144
  %v1351 = vpop.f32.mrb[0].mxu0
  %v1352 = vadd.f32 0.0, %v1351
  %v1353 = vpop.f32.mrb[0].mxu0
  %v1354 = vpop.f32.mrb[0].mxu0
  %v1355 = vadd.f32 0.0, %v1354
  %v1356 = vpop.f32.mrb[0].mxu0
  %1357 = vmatprep.mubr.bf16.mxu0 0
  %1358 = vmatmul.mubr.bf16.gmra.mrb[0].mxu0 %v1147
  %v1359 = vpop.f32.mrb[0].mxu0
  %v1360 = vadd.f32 0.0, %v1359
  %v1361 = vpop.f32.mrb[0].mxu0
  %v1362 = vpop.f32.mrb[0].mxu0
  %v1363 = vadd.f32 0.0, %v1362
  %v1364 = vpop.f32.mrb[0].mxu0
  %1365 = vmatprep.mubr.bf16.mxu0 0
  %1366 = vmatmul.mubr.bf16.gmra.mrb[0].mxu0 %v1150
  %v1367 = vpop.f32.mrb[0].mxu0
  %v1368 = vadd.f32 0.0, %v1367
  %v1369 = vpop.f32.mrb[0].mxu0
  %v1370 = vpop.f32.mrb[0].mxu0
  %v1371 = vadd.f32 0.0, %v1370
  %v1372 = vpop.f32.mrb[0].mxu0
  %1373 = vmatprep.mubr.bf16.mxu0 0
  %1374 = vmatmul.mubr.bf16.gmra.mrb[0].mxu0 %v1153
  %v1375 = vpop.f32.mrb[0].mxu0
  %v1376 = vadd.f32 0.0, %v1375
  %v1377 = vpop.f32.mrb[0].mxu0
  %v1378 = vpop.f32.mrb[0].mxu0
  %v1379 = vadd.f32 0.0, %v1378
  %v1380 = vpop.f32.mrb[0].mxu0
  %1381 = vmatprep.mubr.bf16.mxu0 0
  %1382 = vmatmul.mubr.bf16.gmra.mrb[0].mxu0 %v1156
  %v1383 = vpop.f32.mrb[0].mxu0
  %v1384 = vadd.f32 0.0, %v1383
  %v1385 = vpop.f32.mrb[0].mxu0
  %v1386 = vpop.f32.mrb[0].mxu0
  %v1387 = vadd.f32 0.0, %v1386
  %v1388 = vpop.f32.mrb[0].mxu0
  %1389 = vmatprep.mubr.bf16.mxu0 0
  %1390 = vmatmul.mubr.bf16.gmra.mrb[0].mxu0 %v1159
  %v1391 = vpop.f32.mrb[0].mxu0
  %v1392 = vadd.f32 0.0, %v1391
  %v1393 = vpop.f32.mrb[0].mxu0
  %v1394 = vpop.f32.mrb[0].mxu0
  %v1395 = vadd.f32 0.0, %v1394
  %v1396 = vpop.f32.mrb[0].mxu0
  %1397 = vmatprep.mubr.bf16.mxu0 0
  %1398 = vmatmul.mubr.bf16.gmra.mrb[0].mxu0 %v1162
  %v1399 = vpop.f32.mrb[0].mxu0
  %v1400 = vadd.f32 0.0, %v1399
  %v1401 = vpop.f32.mrb[0].mxu0
  %v1402 = vpop.f32.mrb[0].mxu0
  %v1403 = vadd.f32 0.0, %v1402
  %v1404 = vpop.f32.mrb[0].mxu0
  %1405 = vmatprep.mubr.bf16.mxu0 0
  %1406 = vmatmul.mubr.bf16.gmra.mrb[0].mxu0 %v1165
  %v1407 = vpop.f32.mrb[0].mxu0
  %v1408 = vadd.f32 0.0, %v1407
  %v1409 = vpop.f32.mrb[0].mxu0
  %v1410 = vpop.f32.mrb[0].mxu0
  %v1411 = vadd.f32 0.0, %v1410
  %v1412 = vpop.f32.mrb[0].mxu0
  %1413 = vmatprep.mubr.bf16.mxu0 0
  %1414 = vmatmul.mubr.bf16.gmra.mrb[0].mxu0 %v1168
  %v1415 = vpop.f32.mrb[0].mxu0
  %v1416 = vadd.f32 0.0, %v1415
  %v1417 = vpop.f32.mrb[0].mxu0
  %v1418 = vpop.f32.mrb[0].mxu0
  %v1419 = vadd.f32 0.0, %v1418
  %v1420 = vpop.f32.mrb[0].mxu0
  %1421 = vmatprep.mubr.bf16.mxu0 0
  %1422 = vmatmul.mubr.bf16.gmra.mrb[0].mxu0 %v1171
  %v1423 = vpop.f32.mrb[0].mxu0
  %v1424 = vadd.f32 0.0, %v1423
  %v1425 = vpop.f32.mrb[0].mxu0
  %v1426 = vpop.f32.mrb[0].mxu0
  %v1427 = vadd.f32 0.0, %v1426
  %v1428 = vpop.f32.mrb[0].mxu0
  %1429 = vmatprep.mubr.bf16.mxu0 0
  %1430 = vmatmul.mubr.bf16.gmra.mrb[0].mxu0 %v1174
  %v1431 = vpop.f32.mrb[0].mxu0
  %v1432 = vadd.f32 0.0, %v1431
  %v1433 = vpop.f32.mrb[0].mxu0
  %v1434 = vpop.f32.mrb[0].mxu0
  %v1435 = vadd.f32 0.0, %v1434
  %v1436 = vpop.f32.mrb[0].mxu0
  %1437 = vmatprep.mubr.bf16.mxu0 0
  %1438 = vmatmul.mubr.bf16.gmra.mrb[0].mxu0 %v1177
  %v1439 = vpop.f32.mrb[0].mxu0
  %v1440 = vadd.f32 0.0, %v1439
  %v1441 = vpop.f32.mrb[0].mxu0
  %v1442 = vpop.f32.mrb[0].mxu0
  %v1443 = vadd.f32 0.0, %v1442
  %v1444 = vpop.f32.mrb[0].mxu0
  %1445 = vmatprep.mubr.bf16.mxu0 0
  %1446 = vmatmul.mubr.bf16.gmra.mrb[0].mxu0 %v1180
  %v1447 = vpop.f32.mrb[0].mxu0
  %v1448 = vadd.f32 0.0, %v1447
  %v1449 = vpop.f32.mrb[0].mxu0
  %v1450 = vpop.f32.mrb[0].mxu0
  %v1451 = vadd.f32 0.0, %v1450
  %v1452 = vpop.f32.mrb[0].mxu0
  %1453 = vmatprep.mubr.bf16.mxu0 0
  %1454 = vmatmul.mubr.bf16.gmra.mrb[0].mxu0 %v1183
  %v1455 = vpop.f32.mrb[0].mxu0
  %v1456 = vadd.f32 0.0, %v1455
  %v1457 = vpop.f32.mrb[0].mxu0
  %v1458 = vpop.f32.mrb[0].mxu0
  %v1459 = vadd.f32 0.0, %v1458
  %v1460 = vpop.f32.mrb[0].mxu0
  %1461 = vmatprep.mubr.bf16.mxu0 0
  %1462 = vmatmul.mubr.bf16.gmra.mrb[0].mxu0 %v1186
  %v1463 = vpop.f32.mrb[0].mxu0
  %v1464 = vadd.f32 0.0, %v1463
  %v1465 = vpop.f32.mrb[0].mxu0
  %v1466 = vpop.f32.mrb[0].mxu0
  %v1467 = vadd.f32 0.0, %v1466
  %v1468 = vpop.f32.mrb[0].mxu0
  %1469 = vmatprep.mubr.bf16.mxu0 0
  %1470 = vmatmul.mubr.bf16.gmra.mrb[0].mxu0 %v1189
  %v1471 = vpop.f32.mrb[0].mxu0
  %v1472 = vadd.f32 0.0, %v1471
  %v1473 = vpop.f32.mrb[0].mxu0
  %v1474 = vpop.f32.mrb[0].mxu0
  %v1475 = vadd.f32 0.0, %v1474
  %v1476 = vpop.f32.mrb[0].mxu0
  %1477 = vmatprep.mubr.bf16.mxu0 0
  %1478 = vmatmul.mubr.bf16.gmra.mrb[0].mxu0 %v1192
  %v1479 = vpop.f32.mrb[0].mxu0
  %v1480 = vadd.f32 0.0, %v1479
  %v1481 = vpop.f32.mrb[0].mxu0
  %v1482 = vpop.f32.mrb[0].mxu0
  %v1483 = vadd.f32 0.0, %v1482
  %v1484 = vpop.f32.mrb[0].mxu0
  %1485 = vdwg.mxu0
  %v1486 = vadd.f32 %v746, %v1232
  %v1487 = vadd.f32 %v749, %v1235
  %v1488 = vadd.f32 %v754, %v1240
  %v1489 = vadd.f32 %v757, %v1243
  %v1490 = vadd.f32 %v762, %v1248
  %v1491 = vadd.f32 %v765, %v1251
  %v1492 = vadd.f32 %v770, %v1256
  %v1493 = vadd.f32 %v773, %v1259
  %v1494 = vadd.f32 %v778, %v1264
  %v1495 = vadd.f32 %v781, %v1267
  %v1496 = vadd.f32 %v786, %v1272
  %v1497 = vadd.f32 %v789, %v1275
  %v1498 = vadd.f32 %v794, %v1280
  %v1499 = vadd.f32 %v797, %v1283
  %v1500 = vadd.f32 %v802, %v1288
  %v1501 = vadd.f32 %v805, %v1291
  %v1502 = vadd.f32 %v810, %v1296
  %v1503 = vadd.f32 %v813, %v1299
  %v1504 = vadd.f32 %v818, %v1304
  %v1505 = vadd.f32 %v821, %v1307
  %v1506 = vadd.f32 %v826, %v1312
  %v1507 = vadd.f32 %v829, %v1315
  %v1508 = vadd.f32 %v834, %v1320
  %v1509 = vadd.f32 %v837, %v1323
  %v1510 = vadd.f32 %v842, %v1328
  %v1511 = vadd.f32 %v845, %v1331
  %v1512 = vadd.f32 %v850, %v1336
  %v1513 = vadd.f32 %v853, %v1339
  %v1514 = vadd.f32 %v858, %v1344
  %v1515 = vadd.f32 %v861, %v1347
  %v1516 = vadd.f32 %v866, %v1352
  %v1517 = vadd.f32 %v869, %v1355
  %v1518 = vadd.f32 %v874, %v1360
  %v1519 = vadd.f32 %v877, %v1363
  %v1520 = vadd.f32 %v882, %v1368
  %v1521 = vadd.f32 %v885, %v1371
  %v1522 = vadd.f32 %v890, %v1376
  %v1523 = vadd.f32 %v893, %v1379
  %v1524 = vadd.f32 %v898, %v1384
  %v1525 = vadd.f32 %v901, %v1387
  %v1526 = vadd.f32 %v906, %v1392
  %v1527 = vadd.f32 %v909, %v1395
  %v1528 = vadd.f32 %v914, %v1400
  %v1529 = vadd.f32 %v917, %v1403
  %v1530 = vadd.f32 %v922, %v1408
  %v1531 = vadd.f32 %v925, %v1411
  %v1532 = vadd.f32 %v930, %v1416
  %v1533 = vadd.f32 %v933, %v1419
  %v1534 = vadd.f32 %v938, %v1424
  %v1535 = vadd.f32 %v941, %v1427
  %v1536 = vadd.f32 %v946, %v1432
  %v1537 = vadd.f32 %v949, %v1435
  %v1538 = vadd.f32 %v954, %v1440
  %v1539 = vadd.f32 %v957, %v1443
  %v1540 = vadd.f32 %v962, %v1448
  %v1541 = vadd.f32 %v965, %v1451
  %v1542 = vadd.f32 %v970, %v1456
  %v1543 = vadd.f32 %v973, %v1459
  %v1544 = vadd.f32 %v978, %v1464
  %v1545 = vadd.f32 %v981, %v1467
  %v1546 = vadd.f32 %v986, %v1472
  %v1547 = vadd.f32 %v989, %v1475
  %v1548 = vadd.f32 %v994, %v1480
  %v1549 = vadd.f32 %v997, %v1483
  %s1550 = scalar_lea.vmem %s0, 24
  %v1551 = vld [vmem:[%s1550] sm:$0xff]
  %v1552 = vld [vmem:[%s1550 + $0x8] sm:$0xff]
  %v1553 = vld [vmem:[%s1550 + $0x18] sm:$0xff]
  %v1554 = vld [vmem:[%s1550 + $0x20] sm:$0xff]
  %v1555 = vld [vmem:[%s1550 + $0x30] sm:$0xff]
  %v1556 = vld [vmem:[%s1550 + $0x38] sm:$0xff]
  %v1557 = vld [vmem:[%s1550 + $0x48] sm:$0xff]
  %v1558 = vld [vmem:[%s1550 + $0x50] sm:$0xff]
  %v1559 = vld [vmem:[%s1550 + $0x60] sm:$0xff]
  %v1560 = vld [vmem:[%s1550 + $0x68] sm:$0xff]
  %v1561 = vld [vmem:[%s1550 + $0x78] sm:$0xff]
  %v1562 = vld [vmem:[%s1550 + $0x80] sm:$0xff]
  %v1563 = vld [vmem:[%s1550 + $0x90] sm:$0xff]
  %v1564 = vld [vmem:[%s1550 + $0x98] sm:$0xff]
  %v1565 = vld [vmem:[%s1550 + $0xa8] sm:$0xff]
  %v1566 = vld [vmem:[%s1550 + $0xb0] sm:$0xff]
  %v1567 = vld [vmem:[%s1550 + $0xc0] sm:$0xff]
  %v1568 = vld [vmem:[%s1550 + $0xc8] sm:$0xff]
  %v1569 = vld [vmem:[%s1550 + $0xd8] sm:$0xff]
  %v1570 = vld [vmem:[%s1550 + $0xe0] sm:$0xff]
  %v1571 = vld [vmem:[%s1550 + $0xf0] sm:$0xff]
  %v1572 = vld [vmem:[%s1550 + $0xf8] sm:$0xff]
  %v1573 = vld [vmem:[%s1550 + $0x108] sm:$0xff]
  %v1574 = vld [vmem:[%s1550 + $0x110] sm:$0xff]
  %v1575 = vld [vmem:[%s1550 + $0x120] sm:$0xff]
  %v1576 = vld [vmem:[%s1550 + $0x128] sm:$0xff]
  %v1577 = vld [vmem:[%s1550 + $0x138] sm:$0xff]
  %v1578 = vld [vmem:[%s1550 + $0x140] sm:$0xff]
  %v1579 = vld [vmem:[%s1550 + $0x150] sm:$0xff]
  %v1580 = vld [vmem:[%s1550 + $0x158] sm:$0xff]
  %v1581 = vld [vmem:[%s1550 + $0x168] sm:$0xff]
  %v1582 = vld [vmem:[%s1550 + $0x170] sm:$0xff]
  %v1583 = vld [vmem:[%s1550 + $0x1b0] sm:$0xff]
  %v1584 = vld [vmem:[%s1550 + $0x1b8] sm:$0xff]
  %v1585 = vld [vmem:[%s1550 + $0x1c8] sm:$0xff]
  %v1586 = vld [vmem:[%s1550 + $0x1d0] sm:$0xff]
  %v1587 = vld [vmem:[%s1550 + $0x1e0] sm:$0xff]
  %v1588 = vld [vmem:[%s1550 + $0x1e8] sm:$0xff]
  %v1589 = vld [vmem:[%s1550 + $0x1f8] sm:$0xff]
  %v1590 = vld [vmem:[%s1550 + $0x200] sm:$0xff]
  %v1591 = vld [vmem:[%s1550 + $0x210] sm:$0xff]
  %v1592 = vld [vmem:[%s1550 + $0x218] sm:$0xff]
  %v1593 = vld [vmem:[%s1550 + $0x228] sm:$0xff]
  %v1594 = vld [vmem:[%s1550 + $0x230] sm:$0xff]
  %v1595 = vld [vmem:[%s1550 + $0x240] sm:$0xff]
  %v1596 = vld [vmem:[%s1550 + $0x248] sm:$0xff]
  %v1597 = vld [vmem:[%s1550 + $0x258] sm:$0xff]
  %v1598 = vld [vmem:[%s1550 + $0x260] sm:$0xff]
  %v1599 = vld [vmem:[%s1550 + $0x270] sm:$0xff]
  %v1600 = vld [vmem:[%s1550 + $0x278] sm:$0xff]
  %v1601 = vld [vmem:[%s1550 + $0x288] sm:$0xff]
  %v1602 = vld [vmem:[%s1550 + $0x290] sm:$0xff]
  %v1603 = vld [vmem:[%s1550 + $0x2a0] sm:$0xff]
  %v1604 = vld [vmem:[%s1550 + $0x2a8] sm:$0xff]
  %v1605 = vld [vmem:[%s1550 + $0x2b8] sm:$0xff]
  %v1606 = vld [vmem:[%s1550 + $0x2c0] sm:$0xff]
  %v1607 = vld [vmem:[%s1550 + $0x2d0] sm:$0xff]
  %v1608 = vld [vmem:[%s1550 + $0x2d8] sm:$0xff]
  %v1609 = vld [vmem:[%s1550 + $0x2e8] sm:$0xff]
  %v1610 = vld [vmem:[%s1550 + $0x2f0] sm:$0xff]
  %v1611 = vld [vmem:[%s1550 + $0x300] sm:$0xff]
  %v1612 = vld [vmem:[%s1550 + $0x308] sm:$0xff]
  %v1613 = vld [vmem:[%s1550 + $0x318] sm:$0xff]
  %v1614 = vld [vmem:[%s1550 + $0x320] sm:$0xff]
  %v1615 = vpack.c.bf16 %v1552, %v1551
  %v1616 = vpack.c.bf16 %v1554, %v1553
  %v1617 = vpack.c.bf16 %v1556, %v1555
  %v1618 = vpack.c.bf16 %v1558, %v1557
  %v1619 = vpack.c.bf16 %v1560, %v1559
  %v1620 = vpack.c.bf16 %v1562, %v1561
  %v1621 = vpack.c.bf16 %v1564, %v1563
  %v1622 = vpack.c.bf16 %v1566, %v1565
  %v1623 = vpack.c.bf16 %v1568, %v1567
  %v1624 = vpack.c.bf16 %v1570, %v1569
  %v1625 = vpack.c.bf16 %v1572, %v1571
  %v1626 = vpack.c.bf16 %v1574, %v1573
  %v1627 = vpack.c.bf16 %v1576, %v1575
  %v1628 = vpack.c.bf16 %v1578, %v1577
  %v1629 = vpack.c.bf16 %v1580, %v1579
  %v1630 = vpack.c.bf16 %v1582, %v1581
  %v1631 = vpack.c.bf16 %v1584, %v1583
  %v1632 = vpack.c.bf16 %v1586, %v1585
  %v1633 = vpack.c.bf16 %v1588, %v1587
  %v1634 = vpack.c.bf16 %v1590, %v1589
  %v1635 = vpack.c.bf16 %v1592, %v1591
  %v1636 = vpack.c.bf16 %v1594, %v1593
  %v1637 = vpack.c.bf16 %v1596, %v1595
  %v1638 = vpack.c.bf16 %v1598, %v1597
  %v1639 = vpack.c.bf16 %v1600, %v1599
  %v1640 = vpack.c.bf16 %v1602, %v1601
  %v1641 = vpack.c.bf16 %v1604, %v1603
  %v1642 = vpack.c.bf16 %v1606, %v1605
  %v1643 = vpack.c.bf16 %v1608, %v1607
  %v1644 = vpack.c.bf16 %v1610, %v1609
  %v1645 = vpack.c.bf16 %v1612, %v1611
  %v1646 = vpack.c.bf16 %v1614, %v1613
  %s1647 = scalar_lea.vmem %s1, 12
  %v1648 = vld [vmem:[%s1647] sm:$0xf]
  %v1650 = vsel %vm222, %v1615, 0
  %v1653 = vsel %vm222, %v1616, 0
  %v1656 = vsel %vm222, %v1617, 0
  %v1659 = vsel %vm222, %v1618, 0
  %v1662 = vsel %vm222, %v1619, 0
  %v1665 = vsel %vm222, %v1620, 0
  %v1668 = vsel %vm222, %v1621, 0
  %v1671 = vsel %vm222, %v1622, 0
  %v1674 = vsel %vm222, %v1623, 0
  %v1677 = vsel %vm222, %v1624, 0
  %v1680 = vsel %vm222, %v1625, 0
  %v1683 = vsel %vm222, %v1626, 0
  %v1686 = vsel %vm222, %v1627, 0
  %v1689 = vsel %vm222, %v1628, 0
  %v1692 = vsel %vm222, %v1629, 0
  %v1695 = vsel %vm222, %v1630, 0
  %v1698 = vsel %vm222, %v1631, 0
  %v1701 = vsel %vm222, %v1632, 0
  %v1704 = vsel %vm222, %v1633, 0
  %v1707 = vsel %vm222, %v1634, 0
  %v1710 = vsel %vm222, %v1635, 0
  %v1713 = vsel %vm222, %v1636, 0
  %v1716 = vsel %vm222, %v1637, 0
  %v1719 = vsel %vm222, %v1638, 0
  %v1722 = vsel %vm222, %v1639, 0
  %v1725 = vsel %vm222, %v1640, 0
  %v1728 = vsel %vm222, %v1641, 0
  %v1731 = vsel %vm222, %v1642, 0
  %v1734 = vsel %vm222, %v1643, 0
  %v1737 = vsel %vm222, %v1644, 0
  %v1740 = vsel %vm222, %v1645, 0
  %v1743 = vsel %vm222, %v1646, 0
  %v1746 = vsel %vm319, %v1648, 0
  %1748 = vmatprep.subr.bf16.mxu0 0
  %1749 = vmatpush1.bf16.msra.mxu0 %v1746
  %1750 = vmatprep.subr.bf16.mxu0 0
  %1751 = vmatpush1.bf16.msra.mxu0 0
  %1752 = vmatprep.subr.bf16.mxu0 0
  %1753 = vmatpush1.bf16.msra.mxu0 0
  %1754 = vmatprep.subr.bf16.mxu0 0
  %1755 = vmatpush1.bf16.msra.mxu0 0
  %1756 = vmatprep.subr.bf16.mxu0 0
  %1757 = vmatpush1.bf16.msra.mxu0 0
  %1758 = vmatprep.subr.bf16.mxu0 0
  %1759 = vmatpush1.bf16.msra.mxu0 0
  %1760 = vmatprep.subr.bf16.mxu0 0
  %1761 = vmatpush1.bf16.msra.mxu0 0
  %1762 = vmatprep.subr.bf16.mxu0 0
  %1763 = vmatpush1.bf16.msra.mxu0 0
  %1764 = vmatprep.subr.bf16.mxu0 0
  %1765 = vmatpush1.bf16.msra.mxu0 0
  %1766 = vmatprep.subr.bf16.mxu0 0
  %1767 = vmatpush1.bf16.msra.mxu0 0
  %1768 = vmatprep.subr.bf16.mxu0 0
  %1769 = vmatpush1.bf16.msra.mxu0 0
  %1770 = vmatprep.subr.bf16.mxu0 0
  %1771 = vmatpush1.bf16.msra.mxu0 0
  %1772 = vmatprep.subr.bf16.mxu0 0
  %1773 = vmatpush1.bf16.msra.mxu0 0
  %1774 = vmatprep.subr.bf16.mxu0 0
  %1775 = vmatpush1.bf16.msra.mxu0 0
  %1776 = vmatprep.subr.bf16.mxu0 0
  %1777 = vmatpush1.bf16.msra.mxu0 0
  %1778 = vmatprep.subr.bf16.mxu0 0
  %1779 = vmatpush1.bf16.msra.mxu0 0
  %1780 = vmatprep.mubr.bf16.mxu0 0
  %1781 = vmatmul.mubr.bf16.gmra.mrb[0].mxu0 %v1650
  %v1782 = vpop.f32.mrb[0].mxu0
  %v1783 = vadd.f32 0.0, %v1782
  %v1784 = vpop.f32.mrb[0].mxu0
  %v1785 = vpop.f32.mrb[0].mxu0
  %v1786 = vadd.f32 0.0, %v1785
  %v1787 = vpop.f32.mrb[0].mxu0
  %1788 = vmatprep.mubr.bf16.mxu0 0
  %1789 = vmatmul.mubr.bf16.gmra.mrb[0].mxu0 %v1653
  %v1790 = vpop.f32.mrb[0].mxu0
  %v1791 = vadd.f32 0.0, %v1790
  %v1792 = vpop.f32.mrb[0].mxu0
  %v1793 = vpop.f32.mrb[0].mxu0
  %v1794 = vadd.f32 0.0, %v1793
  %v1795 = vpop.f32.mrb[0].mxu0
  %1796 = vmatprep.mubr.bf16.mxu0 0
  %1797 = vmatmul.mubr.bf16.gmra.mrb[0].mxu0 %v1656
  %v1798 = vpop.f32.mrb[0].mxu0
  %v1799 = vadd.f32 0.0, %v1798
  %v1800 = vpop.f32.mrb[0].mxu0
  %v1801 = vpop.f32.mrb[0].mxu0
  %v1802 = vadd.f32 0.0, %v1801
  %v1803 = vpop.f32.mrb[0].mxu0
  %1804 = vmatprep.mubr.bf16.mxu0 0
  %1805 = vmatmul.mubr.bf16.gmra.mrb[0].mxu0 %v1659
  %v1806 = vpop.f32.mrb[0].mxu0
  %v1807 = vadd.f32 0.0, %v1806
  %v1808 = vpop.f32.mrb[0].mxu0
  %v1809 = vpop.f32.mrb[0].mxu0
  %v1810 = vadd.f32 0.0, %v1809
  %v1811 = vpop.f32.mrb[0].mxu0
  %1812 = vmatprep.mubr.bf16.mxu0 0
  %1813 = vmatmul.mubr.bf16.gmra.mrb[0].mxu0 %v1662
  %v1814 = vpop.f32.mrb[0].mxu0
  %v1815 = vadd.f32 0.0, %v1814
  %v1816 = vpop.f32.mrb[0].mxu0
  %v1817 = vpop.f32.mrb[0].mxu0
  %v1818 = vadd.f32 0.0, %v1817
  %v1819 = vpop.f32.mrb[0].mxu0
  %1820 = vmatprep.mubr.bf16.mxu0 0
  %1821 = vmatmul.mubr.bf16.gmra.mrb[0].mxu0 %v1665
  %v1822 = vpop.f32.mrb[0].mxu0
  %v1823 = vadd.f32 0.0, %v1822
  %v1824 = vpop.f32.mrb[0].mxu0
  %v1825 = vpop.f32.mrb[0].mxu0
  %v1826 = vadd.f32 0.0, %v1825
  %v1827 = vpop.f32.mrb[0].mxu0
  %1828 = vmatprep.mubr.bf16.mxu0 0
  %1829 = vmatmul.mubr.bf16.gmra.mrb[0].mxu0 %v1668
  %v1830 = vpop.f32.mrb[0].mxu0
  %v1831 = vadd.f32 0.0, %v1830
  %v1832 = vpop.f32.mrb[0].mxu0
  %v1833 = vpop.f32.mrb[0].mxu0
  %v1834 = vadd.f32 0.0, %v1833
  %v1835 = vpop.f32.mrb[0].mxu0
  %1836 = vmatprep.mubr.bf16.mxu0 0
  %1837 = vmatmul.mubr.bf16.gmra.mrb[0].mxu0 %v1671
  %v1838 = vpop.f32.mrb[0].mxu0
  %v1839 = vadd.f32 0.0, %v1838
  %v1840 = vpop.f32.mrb[0].mxu0
  %v1841 = vpop.f32.mrb[0].mxu0
  %v1842 = vadd.f32 0.0, %v1841
  %v1843 = vpop.f32.mrb[0].mxu0
  %1844 = vmatprep.mubr.bf16.mxu0 0
  %1845 = vmatmul.mubr.bf16.gmra.mrb[0].mxu0 %v1674
  %v1846 = vpop.f32.mrb[0].mxu0
  %v1847 = vadd.f32 0.0, %v1846
  %v1848 = vpop.f32.mrb[0].mxu0
  %v1849 = vpop.f32.mrb[0].mxu0
  %v1850 = vadd.f32 0.0, %v1849
  %v1851 = vpop.f32.mrb[0].mxu0
  %1852 = vmatprep.mubr.bf16.mxu0 0
  %1853 = vmatmul.mubr.bf16.gmra.mrb[0].mxu0 %v1677
  %v1854 = vpop.f32.mrb[0].mxu0
  %v1855 = vadd.f32 0.0, %v1854
  %v1856 = vpop.f32.mrb[0].mxu0
  %v1857 = vpop.f32.mrb[0].mxu0
  %v1858 = vadd.f32 0.0, %v1857
  %v1859 = vpop.f32.mrb[0].mxu0
  %1860 = vmatprep.mubr.bf16.mxu0 0
  %1861 = vmatmul.mubr.bf16.gmra.mrb[0].mxu0 %v1680
  %v1862 = vpop.f32.mrb[0].mxu0
  %v1863 = vadd.f32 0.0, %v1862
  %v1864 = vpop.f32.mrb[0].mxu0
  %v1865 = vpop.f32.mrb[0].mxu0
  %v1866 = vadd.f32 0.0, %v1865
  %v1867 = vpop.f32.mrb[0].mxu0
  %1868 = vmatprep.mubr.bf16.mxu0 0
  %1869 = vmatmul.mubr.bf16.gmra.mrb[0].mxu0 %v1683
  %v1870 = vpop.f32.mrb[0].mxu0
  %v1871 = vadd.f32 0.0, %v1870
  %v1872 = vpop.f32.mrb[0].mxu0
  %v1873 = vpop.f32.mrb[0].mxu0
  %v1874 = vadd.f32 0.0, %v1873
  %v1875 = vpop.f32.mrb[0].mxu0
  %1876 = vmatprep.mubr.bf16.mxu0 0
  %1877 = vmatmul.mubr.bf16.gmra.mrb[0].mxu0 %v1686
  %v1878 = vpop.f32.mrb[0].mxu0
  %v1879 = vadd.f32 0.0, %v1878
  %v1880 = vpop.f32.mrb[0].mxu0
  %v1881 = vpop.f32.mrb[0].mxu0
  %v1882 = vadd.f32 0.0, %v1881
  %v1883 = vpop.f32.mrb[0].mxu0
  %1884 = vmatprep.mubr.bf16.mxu0 0
  %1885 = vmatmul.mubr.bf16.gmra.mrb[0].mxu0 %v1689
  %v1886 = vpop.f32.mrb[0].mxu0
  %v1887 = vadd.f32 0.0, %v1886
  %v1888 = vpop.f32.mrb[0].mxu0
  %v1889 = vpop.f32.mrb[0].mxu0
  %v1890 = vadd.f32 0.0, %v1889
  %v1891 = vpop.f32.mrb[0].mxu0
  %1892 = vmatprep.mubr.bf16.mxu0 0
  %1893 = vmatmul.mubr.bf16.gmra.mrb[0].mxu0 %v1692
  %v1894 = vpop.f32.mrb[0].mxu0
  %v1895 = vadd.f32 0.0, %v1894
  %v1896 = vpop.f32.mrb[0].mxu0
  %v1897 = vpop.f32.mrb[0].mxu0
  %v1898 = vadd.f32 0.0, %v1897
  %v1899 = vpop.f32.mrb[0].mxu0
  %1900 = vmatprep.mubr.bf16.mxu0 0
  %1901 = vmatmul.mubr.bf16.gmra.mrb[0].mxu0 %v1695
  %v1902 = vpop.f32.mrb[0].mxu0
  %v1903 = vadd.f32 0.0, %v1902
  %v1904 = vpop.f32.mrb[0].mxu0
  %v1905 = vpop.f32.mrb[0].mxu0
  %v1906 = vadd.f32 0.0, %v1905
  %v1907 = vpop.f32.mrb[0].mxu0
  %1908 = vmatprep.mubr.bf16.mxu0 0
  %1909 = vmatmul.mubr.bf16.gmra.mrb[0].mxu0 %v1698
  %v1910 = vpop.f32.mrb[0].mxu0
  %v1911 = vadd.f32 0.0, %v1910
  %v1912 = vpop.f32.mrb[0].mxu0
  %v1913 = vpop.f32.mrb[0].mxu0
  %v1914 = vadd.f32 0.0, %v1913
  %v1915 = vpop.f32.mrb[0].mxu0
  %1916 = vmatprep.mubr.bf16.mxu0 0
  %1917 = vmatmul.mubr.bf16.gmra.mrb[0].mxu0 %v1701
  %v1918 = vpop.f32.mrb[0].mxu0
  %v1919 = vadd.f32 0.0, %v1918
  %v1920 = vpop.f32.mrb[0].mxu0
  %v1921 = vpop.f32.mrb[0].mxu0
  %v1922 = vadd.f32 0.0, %v1921
  %v1923 = vpop.f32.mrb[0].mxu0
  %1924 = vmatprep.mubr.bf16.mxu0 0
  %1925 = vmatmul.mubr.bf16.gmra.mrb[0].mxu0 %v1704
  %v1926 = vpop.f32.mrb[0].mxu0
  %v1927 = vadd.f32 0.0, %v1926
  %v1928 = vpop.f32.mrb[0].mxu0
  %v1929 = vpop.f32.mrb[0].mxu0
  %v1930 = vadd.f32 0.0, %v1929
  %v1931 = vpop.f32.mrb[0].mxu0
  %1932 = vmatprep.mubr.bf16.mxu0 0
  %1933 = vmatmul.mubr.bf16.gmra.mrb[0].mxu0 %v1707
  %v1934 = vpop.f32.mrb[0].mxu0
  %v1935 = vadd.f32 0.0, %v1934
  %v1936 = vpop.f32.mrb[0].mxu0
  %v1937 = vpop.f32.mrb[0].mxu0
  %v1938 = vadd.f32 0.0, %v1937
  %v1939 = vpop.f32.mrb[0].mxu0
  %1940 = vmatprep.mubr.bf16.mxu0 0
  %1941 = vmatmul.mubr.bf16.gmra.mrb[0].mxu0 %v1710
  %v1942 = vpop.f32.mrb[0].mxu0
  %v1943 = vadd.f32 0.0, %v1942
  %v1944 = vpop.f32.mrb[0].mxu0
  %v1945 = vpop.f32.mrb[0].mxu0
  %v1946 = vadd.f32 0.0, %v1945
  %v1947 = vpop.f32.mrb[0].mxu0
  %1948 = vmatprep.mubr.bf16.mxu0 0
  %1949 = vmatmul.mubr.bf16.gmra.mrb[0].mxu0 %v1713
  %v1950 = vpop.f32.mrb[0].mxu0
  %v1951 = vadd.f32 0.0, %v1950
  %v1952 = vpop.f32.mrb[0].mxu0
  %v1953 = vpop.f32.mrb[0].mxu0
  %v1954 = vadd.f32 0.0, %v1953
  %v1955 = vpop.f32.mrb[0].mxu0
  %1956 = vmatprep.mubr.bf16.mxu0 0
  %1957 = vmatmul.mubr.bf16.gmra.mrb[0].mxu0 %v1716
  %v1958 = vpop.f32.mrb[0].mxu0
  %v1959 = vadd.f32 0.0, %v1958
  %v1960 = vpop.f32.mrb[0].mxu0
  %v1961 = vpop.f32.mrb[0].mxu0
  %v1962 = vadd.f32 0.0, %v1961
  %v1963 = vpop.f32.mrb[0].mxu0
  %1964 = vmatprep.mubr.bf16.mxu0 0
  %1965 = vmatmul.mubr.bf16.gmra.mrb[0].mxu0 %v1719
  %v1966 = vpop.f32.mrb[0].mxu0
  %v1967 = vadd.f32 0.0, %v1966
  %v1968 = vpop.f32.mrb[0].mxu0
  %v1969 = vpop.f32.mrb[0].mxu0
  %v1970 = vadd.f32 0.0, %v1969
  %v1971 = vpop.f32.mrb[0].mxu0
  %1972 = vmatprep.mubr.bf16.mxu0 0
  %1973 = vmatmul.mubr.bf16.gmra.mrb[0].mxu0 %v1722
  %v1974 = vpop.f32.mrb[0].mxu0
  %v1975 = vadd.f32 0.0, %v1974
  %v1976 = vpop.f32.mrb[0].mxu0
  %v1977 = vpop.f32.mrb[0].mxu0
  %v1978 = vadd.f32 0.0, %v1977
  %v1979 = vpop.f32.mrb[0].mxu0
  %1980 = vmatprep.mubr.bf16.mxu0 0
  %1981 = vmatmul.mubr.bf16.gmra.mrb[0].mxu0 %v1725
  %v1982 = vpop.f32.mrb[0].mxu0
  %v1983 = vadd.f32 0.0, %v1982
  %v1984 = vpop.f32.mrb[0].mxu0
  %v1985 = vpop.f32.mrb[0].mxu0
  %v1986 = vadd.f32 0.0, %v1985
  %v1987 = vpop.f32.mrb[0].mxu0
  %1988 = vmatprep.mubr.bf16.mxu0 0
  %1989 = vmatmul.mubr.bf16.gmra.mrb[0].mxu0 %v1728
  %v1990 = vpop.f32.mrb[0].mxu0
  %v1991 = vadd.f32 0.0, %v1990
  %v1992 = vpop.f32.mrb[0].mxu0
  %v1993 = vpop.f32.mrb[0].mxu0
  %v1994 = vadd.f32 0.0, %v1993
  %v1995 = vpop.f32.mrb[0].mxu0
  %1996 = vmatprep.mubr.bf16.mxu0 0
  %1997 = vmatmul.mubr.bf16.gmra.mrb[0].mxu0 %v1731
  %v1998 = vpop.f32.mrb[0].mxu0
  %v1999 = vadd.f32 0.0, %v1998
  %v2000 = vpop.f32.mrb[0].mxu0
  %v2001 = vpop.f32.mrb[0].mxu0
  %v2002 = vadd.f32 0.0, %v2001
  %v2003 = vpop.f32.mrb[0].mxu0
  %2004 = vmatprep.mubr.bf16.mxu0 0
  %2005 = vmatmul.mubr.bf16.gmra.mrb[0].mxu0 %v1734
  %v2006 = vpop.f32.mrb[0].mxu0
  %v2007 = vadd.f32 0.0, %v2006
  %v2008 = vpop.f32.mrb[0].mxu0
  %v2009 = vpop.f32.mrb[0].mxu0
  %v2010 = vadd.f32 0.0, %v2009
  %v2011 = vpop.f32.mrb[0].mxu0
  %2012 = vmatprep.mubr.bf16.mxu0 0
  %2013 = vmatmul.mubr.bf16.gmra.mrb[0].mxu0 %v1737
  %v2014 = vpop.f32.mrb[0].mxu0
  %v2015 = vadd.f32 0.0, %v2014
  %v2016 = vpop.f32.mrb[0].mxu0
  %v2017 = vpop.f32.mrb[0].mxu0
  %v2018 = vadd.f32 0.0, %v2017
  %v2019 = vpop.f32.mrb[0].mxu0
  %2020 = vmatprep.mubr.bf16.mxu0 0
  %2021 = vmatmul.mubr.bf16.gmra.mrb[0].mxu0 %v1740
  %v2022 = vpop.f32.mrb[0].mxu0
  %v2023 = vadd.f32 0.0, %v2022
  %v2024 = vpop.f32.mrb[0].mxu0
  %v2025 = vpop.f32.mrb[0].mxu0
  %v2026 = vadd.f32 0.0, %v2025
  %v2027 = vpop.f32.mrb[0].mxu0
  %2028 = vmatprep.mubr.bf16.mxu0 0
  %2029 = vmatmul.mubr.bf16.gmra.mrb[0].mxu0 %v1743
  %v2030 = vpop.f32.mrb[0].mxu0
  %v2031 = vadd.f32 0.0, %v2030
  %v2032 = vpop.f32.mrb[0].mxu0
  %v2033 = vpop.f32.mrb[0].mxu0
  %v2034 = vadd.f32 0.0, %v2033
  %v2035 = vpop.f32.mrb[0].mxu0
  %2036 = vdwg.mxu0
  %v2037 = vadd.f32 %v1486, %v1783
  %v2038 = vadd.f32 %v1487, %v1786
  %v2039 = vadd.f32 %v1488, %v1791
  %v2040 = vadd.f32 %v1489, %v1794
  %v2041 = vadd.f32 %v1490, %v1799
  %v2042 = vadd.f32 %v1491, %v1802
  %v2043 = vadd.f32 %v1492, %v1807
  %v2044 = vadd.f32 %v1493, %v1810
  %v2045 = vadd.f32 %v1494, %v1815
  %v2046 = vadd.f32 %v1495, %v1818
  %v2047 = vadd.f32 %v1496, %v1823
  %v2048 = vadd.f32 %v1497, %v1826
  %v2049 = vadd.f32 %v1498, %v1831
  %v2050 = vadd.f32 %v1499, %v1834
  %v2051 = vadd.f32 %v1500, %v1839
  %v2052 = vadd.f32 %v1501, %v1842
  %v2053 = vadd.f32 %v1502, %v1847
  %v2054 = vadd.f32 %v1503, %v1850
  %v2055 = vadd.f32 %v1504, %v1855
  %v2056 = vadd.f32 %v1505, %v1858
  %v2057 = vadd.f32 %v1506, %v1863
  %v2058 = vadd.f32 %v1507, %v1866
  %v2059 = vadd.f32 %v1508, %v1871
  %v2060 = vadd.f32 %v1509, %v1874
  %v2061 = vadd.f32 %v1510, %v1879
  %v2062 = vadd.f32 %v1511, %v1882
  %v2063 = vadd.f32 %v1512, %v1887
  %v2064 = vadd.f32 %v1513, %v1890
  %v2065 = vadd.f32 %v1514, %v1895
  %v2066 = vadd.f32 %v1515, %v1898
  %v2067 = vadd.f32 %v1516, %v1903
  %v2068 = vadd.f32 %v1517, %v1906
  %v2069 = vadd.f32 %v1518, %v1911
  %v2070 = vadd.f32 %v1519, %v1914
  %v2071 = vadd.f32 %v1520, %v1919
  %v2072 = vadd.f32 %v1521, %v1922
  %v2073 = vadd.f32 %v1522, %v1927
  %v2074 = vadd.f32 %v1523, %v1930
  %v2075 = vadd.f32 %v1524, %v1935
  %v2076 = vadd.f32 %v1525, %v1938
  %v2077 = vadd.f32 %v1526, %v1943
  %v2078 = vadd.f32 %v1527, %v1946
  %v2079 = vadd.f32 %v1528, %v1951
  %v2080 = vadd.f32 %v1529, %v1954
  %v2081 = vadd.f32 %v1530, %v1959
  %v2082 = vadd.f32 %v1531, %v1962
  %v2083 = vadd.f32 %v1532, %v1967
  %v2084 = vadd.f32 %v1533, %v1970
  %v2085 = vadd.f32 %v1534, %v1975
  %v2086 = vadd.f32 %v1535, %v1978
  %v2087 = vadd.f32 %v1536, %v1983
  %v2088 = vadd.f32 %v1537, %v1986
  %v2089 = vadd.f32 %v1538, %v1991
  %v2090 = vadd.f32 %v1539, %v1994
  %v2091 = vadd.f32 %v1540, %v1999
  %v2092 = vadd.f32 %v1541, %v2002
  %v2093 = vadd.f32 %v1542, %v2007
  %v2094 = vadd.f32 %v1543, %v2010
  %v2095 = vadd.f32 %v1544, %v2015
  %v2096 = vadd.f32 %v1545, %v2018
  %v2097 = vadd.f32 %v1546, %v2023
  %v2098 = vadd.f32 %v1547, %v2026
  %v2099 = vadd.f32 %v1548, %v2031
  %v2100 = vadd.f32 %v1549, %v2034
  %v2101 = vld [vmem:[%s1550 + $0x1] sm:$0xff]
  %v2102 = vld [vmem:[%s1550 + $0x9] sm:$0xff]
  %v2103 = vld [vmem:[%s1550 + $0x19] sm:$0xff]
  %v2104 = vld [vmem:[%s1550 + $0x21] sm:$0xff]
  %v2105 = vld [vmem:[%s1550 + $0x31] sm:$0xff]
  %v2106 = vld [vmem:[%s1550 + $0x39] sm:$0xff]
  %v2107 = vld [vmem:[%s1550 + $0x49] sm:$0xff]
  %v2108 = vld [vmem:[%s1550 + $0x51] sm:$0xff]
  %v2109 = vld [vmem:[%s1550 + $0x61] sm:$0xff]
  %v2110 = vld [vmem:[%s1550 + $0x69] sm:$0xff]
  %v2111 = vld [vmem:[%s1550 + $0x79] sm:$0xff]
  %v2112 = vld [vmem:[%s1550 + $0x81] sm:$0xff]
  %v2113 = vld [vmem:[%s1550 + $0x91] sm:$0xff]
  %v2114 = vld [vmem:[%s1550 + $0x99] sm:$0xff]
  %v2115 = vld [vmem:[%s1550 + $0xa9] sm:$0xff]
  %v2116 = vld [vmem:[%s1550 + $0xb1] sm:$0xff]
  %v2117 = vld [vmem:[%s1550 + $0xc1] sm:$0xff]
  %v2118 = vld [vmem:[%s1550 + $0xc9] sm:$0xff]
  %v2119 = vld [vmem:[%s1550 + $0xd9] sm:$0xff]
  %v2120 = vld [vmem:[%s1550 + $0xe1] sm:$0xff]
  %v2121 = vld [vmem:[%s1550 + $0xf1] sm:$0xff]
  %v2122 = vld [vmem:[%s1550 + $0xf9] sm:$0xff]
  %v2123 = vld [vmem:[%s1550 + $0x109] sm:$0xff]
  %v2124 = vld [vmem:[%s1550 + $0x111] sm:$0xff]
  %v2125 = vld [vmem:[%s1550 + $0x121] sm:$0xff]
  %v2126 = vld [vmem:[%s1550 + $0x129] sm:$0xff]
  %v2127 = vld [vmem:[%s1550 + $0x139] sm:$0xff]
  %v2128 = vld [vmem:[%s1550 + $0x141] sm:$0xff]
  %v2129 = vld [vmem:[%s1550 + $0x151] sm:$0xff]
  %v2130 = vld [vmem:[%s1550 + $0x159] sm:$0xff]
  %v2131 = vld [vmem:[%s1550 + $0x169] sm:$0xff]
  %v2132 = vld [vmem:[%s1550 + $0x171] sm:$0xff]
  %v2133 = vld [vmem:[%s1550 + $0x1b1] sm:$0xff]
  %v2134 = vld [vmem:[%s1550 + $0x1b9] sm:$0xff]
  %v2135 = vld [vmem:[%s1550 + $0x1c9] sm:$0xff]
  %v2136 = vld [vmem:[%s1550 + $0x1d1] sm:$0xff]
  %v2137 = vld [vmem:[%s1550 + $0x1e1] sm:$0xff]
  %v2138 = vld [vmem:[%s1550 + $0x1e9] sm:$0xff]
  %v2139 = vld [vmem:[%s1550 + $0x1f9] sm:$0xff]
  %v2140 = vld [vmem:[%s1550 + $0x201] sm:$0xff]
  %v2141 = vld [vmem:[%s1550 + $0x211] sm:$0xff]
  %v2142 = vld [vmem:[%s1550 + $0x219] sm:$0xff]
  %v2143 = vld [vmem:[%s1550 + $0x229] sm:$0xff]
  %v2144 = vld [vmem:[%s1550 + $0x231] sm:$0xff]
  %v2145 = vld [vmem:[%s1550 + $0x241] sm:$0xff]
  %v2146 = vld [vmem:[%s1550 + $0x249] sm:$0xff]
  %v2147 = vld [vmem:[%s1550 + $0x259] sm:$0xff]
  %v2148 = vld [vmem:[%s1550 + $0x261] sm:$0xff]
  %v2149 = vld [vmem:[%s1550 + $0x271] sm:$0xff]
  %v2150 = vld [vmem:[%s1550 + $0x279] sm:$0xff]
  %v2151 = vld [vmem:[%s1550 + $0x289] sm:$0xff]
  %v2152 = vld [vmem:[%s1550 + $0x291] sm:$0xff]
  %v2153 = vld [vmem:[%s1550 + $0x2a1] sm:$0xff]
  %v2154 = vld [vmem:[%s1550 + $0x2a9] sm:$0xff]
  %v2155 = vld [vmem:[%s1550 + $0x2b9] sm:$0xff]
  %v2156 = vld [vmem:[%s1550 + $0x2c1] sm:$0xff]
  %v2157 = vld [vmem:[%s1550 + $0x2d1] sm:$0xff]
  %v2158 = vld [vmem:[%s1550 + $0x2d9] sm:$0xff]
  %v2159 = vld [vmem:[%s1550 + $0x2e9] sm:$0xff]
  %v2160 = vld [vmem:[%s1550 + $0x2f1] sm:$0xff]
  %v2161 = vld [vmem:[%s1550 + $0x301] sm:$0xff]
  %v2162 = vld [vmem:[%s1550 + $0x309] sm:$0xff]
  %v2163 = vld [vmem:[%s1550 + $0x319] sm:$0xff]
  %v2164 = vld [vmem:[%s1550 + $0x321] sm:$0xff]
  %v2165 = vpack.c.bf16 %v2102, %v2101
  %v2166 = vpack.c.bf16 %v2104, %v2103
  %v2167 = vpack.c.bf16 %v2106, %v2105
  %v2168 = vpack.c.bf16 %v2108, %v2107
  %v2169 = vpack.c.bf16 %v2110, %v2109
  %v2170 = vpack.c.bf16 %v2112, %v2111
  %v2171 = vpack.c.bf16 %v2114, %v2113
  %v2172 = vpack.c.bf16 %v2116, %v2115
  %v2173 = vpack.c.bf16 %v2118, %v2117
  %v2174 = vpack.c.bf16 %v2120, %v2119
  %v2175 = vpack.c.bf16 %v2122, %v2121
  %v2176 = vpack.c.bf16 %v2124, %v2123
  %v2177 = vpack.c.bf16 %v2126, %v2125
  %v2178 = vpack.c.bf16 %v2128, %v2127
  %v2179 = vpack.c.bf16 %v2130, %v2129
  %v2180 = vpack.c.bf16 %v2132, %v2131
  %v2181 = vpack.c.bf16 %v2134, %v2133
  %v2182 = vpack.c.bf16 %v2136, %v2135
  %v2183 = vpack.c.bf16 %v2138, %v2137
  %v2184 = vpack.c.bf16 %v2140, %v2139
  %v2185 = vpack.c.bf16 %v2142, %v2141
  %v2186 = vpack.c.bf16 %v2144, %v2143
  %v2187 = vpack.c.bf16 %v2146, %v2145
  %v2188 = vpack.c.bf16 %v2148, %v2147
  %v2189 = vpack.c.bf16 %v2150, %v2149
  %v2190 = vpack.c.bf16 %v2152, %v2151
  %v2191 = vpack.c.bf16 %v2154, %v2153
  %v2192 = vpack.c.bf16 %v2156, %v2155
  %v2193 = vpack.c.bf16 %v2158, %v2157
  %v2194 = vpack.c.bf16 %v2160, %v2159
  %v2195 = vpack.c.bf16 %v2162, %v2161
  %v2196 = vpack.c.bf16 %v2164, %v2163
  %s2197 = scalar_lea.vmem %s1, 16
  %v2198 = vld [vmem:[%s2197] sm:$0xf]
  %v2200 = vsel %vm222, %v2165, 0
  %v2203 = vsel %vm222, %v2166, 0
  %v2206 = vsel %vm222, %v2167, 0
  %v2209 = vsel %vm222, %v2168, 0
  %v2212 = vsel %vm222, %v2169, 0
  %v2215 = vsel %vm222, %v2170, 0
  %v2218 = vsel %vm222, %v2171, 0
  %v2221 = vsel %vm222, %v2172, 0
  %v2224 = vsel %vm222, %v2173, 0
  %v2227 = vsel %vm222, %v2174, 0
  %v2230 = vsel %vm222, %v2175, 0
  %v2233 = vsel %vm222, %v2176, 0
  %v2236 = vsel %vm222, %v2177, 0
  %v2239 = vsel %vm222, %v2178, 0
  %v2242 = vsel %vm222, %v2179, 0
  %v2245 = vsel %vm222, %v2180, 0
  %v2248 = vsel %vm222, %v2181, 0
  %v2251 = vsel %vm222, %v2182, 0
  %v2254 = vsel %vm222, %v2183, 0
  %v2257 = vsel %vm222, %v2184, 0
  %v2260 = vsel %vm222, %v2185, 0
  %v2263 = vsel %vm222, %v2186, 0
  %v2266 = vsel %vm222, %v2187, 0
  %v2269 = vsel %vm222, %v2188, 0
  %v2272 = vsel %vm222, %v2189, 0
  %v2275 = vsel %vm222, %v2190, 0
  %v2278 = vsel %vm222, %v2191, 0
  %v2281 = vsel %vm222, %v2192, 0
  %v2284 = vsel %vm222, %v2193, 0
  %v2287 = vsel %vm222, %v2194, 0
  %v2290 = vsel %vm222, %v2195, 0
  %v2293 = vsel %vm222, %v2196, 0
  %v2296 = vsel %vm319, %v2198, 0
  %2298 = vmatprep.subr.bf16.mxu0 0
  %2299 = vmatpush1.bf16.msra.mxu0 %v2296
  %2300 = vmatprep.subr.bf16.mxu0 0
  %2301 = vmatpush1.bf16.msra.mxu0 0
  %2302 = vmatprep.subr.bf16.mxu0 0
  %2303 = vmatpush1.bf16.msra.mxu0 0
  %2304 = vmatprep.subr.bf16.mxu0 0
  %2305 = vmatpush1.bf16.msra.mxu0 0
  %2306 = vmatprep.subr.bf16.mxu0 0
  %2307 = vmatpush1.bf16.msra.mxu0 0
  %2308 = vmatprep.subr.bf16.mxu0 0
  %2309 = vmatpush1.bf16.msra.mxu0 0
  %2310 = vmatprep.subr.bf16.mxu0 0
  %2311 = vmatpush1.bf16.msra.mxu0 0
  %2312 = vmatprep.subr.bf16.mxu0 0
  %2313 = vmatpush1.bf16.msra.mxu0 0
  %2314 = vmatprep.subr.bf16.mxu0 0
  %2315 = vmatpush1.bf16.msra.mxu0 0
  %2316 = vmatprep.subr.bf16.mxu0 0
  %2317 = vmatpush1.bf16.msra.mxu0 0
  %2318 = vmatprep.subr.bf16.mxu0 0
  %2319 = vmatpush1.bf16.msra.mxu0 0
  %2320 = vmatprep.subr.bf16.mxu0 0
  %2321 = vmatpush1.bf16.msra.mxu0 0
  %2322 = vmatprep.subr.bf16.mxu0 0
  %2323 = vmatpush1.bf16.msra.mxu0 0
  %2324 = vmatprep.subr.bf16.mxu0 0
  %2325 = vmatpush1.bf16.msra.mxu0 0
  %2326 = vmatprep.subr.bf16.mxu0 0
  %2327 = vmatpush1.bf16.msra.mxu0 0
  %2328 = vmatprep.subr.bf16.mxu0 0
  %2329 = vmatpush1.bf16.msra.mxu0 0
  %2330 = vmatprep.mubr.bf16.mxu0 0
  %2331 = vmatmul.mubr.bf16.gmra.mrb[0].mxu0 %v2200
  %v2332 = vpop.f32.mrb[0].mxu0
  %v2333 = vadd.f32 0.0, %v2332
  %v2334 = vpop.f32.mrb[0].mxu0
  %v2335 = vpop.f32.mrb[0].mxu0
  %v2336 = vadd.f32 0.0, %v2335
  %v2337 = vpop.f32.mrb[0].mxu0
  %2338 = vmatprep.mubr.bf16.mxu0 0
  %2339 = vmatmul.mubr.bf16.gmra.mrb[0].mxu0 %v2203
  %v2340 = vpop.f32.mrb[0].mxu0
  %v2341 = vadd.f32 0.0, %v2340
  %v2342 = vpop.f32.mrb[0].mxu0
  %v2343 = vpop.f32.mrb[0].mxu0
  %v2344 = vadd.f32 0.0, %v2343
  %v2345 = vpop.f32.mrb[0].mxu0
  %2346 = vmatprep.mubr.bf16.mxu0 0
  %2347 = vmatmul.mubr.bf16.gmra.mrb[0].mxu0 %v2206
  %v2348 = vpop.f32.mrb[0].mxu0
  %v2349 = vadd.f32 0.0, %v2348
  %v2350 = vpop.f32.mrb[0].mxu0
  %v2351 = vpop.f32.mrb[0].mxu0
  %v2352 = vadd.f32 0.0, %v2351
  %v2353 = vpop.f32.mrb[0].mxu0
  %2354 = vmatprep.mubr.bf16.mxu0 0
  %2355 = vmatmul.mubr.bf16.gmra.mrb[0].mxu0 %v2209
  %v2356 = vpop.f32.mrb[0].mxu0
  %v2357 = vadd.f32 0.0, %v2356
  %v2358 = vpop.f32.mrb[0].mxu0
  %v2359 = vpop.f32.mrb[0].mxu0
  %v2360 = vadd.f32 0.0, %v2359
  %v2361 = vpop.f32.mrb[0].mxu0
  %2362 = vmatprep.mubr.bf16.mxu0 0
  %2363 = vmatmul.mubr.bf16.gmra.mrb[0].mxu0 %v2212
  %v2364 = vpop.f32.mrb[0].mxu0
  %v2365 = vadd.f32 0.0, %v2364
  %v2366 = vpop.f32.mrb[0].mxu0
  %v2367 = vpop.f32.mrb[0].mxu0
  %v2368 = vadd.f32 0.0, %v2367
  %v2369 = vpop.f32.mrb[0].mxu0
  %2370 = vmatprep.mubr.bf16.mxu0 0
  %2371 = vmatmul.mubr.bf16.gmra.mrb[0].mxu0 %v2215
  %v2372 = vpop.f32.mrb[0].mxu0
  %v2373 = vadd.f32 0.0, %v2372
  %v2374 = vpop.f32.mrb[0].mxu0
  %v2375 = vpop.f32.mrb[0].mxu0
  %v2376 = vadd.f32 0.0, %v2375
  %v2377 = vpop.f32.mrb[0].mxu0
  %2378 = vmatprep.mubr.bf16.mxu0 0
  %2379 = vmatmul.mubr.bf16.gmra.mrb[0].mxu0 %v2218
  %v2380 = vpop.f32.mrb[0].mxu0
  %v2381 = vadd.f32 0.0, %v2380
  %v2382 = vpop.f32.mrb[0].mxu0
  %v2383 = vpop.f32.mrb[0].mxu0
  %v2384 = vadd.f32 0.0, %v2383
  %v2385 = vpop.f32.mrb[0].mxu0
  %2386 = vmatprep.mubr.bf16.mxu0 0
  %2387 = vmatmul.mubr.bf16.gmra.mrb[0].mxu0 %v2221
  %v2388 = vpop.f32.mrb[0].mxu0
  %v2389 = vadd.f32 0.0, %v2388
  %v2390 = vpop.f32.mrb[0].mxu0
  %v2391 = vpop.f32.mrb[0].mxu0
  %v2392 = vadd.f32 0.0, %v2391
  %v2393 = vpop.f32.mrb[0].mxu0
  %2394 = vmatprep.mubr.bf16.mxu0 0
  %2395 = vmatmul.mubr.bf16.gmra.mrb[0].mxu0 %v2224
  %v2396 = vpop.f32.mrb[0].mxu0
  %v2397 = vadd.f32 0.0, %v2396
  %v2398 = vpop.f32.mrb[0].mxu0
  %v2399 = vpop.f32.mrb[0].mxu0
  %v2400 = vadd.f32 0.0, %v2399
  %v2401 = vpop.f32.mrb[0].mxu0
  %2402 = vmatprep.mubr.bf16.mxu0 0
  %2403 = vmatmul.mubr.bf16.gmra.mrb[0].mxu0 %v2227
  %v2404 = vpop.f32.mrb[0].mxu0
  %v2405 = vadd.f32 0.0, %v2404
  %v2406 = vpop.f32.mrb[0].mxu0
  %v2407 = vpop.f32.mrb[0].mxu0
  %v2408 = vadd.f32 0.0, %v2407
  %v2409 = vpop.f32.mrb[0].mxu0
  %2410 = vmatprep.mubr.bf16.mxu0 0
  %2411 = vmatmul.mubr.bf16.gmra.mrb[0].mxu0 %v2230
  %v2412 = vpop.f32.mrb[0].mxu0
  %v2413 = vadd.f32 0.0, %v2412
  %v2414 = vpop.f32.mrb[0].mxu0
  %v2415 = vpop.f32.mrb[0].mxu0
  %v2416 = vadd.f32 0.0, %v2415
  %v2417 = vpop.f32.mrb[0].mxu0
  %2418 = vmatprep.mubr.bf16.mxu0 0
  %2419 = vmatmul.mubr.bf16.gmra.mrb[0].mxu0 %v2233
  %v2420 = vpop.f32.mrb[0].mxu0
  %v2421 = vadd.f32 0.0, %v2420
  %v2422 = vpop.f32.mrb[0].mxu0
  %v2423 = vpop.f32.mrb[0].mxu0
  %v2424 = vadd.f32 0.0, %v2423
  %v2425 = vpop.f32.mrb[0].mxu0
  %2426 = vmatprep.mubr.bf16.mxu0 0
  %2427 = vmatmul.mubr.bf16.gmra.mrb[0].mxu0 %v2236
  %v2428 = vpop.f32.mrb[0].mxu0
  %v2429 = vadd.f32 0.0, %v2428
  %v2430 = vpop.f32.mrb[0].mxu0
  %v2431 = vpop.f32.mrb[0].mxu0
  %v2432 = vadd.f32 0.0, %v2431
  %v2433 = vpop.f32.mrb[0].mxu0
  %2434 = vmatprep.mubr.bf16.mxu0 0
  %2435 = vmatmul.mubr.bf16.gmra.mrb[0].mxu0 %v2239
  %v2436 = vpop.f32.mrb[0].mxu0
  %v2437 = vadd.f32 0.0, %v2436
  %v2438 = vpop.f32.mrb[0].mxu0
  %v2439 = vpop.f32.mrb[0].mxu0
  %v2440 = vadd.f32 0.0, %v2439
  %v2441 = vpop.f32.mrb[0].mxu0
  %2442 = vmatprep.mubr.bf16.mxu0 0
  %2443 = vmatmul.mubr.bf16.gmra.mrb[0].mxu0 %v2242
  %v2444 = vpop.f32.mrb[0].mxu0
  %v2445 = vadd.f32 0.0, %v2444
  %v2446 = vpop.f32.mrb[0].mxu0
  %v2447 = vpop.f32.mrb[0].mxu0
  %v2448 = vadd.f32 0.0, %v2447
  %v2449 = vpop.f32.mrb[0].mxu0
  %2450 = vmatprep.mubr.bf16.mxu0 0
  %2451 = vmatmul.mubr.bf16.gmra.mrb[0].mxu0 %v2245
  %v2452 = vpop.f32.mrb[0].mxu0
  %v2453 = vadd.f32 0.0, %v2452
  %v2454 = vpop.f32.mrb[0].mxu0
  %v2455 = vpop.f32.mrb[0].mxu0
  %v2456 = vadd.f32 0.0, %v2455
  %v2457 = vpop.f32.mrb[0].mxu0
  %2458 = vmatprep.mubr.bf16.mxu0 0
  %2459 = vmatmul.mubr.bf16.gmra.mrb[0].mxu0 %v2248
  %v2460 = vpop.f32.mrb[0].mxu0
  %v2461 = vadd.f32 0.0, %v2460
  %v2462 = vpop.f32.mrb[0].mxu0
  %v2463 = vpop.f32.mrb[0].mxu0
  %v2464 = vadd.f32 0.0, %v2463
  %v2465 = vpop.f32.mrb[0].mxu0
  %2466 = vmatprep.mubr.bf16.mxu0 0
  %2467 = vmatmul.mubr.bf16.gmra.mrb[0].mxu0 %v2251
  %v2468 = vpop.f32.mrb[0].mxu0
  %v2469 = vadd.f32 0.0, %v2468
  %v2470 = vpop.f32.mrb[0].mxu0
  %v2471 = vpop.f32.mrb[0].mxu0
  %v2472 = vadd.f32 0.0, %v2471
  %v2473 = vpop.f32.mrb[0].mxu0
  %2474 = vmatprep.mubr.bf16.mxu0 0
  %2475 = vmatmul.mubr.bf16.gmra.mrb[0].mxu0 %v2254
  %v2476 = vpop.f32.mrb[0].mxu0
  %v2477 = vadd.f32 0.0, %v2476
  %v2478 = vpop.f32.mrb[0].mxu0
  %v2479 = vpop.f32.mrb[0].mxu0
  %v2480 = vadd.f32 0.0, %v2479
  %v2481 = vpop.f32.mrb[0].mxu0
  %2482 = vmatprep.mubr.bf16.mxu0 0
  %2483 = vmatmul.mubr.bf16.gmra.mrb[0].mxu0 %v2257
  %v2484 = vpop.f32.mrb[0].mxu0
  %v2485 = vadd.f32 0.0, %v2484
  %v2486 = vpop.f32.mrb[0].mxu0
  %v2487 = vpop.f32.mrb[0].mxu0
  %v2488 = vadd.f32 0.0, %v2487
  %v2489 = vpop.f32.mrb[0].mxu0
  %2490 = vmatprep.mubr.bf16.mxu0 0
  %2491 = vmatmul.mubr.bf16.gmra.mrb[0].mxu0 %v2260
  %v2492 = vpop.f32.mrb[0].mxu0
  %v2493 = vadd.f32 0.0, %v2492
  %v2494 = vpop.f32.mrb[0].mxu0
  %v2495 = vpop.f32.mrb[0].mxu0
  %v2496 = vadd.f32 0.0, %v2495
  %v2497 = vpop.f32.mrb[0].mxu0
  %2498 = vmatprep.mubr.bf16.mxu0 0
  %2499 = vmatmul.mubr.bf16.gmra.mrb[0].mxu0 %v2263
  %v2500 = vpop.f32.mrb[0].mxu0
  %v2501 = vadd.f32 0.0, %v2500
  %v2502 = vpop.f32.mrb[0].mxu0
  %v2503 = vpop.f32.mrb[0].mxu0
  %v2504 = vadd.f32 0.0, %v2503
  %v2505 = vpop.f32.mrb[0].mxu0
  %2506 = vmatprep.mubr.bf16.mxu0 0
  %2507 = vmatmul.mubr.bf16.gmra.mrb[0].mxu0 %v2266
  %v2508 = vpop.f32.mrb[0].mxu0
  %v2509 = vadd.f32 0.0, %v2508
  %v2510 = vpop.f32.mrb[0].mxu0
  %v2511 = vpop.f32.mrb[0].mxu0
  %v2512 = vadd.f32 0.0, %v2511
  %v2513 = vpop.f32.mrb[0].mxu0
  %2514 = vmatprep.mubr.bf16.mxu0 0
  %2515 = vmatmul.mubr.bf16.gmra.mrb[0].mxu0 %v2269
  %v2516 = vpop.f32.mrb[0].mxu0
  %v2517 = vadd.f32 0.0, %v2516
  %v2518 = vpop.f32.mrb[0].mxu0
  %v2519 = vpop.f32.mrb[0].mxu0
  %v2520 = vadd.f32 0.0, %v2519
  %v2521 = vpop.f32.mrb[0].mxu0
  %2522 = vmatprep.mubr.bf16.mxu0 0
  %2523 = vmatmul.mubr.bf16.gmra.mrb[0].mxu0 %v2272
  %v2524 = vpop.f32.mrb[0].mxu0
  %v2525 = vadd.f32 0.0, %v2524
  %v2526 = vpop.f32.mrb[0].mxu0
  %v2527 = vpop.f32.mrb[0].mxu0
  %v2528 = vadd.f32 0.0, %v2527
  %v2529 = vpop.f32.mrb[0].mxu0
  %2530 = vmatprep.mubr.bf16.mxu0 0
  %2531 = vmatmul.mubr.bf16.gmra.mrb[0].mxu0 %v2275
  %v2532 = vpop.f32.mrb[0].mxu0
  %v2533 = vadd.f32 0.0, %v2532
  %v2534 = vpop.f32.mrb[0].mxu0
  %v2535 = vpop.f32.mrb[0].mxu0
  %v2536 = vadd.f32 0.0, %v2535
  %v2537 = vpop.f32.mrb[0].mxu0
  %2538 = vmatprep.mubr.bf16.mxu0 0
  %2539 = vmatmul.mubr.bf16.gmra.mrb[0].mxu0 %v2278
  %v2540 = vpop.f32.mrb[0].mxu0
  %v2541 = vadd.f32 0.0, %v2540
  %v2542 = vpop.f32.mrb[0].mxu0
  %v2543 = vpop.f32.mrb[0].mxu0
  %v2544 = vadd.f32 0.0, %v2543
  %v2545 = vpop.f32.mrb[0].mxu0
  %2546 = vmatprep.mubr.bf16.mxu0 0
  %2547 = vmatmul.mubr.bf16.gmra.mrb[0].mxu0 %v2281
  %v2548 = vpop.f32.mrb[0].mxu0
  %v2549 = vadd.f32 0.0, %v2548
  %v2550 = vpop.f32.mrb[0].mxu0
  %v2551 = vpop.f32.mrb[0].mxu0
  %v2552 = vadd.f32 0.0, %v2551
  %v2553 = vpop.f32.mrb[0].mxu0
  %2554 = vmatprep.mubr.bf16.mxu0 0
  %2555 = vmatmul.mubr.bf16.gmra.mrb[0].mxu0 %v2284
  %v2556 = vpop.f32.mrb[0].mxu0
  %v2557 = vadd.f32 0.0, %v2556
  %v2558 = vpop.f32.mrb[0].mxu0
  %v2559 = vpop.f32.mrb[0].mxu0
  %v2560 = vadd.f32 0.0, %v2559
  %v2561 = vpop.f32.mrb[0].mxu0
  %2562 = vmatprep.mubr.bf16.mxu0 0
  %2563 = vmatmul.mubr.bf16.gmra.mrb[0].mxu0 %v2287
  %v2564 = vpop.f32.mrb[0].mxu0
  %v2565 = vadd.f32 0.0, %v2564
  %v2566 = vpop.f32.mrb[0].mxu0
  %v2567 = vpop.f32.mrb[0].mxu0
  %v2568 = vadd.f32 0.0, %v2567
  %v2569 = vpop.f32.mrb[0].mxu0
  %2570 = vmatprep.mubr.bf16.mxu0 0
  %2571 = vmatmul.mubr.bf16.gmra.mrb[0].mxu0 %v2290
  %v2572 = vpop.f32.mrb[0].mxu0
  %v2573 = vadd.f32 0.0, %v2572
  %v2574 = vpop.f32.mrb[0].mxu0
  %v2575 = vpop.f32.mrb[0].mxu0
  %v2576 = vadd.f32 0.0, %v2575
  %v2577 = vpop.f32.mrb[0].mxu0
  %2578 = vmatprep.mubr.bf16.mxu0 0
  %2579 = vmatmul.mubr.bf16.gmra.mrb[0].mxu0 %v2293
  %v2580 = vpop.f32.mrb[0].mxu0
  %v2581 = vadd.f32 0.0, %v2580
  %v2582 = vpop.f32.mrb[0].mxu0
  %v2583 = vpop.f32.mrb[0].mxu0
  %v2584 = vadd.f32 0.0, %v2583
  %v2585 = vpop.f32.mrb[0].mxu0
  %2586 = vdwg.mxu0
  %v2587 = vadd.f32 %v2037, %v2333
  %v2588 = vadd.f32 %v2038, %v2336
  %v2589 = vadd.f32 %v2039, %v2341
  %v2590 = vadd.f32 %v2040, %v2344
  %v2591 = vadd.f32 %v2041, %v2349
  %v2592 = vadd.f32 %v2042, %v2352
  %v2593 = vadd.f32 %v2043, %v2357
  %v2594 = vadd.f32 %v2044, %v2360
  %v2595 = vadd.f32 %v2045, %v2365
  %v2596 = vadd.f32 %v2046, %v2368
  %v2597 = vadd.f32 %v2047, %v2373
  %v2598 = vadd.f32 %v2048, %v2376
  %v2599 = vadd.f32 %v2049, %v2381
  %v2600 = vadd.f32 %v2050, %v2384
  %v2601 = vadd.f32 %v2051, %v2389
  %v2602 = vadd.f32 %v2052, %v2392
  %v2603 = vadd.f32 %v2053, %v2397
  %v2604 = vadd.f32 %v2054, %v2400
  %v2605 = vadd.f32 %v2055, %v2405
  %v2606 = vadd.f32 %v2056, %v2408
  %v2607 = vadd.f32 %v2057, %v2413
  %v2608 = vadd.f32 %v2058, %v2416
  %v2609 = vadd.f32 %v2059, %v2421
  %v2610 = vadd.f32 %v2060, %v2424
  %v2611 = vadd.f32 %v2061, %v2429
  %v2612 = vadd.f32 %v2062, %v2432
  %v2613 = vadd.f32 %v2063, %v2437
  %v2614 = vadd.f32 %v2064, %v2440
  %v2615 = vadd.f32 %v2065, %v2445
  %v2616 = vadd.f32 %v2066, %v2448
  %v2617 = vadd.f32 %v2067, %v2453
  %v2618 = vadd.f32 %v2068, %v2456
  %v2619 = vadd.f32 %v2069, %v2461
  %v2620 = vadd.f32 %v2070, %v2464
  %v2621 = vadd.f32 %v2071, %v2469
  %v2622 = vadd.f32 %v2072, %v2472
  %v2623 = vadd.f32 %v2073, %v2477
  %v2624 = vadd.f32 %v2074, %v2480
  %v2625 = vadd.f32 %v2075, %v2485
  %v2626 = vadd.f32 %v2076, %v2488
  %v2627 = vadd.f32 %v2077, %v2493
  %v2628 = vadd.f32 %v2078, %v2496
  %v2629 = vadd.f32 %v2079, %v2501
  %v2630 = vadd.f32 %v2080, %v2504
  %v2631 = vadd.f32 %v2081, %v2509
  %v2632 = vadd.f32 %v2082, %v2512
  %v2633 = vadd.f32 %v2083, %v2517
  %v2634 = vadd.f32 %v2084, %v2520
  %v2635 = vadd.f32 %v2085, %v2525
  %v2636 = vadd.f32 %v2086, %v2528
  %v2637 = vadd.f32 %v2087, %v2533
  %v2638 = vadd.f32 %v2088, %v2536
  %v2639 = vadd.f32 %v2089, %v2541
  %v2640 = vadd.f32 %v2090, %v2544
  %v2641 = vadd.f32 %v2091, %v2549
  %v2642 = vadd.f32 %v2092, %v2552
  %v2643 = vadd.f32 %v2093, %v2557
  %v2644 = vadd.f32 %v2094, %v2560
  %v2645 = vadd.f32 %v2095, %v2565
  %v2646 = vadd.f32 %v2096, %v2568
  %v2647 = vadd.f32 %v2097, %v2573
  %v2648 = vadd.f32 %v2098, %v2576
  %v2649 = vadd.f32 %v2099, %v2581
  %v2650 = vadd.f32 %v2100, %v2584
  %v2651 = vld [vmem:[%s1550 + $0x2] sm:$0xff]
  %v2652 = vld [vmem:[%s1550 + $0xa] sm:$0xff]
  %v2653 = vld [vmem:[%s1550 + $0x1a] sm:$0xff]
  %v2654 = vld [vmem:[%s1550 + $0x22] sm:$0xff]
  %v2655 = vld [vmem:[%s1550 + $0x32] sm:$0xff]
  %v2656 = vld [vmem:[%s1550 + $0x3a] sm:$0xff]
  %v2657 = vld [vmem:[%s1550 + $0x4a] sm:$0xff]
  %v2658 = vld [vmem:[%s1550 + $0x52] sm:$0xff]
  %v2659 = vld [vmem:[%s1550 + $0x62] sm:$0xff]
  %v2660 = vld [vmem:[%s1550 + $0x6a] sm:$0xff]
  %v2661 = vld [vmem:[%s1550 + $0x7a] sm:$0xff]
  %v2662 = vld [vmem:[%s1550 + $0x82] sm:$0xff]
  %v2663 = vld [vmem:[%s1550 + $0x92] sm:$0xff]
  %v2664 = vld [vmem:[%s1550 + $0x9a] sm:$0xff]
  %v2665 = vld [vmem:[%s1550 + $0xaa] sm:$0xff]
  %v2666 = vld [vmem:[%s1550 + $0xb2] sm:$0xff]
  %v2667 = vld [vmem:[%s1550 + $0xc2] sm:$0xff]
  %v2668 = vld [vmem:[%s1550 + $0xca] sm:$0xff]
  %v2669 = vld [vmem:[%s1550 + $0xda] sm:$0xff]
  %v2670 = vld [vmem:[%s1550 + $0xe2] sm:$0xff]
  %v2671 = vld [vmem:[%s1550 + $0xf2] sm:$0xff]
  %v2672 = vld [vmem:[%s1550 + $0xfa] sm:$0xff]
  %v2673 = vld [vmem:[%s1550 + $0x10a] sm:$0xff]
  %v2674 = vld [vmem:[%s1550 + $0x112] sm:$0xff]
  %v2675 = vld [vmem:[%s1550 + $0x122] sm:$0xff]
  %v2676 = vld [vmem:[%s1550 + $0x12a] sm:$0xff]
  %v2677 = vld [vmem:[%s1550 + $0x13a] sm:$0xff]
  %v2678 = vld [vmem:[%s1550 + $0x142] sm:$0xff]
  %v2679 = vld [vmem:[%s1550 + $0x152] sm:$0xff]
  %v2680 = vld [vmem:[%s1550 + $0x15a] sm:$0xff]
  %v2681 = vld [vmem:[%s1550 + $0x16a] sm:$0xff]
  %v2682 = vld [vmem:[%s1550 + $0x172] sm:$0xff]
  %v2683 = vld [vmem:[%s1550 + $0x1b2] sm:$0xff]
  %v2684 = vld [vmem:[%s1550 + $0x1ba] sm:$0xff]
  %v2685 = vld [vmem:[%s1550 + $0x1ca] sm:$0xff]
  %v2686 = vld [vmem:[%s1550 + $0x1d2] sm:$0xff]
  %v2687 = vld [vmem:[%s1550 + $0x1e2] sm:$0xff]
  %v2688 = vld [vmem:[%s1550 + $0x1ea] sm:$0xff]
  %v2689 = vld [vmem:[%s1550 + $0x1fa] sm:$0xff]
  %v2690 = vld [vmem:[%s1550 + $0x202] sm:$0xff]
  %v2691 = vld [vmem:[%s1550 + $0x212] sm:$0xff]
  %v2692 = vld [vmem:[%s1550 + $0x21a] sm:$0xff]
  %v2693 = vld [vmem:[%s1550 + $0x22a] sm:$0xff]
  %v2694 = vld [vmem:[%s1550 + $0x232] sm:$0xff]
  %v2695 = vld [vmem:[%s1550 + $0x242] sm:$0xff]
  %v2696 = vld [vmem:[%s1550 + $0x24a] sm:$0xff]
  %v2697 = vld [vmem:[%s1550 + $0x25a] sm:$0xff]
  %v2698 = vld [vmem:[%s1550 + $0x262] sm:$0xff]
  %v2699 = vld [vmem:[%s1550 + $0x272] sm:$0xff]
  %v2700 = vld [vmem:[%s1550 + $0x27a] sm:$0xff]
  %v2701 = vld [vmem:[%s1550 + $0x28a] sm:$0xff]
  %v2702 = vld [vmem:[%s1550 + $0x292] sm:$0xff]
  %v2703 = vld [vmem:[%s1550 + $0x2a2] sm:$0xff]
  %v2704 = vld [vmem:[%s1550 + $0x2aa] sm:$0xff]
  %v2705 = vld [vmem:[%s1550 + $0x2ba] sm:$0xff]
  %v2706 = vld [vmem:[%s1550 + $0x2c2] sm:$0xff]
  %v2707 = vld [vmem:[%s1550 + $0x2d2] sm:$0xff]
  %v2708 = vld [vmem:[%s1550 + $0x2da] sm:$0xff]
  %v2709 = vld [vmem:[%s1550 + $0x2ea] sm:$0xff]
  %v2710 = vld [vmem:[%s1550 + $0x2f2] sm:$0xff]
  %v2711 = vld [vmem:[%s1550 + $0x302] sm:$0xff]
  %v2712 = vld [vmem:[%s1550 + $0x30a] sm:$0xff]
  %v2713 = vld [vmem:[%s1550 + $0x31a] sm:$0xff]
  %v2714 = vld [vmem:[%s1550 + $0x322] sm:$0xff]
  %v2715 = vpack.c.bf16 %v2652, %v2651
  %v2716 = vpack.c.bf16 %v2654, %v2653
  %v2717 = vpack.c.bf16 %v2656, %v2655
  %v2718 = vpack.c.bf16 %v2658, %v2657
  %v2719 = vpack.c.bf16 %v2660, %v2659
  %v2720 = vpack.c.bf16 %v2662, %v2661
  %v2721 = vpack.c.bf16 %v2664, %v2663
  %v2722 = vpack.c.bf16 %v2666, %v2665
  %v2723 = vpack.c.bf16 %v2668, %v2667
  %v2724 = vpack.c.bf16 %v2670, %v2669
  %v2725 = vpack.c.bf16 %v2672, %v2671
  %v2726 = vpack.c.bf16 %v2674, %v2673
  %v2727 = vpack.c.bf16 %v2676, %v2675
  %v2728 = vpack.c.bf16 %v2678, %v2677
  %v2729 = vpack.c.bf16 %v2680, %v2679
  %v2730 = vpack.c.bf16 %v2682, %v2681
  %v2731 = vpack.c.bf16 %v2684, %v2683
  %v2732 = vpack.c.bf16 %v2686, %v2685
  %v2733 = vpack.c.bf16 %v2688, %v2687
  %v2734 = vpack.c.bf16 %v2690, %v2689
  %v2735 = vpack.c.bf16 %v2692, %v2691
  %v2736 = vpack.c.bf16 %v2694, %v2693
  %v2737 = vpack.c.bf16 %v2696, %v2695
  %v2738 = vpack.c.bf16 %v2698, %v2697
  %v2739 = vpack.c.bf16 %v2700, %v2699
  %v2740 = vpack.c.bf16 %v2702, %v2701
  %v2741 = vpack.c.bf16 %v2704, %v2703
  %v2742 = vpack.c.bf16 %v2706, %v2705
  %v2743 = vpack.c.bf16 %v2708, %v2707
  %v2744 = vpack.c.bf16 %v2710, %v2709
  %v2745 = vpack.c.bf16 %v2712, %v2711
  %v2746 = vpack.c.bf16 %v2714, %v2713
  %s2747 = scalar_lea.vmem %s1, 20
  %v2748 = vld [vmem:[%s2747] sm:$0xf]
  %v2750 = vsel %vm222, %v2715, 0
  %v2753 = vsel %vm222, %v2716, 0
  %v2756 = vsel %vm222, %v2717, 0
  %v2759 = vsel %vm222, %v2718, 0
  %v2762 = vsel %vm222, %v2719, 0
  %v2765 = vsel %vm222, %v2720, 0
  %v2768 = vsel %vm222, %v2721, 0
  %v2771 = vsel %vm222, %v2722, 0
  %v2774 = vsel %vm222, %v2723, 0
  %v2777 = vsel %vm222, %v2724, 0
  %v2780 = vsel %vm222, %v2725, 0
  %v2783 = vsel %vm222, %v2726, 0
  %v2786 = vsel %vm222, %v2727, 0
  %v2789 = vsel %vm222, %v2728, 0
  %v2792 = vsel %vm222, %v2729, 0
  %v2795 = vsel %vm222, %v2730, 0
  %v2798 = vsel %vm222, %v2731, 0
  %v2801 = vsel %vm222, %v2732, 0
  %v2804 = vsel %vm222, %v2733, 0
  %v2807 = vsel %vm222, %v2734, 0
  %v2810 = vsel %vm222, %v2735, 0
  %v2813 = vsel %vm222, %v2736, 0
  %v2816 = vsel %vm222, %v2737, 0
  %v2819 = vsel %vm222, %v2738, 0
  %v2822 = vsel %vm222, %v2739, 0
  %v2825 = vsel %vm222, %v2740, 0
  %v2828 = vsel %vm222, %v2741, 0
  %v2831 = vsel %vm222, %v2742, 0
  %v2834 = vsel %vm222, %v2743, 0
  %v2837 = vsel %vm222, %v2744, 0
  %v2840 = vsel %vm222, %v2745, 0
  %v2843 = vsel %vm222, %v2746, 0
  %v2846 = vsel %vm319, %v2748, 0
  %2848 = vmatprep.subr.bf16.mxu0 0
  %2849 = vmatpush1.bf16.msra.mxu0 %v2846
  %2850 = vmatprep.subr.bf16.mxu0 0
  %2851 = vmatpush1.bf16.msra.mxu0 0
  %2852 = vmatprep.subr.bf16.mxu0 0
  %2853 = vmatpush1.bf16.msra.mxu0 0
  %2854 = vmatprep.subr.bf16.mxu0 0
  %2855 = vmatpush1.bf16.msra.mxu0 0
  %2856 = vmatprep.subr.bf16.mxu0 0
  %2857 = vmatpush1.bf16.msra.mxu0 0
  %2858 = vmatprep.subr.bf16.mxu0 0
  %2859 = vmatpush1.bf16.msra.mxu0 0
  %2860 = vmatprep.subr.bf16.mxu0 0
  %2861 = vmatpush1.bf16.msra.mxu0 0
  %2862 = vmatprep.subr.bf16.mxu0 0
  %2863 = vmatpush1.bf16.msra.mxu0 0
  %2864 = vmatprep.subr.bf16.mxu0 0
  %2865 = vmatpush1.bf16.msra.mxu0 0
  %2866 = vmatprep.subr.bf16.mxu0 0
  %2867 = vmatpush1.bf16.msra.mxu0 0
  %2868 = vmatprep.subr.bf16.mxu0 0
  %2869 = vmatpush1.bf16.msra.mxu0 0
  %2870 = vmatprep.subr.bf16.mxu0 0
  %2871 = vmatpush1.bf16.msra.mxu0 0
  %2872 = vmatprep.subr.bf16.mxu0 0
  %2873 = vmatpush1.bf16.msra.mxu0 0
  %2874 = vmatprep.subr.bf16.mxu0 0
  %2875 = vmatpush1.bf16.msra.mxu0 0
  %2876 = vmatprep.subr.bf16.mxu0 0
  %2877 = vmatpush1.bf16.msra.mxu0 0
  %2878 = vmatprep.subr.bf16.mxu0 0
  %2879 = vmatpush1.bf16.msra.mxu0 0
  %2880 = vmatprep.mubr.bf16.mxu0 0
  %2881 = vmatmul.mubr.bf16.gmra.mrb[0].mxu0 %v2750
  %v2882 = vpop.f32.mrb[0].mxu0
  %v2883 = vadd.f32 0.0, %v2882
  %v2884 = vpop.f32.mrb[0].mxu0
  %v2885 = vpop.f32.mrb[0].mxu0
  %v2886 = vadd.f32 0.0, %v2885
  %v2887 = vpop.f32.mrb[0].mxu0
  %2888 = vmatprep.mubr.bf16.mxu0 0
  %2889 = vmatmul.mubr.bf16.gmra.mrb[0].mxu0 %v2753
  %v2890 = vpop.f32.mrb[0].mxu0
  %v2891 = vadd.f32 0.0, %v2890
  %v2892 = vpop.f32.mrb[0].mxu0
  %v2893 = vpop.f32.mrb[0].mxu0
  %v2894 = vadd.f32 0.0, %v2893
  %v2895 = vpop.f32.mrb[0].mxu0
  %2896 = vmatprep.mubr.bf16.mxu0 0
  %2897 = vmatmul.mubr.bf16.gmra.mrb[0].mxu0 %v2756
  %v2898 = vpop.f32.mrb[0].mxu0
  %v2899 = vadd.f32 0.0, %v2898
  %v2900 = vpop.f32.mrb[0].mxu0
  %v2901 = vpop.f32.mrb[0].mxu0
  %v2902 = vadd.f32 0.0, %v2901
  %v2903 = vpop.f32.mrb[0].mxu0
  %2904 = vmatprep.mubr.bf16.mxu0 0
  %2905 = vmatmul.mubr.bf16.gmra.mrb[0].mxu0 %v2759
  %v2906 = vpop.f32.mrb[0].mxu0
  %v2907 = vadd.f32 0.0, %v2906
  %v2908 = vpop.f32.mrb[0].mxu0
  %v2909 = vpop.f32.mrb[0].mxu0
  %v2910 = vadd.f32 0.0, %v2909
  %v2911 = vpop.f32.mrb[0].mxu0
  %2912 = vmatprep.mubr.bf16.mxu0 0
  %2913 = vmatmul.mubr.bf16.gmra.mrb[0].mxu0 %v2762
  %v2914 = vpop.f32.mrb[0].mxu0
  %v2915 = vadd.f32 0.0, %v2914
  %v2916 = vpop.f32.mrb[0].mxu0
  %v2917 = vpop.f32.mrb[0].mxu0
  %v2918 = vadd.f32 0.0, %v2917
  %v2919 = vpop.f32.mrb[0].mxu0
  %2920 = vmatprep.mubr.bf16.mxu0 0
  %2921 = vmatmul.mubr.bf16.gmra.mrb[0].mxu0 %v2765
  %v2922 = vpop.f32.mrb[0].mxu0
  %v2923 = vadd.f32 0.0, %v2922
  %v2924 = vpop.f32.mrb[0].mxu0
  %v2925 = vpop.f32.mrb[0].mxu0
  %v2926 = vadd.f32 0.0, %v2925
  %v2927 = vpop.f32.mrb[0].mxu0
  %2928 = vmatprep.mubr.bf16.mxu0 0
  %2929 = vmatmul.mubr.bf16.gmra.mrb[0].mxu0 %v2768
  %v2930 = vpop.f32.mrb[0].mxu0
  %v2931 = vadd.f32 0.0, %v2930
  %v2932 = vpop.f32.mrb[0].mxu0
  %v2933 = vpop.f32.mrb[0].mxu0
  %v2934 = vadd.f32 0.0, %v2933
  %v2935 = vpop.f32.mrb[0].mxu0
  %2936 = vmatprep.mubr.bf16.mxu0 0
  %2937 = vmatmul.mubr.bf16.gmra.mrb[0].mxu0 %v2771
  %v2938 = vpop.f32.mrb[0].mxu0
  %v2939 = vadd.f32 0.0, %v2938
  %v2940 = vpop.f32.mrb[0].mxu0
  %v2941 = vpop.f32.mrb[0].mxu0
  %v2942 = vadd.f32 0.0, %v2941
  %v2943 = vpop.f32.mrb[0].mxu0
  %2944 = vmatprep.mubr.bf16.mxu0 0
  %2945 = vmatmul.mubr.bf16.gmra.mrb[0].mxu0 %v2774
  %v2946 = vpop.f32.mrb[0].mxu0
  %v2947 = vadd.f32 0.0, %v2946
  %v2948 = vpop.f32.mrb[0].mxu0
  %v2949 = vpop.f32.mrb[0].mxu0
  %v2950 = vadd.f32 0.0, %v2949
  %v2951 = vpop.f32.mrb[0].mxu0
  %2952 = vmatprep.mubr.bf16.mxu0 0
  %2953 = vmatmul.mubr.bf16.gmra.mrb[0].mxu0 %v2777
  %v2954 = vpop.f32.mrb[0].mxu0
  %v2955 = vadd.f32 0.0, %v2954
  %v2956 = vpop.f32.mrb[0].mxu0
  %v2957 = vpop.f32.mrb[0].mxu0
  %v2958 = vadd.f32 0.0, %v2957
  %v2959 = vpop.f32.mrb[0].mxu0
  %2960 = vmatprep.mubr.bf16.mxu0 0
  %2961 = vmatmul.mubr.bf16.gmra.mrb[0].mxu0 %v2780
  %v2962 = vpop.f32.mrb[0].mxu0
  %v2963 = vadd.f32 0.0, %v2962
  %v2964 = vpop.f32.mrb[0].mxu0
  %v2965 = vpop.f32.mrb[0].mxu0
  %v2966 = vadd.f32 0.0, %v2965
  %v2967 = vpop.f32.mrb[0].mxu0
  %2968 = vmatprep.mubr.bf16.mxu0 0
  %2969 = vmatmul.mubr.bf16.gmra.mrb[0].mxu0 %v2783
  %v2970 = vpop.f32.mrb[0].mxu0
  %v2971 = vadd.f32 0.0, %v2970
  %v2972 = vpop.f32.mrb[0].mxu0
  %v2973 = vpop.f32.mrb[0].mxu0
  %v2974 = vadd.f32 0.0, %v2973
  %v2975 = vpop.f32.mrb[0].mxu0
  %2976 = vmatprep.mubr.bf16.mxu0 0
  %2977 = vmatmul.mubr.bf16.gmra.mrb[0].mxu0 %v2786
  %v2978 = vpop.f32.mrb[0].mxu0
  %v2979 = vadd.f32 0.0, %v2978
  %v2980 = vpop.f32.mrb[0].mxu0
  %v2981 = vpop.f32.mrb[0].mxu0
  %v2982 = vadd.f32 0.0, %v2981
  %v2983 = vpop.f32.mrb[0].mxu0
  %2984 = vmatprep.mubr.bf16.mxu0 0
  %2985 = vmatmul.mubr.bf16.gmra.mrb[0].mxu0 %v2789
  %v2986 = vpop.f32.mrb[0].mxu0
  %v2987 = vadd.f32 0.0, %v2986
  %v2988 = vpop.f32.mrb[0].mxu0
  %v2989 = vpop.f32.mrb[0].mxu0
  %v2990 = vadd.f32 0.0, %v2989
  %v2991 = vpop.f32.mrb[0].mxu0
  %2992 = vmatprep.mubr.bf16.mxu0 0
  %2993 = vmatmul.mubr.bf16.gmra.mrb[0].mxu0 %v2792
  %v2994 = vpop.f32.mrb[0].mxu0
  %v2995 = vadd.f32 0.0, %v2994
  %v2996 = vpop.f32.mrb[0].mxu0
  %v2997 = vpop.f32.mrb[0].mxu0
  %v2998 = vadd.f32 0.0, %v2997
  %v2999 = vpop.f32.mrb[0].mxu0
  %3000 = vmatprep.mubr.bf16.mxu0 0
  %3001 = vmatmul.mubr.bf16.gmra.mrb[0].mxu0 %v2795
  %v3002 = vpop.f32.mrb[0].mxu0
  %v3003 = vadd.f32 0.0, %v3002
  %v3004 = vpop.f32.mrb[0].mxu0
  %v3005 = vpop.f32.mrb[0].mxu0
  %v3006 = vadd.f32 0.0, %v3005
  %v3007 = vpop.f32.mrb[0].mxu0
  %3008 = vmatprep.mubr.bf16.mxu0 0
  %3009 = vmatmul.mubr.bf16.gmra.mrb[0].mxu0 %v2798
  %v3010 = vpop.f32.mrb[0].mxu0
  %v3011 = vadd.f32 0.0, %v3010
  %v3012 = vpop.f32.mrb[0].mxu0
  %v3013 = vpop.f32.mrb[0].mxu0
  %v3014 = vadd.f32 0.0, %v3013
  %v3015 = vpop.f32.mrb[0].mxu0
  %3016 = vmatprep.mubr.bf16.mxu0 0
  %3017 = vmatmul.mubr.bf16.gmra.mrb[0].mxu0 %v2801
  %v3018 = vpop.f32.mrb[0].mxu0
  %v3019 = vadd.f32 0.0, %v3018
  %v3020 = vpop.f32.mrb[0].mxu0
  %v3021 = vpop.f32.mrb[0].mxu0
  %v3022 = vadd.f32 0.0, %v3021
  %v3023 = vpop.f32.mrb[0].mxu0
  %3024 = vmatprep.mubr.bf16.mxu0 0
  %3025 = vmatmul.mubr.bf16.gmra.mrb[0].mxu0 %v2804
  %v3026 = vpop.f32.mrb[0].mxu0
  %v3027 = vadd.f32 0.0, %v3026
  %v3028 = vpop.f32.mrb[0].mxu0
  %v3029 = vpop.f32.mrb[0].mxu0
  %v3030 = vadd.f32 0.0, %v3029
  %v3031 = vpop.f32.mrb[0].mxu0
  %3032 = vmatprep.mubr.bf16.mxu0 0
  %3033 = vmatmul.mubr.bf16.gmra.mrb[0].mxu0 %v2807
  %v3034 = vpop.f32.mrb[0].mxu0
  %v3035 = vadd.f32 0.0, %v3034
  %v3036 = vpop.f32.mrb[0].mxu0
  %v3037 = vpop.f32.mrb[0].mxu0
  %v3038 = vadd.f32 0.0, %v3037
  %v3039 = vpop.f32.mrb[0].mxu0
  %3040 = vmatprep.mubr.bf16.mxu0 0
  %3041 = vmatmul.mubr.bf16.gmra.mrb[0].mxu0 %v2810
  %v3042 = vpop.f32.mrb[0].mxu0
  %v3043 = vadd.f32 0.0, %v3042
  %v3044 = vpop.f32.mrb[0].mxu0
  %v3045 = vpop.f32.mrb[0].mxu0
  %v3046 = vadd.f32 0.0, %v3045
  %v3047 = vpop.f32.mrb[0].mxu0
  %3048 = vmatprep.mubr.bf16.mxu0 0
  %3049 = vmatmul.mubr.bf16.gmra.mrb[0].mxu0 %v2813
  %v3050 = vpop.f32.mrb[0].mxu0
  %v3051 = vadd.f32 0.0, %v3050
  %v3052 = vpop.f32.mrb[0].mxu0
  %v3053 = vpop.f32.mrb[0].mxu0
  %v3054 = vadd.f32 0.0, %v3053
  %v3055 = vpop.f32.mrb[0].mxu0
  %3056 = vmatprep.mubr.bf16.mxu0 0
  %3057 = vmatmul.mubr.bf16.gmra.mrb[0].mxu0 %v2816
  %v3058 = vpop.f32.mrb[0].mxu0
  %v3059 = vadd.f32 0.0, %v3058
  %v3060 = vpop.f32.mrb[0].mxu0
  %v3061 = vpop.f32.mrb[0].mxu0
  %v3062 = vadd.f32 0.0, %v3061
  %v3063 = vpop.f32.mrb[0].mxu0
  %3064 = vmatprep.mubr.bf16.mxu0 0
  %3065 = vmatmul.mubr.bf16.gmra.mrb[0].mxu0 %v2819
  %v3066 = vpop.f32.mrb[0].mxu0
  %v3067 = vadd.f32 0.0, %v3066
  %v3068 = vpop.f32.mrb[0].mxu0
  %v3069 = vpop.f32.mrb[0].mxu0
  %v3070 = vadd.f32 0.0, %v3069
  %v3071 = vpop.f32.mrb[0].mxu0
  %3072 = vmatprep.mubr.bf16.mxu0 0
  %3073 = vmatmul.mubr.bf16.gmra.mrb[0].mxu0 %v2822
  %v3074 = vpop.f32.mrb[0].mxu0
  %v3075 = vadd.f32 0.0, %v3074
  %v3076 = vpop.f32.mrb[0].mxu0
  %v3077 = vpop.f32.mrb[0].mxu0
  %v3078 = vadd.f32 0.0, %v3077
  %v3079 = vpop.f32.mrb[0].mxu0
  %3080 = vmatprep.mubr.bf16.mxu0 0
  %3081 = vmatmul.mubr.bf16.gmra.mrb[0].mxu0 %v2825
  %v3082 = vpop.f32.mrb[0].mxu0
  %v3083 = vadd.f32 0.0, %v3082
  %v3084 = vpop.f32.mrb[0].mxu0
  %v3085 = vpop.f32.mrb[0].mxu0
  %v3086 = vadd.f32 0.0, %v3085
  %v3087 = vpop.f32.mrb[0].mxu0
  %3088 = vmatprep.mubr.bf16.mxu0 0
  %3089 = vmatmul.mubr.bf16.gmra.mrb[0].mxu0 %v2828
  %v3090 = vpop.f32.mrb[0].mxu0
  %v3091 = vadd.f32 0.0, %v3090
  %v3092 = vpop.f32.mrb[0].mxu0
  %v3093 = vpop.f32.mrb[0].mxu0
  %v3094 = vadd.f32 0.0, %v3093
  %v3095 = vpop.f32.mrb[0].mxu0
  %3096 = vmatprep.mubr.bf16.mxu0 0
  %3097 = vmatmul.mubr.bf16.gmra.mrb[0].mxu0 %v2831
  %v3098 = vpop.f32.mrb[0].mxu0
  %v3099 = vadd.f32 0.0, %v3098
  %v3100 = vpop.f32.mrb[0].mxu0
  %v3101 = vpop.f32.mrb[0].mxu0
  %v3102 = vadd.f32 0.0, %v3101
  %v3103 = vpop.f32.mrb[0].mxu0
  %3104 = vmatprep.mubr.bf16.mxu0 0
  %3105 = vmatmul.mubr.bf16.gmra.mrb[0].mxu0 %v2834
  %v3106 = vpop.f32.mrb[0].mxu0
  %v3107 = vadd.f32 0.0, %v3106
  %v3108 = vpop.f32.mrb[0].mxu0
  %v3109 = vpop.f32.mrb[0].mxu0
  %v3110 = vadd.f32 0.0, %v3109
  %v3111 = vpop.f32.mrb[0].mxu0
  %3112 = vmatprep.mubr.bf16.mxu0 0
  %3113 = vmatmul.mubr.bf16.gmra.mrb[0].mxu0 %v2837
  %v3114 = vpop.f32.mrb[0].mxu0
  %v3115 = vadd.f32 0.0, %v3114
  %v3116 = vpop.f32.mrb[0].mxu0
  %v3117 = vpop.f32.mrb[0].mxu0
  %v3118 = vadd.f32 0.0, %v3117
  %v3119 = vpop.f32.mrb[0].mxu0
  %3120 = vmatprep.mubr.bf16.mxu0 0
  %3121 = vmatmul.mubr.bf16.gmra.mrb[0].mxu0 %v2840
  %v3122 = vpop.f32.mrb[0].mxu0
  %v3123 = vadd.f32 0.0, %v3122
  %v3124 = vpop.f32.mrb[0].mxu0
  %v3125 = vpop.f32.mrb[0].mxu0
  %v3126 = vadd.f32 0.0, %v3125
  %v3127 = vpop.f32.mrb[0].mxu0
  %3128 = vmatprep.mubr.bf16.mxu0 0
  %3129 = vmatmul.mubr.bf16.gmra.mrb[0].mxu0 %v2843
  %v3130 = vpop.f32.mrb[0].mxu0
  %v3131 = vadd.f32 0.0, %v3130
  %v3132 = vpop.f32.mrb[0].mxu0
  %v3133 = vpop.f32.mrb[0].mxu0
  %v3134 = vadd.f32 0.0, %v3133
  %v3135 = vpop.f32.mrb[0].mxu0
  %3136 = vdwg.mxu0
  %v3137 = vadd.f32 %v2587, %v2883
  %v3138 = vadd.f32 %v2588, %v2886
  %v3139 = vadd.f32 %v2589, %v2891
  %v3140 = vadd.f32 %v2590, %v2894
  %v3141 = vadd.f32 %v2591, %v2899
  %v3142 = vadd.f32 %v2592, %v2902
  %v3143 = vadd.f32 %v2593, %v2907
  %v3144 = vadd.f32 %v2594, %v2910
  %v3145 = vadd.f32 %v2595, %v2915
  %v3146 = vadd.f32 %v2596, %v2918
  %v3147 = vadd.f32 %v2597, %v2923
  %v3148 = vadd.f32 %v2598, %v2926
  %v3149 = vadd.f32 %v2599, %v2931
  %v3150 = vadd.f32 %v2600, %v2934
  %v3151 = vadd.f32 %v2601, %v2939
  %v3152 = vadd.f32 %v2602, %v2942
  %v3153 = vadd.f32 %v2603, %v2947
  %v3154 = vadd.f32 %v2604, %v2950
  %v3155 = vadd.f32 %v2605, %v2955
  %v3156 = vadd.f32 %v2606, %v2958
  %v3157 = vadd.f32 %v2607, %v2963
  %v3158 = vadd.f32 %v2608, %v2966
  %v3159 = vadd.f32 %v2609, %v2971
  %v3160 = vadd.f32 %v2610, %v2974
  %v3161 = vadd.f32 %v2611, %v2979
  %v3162 = vadd.f32 %v2612, %v2982
  %v3163 = vadd.f32 %v2613, %v2987
  %v3164 = vadd.f32 %v2614, %v2990
  %v3165 = vadd.f32 %v2615, %v2995
  %v3166 = vadd.f32 %v2616, %v2998
  %v3167 = vadd.f32 %v2617, %v3003
  %v3168 = vadd.f32 %v2618, %v3006
  %v3169 = vadd.f32 %v2619, %v3011
  %v3170 = vadd.f32 %v2620, %v3014
  %v3171 = vadd.f32 %v2621, %v3019
  %v3172 = vadd.f32 %v2622, %v3022
  %v3173 = vadd.f32 %v2623, %v3027
  %v3174 = vadd.f32 %v2624, %v3030
  %v3175 = vadd.f32 %v2625, %v3035
  %v3176 = vadd.f32 %v2626, %v3038
  %v3177 = vadd.f32 %v2627, %v3043
  %v3178 = vadd.f32 %v2628, %v3046
  %v3179 = vadd.f32 %v2629, %v3051
  %v3180 = vadd.f32 %v2630, %v3054
  %v3181 = vadd.f32 %v2631, %v3059
  %v3182 = vadd.f32 %v2632, %v3062
  %v3183 = vadd.f32 %v2633, %v3067
  %v3184 = vadd.f32 %v2634, %v3070
  %v3185 = vadd.f32 %v2635, %v3075
  %v3186 = vadd.f32 %v2636, %v3078
  %v3187 = vadd.f32 %v2637, %v3083
  %v3188 = vadd.f32 %v2638, %v3086
  %v3189 = vadd.f32 %v2639, %v3091
  %v3190 = vadd.f32 %v2640, %v3094
  %v3191 = vadd.f32 %v2641, %v3099
  %v3192 = vadd.f32 %v2642, %v3102
  %v3193 = vadd.f32 %v2643, %v3107
  %v3194 = vadd.f32 %v2644, %v3110
  %v3195 = vadd.f32 %v2645, %v3115
  %v3196 = vadd.f32 %v2646, %v3118
  %v3197 = vadd.f32 %v2647, %v3123
  %v3198 = vadd.f32 %v2648, %v3126
  %v3199 = vadd.f32 %v2649, %v3131
  %v3200 = vadd.f32 %v2650, %v3134
  %s3201 = scalar_lea.vmem %s0, 48
  %v3202 = vld [vmem:[%s3201] sm:$0xff]
  %v3203 = vld [vmem:[%s3201 + $0x8] sm:$0xff]
  %v3204 = vld [vmem:[%s3201 + $0x18] sm:$0xff]
  %v3205 = vld [vmem:[%s3201 + $0x20] sm:$0xff]
  %v3206 = vld [vmem:[%s3201 + $0x30] sm:$0xff]
  %v3207 = vld [vmem:[%s3201 + $0x38] sm:$0xff]
  %v3208 = vld [vmem:[%s3201 + $0x48] sm:$0xff]
  %v3209 = vld [vmem:[%s3201 + $0x50] sm:$0xff]
  %v3210 = vld [vmem:[%s3201 + $0x60] sm:$0xff]
  %v3211 = vld [vmem:[%s3201 + $0x68] sm:$0xff]
  %v3212 = vld [vmem:[%s3201 + $0x78] sm:$0xff]
  %v3213 = vld [vmem:[%s3201 + $0x80] sm:$0xff]
  %v3214 = vld [vmem:[%s3201 + $0x90] sm:$0xff]
  %v3215 = vld [vmem:[%s3201 + $0x98] sm:$0xff]
  %v3216 = vld [vmem:[%s3201 + $0xa8] sm:$0xff]
  %v3217 = vld [vmem:[%s3201 + $0xb0] sm:$0xff]
  %v3218 = vld [vmem:[%s3201 + $0xc0] sm:$0xff]
  %v3219 = vld [vmem:[%s3201 + $0xc8] sm:$0xff]
  %v3220 = vld [vmem:[%s3201 + $0xd8] sm:$0xff]
  %v3221 = vld [vmem:[%s3201 + $0xe0] sm:$0xff]
  %v3222 = vld [vmem:[%s3201 + $0xf0] sm:$0xff]
  %v3223 = vld [vmem:[%s3201 + $0xf8] sm:$0xff]
  %v3224 = vld [vmem:[%s3201 + $0x108] sm:$0xff]
  %v3225 = vld [vmem:[%s3201 + $0x110] sm:$0xff]
  %v3226 = vld [vmem:[%s3201 + $0x120] sm:$0xff]
  %v3227 = vld [vmem:[%s3201 + $0x128] sm:$0xff]
  %v3228 = vld [vmem:[%s3201 + $0x138] sm:$0xff]
  %v3229 = vld [vmem:[%s3201 + $0x140] sm:$0xff]
  %v3230 = vld [vmem:[%s3201 + $0x150] sm:$0xff]
  %v3231 = vld [vmem:[%s3201 + $0x158] sm:$0xff]
  %v3232 = vld [vmem:[%s3201 + $0x168] sm:$0xff]
  %v3233 = vld [vmem:[%s3201 + $0x170] sm:$0xff]
  %v3234 = vld [vmem:[%s3201 + $0x1b0] sm:$0xff]
  %v3235 = vld [vmem:[%s3201 + $0x1b8] sm:$0xff]
  %v3236 = vld [vmem:[%s3201 + $0x1c8] sm:$0xff]
  %v3237 = vld [vmem:[%s3201 + $0x1d0] sm:$0xff]
  %v3238 = vld [vmem:[%s3201 + $0x1e0] sm:$0xff]
  %v3239 = vld [vmem:[%s3201 + $0x1e8] sm:$0xff]
  %v3240 = vld [vmem:[%s3201 + $0x1f8] sm:$0xff]
  %v3241 = vld [vmem:[%s3201 + $0x200] sm:$0xff]
  %v3242 = vld [vmem:[%s3201 + $0x210] sm:$0xff]
  %v3243 = vld [vmem:[%s3201 + $0x218] sm:$0xff]
  %v3244 = vld [vmem:[%s3201 + $0x228] sm:$0xff]
  %v3245 = vld [vmem:[%s3201 + $0x230] sm:$0xff]
  %v3246 = vld [vmem:[%s3201 + $0x240] sm:$0xff]
  %v3247 = vld [vmem:[%s3201 + $0x248] sm:$0xff]
  %v3248 = vld [vmem:[%s3201 + $0x258] sm:$0xff]
  %v3249 = vld [vmem:[%s3201 + $0x260] sm:$0xff]
  %v3250 = vld [vmem:[%s3201 + $0x270] sm:$0xff]
  %v3251 = vld [vmem:[%s3201 + $0x278] sm:$0xff]
  %v3252 = vld [vmem:[%s3201 + $0x288] sm:$0xff]
  %v3253 = vld [vmem:[%s3201 + $0x290] sm:$0xff]
  %v3254 = vld [vmem:[%s3201 + $0x2a0] sm:$0xff]
  %v3255 = vld [vmem:[%s3201 + $0x2a8] sm:$0xff]
  %v3256 = vld [vmem:[%s3201 + $0x2b8] sm:$0xff]
  %v3257 = vld [vmem:[%s3201 + $0x2c0] sm:$0xff]
  %v3258 = vld [vmem:[%s3201 + $0x2d0] sm:$0xff]
  %v3259 = vld [vmem:[%s3201 + $0x2d8] sm:$0xff]
  %v3260 = vld [vmem:[%s3201 + $0x2e8] sm:$0xff]
  %v3261 = vld [vmem:[%s3201 + $0x2f0] sm:$0xff]
  %v3262 = vld [vmem:[%s3201 + $0x300] sm:$0xff]
  %v3263 = vld [vmem:[%s3201 + $0x308] sm:$0xff]
  %v3264 = vld [vmem:[%s3201 + $0x318] sm:$0xff]
  %v3265 = vld [vmem:[%s3201 + $0x320] sm:$0xff]
  %v3266 = vpack.c.bf16 %v3203, %v3202
  %v3267 = vpack.c.bf16 %v3205, %v3204
  %v3268 = vpack.c.bf16 %v3207, %v3206
  %v3269 = vpack.c.bf16 %v3209, %v3208
  %v3270 = vpack.c.bf16 %v3211, %v3210
  %v3271 = vpack.c.bf16 %v3213, %v3212
  %v3272 = vpack.c.bf16 %v3215, %v3214
  %v3273 = vpack.c.bf16 %v3217, %v3216
  %v3274 = vpack.c.bf16 %v3219, %v3218
  %v3275 = vpack.c.bf16 %v3221, %v3220
  %v3276 = vpack.c.bf16 %v3223, %v3222
  %v3277 = vpack.c.bf16 %v3225, %v3224
  %v3278 = vpack.c.bf16 %v3227, %v3226
  %v3279 = vpack.c.bf16 %v3229, %v3228
  %v3280 = vpack.c.bf16 %v3231, %v3230
  %v3281 = vpack.c.bf16 %v3233, %v3232
  %v3282 = vpack.c.bf16 %v3235, %v3234
  %v3283 = vpack.c.bf16 %v3237, %v3236
  %v3284 = vpack.c.bf16 %v3239, %v3238
  %v3285 = vpack.c.bf16 %v3241, %v3240
  %v3286 = vpack.c.bf16 %v3243, %v3242
  %v3287 = vpack.c.bf16 %v3245, %v3244
  %v3288 = vpack.c.bf16 %v3247, %v3246
  %v3289 = vpack.c.bf16 %v3249, %v3248
  %v3290 = vpack.c.bf16 %v3251, %v3250
  %v3291 = vpack.c.bf16 %v3253, %v3252
  %v3292 = vpack.c.bf16 %v3255, %v3254
  %v3293 = vpack.c.bf16 %v3257, %v3256
  %v3294 = vpack.c.bf16 %v3259, %v3258
  %v3295 = vpack.c.bf16 %v3261, %v3260
  %v3296 = vpack.c.bf16 %v3263, %v3262
  %v3297 = vpack.c.bf16 %v3265, %v3264
  %s3298 = scalar_lea.vmem %s1, 24
  %v3299 = vld [vmem:[%s3298] sm:$0xf]
  %v3301 = vsel %vm222, %v3266, 0
  %v3304 = vsel %vm222, %v3267, 0
  %v3307 = vsel %vm222, %v3268, 0
  %v3310 = vsel %vm222, %v3269, 0
  %v3313 = vsel %vm222, %v3270, 0
  %v3316 = vsel %vm222, %v3271, 0
  %v3319 = vsel %vm222, %v3272, 0
  %v3322 = vsel %vm222, %v3273, 0
  %v3325 = vsel %vm222, %v3274, 0
  %v3328 = vsel %vm222, %v3275, 0
  %v3331 = vsel %vm222, %v3276, 0
  %v3334 = vsel %vm222, %v3277, 0
  %v3337 = vsel %vm222, %v3278, 0
  %v3340 = vsel %vm222, %v3279, 0
  %v3343 = vsel %vm222, %v3280, 0
  %v3346 = vsel %vm222, %v3281, 0
  %v3349 = vsel %vm222, %v3282, 0
  %v3352 = vsel %vm222, %v3283, 0
  %v3355 = vsel %vm222, %v3284, 0
  %v3358 = vsel %vm222, %v3285, 0
  %v3361 = vsel %vm222, %v3286, 0
  %v3364 = vsel %vm222, %v3287, 0
  %v3367 = vsel %vm222, %v3288, 0
  %v3370 = vsel %vm222, %v3289, 0
  %v3373 = vsel %vm222, %v3290, 0
  %v3376 = vsel %vm222, %v3291, 0
  %v3379 = vsel %vm222, %v3292, 0
  %v3382 = vsel %vm222, %v3293, 0
  %v3385 = vsel %vm222, %v3294, 0
  %v3388 = vsel %vm222, %v3295, 0
  %v3391 = vsel %vm222, %v3296, 0
  %v3394 = vsel %vm222, %v3297, 0
  %v3397 = vsel %vm319, %v3299, 0
  %3399 = vmatprep.subr.bf16.mxu0 0
  %3400 = vmatpush1.bf16.msra.mxu0 %v3397
  %3401 = vmatprep.subr.bf16.mxu0 0
  %3402 = vmatpush1.bf16.msra.mxu0 0
  %3403 = vmatprep.subr.bf16.mxu0 0
  %3404 = vmatpush1.bf16.msra.mxu0 0
  %3405 = vmatprep.subr.bf16.mxu0 0
  %3406 = vmatpush1.bf16.msra.mxu0 0
  %3407 = vmatprep.subr.bf16.mxu0 0
  %3408 = vmatpush1.bf16.msra.mxu0 0
  %3409 = vmatprep.subr.bf16.mxu0 0
  %3410 = vmatpush1.bf16.msra.mxu0 0
  %3411 = vmatprep.subr.bf16.mxu0 0
  %3412 = vmatpush1.bf16.msra.mxu0 0
  %3413 = vmatprep.subr.bf16.mxu0 0
  %3414 = vmatpush1.bf16.msra.mxu0 0
  %3415 = vmatprep.subr.bf16.mxu0 0
  %3416 = vmatpush1.bf16.msra.mxu0 0
  %3417 = vmatprep.subr.bf16.mxu0 0
  %3418 = vmatpush1.bf16.msra.mxu0 0
  %3419 = vmatprep.subr.bf16.mxu0 0
  %3420 = vmatpush1.bf16.msra.mxu0 0
  %3421 = vmatprep.subr.bf16.mxu0 0
  %3422 = vmatpush1.bf16.msra.mxu0 0
  %3423 = vmatprep.subr.bf16.mxu0 0
  %3424 = vmatpush1.bf16.msra.mxu0 0
  %3425 = vmatprep.subr.bf16.mxu0 0
  %3426 = vmatpush1.bf16.msra.mxu0 0
  %3427 = vmatprep.subr.bf16.mxu0 0
  %3428 = vmatpush1.bf16.msra.mxu0 0
  %3429 = vmatprep.subr.bf16.mxu0 0
  %3430 = vmatpush1.bf16.msra.mxu0 0
  %3431 = vmatprep.mubr.bf16.mxu0 0
  %3432 = vmatmul.mubr.bf16.gmra.mrb[0].mxu0 %v3301
  %v3433 = vpop.f32.mrb[0].mxu0
  %v3434 = vadd.f32 0.0, %v3433
  %v3435 = vpop.f32.mrb[0].mxu0
  %v3436 = vpop.f32.mrb[0].mxu0
  %v3437 = vadd.f32 0.0, %v3436
  %v3438 = vpop.f32.mrb[0].mxu0
  %3439 = vmatprep.mubr.bf16.mxu0 0
  %3440 = vmatmul.mubr.bf16.gmra.mrb[0].mxu0 %v3304
  %v3441 = vpop.f32.mrb[0].mxu0
  %v3442 = vadd.f32 0.0, %v3441
  %v3443 = vpop.f32.mrb[0].mxu0
  %v3444 = vpop.f32.mrb[0].mxu0
  %v3445 = vadd.f32 0.0, %v3444
  %v3446 = vpop.f32.mrb[0].mxu0
  %3447 = vmatprep.mubr.bf16.mxu0 0
  %3448 = vmatmul.mubr.bf16.gmra.mrb[0].mxu0 %v3307
  %v3449 = vpop.f32.mrb[0].mxu0
  %v3450 = vadd.f32 0.0, %v3449
  %v3451 = vpop.f32.mrb[0].mxu0
  %v3452 = vpop.f32.mrb[0].mxu0
  %v3453 = vadd.f32 0.0, %v3452
  %v3454 = vpop.f32.mrb[0].mxu0
  %3455 = vmatprep.mubr.bf16.mxu0 0
  %3456 = vmatmul.mubr.bf16.gmra.mrb[0].mxu0 %v3310
  %v3457 = vpop.f32.mrb[0].mxu0
  %v3458 = vadd.f32 0.0, %v3457
  %v3459 = vpop.f32.mrb[0].mxu0
  %v3460 = vpop.f32.mrb[0].mxu0
  %v3461 = vadd.f32 0.0, %v3460
  %v3462 = vpop.f32.mrb[0].mxu0
  %3463 = vmatprep.mubr.bf16.mxu0 0
  %3464 = vmatmul.mubr.bf16.gmra.mrb[0].mxu0 %v3313
  %v3465 = vpop.f32.mrb[0].mxu0
  %v3466 = vadd.f32 0.0, %v3465
  %v3467 = vpop.f32.mrb[0].mxu0
  %v3468 = vpop.f32.mrb[0].mxu0
  %v3469 = vadd.f32 0.0, %v3468
  %v3470 = vpop.f32.mrb[0].mxu0
  %3471 = vmatprep.mubr.bf16.mxu0 0
  %3472 = vmatmul.mubr.bf16.gmra.mrb[0].mxu0 %v3316
  %v3473 = vpop.f32.mrb[0].mxu0
  %v3474 = vadd.f32 0.0, %v3473
  %v3475 = vpop.f32.mrb[0].mxu0
  %v3476 = vpop.f32.mrb[0].mxu0
  %v3477 = vadd.f32 0.0, %v3476
  %v3478 = vpop.f32.mrb[0].mxu0
  %3479 = vmatprep.mubr.bf16.mxu0 0
  %3480 = vmatmul.mubr.bf16.gmra.mrb[0].mxu0 %v3319
  %v3481 = vpop.f32.mrb[0].mxu0
  %v3482 = vadd.f32 0.0, %v3481
  %v3483 = vpop.f32.mrb[0].mxu0
  %v3484 = vpop.f32.mrb[0].mxu0
  %v3485 = vadd.f32 0.0, %v3484
  %v3486 = vpop.f32.mrb[0].mxu0
  %3487 = vmatprep.mubr.bf16.mxu0 0
  %3488 = vmatmul.mubr.bf16.gmra.mrb[0].mxu0 %v3322
  %v3489 = vpop.f32.mrb[0].mxu0
  %v3490 = vadd.f32 0.0, %v3489
  %v3491 = vpop.f32.mrb[0].mxu0
  %v3492 = vpop.f32.mrb[0].mxu0
  %v3493 = vadd.f32 0.0, %v3492
  %v3494 = vpop.f32.mrb[0].mxu0
  %3495 = vmatprep.mubr.bf16.mxu0 0
  %3496 = vmatmul.mubr.bf16.gmra.mrb[0].mxu0 %v3325
  %v3497 = vpop.f32.mrb[0].mxu0
  %v3498 = vadd.f32 0.0, %v3497
  %v3499 = vpop.f32.mrb[0].mxu0
  %v3500 = vpop.f32.mrb[0].mxu0
  %v3501 = vadd.f32 0.0, %v3500
  %v3502 = vpop.f32.mrb[0].mxu0
  %3503 = vmatprep.mubr.bf16.mxu0 0
  %3504 = vmatmul.mubr.bf16.gmra.mrb[0].mxu0 %v3328
  %v3505 = vpop.f32.mrb[0].mxu0
  %v3506 = vadd.f32 0.0, %v3505
  %v3507 = vpop.f32.mrb[0].mxu0
  %v3508 = vpop.f32.mrb[0].mxu0
  %v3509 = vadd.f32 0.0, %v3508
  %v3510 = vpop.f32.mrb[0].mxu0
  %3511 = vmatprep.mubr.bf16.mxu0 0
  %3512 = vmatmul.mubr.bf16.gmra.mrb[0].mxu0 %v3331
  %v3513 = vpop.f32.mrb[0].mxu0
  %v3514 = vadd.f32 0.0, %v3513
  %v3515 = vpop.f32.mrb[0].mxu0
  %v3516 = vpop.f32.mrb[0].mxu0
  %v3517 = vadd.f32 0.0, %v3516
  %v3518 = vpop.f32.mrb[0].mxu0
  %3519 = vmatprep.mubr.bf16.mxu0 0
  %3520 = vmatmul.mubr.bf16.gmra.mrb[0].mxu0 %v3334
  %v3521 = vpop.f32.mrb[0].mxu0
  %v3522 = vadd.f32 0.0, %v3521
  %v3523 = vpop.f32.mrb[0].mxu0
  %v3524 = vpop.f32.mrb[0].mxu0
  %v3525 = vadd.f32 0.0, %v3524
  %v3526 = vpop.f32.mrb[0].mxu0
  %3527 = vmatprep.mubr.bf16.mxu0 0
  %3528 = vmatmul.mubr.bf16.gmra.mrb[0].mxu0 %v3337
  %v3529 = vpop.f32.mrb[0].mxu0
  %v3530 = vadd.f32 0.0, %v3529
  %v3531 = vpop.f32.mrb[0].mxu0
  %v3532 = vpop.f32.mrb[0].mxu0
  %v3533 = vadd.f32 0.0, %v3532
  %v3534 = vpop.f32.mrb[0].mxu0
  %3535 = vmatprep.mubr.bf16.mxu0 0
  %3536 = vmatmul.mubr.bf16.gmra.mrb[0].mxu0 %v3340
  %v3537 = vpop.f32.mrb[0].mxu0
  %v3538 = vadd.f32 0.0, %v3537
  %v3539 = vpop.f32.mrb[0].mxu0
  %v3540 = vpop.f32.mrb[0].mxu0
  %v3541 = vadd.f32 0.0, %v3540
  %v3542 = vpop.f32.mrb[0].mxu0
  %3543 = vmatprep.mubr.bf16.mxu0 0
  %3544 = vmatmul.mubr.bf16.gmra.mrb[0].mxu0 %v3343
  %v3545 = vpop.f32.mrb[0].mxu0
  %v3546 = vadd.f32 0.0, %v3545
  %v3547 = vpop.f32.mrb[0].mxu0
  %v3548 = vpop.f32.mrb[0].mxu0
  %v3549 = vadd.f32 0.0, %v3548
  %v3550 = vpop.f32.mrb[0].mxu0
  %3551 = vmatprep.mubr.bf16.mxu0 0
  %3552 = vmatmul.mubr.bf16.gmra.mrb[0].mxu0 %v3346
  %v3553 = vpop.f32.mrb[0].mxu0
  %v3554 = vadd.f32 0.0, %v3553
  %v3555 = vpop.f32.mrb[0].mxu0
  %v3556 = vpop.f32.mrb[0].mxu0
  %v3557 = vadd.f32 0.0, %v3556
  %v3558 = vpop.f32.mrb[0].mxu0
  %3559 = vmatprep.mubr.bf16.mxu0 0
  %3560 = vmatmul.mubr.bf16.gmra.mrb[0].mxu0 %v3349
  %v3561 = vpop.f32.mrb[0].mxu0
  %v3562 = vadd.f32 0.0, %v3561
  %v3563 = vpop.f32.mrb[0].mxu0
  %v3564 = vpop.f32.mrb[0].mxu0
  %v3565 = vadd.f32 0.0, %v3564
  %v3566 = vpop.f32.mrb[0].mxu0
  %3567 = vmatprep.mubr.bf16.mxu0 0
  %3568 = vmatmul.mubr.bf16.gmra.mrb[0].mxu0 %v3352
  %v3569 = vpop.f32.mrb[0].mxu0
  %v3570 = vadd.f32 0.0, %v3569
  %v3571 = vpop.f32.mrb[0].mxu0
  %v3572 = vpop.f32.mrb[0].mxu0
  %v3573 = vadd.f32 0.0, %v3572
  %v3574 = vpop.f32.mrb[0].mxu0
  %3575 = vmatprep.mubr.bf16.mxu0 0
  %3576 = vmatmul.mubr.bf16.gmra.mrb[0].mxu0 %v3355
  %v3577 = vpop.f32.mrb[0].mxu0
  %v3578 = vadd.f32 0.0, %v3577
  %v3579 = vpop.f32.mrb[0].mxu0
  %v3580 = vpop.f32.mrb[0].mxu0
  %v3581 = vadd.f32 0.0, %v3580
  %v3582 = vpop.f32.mrb[0].mxu0
  %3583 = vmatprep.mubr.bf16.mxu0 0
  %3584 = vmatmul.mubr.bf16.gmra.mrb[0].mxu0 %v3358
  %v3585 = vpop.f32.mrb[0].mxu0
  %v3586 = vadd.f32 0.0, %v3585
  %v3587 = vpop.f32.mrb[0].mxu0
  %v3588 = vpop.f32.mrb[0].mxu0
  %v3589 = vadd.f32 0.0, %v3588
  %v3590 = vpop.f32.mrb[0].mxu0
  %3591 = vmatprep.mubr.bf16.mxu0 0
  %3592 = vmatmul.mubr.bf16.gmra.mrb[0].mxu0 %v3361
  %v3593 = vpop.f32.mrb[0].mxu0
  %v3594 = vadd.f32 0.0, %v3593
  %v3595 = vpop.f32.mrb[0].mxu0
  %v3596 = vpop.f32.mrb[0].mxu0
  %v3597 = vadd.f32 0.0, %v3596
  %v3598 = vpop.f32.mrb[0].mxu0
  %3599 = vmatprep.mubr.bf16.mxu0 0
  %3600 = vmatmul.mubr.bf16.gmra.mrb[0].mxu0 %v3364
  %v3601 = vpop.f32.mrb[0].mxu0
  %v3602 = vadd.f32 0.0, %v3601
  %v3603 = vpop.f32.mrb[0].mxu0
  %v3604 = vpop.f32.mrb[0].mxu0
  %v3605 = vadd.f32 0.0, %v3604
  %v3606 = vpop.f32.mrb[0].mxu0
  %3607 = vmatprep.mubr.bf16.mxu0 0
  %3608 = vmatmul.mubr.bf16.gmra.mrb[0].mxu0 %v3367
  %v3609 = vpop.f32.mrb[0].mxu0
  %v3610 = vadd.f32 0.0, %v3609
  %v3611 = vpop.f32.mrb[0].mxu0
  %v3612 = vpop.f32.mrb[0].mxu0
  %v3613 = vadd.f32 0.0, %v3612
  %v3614 = vpop.f32.mrb[0].mxu0
  %3615 = vmatprep.mubr.bf16.mxu0 0
  %3616 = vmatmul.mubr.bf16.gmra.mrb[0].mxu0 %v3370
  %v3617 = vpop.f32.mrb[0].mxu0
  %v3618 = vadd.f32 0.0, %v3617
  %v3619 = vpop.f32.mrb[0].mxu0
  %v3620 = vpop.f32.mrb[0].mxu0
  %v3621 = vadd.f32 0.0, %v3620
  %v3622 = vpop.f32.mrb[0].mxu0
  %3623 = vmatprep.mubr.bf16.mxu0 0
  %3624 = vmatmul.mubr.bf16.gmra.mrb[0].mxu0 %v3373
  %v3625 = vpop.f32.mrb[0].mxu0
  %v3626 = vadd.f32 0.0, %v3625
  %v3627 = vpop.f32.mrb[0].mxu0
  %v3628 = vpop.f32.mrb[0].mxu0
  %v3629 = vadd.f32 0.0, %v3628
  %v3630 = vpop.f32.mrb[0].mxu0
  %3631 = vmatprep.mubr.bf16.mxu0 0
  %3632 = vmatmul.mubr.bf16.gmra.mrb[0].mxu0 %v3376
  %v3633 = vpop.f32.mrb[0].mxu0
  %v3634 = vadd.f32 0.0, %v3633
  %v3635 = vpop.f32.mrb[0].mxu0
  %v3636 = vpop.f32.mrb[0].mxu0
  %v3637 = vadd.f32 0.0, %v3636
  %v3638 = vpop.f32.mrb[0].mxu0
  %3639 = vmatprep.mubr.bf16.mxu0 0
  %3640 = vmatmul.mubr.bf16.gmra.mrb[0].mxu0 %v3379
  %v3641 = vpop.f32.mrb[0].mxu0
  %v3642 = vadd.f32 0.0, %v3641
  %v3643 = vpop.f32.mrb[0].mxu0
  %v3644 = vpop.f32.mrb[0].mxu0
  %v3645 = vadd.f32 0.0, %v3644
  %v3646 = vpop.f32.mrb[0].mxu0
  %3647 = vmatprep.mubr.bf16.mxu0 0
  %3648 = vmatmul.mubr.bf16.gmra.mrb[0].mxu0 %v3382
  %v3649 = vpop.f32.mrb[0].mxu0
  %v3650 = vadd.f32 0.0, %v3649
  %v3651 = vpop.f32.mrb[0].mxu0
  %v3652 = vpop.f32.mrb[0].mxu0
  %v3653 = vadd.f32 0.0, %v3652
  %v3654 = vpop.f32.mrb[0].mxu0
  %3655 = vmatprep.mubr.bf16.mxu0 0
  %3656 = vmatmul.mubr.bf16.gmra.mrb[0].mxu0 %v3385
  %v3657 = vpop.f32.mrb[0].mxu0
  %v3658 = vadd.f32 0.0, %v3657
  %v3659 = vpop.f32.mrb[0].mxu0
  %v3660 = vpop.f32.mrb[0].mxu0
  %v3661 = vadd.f32 0.0, %v3660
  %v3662 = vpop.f32.mrb[0].mxu0
  %3663 = vmatprep.mubr.bf16.mxu0 0
  %3664 = vmatmul.mubr.bf16.gmra.mrb[0].mxu0 %v3388
  %v3665 = vpop.f32.mrb[0].mxu0
  %v3666 = vadd.f32 0.0, %v3665
  %v3667 = vpop.f32.mrb[0].mxu0
  %v3668 = vpop.f32.mrb[0].mxu0
  %v3669 = vadd.f32 0.0, %v3668
  %v3670 = vpop.f32.mrb[0].mxu0
  %3671 = vmatprep.mubr.bf16.mxu0 0
  %3672 = vmatmul.mubr.bf16.gmra.mrb[0].mxu0 %v3391
  %v3673 = vpop.f32.mrb[0].mxu0
  %v3674 = vadd.f32 0.0, %v3673
  %v3675 = vpop.f32.mrb[0].mxu0
  %v3676 = vpop.f32.mrb[0].mxu0
  %v3677 = vadd.f32 0.0, %v3676
  %v3678 = vpop.f32.mrb[0].mxu0
  %3679 = vmatprep.mubr.bf16.mxu0 0
  %3680 = vmatmul.mubr.bf16.gmra.mrb[0].mxu0 %v3394
  %v3681 = vpop.f32.mrb[0].mxu0
  %v3682 = vadd.f32 0.0, %v3681
  %v3683 = vpop.f32.mrb[0].mxu0
  %v3684 = vpop.f32.mrb[0].mxu0
  %v3685 = vadd.f32 0.0, %v3684
  %v3686 = vpop.f32.mrb[0].mxu0
  %3687 = vdwg.mxu0
  %v3688 = vadd.f32 %v3137, %v3434
  %v3689 = vadd.f32 %v3138, %v3437
  %v3690 = vadd.f32 %v3139, %v3442
  %v3691 = vadd.f32 %v3140, %v3445
  %v3692 = vadd.f32 %v3141, %v3450
  %v3693 = vadd.f32 %v3142, %v3453
  %v3694 = vadd.f32 %v3143, %v3458
  %v3695 = vadd.f32 %v3144, %v3461
  %v3696 = vadd.f32 %v3145, %v3466
  %v3697 = vadd.f32 %v3146, %v3469
  %v3698 = vadd.f32 %v3147, %v3474
  %v3699 = vadd.f32 %v3148, %v3477
  %v3700 = vadd.f32 %v3149, %v3482
  %v3701 = vadd.f32 %v3150, %v3485
  %v3702 = vadd.f32 %v3151, %v3490
  %v3703 = vadd.f32 %v3152, %v3493
  %v3704 = vadd.f32 %v3153, %v3498
  %v3705 = vadd.f32 %v3154, %v3501
  %v3706 = vadd.f32 %v3155, %v3506
  %v3707 = vadd.f32 %v3156, %v3509
  %v3708 = vadd.f32 %v3157, %v3514
  %v3709 = vadd.f32 %v3158, %v3517
  %v3710 = vadd.f32 %v3159, %v3522
  %v3711 = vadd.f32 %v3160, %v3525
  %v3712 = vadd.f32 %v3161, %v3530
  %v3713 = vadd.f32 %v3162, %v3533
  %v3714 = vadd.f32 %v3163, %v3538
  %v3715 = vadd.f32 %v3164, %v3541
  %v3716 = vadd.f32 %v3165, %v3546
  %v3717 = vadd.f32 %v3166, %v3549
  %v3718 = vadd.f32 %v3167, %v3554
  %v3719 = vadd.f32 %v3168, %v3557
  %v3720 = vadd.f32 %v3169, %v3562
  %v3721 = vadd.f32 %v3170, %v3565
  %v3722 = vadd.f32 %v3171, %v3570
  %v3723 = vadd.f32 %v3172, %v3573
  %v3724 = vadd.f32 %v3173, %v3578
  %v3725 = vadd.f32 %v3174, %v3581
  %v3726 = vadd.f32 %v3175, %v3586
  %v3727 = vadd.f32 %v3176, %v3589
  %v3728 = vadd.f32 %v3177, %v3594
  %v3729 = vadd.f32 %v3178, %v3597
  %v3730 = vadd.f32 %v3179, %v3602
  %v3731 = vadd.f32 %v3180, %v3605
  %v3732 = vadd.f32 %v3181, %v3610
  %v3733 = vadd.f32 %v3182, %v3613
  %v3734 = vadd.f32 %v3183, %v3618
  %v3735 = vadd.f32 %v3184, %v3621
  %v3736 = vadd.f32 %v3185, %v3626
  %v3737 = vadd.f32 %v3186, %v3629
  %v3738 = vadd.f32 %v3187, %v3634
  %v3739 = vadd.f32 %v3188, %v3637
  %v3740 = vadd.f32 %v3189, %v3642
  %v3741 = vadd.f32 %v3190, %v3645
  %v3742 = vadd.f32 %v3191, %v3650
  %v3743 = vadd.f32 %v3192, %v3653
  %v3744 = vadd.f32 %v3193, %v3658
  %v3745 = vadd.f32 %v3194, %v3661
  %v3746 = vadd.f32 %v3195, %v3666
  %v3747 = vadd.f32 %v3196, %v3669
  %v3748 = vadd.f32 %v3197, %v3674
  %v3749 = vadd.f32 %v3198, %v3677
  %v3750 = vadd.f32 %v3199, %v3682
  %v3751 = vadd.f32 %v3200, %v3685
  %v3752 = vld [vmem:[%s3201 + $0x1] sm:$0xff]
  %v3753 = vld [vmem:[%s3201 + $0x9] sm:$0xff]
  %v3754 = vld [vmem:[%s3201 + $0x19] sm:$0xff]
  %v3755 = vld [vmem:[%s3201 + $0x21] sm:$0xff]
  %v3756 = vld [vmem:[%s3201 + $0x31] sm:$0xff]
  %v3757 = vld [vmem:[%s3201 + $0x39] sm:$0xff]
  %v3758 = vld [vmem:[%s3201 + $0x49] sm:$0xff]
  %v3759 = vld [vmem:[%s3201 + $0x51] sm:$0xff]
  %v3760 = vld [vmem:[%s3201 + $0x61] sm:$0xff]
  %v3761 = vld [vmem:[%s3201 + $0x69] sm:$0xff]
  %v3762 = vld [vmem:[%s3201 + $0x79] sm:$0xff]
  %v3763 = vld [vmem:[%s3201 + $0x81] sm:$0xff]
  %v3764 = vld [vmem:[%s3201 + $0x91] sm:$0xff]
  %v3765 = vld [vmem:[%s3201 + $0x99] sm:$0xff]
  %v3766 = vld [vmem:[%s3201 + $0xa9] sm:$0xff]
  %v3767 = vld [vmem:[%s3201 + $0xb1] sm:$0xff]
  %v3768 = vld [vmem:[%s3201 + $0xc1] sm:$0xff]
  %v3769 = vld [vmem:[%s3201 + $0xc9] sm:$0xff]
  %v3770 = vld [vmem:[%s3201 + $0xd9] sm:$0xff]
  %v3771 = vld [vmem:[%s3201 + $0xe1] sm:$0xff]
  %v3772 = vld [vmem:[%s3201 + $0xf1] sm:$0xff]
  %v3773 = vld [vmem:[%s3201 + $0xf9] sm:$0xff]
  %v3774 = vld [vmem:[%s3201 + $0x109] sm:$0xff]
  %v3775 = vld [vmem:[%s3201 + $0x111] sm:$0xff]
  %v3776 = vld [vmem:[%s3201 + $0x121] sm:$0xff]
  %v3777 = vld [vmem:[%s3201 + $0x129] sm:$0xff]
  %v3778 = vld [vmem:[%s3201 + $0x139] sm:$0xff]
  %v3779 = vld [vmem:[%s3201 + $0x141] sm:$0xff]
  %v3780 = vld [vmem:[%s3201 + $0x151] sm:$0xff]
  %v3781 = vld [vmem:[%s3201 + $0x159] sm:$0xff]
  %v3782 = vld [vmem:[%s3201 + $0x169] sm:$0xff]
  %v3783 = vld [vmem:[%s3201 + $0x171] sm:$0xff]
  %v3784 = vld [vmem:[%s3201 + $0x1b1] sm:$0xff]
  %v3785 = vld [vmem:[%s3201 + $0x1b9] sm:$0xff]
  %v3786 = vld [vmem:[%s3201 + $0x1c9] sm:$0xff]
  %v3787 = vld [vmem:[%s3201 + $0x1d1] sm:$0xff]
  %v3788 = vld [vmem:[%s3201 + $0x1e1] sm:$0xff]
  %v3789 = vld [vmem:[%s3201 + $0x1e9] sm:$0xff]
  %v3790 = vld [vmem:[%s3201 + $0x1f9] sm:$0xff]
  %v3791 = vld [vmem:[%s3201 + $0x201] sm:$0xff]
  %v3792 = vld [vmem:[%s3201 + $0x211] sm:$0xff]
  %v3793 = vld [vmem:[%s3201 + $0x219] sm:$0xff]
  %v3794 = vld [vmem:[%s3201 + $0x229] sm:$0xff]
  %v3795 = vld [vmem:[%s3201 + $0x231] sm:$0xff]
  %v3796 = vld [vmem:[%s3201 + $0x241] sm:$0xff]
  %v3797 = vld [vmem:[%s3201 + $0x249] sm:$0xff]
  %v3798 = vld [vmem:[%s3201 + $0x259] sm:$0xff]
  %v3799 = vld [vmem:[%s3201 + $0x261] sm:$0xff]
  %v3800 = vld [vmem:[%s3201 + $0x271] sm:$0xff]
  %v3801 = vld [vmem:[%s3201 + $0x279] sm:$0xff]
  %v3802 = vld [vmem:[%s3201 + $0x289] sm:$0xff]
  %v3803 = vld [vmem:[%s3201 + $0x291] sm:$0xff]
  %v3804 = vld [vmem:[%s3201 + $0x2a1] sm:$0xff]
  %v3805 = vld [vmem:[%s3201 + $0x2a9] sm:$0xff]
  %v3806 = vld [vmem:[%s3201 + $0x2b9] sm:$0xff]
  %v3807 = vld [vmem:[%s3201 + $0x2c1] sm:$0xff]
  %v3808 = vld [vmem:[%s3201 + $0x2d1] sm:$0xff]
  %v3809 = vld [vmem:[%s3201 + $0x2d9] sm:$0xff]
  %v3810 = vld [vmem:[%s3201 + $0x2e9] sm:$0xff]
  %v3811 = vld [vmem:[%s3201 + $0x2f1] sm:$0xff]
  %v3812 = vld [vmem:[%s3201 + $0x301] sm:$0xff]
  %v3813 = vld [vmem:[%s3201 + $0x309] sm:$0xff]
  %v3814 = vld [vmem:[%s3201 + $0x319] sm:$0xff]
  %v3815 = vld [vmem:[%s3201 + $0x321] sm:$0xff]
  %v3816 = vpack.c.bf16 %v3753, %v3752
  %v3817 = vpack.c.bf16 %v3755, %v3754
  %v3818 = vpack.c.bf16 %v3757, %v3756
  %v3819 = vpack.c.bf16 %v3759, %v3758
  %v3820 = vpack.c.bf16 %v3761, %v3760
  %v3821 = vpack.c.bf16 %v3763, %v3762
  %v3822 = vpack.c.bf16 %v3765, %v3764
  %v3823 = vpack.c.bf16 %v3767, %v3766
  %v3824 = vpack.c.bf16 %v3769, %v3768
  %v3825 = vpack.c.bf16 %v3771, %v3770
  %v3826 = vpack.c.bf16 %v3773, %v3772
  %v3827 = vpack.c.bf16 %v3775, %v3774
  %v3828 = vpack.c.bf16 %v3777, %v3776
  %v3829 = vpack.c.bf16 %v3779, %v3778
  %v3830 = vpack.c.bf16 %v3781, %v3780
  %v3831 = vpack.c.bf16 %v3783, %v3782
  %v3832 = vpack.c.bf16 %v3785, %v3784
  %v3833 = vpack.c.bf16 %v3787, %v3786
  %v3834 = vpack.c.bf16 %v3789, %v3788
  %v3835 = vpack.c.bf16 %v3791, %v3790
  %v3836 = vpack.c.bf16 %v3793, %v3792
  %v3837 = vpack.c.bf16 %v3795, %v3794
  %v3838 = vpack.c.bf16 %v3797, %v3796
  %v3839 = vpack.c.bf16 %v3799, %v3798
  %v3840 = vpack.c.bf16 %v3801, %v3800
  %v3841 = vpack.c.bf16 %v3803, %v3802
  %v3842 = vpack.c.bf16 %v3805, %v3804
  %v3843 = vpack.c.bf16 %v3807, %v3806
  %v3844 = vpack.c.bf16 %v3809, %v3808
  %v3845 = vpack.c.bf16 %v3811, %v3810
  %v3846 = vpack.c.bf16 %v3813, %v3812
  %v3847 = vpack.c.bf16 %v3815, %v3814
  %s3848 = scalar_lea.vmem %s1, 28
  %v3849 = vld [vmem:[%s3848] sm:$0xf]
  %v3851 = vsel %vm222, %v3816, 0
  %v3854 = vsel %vm222, %v3817, 0
  %v3857 = vsel %vm222, %v3818, 0
  %v3860 = vsel %vm222, %v3819, 0
  %v3863 = vsel %vm222, %v3820, 0
  %v3866 = vsel %vm222, %v3821, 0
  %v3869 = vsel %vm222, %v3822, 0
  %v3872 = vsel %vm222, %v3823, 0
  %v3875 = vsel %vm222, %v3824, 0
  %v3878 = vsel %vm222, %v3825, 0
  %v3881 = vsel %vm222, %v3826, 0
  %v3884 = vsel %vm222, %v3827, 0
  %v3887 = vsel %vm222, %v3828, 0
  %v3890 = vsel %vm222, %v3829, 0
  %v3893 = vsel %vm222, %v3830, 0
  %v3896 = vsel %vm222, %v3831, 0
  %v3899 = vsel %vm222, %v3832, 0
  %v3902 = vsel %vm222, %v3833, 0
  %v3905 = vsel %vm222, %v3834, 0
  %v3908 = vsel %vm222, %v3835, 0
  %v3911 = vsel %vm222, %v3836, 0
  %v3914 = vsel %vm222, %v3837, 0
  %v3917 = vsel %vm222, %v3838, 0
  %v3920 = vsel %vm222, %v3839, 0
  %v3923 = vsel %vm222, %v3840, 0
  %v3926 = vsel %vm222, %v3841, 0
  %v3929 = vsel %vm222, %v3842, 0
  %v3932 = vsel %vm222, %v3843, 0
  %v3935 = vsel %vm222, %v3844, 0
  %v3938 = vsel %vm222, %v3845, 0
  %v3941 = vsel %vm222, %v3846, 0
  %v3944 = vsel %vm222, %v3847, 0
  %v3947 = vsel %vm319, %v3849, 0
  %3949 = vmatprep.subr.bf16.mxu0 0
  %3950 = vmatpush1.bf16.msra.mxu0 %v3947
  %3951 = vmatprep.subr.bf16.mxu0 0
  %3952 = vmatpush1.bf16.msra.mxu0 0
  %3953 = vmatprep.subr.bf16.mxu0 0
  %3954 = vmatpush1.bf16.msra.mxu0 0
  %3955 = vmatprep.subr.bf16.mxu0 0
  %3956 = vmatpush1.bf16.msra.mxu0 0
  %3957 = vmatprep.subr.bf16.mxu0 0
  %3958 = vmatpush1.bf16.msra.mxu0 0
  %3959 = vmatprep.subr.bf16.mxu0 0
  %3960 = vmatpush1.bf16.msra.mxu0 0
  %3961 = vmatprep.subr.bf16.mxu0 0
  %3962 = vmatpush1.bf16.msra.mxu0 0
  %3963 = vmatprep.subr.bf16.mxu0 0
  %3964 = vmatpush1.bf16.msra.mxu0 0
  %3965 = vmatprep.subr.bf16.mxu0 0
  %3966 = vmatpush1.bf16.msra.mxu0 0
  %3967 = vmatprep.subr.bf16.mxu0 0
  %3968 = vmatpush1.bf16.msra.mxu0 0
  %3969 = vmatprep.subr.bf16.mxu0 0
  %3970 = vmatpush1.bf16.msra.mxu0 0
  %3971 = vmatprep.subr.bf16.mxu0 0
  %3972 = vmatpush1.bf16.msra.mxu0 0
  %3973 = vmatprep.subr.bf16.mxu0 0
  %3974 = vmatpush1.bf16.msra.mxu0 0
  %3975 = vmatprep.subr.bf16.mxu0 0
  %3976 = vmatpush1.bf16.msra.mxu0 0
  %3977 = vmatprep.subr.bf16.mxu0 0
  %3978 = vmatpush1.bf16.msra.mxu0 0
  %3979 = vmatprep.subr.bf16.mxu0 0
  %3980 = vmatpush1.bf16.msra.mxu0 0
  %3981 = vmatprep.mubr.bf16.mxu0 0
  %3982 = vmatmul.mubr.bf16.gmra.mrb[0].mxu0 %v3851
  %v3983 = vpop.f32.mrb[0].mxu0
  %v3984 = vadd.f32 0.0, %v3983
  %v3985 = vpop.f32.mrb[0].mxu0
  %v3986 = vpop.f32.mrb[0].mxu0
  %v3987 = vadd.f32 0.0, %v3986
  %v3988 = vpop.f32.mrb[0].mxu0
  %3989 = vmatprep.mubr.bf16.mxu0 0
  %3990 = vmatmul.mubr.bf16.gmra.mrb[0].mxu0 %v3854
  %v3991 = vpop.f32.mrb[0].mxu0
  %v3992 = vadd.f32 0.0, %v3991
  %v3993 = vpop.f32.mrb[0].mxu0
  %v3994 = vpop.f32.mrb[0].mxu0
  %v3995 = vadd.f32 0.0, %v3994
  %v3996 = vpop.f32.mrb[0].mxu0
  %3997 = vmatprep.mubr.bf16.mxu0 0
  %3998 = vmatmul.mubr.bf16.gmra.mrb[0].mxu0 %v3857
  %v3999 = vpop.f32.mrb[0].mxu0
  %v4000 = vadd.f32 0.0, %v3999
  %v4001 = vpop.f32.mrb[0].mxu0
  %v4002 = vpop.f32.mrb[0].mxu0
  %v4003 = vadd.f32 0.0, %v4002
  %v4004 = vpop.f32.mrb[0].mxu0
  %4005 = vmatprep.mubr.bf16.mxu0 0
  %4006 = vmatmul.mubr.bf16.gmra.mrb[0].mxu0 %v3860
  %v4007 = vpop.f32.mrb[0].mxu0
  %v4008 = vadd.f32 0.0, %v4007
  %v4009 = vpop.f32.mrb[0].mxu0
  %v4010 = vpop.f32.mrb[0].mxu0
  %v4011 = vadd.f32 0.0, %v4010
  %v4012 = vpop.f32.mrb[0].mxu0
  %4013 = vmatprep.mubr.bf16.mxu0 0
  %4014 = vmatmul.mubr.bf16.gmra.mrb[0].mxu0 %v3863
  %v4015 = vpop.f32.mrb[0].mxu0
  %v4016 = vadd.f32 0.0, %v4015
  %v4017 = vpop.f32.mrb[0].mxu0
  %v4018 = vpop.f32.mrb[0].mxu0
  %v4019 = vadd.f32 0.0, %v4018
  %v4020 = vpop.f32.mrb[0].mxu0
  %4021 = vmatprep.mubr.bf16.mxu0 0
  %4022 = vmatmul.mubr.bf16.gmra.mrb[0].mxu0 %v3866
  %v4023 = vpop.f32.mrb[0].mxu0
  %v4024 = vadd.f32 0.0, %v4023
  %v4025 = vpop.f32.mrb[0].mxu0
  %v4026 = vpop.f32.mrb[0].mxu0
  %v4027 = vadd.f32 0.0, %v4026
  %v4028 = vpop.f32.mrb[0].mxu0
  %4029 = vmatprep.mubr.bf16.mxu0 0
  %4030 = vmatmul.mubr.bf16.gmra.mrb[0].mxu0 %v3869
  %v4031 = vpop.f32.mrb[0].mxu0
  %v4032 = vadd.f32 0.0, %v4031
  %v4033 = vpop.f32.mrb[0].mxu0
  %v4034 = vpop.f32.mrb[0].mxu0
  %v4035 = vadd.f32 0.0, %v4034
  %v4036 = vpop.f32.mrb[0].mxu0
  %4037 = vmatprep.mubr.bf16.mxu0 0
  %4038 = vmatmul.mubr.bf16.gmra.mrb[0].mxu0 %v3872
  %v4039 = vpop.f32.mrb[0].mxu0
  %v4040 = vadd.f32 0.0, %v4039
  %v4041 = vpop.f32.mrb[0].mxu0
  %v4042 = vpop.f32.mrb[0].mxu0
  %v4043 = vadd.f32 0.0, %v4042
  %v4044 = vpop.f32.mrb[0].mxu0
  %4045 = vmatprep.mubr.bf16.mxu0 0
  %4046 = vmatmul.mubr.bf16.gmra.mrb[0].mxu0 %v3875
  %v4047 = vpop.f32.mrb[0].mxu0
  %v4048 = vadd.f32 0.0, %v4047
  %v4049 = vpop.f32.mrb[0].mxu0
  %v4050 = vpop.f32.mrb[0].mxu0
  %v4051 = vadd.f32 0.0, %v4050
  %v4052 = vpop.f32.mrb[0].mxu0
  %4053 = vmatprep.mubr.bf16.mxu0 0
  %4054 = vmatmul.mubr.bf16.gmra.mrb[0].mxu0 %v3878
  %v4055 = vpop.f32.mrb[0].mxu0
  %v4056 = vadd.f32 0.0, %v4055
  %v4057 = vpop.f32.mrb[0].mxu0
  %v4058 = vpop.f32.mrb[0].mxu0
  %v4059 = vadd.f32 0.0, %v4058
  %v4060 = vpop.f32.mrb[0].mxu0
  %4061 = vmatprep.mubr.bf16.mxu0 0
  %4062 = vmatmul.mubr.bf16.gmra.mrb[0].mxu0 %v3881
  %v4063 = vpop.f32.mrb[0].mxu0
  %v4064 = vadd.f32 0.0, %v4063
  %v4065 = vpop.f32.mrb[0].mxu0
  %v4066 = vpop.f32.mrb[0].mxu0
  %v4067 = vadd.f32 0.0, %v4066
  %v4068 = vpop.f32.mrb[0].mxu0
  %4069 = vmatprep.mubr.bf16.mxu0 0
  %4070 = vmatmul.mubr.bf16.gmra.mrb[0].mxu0 %v3884
  %v4071 = vpop.f32.mrb[0].mxu0
  %v4072 = vadd.f32 0.0, %v4071
  %v4073 = vpop.f32.mrb[0].mxu0
  %v4074 = vpop.f32.mrb[0].mxu0
  %v4075 = vadd.f32 0.0, %v4074
  %v4076 = vpop.f32.mrb[0].mxu0
  %4077 = vmatprep.mubr.bf16.mxu0 0
  %4078 = vmatmul.mubr.bf16.gmra.mrb[0].mxu0 %v3887
  %v4079 = vpop.f32.mrb[0].mxu0
  %v4080 = vadd.f32 0.0, %v4079
  %v4081 = vpop.f32.mrb[0].mxu0
  %v4082 = vpop.f32.mrb[0].mxu0
  %v4083 = vadd.f32 0.0, %v4082
  %v4084 = vpop.f32.mrb[0].mxu0
  %4085 = vmatprep.mubr.bf16.mxu0 0
  %4086 = vmatmul.mubr.bf16.gmra.mrb[0].mxu0 %v3890
  %v4087 = vpop.f32.mrb[0].mxu0
  %v4088 = vadd.f32 0.0, %v4087
  %v4089 = vpop.f32.mrb[0].mxu0
  %v4090 = vpop.f32.mrb[0].mxu0
  %v4091 = vadd.f32 0.0, %v4090
  %v4092 = vpop.f32.mrb[0].mxu0
  %4093 = vmatprep.mubr.bf16.mxu0 0
  %4094 = vmatmul.mubr.bf16.gmra.mrb[0].mxu0 %v3893
  %v4095 = vpop.f32.mrb[0].mxu0
  %v4096 = vadd.f32 0.0, %v4095
  %v4097 = vpop.f32.mrb[0].mxu0
  %v4098 = vpop.f32.mrb[0].mxu0
  %v4099 = vadd.f32 0.0, %v4098
  %v4100 = vpop.f32.mrb[0].mxu0
  %4101 = vmatprep.mubr.bf16.mxu0 0
  %4102 = vmatmul.mubr.bf16.gmra.mrb[0].mxu0 %v3896
  %v4103 = vpop.f32.mrb[0].mxu0
  %v4104 = vadd.f32 0.0, %v4103
  %v4105 = vpop.f32.mrb[0].mxu0
  %v4106 = vpop.f32.mrb[0].mxu0
  %v4107 = vadd.f32 0.0, %v4106
  %v4108 = vpop.f32.mrb[0].mxu0
  %4109 = vmatprep.mubr.bf16.mxu0 0
  %4110 = vmatmul.mubr.bf16.gmra.mrb[0].mxu0 %v3899
  %v4111 = vpop.f32.mrb[0].mxu0
  %v4112 = vadd.f32 0.0, %v4111
  %v4113 = vpop.f32.mrb[0].mxu0
  %v4114 = vpop.f32.mrb[0].mxu0
  %v4115 = vadd.f32 0.0, %v4114
  %v4116 = vpop.f32.mrb[0].mxu0
  %4117 = vmatprep.mubr.bf16.mxu0 0
  %4118 = vmatmul.mubr.bf16.gmra.mrb[0].mxu0 %v3902
  %v4119 = vpop.f32.mrb[0].mxu0
  %v4120 = vadd.f32 0.0, %v4119
  %v4121 = vpop.f32.mrb[0].mxu0
  %v4122 = vpop.f32.mrb[0].mxu0
  %v4123 = vadd.f32 0.0, %v4122
  %v4124 = vpop.f32.mrb[0].mxu0
  %4125 = vmatprep.mubr.bf16.mxu0 0
  %4126 = vmatmul.mubr.bf16.gmra.mrb[0].mxu0 %v3905
  %v4127 = vpop.f32.mrb[0].mxu0
  %v4128 = vadd.f32 0.0, %v4127
  %v4129 = vpop.f32.mrb[0].mxu0
  %v4130 = vpop.f32.mrb[0].mxu0
  %v4131 = vadd.f32 0.0, %v4130
  %v4132 = vpop.f32.mrb[0].mxu0
  %4133 = vmatprep.mubr.bf16.mxu0 0
  %4134 = vmatmul.mubr.bf16.gmra.mrb[0].mxu0 %v3908
  %v4135 = vpop.f32.mrb[0].mxu0
  %v4136 = vadd.f32 0.0, %v4135
  %v4137 = vpop.f32.mrb[0].mxu0
  %v4138 = vpop.f32.mrb[0].mxu0
  %v4139 = vadd.f32 0.0, %v4138
  %v4140 = vpop.f32.mrb[0].mxu0
  %4141 = vmatprep.mubr.bf16.mxu0 0
  %4142 = vmatmul.mubr.bf16.gmra.mrb[0].mxu0 %v3911
  %v4143 = vpop.f32.mrb[0].mxu0
  %v4144 = vadd.f32 0.0, %v4143
  %v4145 = vpop.f32.mrb[0].mxu0
  %v4146 = vpop.f32.mrb[0].mxu0
  %v4147 = vadd.f32 0.0, %v4146
  %v4148 = vpop.f32.mrb[0].mxu0
  %4149 = vmatprep.mubr.bf16.mxu0 0
  %4150 = vmatmul.mubr.bf16.gmra.mrb[0].mxu0 %v3914
  %v4151 = vpop.f32.mrb[0].mxu0
  %v4152 = vadd.f32 0.0, %v4151
  %v4153 = vpop.f32.mrb[0].mxu0
  %v4154 = vpop.f32.mrb[0].mxu0
  %v4155 = vadd.f32 0.0, %v4154
  %v4156 = vpop.f32.mrb[0].mxu0
  %4157 = vmatprep.mubr.bf16.mxu0 0
  %4158 = vmatmul.mubr.bf16.gmra.mrb[0].mxu0 %v3917
  %v4159 = vpop.f32.mrb[0].mxu0
  %v4160 = vadd.f32 0.0, %v4159
  %v4161 = vpop.f32.mrb[0].mxu0
  %v4162 = vpop.f32.mrb[0].mxu0
  %v4163 = vadd.f32 0.0, %v4162
  %v4164 = vpop.f32.mrb[0].mxu0
  %4165 = vmatprep.mubr.bf16.mxu0 0
  %4166 = vmatmul.mubr.bf16.gmra.mrb[0].mxu0 %v3920
  %v4167 = vpop.f32.mrb[0].mxu0
  %v4168 = vadd.f32 0.0, %v4167
  %v4169 = vpop.f32.mrb[0].mxu0
  %v4170 = vpop.f32.mrb[0].mxu0
  %v4171 = vadd.f32 0.0, %v4170
  %v4172 = vpop.f32.mrb[0].mxu0
  %4173 = vmatprep.mubr.bf16.mxu0 0
  %4174 = vmatmul.mubr.bf16.gmra.mrb[0].mxu0 %v3923
  %v4175 = vpop.f32.mrb[0].mxu0
  %v4176 = vadd.f32 0.0, %v4175
  %v4177 = vpop.f32.mrb[0].mxu0
  %v4178 = vpop.f32.mrb[0].mxu0
  %v4179 = vadd.f32 0.0, %v4178
  %v4180 = vpop.f32.mrb[0].mxu0
  %4181 = vmatprep.mubr.bf16.mxu0 0
  %4182 = vmatmul.mubr.bf16.gmra.mrb[0].mxu0 %v3926
  %v4183 = vpop.f32.mrb[0].mxu0
  %v4184 = vadd.f32 0.0, %v4183
  %v4185 = vpop.f32.mrb[0].mxu0
  %v4186 = vpop.f32.mrb[0].mxu0
  %v4187 = vadd.f32 0.0, %v4186
  %v4188 = vpop.f32.mrb[0].mxu0
  %4189 = vmatprep.mubr.bf16.mxu0 0
  %4190 = vmatmul.mubr.bf16.gmra.mrb[0].mxu0 %v3929
  %v4191 = vpop.f32.mrb[0].mxu0
  %v4192 = vadd.f32 0.0, %v4191
  %v4193 = vpop.f32.mrb[0].mxu0
  %v4194 = vpop.f32.mrb[0].mxu0
  %v4195 = vadd.f32 0.0, %v4194
  %v4196 = vpop.f32.mrb[0].mxu0
  %4197 = vmatprep.mubr.bf16.mxu0 0
  %4198 = vmatmul.mubr.bf16.gmra.mrb[0].mxu0 %v3932
  %v4199 = vpop.f32.mrb[0].mxu0
  %v4200 = vadd.f32 0.0, %v4199
  %v4201 = vpop.f32.mrb[0].mxu0
  %v4202 = vpop.f32.mrb[0].mxu0
  %v4203 = vadd.f32 0.0, %v4202
  %v4204 = vpop.f32.mrb[0].mxu0
  %4205 = vmatprep.mubr.bf16.mxu0 0
  %4206 = vmatmul.mubr.bf16.gmra.mrb[0].mxu0 %v3935
  %v4207 = vpop.f32.mrb[0].mxu0
  %v4208 = vadd.f32 0.0, %v4207
  %v4209 = vpop.f32.mrb[0].mxu0
  %v4210 = vpop.f32.mrb[0].mxu0
  %v4211 = vadd.f32 0.0, %v4210
  %v4212 = vpop.f32.mrb[0].mxu0
  %4213 = vmatprep.mubr.bf16.mxu0 0
  %4214 = vmatmul.mubr.bf16.gmra.mrb[0].mxu0 %v3938
  %v4215 = vpop.f32.mrb[0].mxu0
  %v4216 = vadd.f32 0.0, %v4215
  %v4217 = vpop.f32.mrb[0].mxu0
  %v4218 = vpop.f32.mrb[0].mxu0
  %v4219 = vadd.f32 0.0, %v4218
  %v4220 = vpop.f32.mrb[0].mxu0
  %4221 = vmatprep.mubr.bf16.mxu0 0
  %4222 = vmatmul.mubr.bf16.gmra.mrb[0].mxu0 %v3941
  %v4223 = vpop.f32.mrb[0].mxu0
  %v4224 = vadd.f32 0.0, %v4223
  %v4225 = vpop.f32.mrb[0].mxu0
  %v4226 = vpop.f32.mrb[0].mxu0
  %v4227 = vadd.f32 0.0, %v4226
  %v4228 = vpop.f32.mrb[0].mxu0
  %4229 = vmatprep.mubr.bf16.mxu0 0
  %4230 = vmatmul.mubr.bf16.gmra.mrb[0].mxu0 %v3944
  %v4231 = vpop.f32.mrb[0].mxu0
  %v4232 = vadd.f32 0.0, %v4231
  %v4233 = vpop.f32.mrb[0].mxu0
  %v4234 = vpop.f32.mrb[0].mxu0
  %v4235 = vadd.f32 0.0, %v4234
  %v4236 = vpop.f32.mrb[0].mxu0
  %4237 = vdwg.mxu0
  %v4238 = vadd.f32 %v3688, %v3984
  %v4239 = vadd.f32 %v3689, %v3987
  %v4240 = vadd.f32 %v3690, %v3992
  %v4241 = vadd.f32 %v3691, %v3995
  %v4242 = vadd.f32 %v3692, %v4000
  %v4243 = vadd.f32 %v3693, %v4003
  %v4244 = vadd.f32 %v3694, %v4008
  %v4245 = vadd.f32 %v3695, %v4011
  %v4246 = vadd.f32 %v3696, %v4016
  %v4247 = vadd.f32 %v3697, %v4019
  %v4248 = vadd.f32 %v3698, %v4024
  %v4249 = vadd.f32 %v3699, %v4027
  %v4250 = vadd.f32 %v3700, %v4032
  %v4251 = vadd.f32 %v3701, %v4035
  %v4252 = vadd.f32 %v3702, %v4040
  %v4253 = vadd.f32 %v3703, %v4043
  %v4254 = vadd.f32 %v3704, %v4048
  %v4255 = vadd.f32 %v3705, %v4051
  %v4256 = vadd.f32 %v3706, %v4056
  %v4257 = vadd.f32 %v3707, %v4059
  %v4258 = vadd.f32 %v3708, %v4064
  %v4259 = vadd.f32 %v3709, %v4067
  %v4260 = vadd.f32 %v3710, %v4072
  %v4261 = vadd.f32 %v3711, %v4075
  %v4262 = vadd.f32 %v3712, %v4080
  %v4263 = vadd.f32 %v3713, %v4083
  %v4264 = vadd.f32 %v3714, %v4088
  %v4265 = vadd.f32 %v3715, %v4091
  %v4266 = vadd.f32 %v3716, %v4096
  %v4267 = vadd.f32 %v3717, %v4099
  %v4268 = vadd.f32 %v3718, %v4104
  %v4269 = vadd.f32 %v3719, %v4107
  %v4270 = vadd.f32 %v3720, %v4112
  %v4271 = vadd.f32 %v3721, %v4115
  %v4272 = vadd.f32 %v3722, %v4120
  %v4273 = vadd.f32 %v3723, %v4123
  %v4274 = vadd.f32 %v3724, %v4128
  %v4275 = vadd.f32 %v3725, %v4131
  %v4276 = vadd.f32 %v3726, %v4136
  %v4277 = vadd.f32 %v3727, %v4139
  %v4278 = vadd.f32 %v3728, %v4144
  %v4279 = vadd.f32 %v3729, %v4147
  %v4280 = vadd.f32 %v3730, %v4152
  %v4281 = vadd.f32 %v3731, %v4155
  %v4282 = vadd.f32 %v3732, %v4160
  %v4283 = vadd.f32 %v3733, %v4163
  %v4284 = vadd.f32 %v3734, %v4168
  %v4285 = vadd.f32 %v3735, %v4171
  %v4286 = vadd.f32 %v3736, %v4176
  %v4287 = vadd.f32 %v3737, %v4179
  %v4288 = vadd.f32 %v3738, %v4184
  %v4289 = vadd.f32 %v3739, %v4187
  %v4290 = vadd.f32 %v3740, %v4192
  %v4291 = vadd.f32 %v3741, %v4195
  %v4292 = vadd.f32 %v3742, %v4200
  %v4293 = vadd.f32 %v3743, %v4203
  %v4294 = vadd.f32 %v3744, %v4208
  %v4295 = vadd.f32 %v3745, %v4211
  %v4296 = vadd.f32 %v3746, %v4216
  %v4297 = vadd.f32 %v3747, %v4219
  %v4298 = vadd.f32 %v3748, %v4224
  %v4299 = vadd.f32 %v3749, %v4227
  %v4300 = vadd.f32 %v3750, %v4232
  %v4301 = vadd.f32 %v3751, %v4235
  %v4302 = vld [vmem:[%s3201 + $0x2] sm:$0xff]
  %v4303 = vld [vmem:[%s3201 + $0xa] sm:$0xff]
  %v4304 = vld [vmem:[%s3201 + $0x1a] sm:$0xff]
  %v4305 = vld [vmem:[%s3201 + $0x22] sm:$0xff]
  %v4306 = vld [vmem:[%s3201 + $0x32] sm:$0xff]
  %v4307 = vld [vmem:[%s3201 + $0x3a] sm:$0xff]
  %v4308 = vld [vmem:[%s3201 + $0x4a] sm:$0xff]
  %v4309 = vld [vmem:[%s3201 + $0x52] sm:$0xff]
  %v4310 = vld [vmem:[%s3201 + $0x62] sm:$0xff]
  %v4311 = vld [vmem:[%s3201 + $0x6a] sm:$0xff]
  %v4312 = vld [vmem:[%s3201 + $0x7a] sm:$0xff]
  %v4313 = vld [vmem:[%s3201 + $0x82] sm:$0xff]
  %v4314 = vld [vmem:[%s3201 + $0x92] sm:$0xff]
  %v4315 = vld [vmem:[%s3201 + $0x9a] sm:$0xff]
  %v4316 = vld [vmem:[%s3201 + $0xaa] sm:$0xff]
  %v4317 = vld [vmem:[%s3201 + $0xb2] sm:$0xff]
  %v4318 = vld [vmem:[%s3201 + $0xc2] sm:$0xff]
  %v4319 = vld [vmem:[%s3201 + $0xca] sm:$0xff]
  %v4320 = vld [vmem:[%s3201 + $0xda] sm:$0xff]
  %v4321 = vld [vmem:[%s3201 + $0xe2] sm:$0xff]
  %v4322 = vld [vmem:[%s3201 + $0xf2] sm:$0xff]
  %v4323 = vld [vmem:[%s3201 + $0xfa] sm:$0xff]
  %v4324 = vld [vmem:[%s3201 + $0x10a] sm:$0xff]
  %v4325 = vld [vmem:[%s3201 + $0x112] sm:$0xff]
  %v4326 = vld [vmem:[%s3201 + $0x122] sm:$0xff]
  %v4327 = vld [vmem:[%s3201 + $0x12a] sm:$0xff]
  %v4328 = vld [vmem:[%s3201 + $0x13a] sm:$0xff]
  %v4329 = vld [vmem:[%s3201 + $0x142] sm:$0xff]
  %v4330 = vld [vmem:[%s3201 + $0x152] sm:$0xff]
  %v4331 = vld [vmem:[%s3201 + $0x15a] sm:$0xff]
  %v4332 = vld [vmem:[%s3201 + $0x16a] sm:$0xff]
  %v4333 = vld [vmem:[%s3201 + $0x172] sm:$0xff]
  %v4334 = vld [vmem:[%s3201 + $0x1b2] sm:$0xff]
  %v4335 = vld [vmem:[%s3201 + $0x1ba] sm:$0xff]
  %v4336 = vld [vmem:[%s3201 + $0x1ca] sm:$0xff]
  %v4337 = vld [vmem:[%s3201 + $0x1d2] sm:$0xff]
  %v4338 = vld [vmem:[%s3201 + $0x1e2] sm:$0xff]
  %v4339 = vld [vmem:[%s3201 + $0x1ea] sm:$0xff]
  %v4340 = vld [vmem:[%s3201 + $0x1fa] sm:$0xff]
  %v4341 = vld [vmem:[%s3201 + $0x202] sm:$0xff]
  %v4342 = vld [vmem:[%s3201 + $0x212] sm:$0xff]
  %v4343 = vld [vmem:[%s3201 + $0x21a] sm:$0xff]
  %v4344 = vld [vmem:[%s3201 + $0x22a] sm:$0xff]
  %v4345 = vld [vmem:[%s3201 + $0x232] sm:$0xff]
  %v4346 = vld [vmem:[%s3201 + $0x242] sm:$0xff]
  %v4347 = vld [vmem:[%s3201 + $0x24a] sm:$0xff]
  %v4348 = vld [vmem:[%s3201 + $0x25a] sm:$0xff]
  %v4349 = vld [vmem:[%s3201 + $0x262] sm:$0xff]
  %v4350 = vld [vmem:[%s3201 + $0x272] sm:$0xff]
  %v4351 = vld [vmem:[%s3201 + $0x27a] sm:$0xff]
  %v4352 = vld [vmem:[%s3201 + $0x28a] sm:$0xff]
  %v4353 = vld [vmem:[%s3201 + $0x292] sm:$0xff]
  %v4354 = vld [vmem:[%s3201 + $0x2a2] sm:$0xff]
  %v4355 = vld [vmem:[%s3201 + $0x2aa] sm:$0xff]
  %v4356 = vld [vmem:[%s3201 + $0x2ba] sm:$0xff]
  %v4357 = vld [vmem:[%s3201 + $0x2c2] sm:$0xff]
  %v4358 = vld [vmem:[%s3201 + $0x2d2] sm:$0xff]
  %v4359 = vld [vmem:[%s3201 + $0x2da] sm:$0xff]
  %v4360 = vld [vmem:[%s3201 + $0x2ea] sm:$0xff]
  %v4361 = vld [vmem:[%s3201 + $0x2f2] sm:$0xff]
  %v4362 = vld [vmem:[%s3201 + $0x302] sm:$0xff]
  %v4363 = vld [vmem:[%s3201 + $0x30a] sm:$0xff]
  %v4364 = vld [vmem:[%s3201 + $0x31a] sm:$0xff]
  %v4365 = vld [vmem:[%s3201 + $0x322] sm:$0xff]
  %v4366 = vpack.c.bf16 %v4303, %v4302
  %v4367 = vpack.c.bf16 %v4305, %v4304
  %v4368 = vpack.c.bf16 %v4307, %v4306
  %v4369 = vpack.c.bf16 %v4309, %v4308
  %v4370 = vpack.c.bf16 %v4311, %v4310
  %v4371 = vpack.c.bf16 %v4313, %v4312
  %v4372 = vpack.c.bf16 %v4315, %v4314
  %v4373 = vpack.c.bf16 %v4317, %v4316
  %v4374 = vpack.c.bf16 %v4319, %v4318
  %v4375 = vpack.c.bf16 %v4321, %v4320
  %v4376 = vpack.c.bf16 %v4323, %v4322
  %v4377 = vpack.c.bf16 %v4325, %v4324
  %v4378 = vpack.c.bf16 %v4327, %v4326
  %v4379 = vpack.c.bf16 %v4329, %v4328
  %v4380 = vpack.c.bf16 %v4331, %v4330
  %v4381 = vpack.c.bf16 %v4333, %v4332
  %v4382 = vpack.c.bf16 %v4335, %v4334
  %v4383 = vpack.c.bf16 %v4337, %v4336
  %v4384 = vpack.c.bf16 %v4339, %v4338
  %v4385 = vpack.c.bf16 %v4341, %v4340
  %v4386 = vpack.c.bf16 %v4343, %v4342
  %v4387 = vpack.c.bf16 %v4345, %v4344
  %v4388 = vpack.c.bf16 %v4347, %v4346
  %v4389 = vpack.c.bf16 %v4349, %v4348
  %v4390 = vpack.c.bf16 %v4351, %v4350
  %v4391 = vpack.c.bf16 %v4353, %v4352
  %v4392 = vpack.c.bf16 %v4355, %v4354
  %v4393 = vpack.c.bf16 %v4357, %v4356
  %v4394 = vpack.c.bf16 %v4359, %v4358
  %v4395 = vpack.c.bf16 %v4361, %v4360
  %v4396 = vpack.c.bf16 %v4363, %v4362
  %v4397 = vpack.c.bf16 %v4365, %v4364
  %s4398 = scalar_lea.vmem %s1, 32
  %v4399 = vld [vmem:[%s4398] sm:$0xf]
  %v4401 = vsel %vm222, %v4366, 0
  %v4404 = vsel %vm222, %v4367, 0
  %v4407 = vsel %vm222, %v4368, 0
  %v4410 = vsel %vm222, %v4369, 0
  %v4413 = vsel %vm222, %v4370, 0
  %v4416 = vsel %vm222, %v4371, 0
  %v4419 = vsel %vm222, %v4372, 0
  %v4422 = vsel %vm222, %v4373, 0
  %v4425 = vsel %vm222, %v4374, 0
  %v4428 = vsel %vm222, %v4375, 0
  %v4431 = vsel %vm222, %v4376, 0
  %v4434 = vsel %vm222, %v4377, 0
  %v4437 = vsel %vm222, %v4378, 0
  %v4440 = vsel %vm222, %v4379, 0
  %v4443 = vsel %vm222, %v4380, 0
  %v4446 = vsel %vm222, %v4381, 0
  %v4449 = vsel %vm222, %v4382, 0
  %v4452 = vsel %vm222, %v4383, 0
  %v4455 = vsel %vm222, %v4384, 0
  %v4458 = vsel %vm222, %v4385, 0
  %v4461 = vsel %vm222, %v4386, 0
  %v4464 = vsel %vm222, %v4387, 0
  %v4467 = vsel %vm222, %v4388, 0
  %v4470 = vsel %vm222, %v4389, 0
  %v4473 = vsel %vm222, %v4390, 0
  %v4476 = vsel %vm222, %v4391, 0
  %v4479 = vsel %vm222, %v4392, 0
  %v4482 = vsel %vm222, %v4393, 0
  %v4485 = vsel %vm222, %v4394, 0
  %v4488 = vsel %vm222, %v4395, 0
  %v4491 = vsel %vm222, %v4396, 0
  %v4494 = vsel %vm222, %v4397, 0
  %v4497 = vsel %vm319, %v4399, 0
  %4499 = vmatprep.subr.bf16.mxu0 0
  %4500 = vmatpush1.bf16.msra.mxu0 %v4497
  %4501 = vmatprep.subr.bf16.mxu0 0
  %4502 = vmatpush1.bf16.msra.mxu0 0
  %4503 = vmatprep.subr.bf16.mxu0 0
  %4504 = vmatpush1.bf16.msra.mxu0 0
  %4505 = vmatprep.subr.bf16.mxu0 0
  %4506 = vmatpush1.bf16.msra.mxu0 0
  %4507 = vmatprep.subr.bf16.mxu0 0
  %4508 = vmatpush1.bf16.msra.mxu0 0
  %4509 = vmatprep.subr.bf16.mxu0 0
  %4510 = vmatpush1.bf16.msra.mxu0 0
  %4511 = vmatprep.subr.bf16.mxu0 0
  %4512 = vmatpush1.bf16.msra.mxu0 0
  %4513 = vmatprep.subr.bf16.mxu0 0
  %4514 = vmatpush1.bf16.msra.mxu0 0
  %4515 = vmatprep.subr.bf16.mxu0 0
  %4516 = vmatpush1.bf16.msra.mxu0 0
  %4517 = vmatprep.subr.bf16.mxu0 0
  %4518 = vmatpush1.bf16.msra.mxu0 0
  %4519 = vmatprep.subr.bf16.mxu0 0
  %4520 = vmatpush1.bf16.msra.mxu0 0
  %4521 = vmatprep.subr.bf16.mxu0 0
  %4522 = vmatpush1.bf16.msra.mxu0 0
  %4523 = vmatprep.subr.bf16.mxu0 0
  %4524 = vmatpush1.bf16.msra.mxu0 0
  %4525 = vmatprep.subr.bf16.mxu0 0
  %4526 = vmatpush1.bf16.msra.mxu0 0
  %4527 = vmatprep.subr.bf16.mxu0 0
  %4528 = vmatpush1.bf16.msra.mxu0 0
  %4529 = vmatprep.subr.bf16.mxu0 0
  %4530 = vmatpush1.bf16.msra.mxu0 0
  %4531 = vmatprep.mubr.bf16.mxu0 0
  %4532 = vmatmul.mubr.bf16.gmra.mrb[0].mxu0 %v4401
  %v4533 = vpop.f32.mrb[0].mxu0
  %v4534 = vadd.f32 0.0, %v4533
  %v4535 = vpop.f32.mrb[0].mxu0
  %v4536 = vpop.f32.mrb[0].mxu0
  %v4537 = vadd.f32 0.0, %v4536
  %v4538 = vpop.f32.mrb[0].mxu0
  %4539 = vmatprep.mubr.bf16.mxu0 0
  %4540 = vmatmul.mubr.bf16.gmra.mrb[0].mxu0 %v4404
  %v4541 = vpop.f32.mrb[0].mxu0
  %v4542 = vadd.f32 0.0, %v4541
  %v4543 = vpop.f32.mrb[0].mxu0
  %v4544 = vpop.f32.mrb[0].mxu0
  %v4545 = vadd.f32 0.0, %v4544
  %v4546 = vpop.f32.mrb[0].mxu0
  %4547 = vmatprep.mubr.bf16.mxu0 0
  %4548 = vmatmul.mubr.bf16.gmra.mrb[0].mxu0 %v4407
  %v4549 = vpop.f32.mrb[0].mxu0
  %v4550 = vadd.f32 0.0, %v4549
  %v4551 = vpop.f32.mrb[0].mxu0
  %v4552 = vpop.f32.mrb[0].mxu0
  %v4553 = vadd.f32 0.0, %v4552
  %v4554 = vpop.f32.mrb[0].mxu0
  %4555 = vmatprep.mubr.bf16.mxu0 0
  %4556 = vmatmul.mubr.bf16.gmra.mrb[0].mxu0 %v4410
  %v4557 = vpop.f32.mrb[0].mxu0
  %v4558 = vadd.f32 0.0, %v4557
  %v4559 = vpop.f32.mrb[0].mxu0
  %v4560 = vpop.f32.mrb[0].mxu0
  %v4561 = vadd.f32 0.0, %v4560
  %v4562 = vpop.f32.mrb[0].mxu0
  %4563 = vmatprep.mubr.bf16.mxu0 0
  %4564 = vmatmul.mubr.bf16.gmra.mrb[0].mxu0 %v4413
  %v4565 = vpop.f32.mrb[0].mxu0
  %v4566 = vadd.f32 0.0, %v4565
  %v4567 = vpop.f32.mrb[0].mxu0
  %v4568 = vpop.f32.mrb[0].mxu0
  %v4569 = vadd.f32 0.0, %v4568
  %v4570 = vpop.f32.mrb[0].mxu0
  %4571 = vmatprep.mubr.bf16.mxu0 0
  %4572 = vmatmul.mubr.bf16.gmra.mrb[0].mxu0 %v4416
  %v4573 = vpop.f32.mrb[0].mxu0
  %v4574 = vadd.f32 0.0, %v4573
  %v4575 = vpop.f32.mrb[0].mxu0
  %v4576 = vpop.f32.mrb[0].mxu0
  %v4577 = vadd.f32 0.0, %v4576
  %v4578 = vpop.f32.mrb[0].mxu0
  %4579 = vmatprep.mubr.bf16.mxu0 0
  %4580 = vmatmul.mubr.bf16.gmra.mrb[0].mxu0 %v4419
  %v4581 = vpop.f32.mrb[0].mxu0
  %v4582 = vadd.f32 0.0, %v4581
  %v4583 = vpop.f32.mrb[0].mxu0
  %v4584 = vpop.f32.mrb[0].mxu0
  %v4585 = vadd.f32 0.0, %v4584
  %v4586 = vpop.f32.mrb[0].mxu0
  %4587 = vmatprep.mubr.bf16.mxu0 0
  %4588 = vmatmul.mubr.bf16.gmra.mrb[0].mxu0 %v4422
  %v4589 = vpop.f32.mrb[0].mxu0
  %v4590 = vadd.f32 0.0, %v4589
  %v4591 = vpop.f32.mrb[0].mxu0
  %v4592 = vpop.f32.mrb[0].mxu0
  %v4593 = vadd.f32 0.0, %v4592
  %v4594 = vpop.f32.mrb[0].mxu0
  %4595 = vmatprep.mubr.bf16.mxu0 0
  %4596 = vmatmul.mubr.bf16.gmra.mrb[0].mxu0 %v4425
  %v4597 = vpop.f32.mrb[0].mxu0
  %v4598 = vadd.f32 0.0, %v4597
  %v4599 = vpop.f32.mrb[0].mxu0
  %v4600 = vpop.f32.mrb[0].mxu0
  %v4601 = vadd.f32 0.0, %v4600
  %v4602 = vpop.f32.mrb[0].mxu0
  %4603 = vmatprep.mubr.bf16.mxu0 0
  %4604 = vmatmul.mubr.bf16.gmra.mrb[0].mxu0 %v4428
  %v4605 = vpop.f32.mrb[0].mxu0
  %v4606 = vadd.f32 0.0, %v4605
  %v4607 = vpop.f32.mrb[0].mxu0
  %v4608 = vpop.f32.mrb[0].mxu0
  %v4609 = vadd.f32 0.0, %v4608
  %v4610 = vpop.f32.mrb[0].mxu0
  %4611 = vmatprep.mubr.bf16.mxu0 0
  %4612 = vmatmul.mubr.bf16.gmra.mrb[0].mxu0 %v4431
  %v4613 = vpop.f32.mrb[0].mxu0
  %v4614 = vadd.f32 0.0, %v4613
  %v4615 = vpop.f32.mrb[0].mxu0
  %v4616 = vpop.f32.mrb[0].mxu0
  %v4617 = vadd.f32 0.0, %v4616
  %v4618 = vpop.f32.mrb[0].mxu0
  %4619 = vmatprep.mubr.bf16.mxu0 0
  %4620 = vmatmul.mubr.bf16.gmra.mrb[0].mxu0 %v4434
  %v4621 = vpop.f32.mrb[0].mxu0
  %v4622 = vadd.f32 0.0, %v4621
  %v4623 = vpop.f32.mrb[0].mxu0
  %v4624 = vpop.f32.mrb[0].mxu0
  %v4625 = vadd.f32 0.0, %v4624
  %v4626 = vpop.f32.mrb[0].mxu0
  %4627 = vmatprep.mubr.bf16.mxu0 0
  %4628 = vmatmul.mubr.bf16.gmra.mrb[0].mxu0 %v4437
  %v4629 = vpop.f32.mrb[0].mxu0
  %v4630 = vadd.f32 0.0, %v4629
  %v4631 = vpop.f32.mrb[0].mxu0
  %v4632 = vpop.f32.mrb[0].mxu0
  %v4633 = vadd.f32 0.0, %v4632
  %v4634 = vpop.f32.mrb[0].mxu0
  %4635 = vmatprep.mubr.bf16.mxu0 0
  %4636 = vmatmul.mubr.bf16.gmra.mrb[0].mxu0 %v4440
  %v4637 = vpop.f32.mrb[0].mxu0
  %v4638 = vadd.f32 0.0, %v4637
  %v4639 = vpop.f32.mrb[0].mxu0
  %v4640 = vpop.f32.mrb[0].mxu0
  %v4641 = vadd.f32 0.0, %v4640
  %v4642 = vpop.f32.mrb[0].mxu0
  %4643 = vmatprep.mubr.bf16.mxu0 0
  %4644 = vmatmul.mubr.bf16.gmra.mrb[0].mxu0 %v4443
  %v4645 = vpop.f32.mrb[0].mxu0
  %v4646 = vadd.f32 0.0, %v4645
  %v4647 = vpop.f32.mrb[0].mxu0
  %v4648 = vpop.f32.mrb[0].mxu0
  %v4649 = vadd.f32 0.0, %v4648
  %v4650 = vpop.f32.mrb[0].mxu0
  %4651 = vmatprep.mubr.bf16.mxu0 0
  %4652 = vmatmul.mubr.bf16.gmra.mrb[0].mxu0 %v4446
  %v4653 = vpop.f32.mrb[0].mxu0
  %v4654 = vadd.f32 0.0, %v4653
  %v4655 = vpop.f32.mrb[0].mxu0
  %v4656 = vpop.f32.mrb[0].mxu0
  %v4657 = vadd.f32 0.0, %v4656
  %v4658 = vpop.f32.mrb[0].mxu0
  %4659 = vmatprep.mubr.bf16.mxu0 0
  %4660 = vmatmul.mubr.bf16.gmra.mrb[0].mxu0 %v4449
  %v4661 = vpop.f32.mrb[0].mxu0
  %v4662 = vadd.f32 0.0, %v4661
  %v4663 = vpop.f32.mrb[0].mxu0
  %v4664 = vpop.f32.mrb[0].mxu0
  %v4665 = vadd.f32 0.0, %v4664
  %v4666 = vpop.f32.mrb[0].mxu0
  %4667 = vmatprep.mubr.bf16.mxu0 0
  %4668 = vmatmul.mubr.bf16.gmra.mrb[0].mxu0 %v4452
  %v4669 = vpop.f32.mrb[0].mxu0
  %v4670 = vadd.f32 0.0, %v4669
  %v4671 = vpop.f32.mrb[0].mxu0
  %v4672 = vpop.f32.mrb[0].mxu0
  %v4673 = vadd.f32 0.0, %v4672
  %v4674 = vpop.f32.mrb[0].mxu0
  %4675 = vmatprep.mubr.bf16.mxu0 0
  %4676 = vmatmul.mubr.bf16.gmra.mrb[0].mxu0 %v4455
  %v4677 = vpop.f32.mrb[0].mxu0
  %v4678 = vadd.f32 0.0, %v4677
  %v4679 = vpop.f32.mrb[0].mxu0
  %v4680 = vpop.f32.mrb[0].mxu0
  %v4681 = vadd.f32 0.0, %v4680
  %v4682 = vpop.f32.mrb[0].mxu0
  %4683 = vmatprep.mubr.bf16.mxu0 0
  %4684 = vmatmul.mubr.bf16.gmra.mrb[0].mxu0 %v4458
  %v4685 = vpop.f32.mrb[0].mxu0
  %v4686 = vadd.f32 0.0, %v4685
  %v4687 = vpop.f32.mrb[0].mxu0
  %v4688 = vpop.f32.mrb[0].mxu0
  %v4689 = vadd.f32 0.0, %v4688
  %v4690 = vpop.f32.mrb[0].mxu0
  %4691 = vmatprep.mubr.bf16.mxu0 0
  %4692 = vmatmul.mubr.bf16.gmra.mrb[0].mxu0 %v4461
  %v4693 = vpop.f32.mrb[0].mxu0
  %v4694 = vadd.f32 0.0, %v4693
  %v4695 = vpop.f32.mrb[0].mxu0
  %v4696 = vpop.f32.mrb[0].mxu0
  %v4697 = vadd.f32 0.0, %v4696
  %v4698 = vpop.f32.mrb[0].mxu0
  %4699 = vmatprep.mubr.bf16.mxu0 0
  %4700 = vmatmul.mubr.bf16.gmra.mrb[0].mxu0 %v4464
  %v4701 = vpop.f32.mrb[0].mxu0
  %v4702 = vadd.f32 0.0, %v4701
  %v4703 = vpop.f32.mrb[0].mxu0
  %v4704 = vpop.f32.mrb[0].mxu0
  %v4705 = vadd.f32 0.0, %v4704
  %v4706 = vpop.f32.mrb[0].mxu0
  %4707 = vmatprep.mubr.bf16.mxu0 0
  %4708 = vmatmul.mubr.bf16.gmra.mrb[0].mxu0 %v4467
  %v4709 = vpop.f32.mrb[0].mxu0
  %v4710 = vadd.f32 0.0, %v4709
  %v4711 = vpop.f32.mrb[0].mxu0
  %v4712 = vpop.f32.mrb[0].mxu0
  %v4713 = vadd.f32 0.0, %v4712
  %v4714 = vpop.f32.mrb[0].mxu0
  %4715 = vmatprep.mubr.bf16.mxu0 0
  %4716 = vmatmul.mubr.bf16.gmra.mrb[0].mxu0 %v4470
  %v4717 = vpop.f32.mrb[0].mxu0
  %v4718 = vadd.f32 0.0, %v4717
  %v4719 = vpop.f32.mrb[0].mxu0
  %v4720 = vpop.f32.mrb[0].mxu0
  %v4721 = vadd.f32 0.0, %v4720
  %v4722 = vpop.f32.mrb[0].mxu0
  %4723 = vmatprep.mubr.bf16.mxu0 0
  %4724 = vmatmul.mubr.bf16.gmra.mrb[0].mxu0 %v4473
  %v4725 = vpop.f32.mrb[0].mxu0
  %v4726 = vadd.f32 0.0, %v4725
  %v4727 = vpop.f32.mrb[0].mxu0
  %v4728 = vpop.f32.mrb[0].mxu0
  %v4729 = vadd.f32 0.0, %v4728
  %v4730 = vpop.f32.mrb[0].mxu0
  %4731 = vmatprep.mubr.bf16.mxu0 0
  %4732 = vmatmul.mubr.bf16.gmra.mrb[0].mxu0 %v4476
  %v4733 = vpop.f32.mrb[0].mxu0
  %v4734 = vadd.f32 0.0, %v4733
  %v4735 = vpop.f32.mrb[0].mxu0
  %v4736 = vpop.f32.mrb[0].mxu0
  %v4737 = vadd.f32 0.0, %v4736
  %v4738 = vpop.f32.mrb[0].mxu0
  %4739 = vmatprep.mubr.bf16.mxu0 0
  %4740 = vmatmul.mubr.bf16.gmra.mrb[0].mxu0 %v4479
  %v4741 = vpop.f32.mrb[0].mxu0
  %v4742 = vadd.f32 0.0, %v4741
  %v4743 = vpop.f32.mrb[0].mxu0
  %v4744 = vpop.f32.mrb[0].mxu0
  %v4745 = vadd.f32 0.0, %v4744
  %v4746 = vpop.f32.mrb[0].mxu0
  %4747 = vmatprep.mubr.bf16.mxu0 0
  %4748 = vmatmul.mubr.bf16.gmra.mrb[0].mxu0 %v4482
  %v4749 = vpop.f32.mrb[0].mxu0
  %v4750 = vadd.f32 0.0, %v4749
  %v4751 = vpop.f32.mrb[0].mxu0
  %v4752 = vpop.f32.mrb[0].mxu0
  %v4753 = vadd.f32 0.0, %v4752
  %v4754 = vpop.f32.mrb[0].mxu0
  %4755 = vmatprep.mubr.bf16.mxu0 0
  %4756 = vmatmul.mubr.bf16.gmra.mrb[0].mxu0 %v4485
  %v4757 = vpop.f32.mrb[0].mxu0
  %v4758 = vadd.f32 0.0, %v4757
  %v4759 = vpop.f32.mrb[0].mxu0
  %v4760 = vpop.f32.mrb[0].mxu0
  %v4761 = vadd.f32 0.0, %v4760
  %v4762 = vpop.f32.mrb[0].mxu0
  %4763 = vmatprep.mubr.bf16.mxu0 0
  %4764 = vmatmul.mubr.bf16.gmra.mrb[0].mxu0 %v4488
  %v4765 = vpop.f32.mrb[0].mxu0
  %v4766 = vadd.f32 0.0, %v4765
  %v4767 = vpop.f32.mrb[0].mxu0
  %v4768 = vpop.f32.mrb[0].mxu0
  %v4769 = vadd.f32 0.0, %v4768
  %v4770 = vpop.f32.mrb[0].mxu0
  %4771 = vmatprep.mubr.bf16.mxu0 0
  %4772 = vmatmul.mubr.bf16.gmra.mrb[0].mxu0 %v4491
  %v4773 = vpop.f32.mrb[0].mxu0
  %v4774 = vadd.f32 0.0, %v4773
  %v4775 = vpop.f32.mrb[0].mxu0
  %v4776 = vpop.f32.mrb[0].mxu0
  %v4777 = vadd.f32 0.0, %v4776
  %v4778 = vpop.f32.mrb[0].mxu0
  %4779 = vmatprep.mubr.bf16.mxu0 0
  %4780 = vmatmul.mubr.bf16.gmra.mrb[0].mxu0 %v4494
  %v4781 = vpop.f32.mrb[0].mxu0
  %v4782 = vadd.f32 0.0, %v4781
  %v4783 = vpop.f32.mrb[0].mxu0
  %v4784 = vpop.f32.mrb[0].mxu0
  %v4785 = vadd.f32 0.0, %v4784
  %v4786 = vpop.f32.mrb[0].mxu0
  %4787 = vdwg.mxu0
  %v4788 = vadd.f32 %v4238, %v4534
  %v4789 = vadd.f32 %v4239, %v4537
  %v4790 = vadd.f32 %v4240, %v4542
  %v4791 = vadd.f32 %v4241, %v4545
  %v4792 = vadd.f32 %v4242, %v4550
  %v4793 = vadd.f32 %v4243, %v4553
  %v4794 = vadd.f32 %v4244, %v4558
  %v4795 = vadd.f32 %v4245, %v4561
  %v4796 = vadd.f32 %v4246, %v4566
  %v4797 = vadd.f32 %v4247, %v4569
  %v4798 = vadd.f32 %v4248, %v4574
  %v4799 = vadd.f32 %v4249, %v4577
  %v4800 = vadd.f32 %v4250, %v4582
  %v4801 = vadd.f32 %v4251, %v4585
  %v4802 = vadd.f32 %v4252, %v4590
  %v4803 = vadd.f32 %v4253, %v4593
  %v4804 = vadd.f32 %v4254, %v4598
  %v4805 = vadd.f32 %v4255, %v4601
  %v4806 = vadd.f32 %v4256, %v4606
  %v4807 = vadd.f32 %v4257, %v4609
  %v4808 = vadd.f32 %v4258, %v4614
  %v4809 = vadd.f32 %v4259, %v4617
  %v4810 = vadd.f32 %v4260, %v4622
  %v4811 = vadd.f32 %v4261, %v4625
  %v4812 = vadd.f32 %v4262, %v4630
  %v4813 = vadd.f32 %v4263, %v4633
  %v4814 = vadd.f32 %v4264, %v4638
  %v4815 = vadd.f32 %v4265, %v4641
  %v4816 = vadd.f32 %v4266, %v4646
  %v4817 = vadd.f32 %v4267, %v4649
  %v4818 = vadd.f32 %v4268, %v4654
  %v4819 = vadd.f32 %v4269, %v4657
  %v4820 = vadd.f32 %v4270, %v4662
  %v4821 = vadd.f32 %v4271, %v4665
  %v4822 = vadd.f32 %v4272, %v4670
  %v4823 = vadd.f32 %v4273, %v4673
  %v4824 = vadd.f32 %v4274, %v4678
  %v4825 = vadd.f32 %v4275, %v4681
  %v4826 = vadd.f32 %v4276, %v4686
  %v4827 = vadd.f32 %v4277, %v4689
  %v4828 = vadd.f32 %v4278, %v4694
  %v4829 = vadd.f32 %v4279, %v4697
  %v4830 = vadd.f32 %v4280, %v4702
  %v4831 = vadd.f32 %v4281, %v4705
  %v4832 = vadd.f32 %v4282, %v4710
  %v4833 = vadd.f32 %v4283, %v4713
  %v4834 = vadd.f32 %v4284, %v4718
  %v4835 = vadd.f32 %v4285, %v4721
  %v4836 = vadd.f32 %v4286, %v4726
  %v4837 = vadd.f32 %v4287, %v4729
  %v4838 = vadd.f32 %v4288, %v4734
  %v4839 = vadd.f32 %v4289, %v4737
  %v4840 = vadd.f32 %v4290, %v4742
  %v4841 = vadd.f32 %v4291, %v4745
  %v4842 = vadd.f32 %v4292, %v4750
  %v4843 = vadd.f32 %v4293, %v4753
  %v4844 = vadd.f32 %v4294, %v4758
  %v4845 = vadd.f32 %v4295, %v4761
  %v4846 = vadd.f32 %v4296, %v4766
  %v4847 = vadd.f32 %v4297, %v4769
  %v4848 = vadd.f32 %v4298, %v4774
  %v4849 = vadd.f32 %v4299, %v4777
  %v4850 = vadd.f32 %v4300, %v4782
  %v4851 = vadd.f32 %v4301, %v4785
  %v4852 = vld [vmem:[%s2] sm:$0x1]
  %v4853 = vld [vmem:[%s3] sm:$0x1]
  %vm4854 = vcmask 523264
  %v4855 = vsel %vm4854, %v4788, 0.0
  %v4856 = vsel %vm4854, %v4789, 0.0
  %v4857 = vadd.f32 %v4855, %v4856
  %v4858 = vsel %vm4854, %v4790, 0.0
  %v4859 = vadd.f32 %v4857, %v4858
  %v4860 = vsel %vm4854, %v4791, 0.0
  %v4861 = vadd.f32 %v4859, %v4860
  %v4862 = vsel %vm4854, %v4792, 0.0
  %v4863 = vadd.f32 %v4861, %v4862
  %v4864 = vsel %vm4854, %v4793, 0.0
  %v4865 = vadd.f32 %v4863, %v4864
  %v4866 = vsel %vm4854, %v4794, 0.0
  %v4867 = vadd.f32 %v4865, %v4866
  %v4868 = vsel %vm4854, %v4795, 0.0
  %v4869 = vadd.f32 %v4867, %v4868
  %v4870 = vsel %vm4854, %v4796, 0.0
  %v4871 = vadd.f32 %v4869, %v4870
  %v4872 = vsel %vm4854, %v4797, 0.0
  %v4873 = vadd.f32 %v4871, %v4872
  %v4874 = vsel %vm4854, %v4798, 0.0
  %v4875 = vadd.f32 %v4873, %v4874
  %v4876 = vsel %vm4854, %v4799, 0.0
  %v4877 = vadd.f32 %v4875, %v4876
  %v4878 = vsel %vm4854, %v4800, 0.0
  %v4879 = vadd.f32 %v4877, %v4878
  %v4880 = vsel %vm4854, %v4801, 0.0
  %v4881 = vadd.f32 %v4879, %v4880
  %v4882 = vsel %vm4854, %v4802, 0.0
  %v4883 = vadd.f32 %v4881, %v4882
  %v4884 = vsel %vm4854, %v4803, 0.0
  %v4885 = vadd.f32 %v4883, %v4884
  %v4886 = vsel %vm4854, %v4804, 0.0
  %v4887 = vadd.f32 %v4885, %v4886
  %v4888 = vsel %vm4854, %v4805, 0.0
  %v4889 = vadd.f32 %v4887, %v4888
  %v4890 = vsel %vm4854, %v4806, 0.0
  %v4891 = vadd.f32 %v4889, %v4890
  %v4892 = vsel %vm4854, %v4807, 0.0
  %v4893 = vadd.f32 %v4891, %v4892
  %v4894 = vsel %vm4854, %v4808, 0.0
  %v4895 = vadd.f32 %v4893, %v4894
  %v4896 = vsel %vm4854, %v4809, 0.0
  %v4897 = vadd.f32 %v4895, %v4896
  %v4898 = vsel %vm4854, %v4810, 0.0
  %v4899 = vadd.f32 %v4897, %v4898
  %v4900 = vsel %vm4854, %v4811, 0.0
  %v4901 = vadd.f32 %v4899, %v4900
  %v4902 = vsel %vm4854, %v4812, 0.0
  %v4903 = vadd.f32 %v4901, %v4902
  %v4904 = vsel %vm4854, %v4813, 0.0
  %v4905 = vadd.f32 %v4903, %v4904
  %v4906 = vsel %vm4854, %v4814, 0.0
  %v4907 = vadd.f32 %v4905, %v4906
  %v4908 = vsel %vm4854, %v4815, 0.0
  %v4909 = vadd.f32 %v4907, %v4908
  %v4910 = vsel %vm4854, %v4816, 0.0
  %v4911 = vadd.f32 %v4909, %v4910
  %v4912 = vsel %vm4854, %v4817, 0.0
  %v4913 = vadd.f32 %v4911, %v4912
  %v4914 = vsel %vm4854, %v4818, 0.0
  %v4915 = vadd.f32 %v4913, %v4914
  %v4916 = vsel %vm4854, %v4819, 0.0
  %v4917 = vadd.f32 %v4915, %v4916
  %v4918 = vsel %vm4854, %v4820, 0.0
  %v4919 = vadd.f32 %v4917, %v4918
  %v4920 = vsel %vm4854, %v4821, 0.0
  %v4921 = vadd.f32 %v4919, %v4920
  %v4922 = vsel %vm4854, %v4822, 0.0
  %v4923 = vadd.f32 %v4921, %v4922
  %v4924 = vsel %vm4854, %v4823, 0.0
  %v4925 = vadd.f32 %v4923, %v4924
  %v4926 = vsel %vm4854, %v4824, 0.0
  %v4927 = vadd.f32 %v4925, %v4926
  %v4928 = vsel %vm4854, %v4825, 0.0
  %v4929 = vadd.f32 %v4927, %v4928
  %v4930 = vsel %vm4854, %v4826, 0.0
  %v4931 = vadd.f32 %v4929, %v4930
  %v4932 = vsel %vm4854, %v4827, 0.0
  %v4933 = vadd.f32 %v4931, %v4932
  %v4934 = vsel %vm4854, %v4828, 0.0
  %v4935 = vadd.f32 %v4933, %v4934
  %v4936 = vsel %vm4854, %v4829, 0.0
  %v4937 = vadd.f32 %v4935, %v4936
  %v4938 = vsel %vm4854, %v4830, 0.0
  %v4939 = vadd.f32 %v4937, %v4938
  %v4940 = vsel %vm4854, %v4831, 0.0
  %v4941 = vadd.f32 %v4939, %v4940
  %v4942 = vsel %vm4854, %v4832, 0.0
  %v4943 = vadd.f32 %v4941, %v4942
  %v4944 = vsel %vm4854, %v4833, 0.0
  %v4945 = vadd.f32 %v4943, %v4944
  %v4946 = vsel %vm4854, %v4834, 0.0
  %v4947 = vadd.f32 %v4945, %v4946
  %v4948 = vsel %vm4854, %v4835, 0.0
  %v4949 = vadd.f32 %v4947, %v4948
  %v4950 = vsel %vm4854, %v4836, 0.0
  %v4951 = vadd.f32 %v4949, %v4950
  %v4952 = vsel %vm4854, %v4837, 0.0
  %v4953 = vadd.f32 %v4951, %v4952
  %v4954 = vsel %vm4854, %v4838, 0.0
  %v4955 = vadd.f32 %v4953, %v4954
  %v4956 = vsel %vm4854, %v4839, 0.0
  %v4957 = vadd.f32 %v4955, %v4956
  %v4958 = vsel %vm4854, %v4840, 0.0
  %v4959 = vadd.f32 %v4957, %v4958
  %v4960 = vsel %vm4854, %v4841, 0.0
  %v4961 = vadd.f32 %v4959, %v4960
  %v4962 = vsel %vm4854, %v4842, 0.0
  %v4963 = vadd.f32 %v4961, %v4962
  %v4964 = vsel %vm4854, %v4843, 0.0
  %v4965 = vadd.f32 %v4963, %v4964
  %v4966 = vsel %vm4854, %v4844, 0.0
  %v4967 = vadd.f32 %v4965, %v4966
  %v4968 = vsel %vm4854, %v4845, 0.0
  %v4969 = vadd.f32 %v4967, %v4968
  %v4970 = vsel %vm4854, %v4846, 0.0
  %v4971 = vadd.f32 %v4969, %v4970
  %v4972 = vsel %vm4854, %v4847, 0.0
  %v4973 = vadd.f32 %v4971, %v4972
  %v4974 = vsel %vm4854, %v4848, 0.0
  %v4975 = vadd.f32 %v4973, %v4974
  %v4976 = vsel %vm4854, %v4849, 0.0
  %v4977 = vadd.f32 %v4975, %v4976
  %v4978 = vsel %vm4854, %v4850, 0.0
  %v4979 = vadd.f32 %v4977, %v4978
  %v4980 = vsel %vm4854, %v4851, 0.0
  %v4981 = vadd.f32 %v4979, %v4980
  %v4982 = vrot.slane %v4981, 4
  %v4983 = vadd.f32 %v4981, %v4982
  %v4984 = vrot.slane %v4983, 2
  %v4985 = vadd.f32 %v4983, %v4984
  %v4986 = vrot.slane %v4985, 1
  %v4987 = vadd.f32 %v4985, %v4986
  %v4988 = vrcp.pop 512.0
  %v4989 = vmul.f32 %v4987, %v4988
  %v4990 = vsub.f32 %v4788, %v4989
  %v4991 = vsub.f32 %v4789, %v4989
  %v4992 = vsub.f32 %v4790, %v4989
  %v4993 = vsub.f32 %v4791, %v4989
  %v4994 = vsub.f32 %v4792, %v4989
  %v4995 = vsub.f32 %v4793, %v4989
  %v4996 = vsub.f32 %v4794, %v4989
  %v4997 = vsub.f32 %v4795, %v4989
  %v4998 = vsub.f32 %v4796, %v4989
  %v4999 = vsub.f32 %v4797, %v4989
  %v5000 = vsub.f32 %v4798, %v4989
  %v5001 = vsub.f32 %v4799, %v4989
  %v5002 = vsub.f32 %v4800, %v4989
  %v5003 = vsub.f32 %v4801, %v4989
  %v5004 = vsub.f32 %v4802, %v4989
  %v5005 = vsub.f32 %v4803, %v4989
  %v5006 = vsub.f32 %v4804, %v4989
  %v5007 = vsub.f32 %v4805, %v4989
  %v5008 = vsub.f32 %v4806, %v4989
  %v5009 = vsub.f32 %v4807, %v4989
  %v5010 = vsub.f32 %v4808, %v4989
  %v5011 = vsub.f32 %v4809, %v4989
  %v5012 = vsub.f32 %v4810, %v4989
  %v5013 = vsub.f32 %v4811, %v4989
  %v5014 = vsub.f32 %v4812, %v4989
  %v5015 = vsub.f32 %v4813, %v4989
  %v5016 = vsub.f32 %v4814, %v4989
  %v5017 = vsub.f32 %v4815, %v4989
  %v5018 = vsub.f32 %v4816, %v4989
  %v5019 = vsub.f32 %v4817, %v4989
  %v5020 = vsub.f32 %v4818, %v4989
  %v5021 = vsub.f32 %v4819, %v4989
  %v5022 = vsub.f32 %v4820, %v4989
  %v5023 = vsub.f32 %v4821, %v4989
  %v5024 = vsub.f32 %v4822, %v4989
  %v5025 = vsub.f32 %v4823, %v4989
  %v5026 = vsub.f32 %v4824, %v4989
  %v5027 = vsub.f32 %v4825, %v4989
  %v5028 = vsub.f32 %v4826, %v4989
  %v5029 = vsub.f32 %v4827, %v4989
  %v5030 = vsub.f32 %v4828, %v4989
  %v5031 = vsub.f32 %v4829, %v4989
  %v5032 = vsub.f32 %v4830, %v4989
  %v5033 = vsub.f32 %v4831, %v4989
  %v5034 = vsub.f32 %v4832, %v4989
  %v5035 = vsub.f32 %v4833, %v4989
  %v5036 = vsub.f32 %v4834, %v4989
  %v5037 = vsub.f32 %v4835, %v4989
  %v5038 = vsub.f32 %v4836, %v4989
  %v5039 = vsub.f32 %v4837, %v4989
  %v5040 = vsub.f32 %v4838, %v4989
  %v5041 = vsub.f32 %v4839, %v4989
  %v5042 = vsub.f32 %v4840, %v4989
  %v5043 = vsub.f32 %v4841, %v4989
  %v5044 = vsub.f32 %v4842, %v4989
  %v5045 = vsub.f32 %v4843, %v4989
  %v5046 = vsub.f32 %v4844, %v4989
  %v5047 = vsub.f32 %v4845, %v4989
  %v5048 = vsub.f32 %v4846, %v4989
  %v5049 = vsub.f32 %v4847, %v4989
  %v5050 = vsub.f32 %v4848, %v4989
  %v5051 = vsub.f32 %v4849, %v4989
  %v5052 = vsub.f32 %v4850, %v4989
  %v5053 = vsub.f32 %v4851, %v4989
  %v5054 = vmul.f32 %v4990, %v4990
  %v5055 = vmul.f32 %v4991, %v4991
  %v5056 = vmul.f32 %v4992, %v4992
  %v5057 = vmul.f32 %v4993, %v4993
  %v5058 = vmul.f32 %v4994, %v4994
  %v5059 = vmul.f32 %v4995, %v4995
  %v5060 = vmul.f32 %v4996, %v4996
  %v5061 = vmul.f32 %v4997, %v4997
  %v5062 = vmul.f32 %v4998, %v4998
  %v5063 = vmul.f32 %v4999, %v4999
  %v5064 = vmul.f32 %v5000, %v5000
  %v5065 = vmul.f32 %v5001, %v5001
  %v5066 = vmul.f32 %v5002, %v5002
  %v5067 = vmul.f32 %v5003, %v5003
  %v5068 = vmul.f32 %v5004, %v5004
  %v5069 = vmul.f32 %v5005, %v5005
  %v5070 = vmul.f32 %v5006, %v5006
  %v5071 = vmul.f32 %v5007, %v5007
  %v5072 = vmul.f32 %v5008, %v5008
  %v5073 = vmul.f32 %v5009, %v5009
  %v5074 = vmul.f32 %v5010, %v5010
  %v5075 = vmul.f32 %v5011, %v5011
  %v5076 = vmul.f32 %v5012, %v5012
  %v5077 = vmul.f32 %v5013, %v5013
  %v5078 = vmul.f32 %v5014, %v5014
  %v5079 = vmul.f32 %v5015, %v5015
  %v5080 = vmul.f32 %v5016, %v5016
  %v5081 = vmul.f32 %v5017, %v5017
  %v5082 = vmul.f32 %v5018, %v5018
  %v5083 = vmul.f32 %v5019, %v5019
  %v5084 = vmul.f32 %v5020, %v5020
  %v5085 = vmul.f32 %v5021, %v5021
  %v5086 = vmul.f32 %v5022, %v5022
  %v5087 = vmul.f32 %v5023, %v5023
  %v5088 = vmul.f32 %v5024, %v5024
  %v5089 = vmul.f32 %v5025, %v5025
  %v5090 = vmul.f32 %v5026, %v5026
  %v5091 = vmul.f32 %v5027, %v5027
  %v5092 = vmul.f32 %v5028, %v5028
  %v5093 = vmul.f32 %v5029, %v5029
  %v5094 = vmul.f32 %v5030, %v5030
  %v5095 = vmul.f32 %v5031, %v5031
  %v5096 = vmul.f32 %v5032, %v5032
  %v5097 = vmul.f32 %v5033, %v5033
  %v5098 = vmul.f32 %v5034, %v5034
  %v5099 = vmul.f32 %v5035, %v5035
  %v5100 = vmul.f32 %v5036, %v5036
  %v5101 = vmul.f32 %v5037, %v5037
  %v5102 = vmul.f32 %v5038, %v5038
  %v5103 = vmul.f32 %v5039, %v5039
  %v5104 = vmul.f32 %v5040, %v5040
  %v5105 = vmul.f32 %v5041, %v5041
  %v5106 = vmul.f32 %v5042, %v5042
  %v5107 = vmul.f32 %v5043, %v5043
  %v5108 = vmul.f32 %v5044, %v5044
  %v5109 = vmul.f32 %v5045, %v5045
  %v5110 = vmul.f32 %v5046, %v5046
  %v5111 = vmul.f32 %v5047, %v5047
  %v5112 = vmul.f32 %v5048, %v5048
  %v5113 = vmul.f32 %v5049, %v5049
  %v5114 = vmul.f32 %v5050, %v5050
  %v5115 = vmul.f32 %v5051, %v5051
  %v5116 = vmul.f32 %v5052, %v5052
  %v5117 = vmul.f32 %v5053, %v5053
  %v5118 = vsel %vm4854, %v5054, 0.0
  %v5119 = vsel %vm4854, %v5055, 0.0
  %v5120 = vadd.f32 %v5118, %v5119
  %v5121 = vsel %vm4854, %v5056, 0.0
  %v5122 = vadd.f32 %v5120, %v5121
  %v5123 = vsel %vm4854, %v5057, 0.0
  %v5124 = vadd.f32 %v5122, %v5123
  %v5125 = vsel %vm4854, %v5058, 0.0
  %v5126 = vadd.f32 %v5124, %v5125
  %v5127 = vsel %vm4854, %v5059, 0.0
  %v5128 = vadd.f32 %v5126, %v5127
  %v5129 = vsel %vm4854, %v5060, 0.0
  %v5130 = vadd.f32 %v5128, %v5129
  %v5131 = vsel %vm4854, %v5061, 0.0
  %v5132 = vadd.f32 %v5130, %v5131
  %v5133 = vsel %vm4854, %v5062, 0.0
  %v5134 = vadd.f32 %v5132, %v5133
  %v5135 = vsel %vm4854, %v5063, 0.0
  %v5136 = vadd.f32 %v5134, %v5135
  %v5137 = vsel %vm4854, %v5064, 0.0
  %v5138 = vadd.f32 %v5136, %v5137
  %v5139 = vsel %vm4854, %v5065, 0.0
  %v5140 = vadd.f32 %v5138, %v5139
  %v5141 = vsel %vm4854, %v5066, 0.0
  %v5142 = vadd.f32 %v5140, %v5141
  %v5143 = vsel %vm4854, %v5067, 0.0
  %v5144 = vadd.f32 %v5142, %v5143
  %v5145 = vsel %vm4854, %v5068, 0.0
  %v5146 = vadd.f32 %v5144, %v5145
  %v5147 = vsel %vm4854, %v5069, 0.0
  %v5148 = vadd.f32 %v5146, %v5147
  %v5149 = vsel %vm4854, %v5070, 0.0
  %v5150 = vadd.f32 %v5148, %v5149
  %v5151 = vsel %vm4854, %v5071, 0.0
  %v5152 = vadd.f32 %v5150, %v5151
  %v5153 = vsel %vm4854, %v5072, 0.0
  %v5154 = vadd.f32 %v5152, %v5153
  %v5155 = vsel %vm4854, %v5073, 0.0
  %v5156 = vadd.f32 %v5154, %v5155
  %v5157 = vsel %vm4854, %v5074, 0.0
  %v5158 = vadd.f32 %v5156, %v5157
  %v5159 = vsel %vm4854, %v5075, 0.0
  %v5160 = vadd.f32 %v5158, %v5159
  %v5161 = vsel %vm4854, %v5076, 0.0
  %v5162 = vadd.f32 %v5160, %v5161
  %v5163 = vsel %vm4854, %v5077, 0.0
  %v5164 = vadd.f32 %v5162, %v5163
  %v5165 = vsel %vm4854, %v5078, 0.0
  %v5166 = vadd.f32 %v5164, %v5165
  %v5167 = vsel %vm4854, %v5079, 0.0
  %v5168 = vadd.f32 %v5166, %v5167
  %v5169 = vsel %vm4854, %v5080, 0.0
  %v5170 = vadd.f32 %v5168, %v5169
  %v5171 = vsel %vm4854, %v5081, 0.0
  %v5172 = vadd.f32 %v5170, %v5171
  %v5173 = vsel %vm4854, %v5082, 0.0
  %v5174 = vadd.f32 %v5172, %v5173
  %v5175 = vsel %vm4854, %v5083, 0.0
  %v5176 = vadd.f32 %v5174, %v5175
  %v5177 = vsel %vm4854, %v5084, 0.0
  %v5178 = vadd.f32 %v5176, %v5177
  %v5179 = vsel %vm4854, %v5085, 0.0
  %v5180 = vadd.f32 %v5178, %v5179
  %v5181 = vsel %vm4854, %v5086, 0.0
  %v5182 = vadd.f32 %v5180, %v5181
  %v5183 = vsel %vm4854, %v5087, 0.0
  %v5184 = vadd.f32 %v5182, %v5183
  %v5185 = vsel %vm4854, %v5088, 0.0
  %v5186 = vadd.f32 %v5184, %v5185
  %v5187 = vsel %vm4854, %v5089, 0.0
  %v5188 = vadd.f32 %v5186, %v5187
  %v5189 = vsel %vm4854, %v5090, 0.0
  %v5190 = vadd.f32 %v5188, %v5189
  %v5191 = vsel %vm4854, %v5091, 0.0
  %v5192 = vadd.f32 %v5190, %v5191
  %v5193 = vsel %vm4854, %v5092, 0.0
  %v5194 = vadd.f32 %v5192, %v5193
  %v5195 = vsel %vm4854, %v5093, 0.0
  %v5196 = vadd.f32 %v5194, %v5195
  %v5197 = vsel %vm4854, %v5094, 0.0
  %v5198 = vadd.f32 %v5196, %v5197
  %v5199 = vsel %vm4854, %v5095, 0.0
  %v5200 = vadd.f32 %v5198, %v5199
  %v5201 = vsel %vm4854, %v5096, 0.0
  %v5202 = vadd.f32 %v5200, %v5201
  %v5203 = vsel %vm4854, %v5097, 0.0
  %v5204 = vadd.f32 %v5202, %v5203
  %v5205 = vsel %vm4854, %v5098, 0.0
  %v5206 = vadd.f32 %v5204, %v5205
  %v5207 = vsel %vm4854, %v5099, 0.0
  %v5208 = vadd.f32 %v5206, %v5207
  %v5209 = vsel %vm4854, %v5100, 0.0
  %v5210 = vadd.f32 %v5208, %v5209
  %v5211 = vsel %vm4854, %v5101, 0.0
  %v5212 = vadd.f32 %v5210, %v5211
  %v5213 = vsel %vm4854, %v5102, 0.0
  %v5214 = vadd.f32 %v5212, %v5213
  %v5215 = vsel %vm4854, %v5103, 0.0
  %v5216 = vadd.f32 %v5214, %v5215
  %v5217 = vsel %vm4854, %v5104, 0.0
  %v5218 = vadd.f32 %v5216, %v5217
  %v5219 = vsel %vm4854, %v5105, 0.0
  %v5220 = vadd.f32 %v5218, %v5219
  %v5221 = vsel %vm4854, %v5106, 0.0
  %v5222 = vadd.f32 %v5220, %v5221
  %v5223 = vsel %vm4854, %v5107, 0.0
  %v5224 = vadd.f32 %v5222, %v5223
  %v5225 = vsel %vm4854, %v5108, 0.0
  %v5226 = vadd.f32 %v5224, %v5225
  %v5227 = vsel %vm4854, %v5109, 0.0
  %v5228 = vadd.f32 %v5226, %v5227
  %v5229 = vsel %vm4854, %v5110, 0.0
  %v5230 = vadd.f32 %v5228, %v5229
  %v5231 = vsel %vm4854, %v5111, 0.0
  %v5232 = vadd.f32 %v5230, %v5231
  %v5233 = vsel %vm4854, %v5112, 0.0
  %v5234 = vadd.f32 %v5232, %v5233
  %v5235 = vsel %vm4854, %v5113, 0.0
  %v5236 = vadd.f32 %v5234, %v5235
  %v5237 = vsel %vm4854, %v5114, 0.0
  %v5238 = vadd.f32 %v5236, %v5237
  %v5239 = vsel %vm4854, %v5115, 0.0
  %v5240 = vadd.f32 %v5238, %v5239
  %v5241 = vsel %vm4854, %v5116, 0.0
  %v5242 = vadd.f32 %v5240, %v5241
  %v5243 = vsel %vm4854, %v5117, 0.0
  %v5244 = vadd.f32 %v5242, %v5243
  %v5245 = vrot.slane %v5244, 4
  %v5246 = vadd.f32 %v5244, %v5245
  %v5247 = vrot.slane %v5246, 2
  %v5248 = vadd.f32 %v5246, %v5247
  %v5249 = vrot.slane %v5248, 1
  %v5250 = vadd.f32 %v5248, %v5249
  %v5251 = vmul.f32 %v5250, %v4988
  %v5252 = vadd.f32 %v5251, 1e-05
  %v5253 = vrsqrt.pop %v5252
  %v5254 = vmul.f32 %v4990, %v5253
  %v5255 = vmul.f32 %v4991, %v5253
  %v5256 = vmul.f32 %v4992, %v5253
  %v5257 = vmul.f32 %v4993, %v5253
  %v5258 = vmul.f32 %v4994, %v5253
  %v5259 = vmul.f32 %v4995, %v5253
  %v5260 = vmul.f32 %v4996, %v5253
  %v5261 = vmul.f32 %v4997, %v5253
  %v5262 = vmul.f32 %v4998, %v5253
  %v5263 = vmul.f32 %v4999, %v5253
  %v5264 = vmul.f32 %v5000, %v5253
  %v5265 = vmul.f32 %v5001, %v5253
  %v5266 = vmul.f32 %v5002, %v5253
  %v5267 = vmul.f32 %v5003, %v5253
  %v5268 = vmul.f32 %v5004, %v5253
  %v5269 = vmul.f32 %v5005, %v5253
  %v5270 = vmul.f32 %v5006, %v5253
  %v5271 = vmul.f32 %v5007, %v5253
  %v5272 = vmul.f32 %v5008, %v5253
  %v5273 = vmul.f32 %v5009, %v5253
  %v5274 = vmul.f32 %v5010, %v5253
  %v5275 = vmul.f32 %v5011, %v5253
  %v5276 = vmul.f32 %v5012, %v5253
  %v5277 = vmul.f32 %v5013, %v5253
  %v5278 = vmul.f32 %v5014, %v5253
  %v5279 = vmul.f32 %v5015, %v5253
  %v5280 = vmul.f32 %v5016, %v5253
  %v5281 = vmul.f32 %v5017, %v5253
  %v5282 = vmul.f32 %v5018, %v5253
  %v5283 = vmul.f32 %v5019, %v5253
  %v5284 = vmul.f32 %v5020, %v5253
  %v5285 = vmul.f32 %v5021, %v5253
  %v5286 = vmul.f32 %v5022, %v5253
  %v5287 = vmul.f32 %v5023, %v5253
  %v5288 = vmul.f32 %v5024, %v5253
  %v5289 = vmul.f32 %v5025, %v5253
  %v5290 = vmul.f32 %v5026, %v5253
  %v5291 = vmul.f32 %v5027, %v5253
  %v5292 = vmul.f32 %v5028, %v5253
  %v5293 = vmul.f32 %v5029, %v5253
  %v5294 = vmul.f32 %v5030, %v5253
  %v5295 = vmul.f32 %v5031, %v5253
  %v5296 = vmul.f32 %v5032, %v5253
  %v5297 = vmul.f32 %v5033, %v5253
  %v5298 = vmul.f32 %v5034, %v5253
  %v5299 = vmul.f32 %v5035, %v5253
  %v5300 = vmul.f32 %v5036, %v5253
  %v5301 = vmul.f32 %v5037, %v5253
  %v5302 = vmul.f32 %v5038, %v5253
  %v5303 = vmul.f32 %v5039, %v5253
  %v5304 = vmul.f32 %v5040, %v5253
  %v5305 = vmul.f32 %v5041, %v5253
  %v5306 = vmul.f32 %v5042, %v5253
  %v5307 = vmul.f32 %v5043, %v5253
  %v5308 = vmul.f32 %v5044, %v5253
  %v5309 = vmul.f32 %v5045, %v5253
  %v5310 = vmul.f32 %v5046, %v5253
  %v5311 = vmul.f32 %v5047, %v5253
  %v5312 = vmul.f32 %v5048, %v5253
  %v5313 = vmul.f32 %v5049, %v5253
  %v5314 = vmul.f32 %v5050, %v5253
  %v5315 = vmul.f32 %v5051, %v5253
  %v5316 = vmul.f32 %v5052, %v5253
  %v5317 = vmul.f32 %v5053, %v5253
  %v5319 = vlaneseq
  %v5320 = vshrl.u32 %v5319, 7
  %v5321 = vsub.s32 0, %v5320
  %v5322 = vrot.slane %v4852, %v5321
  %v5324 = vmul.f32 %v5254, %v5322
  %v5325 = vmul.f32 %v5255, %v5322
  %v5326 = vmul.f32 %v5256, %v5322
  %v5327 = vmul.f32 %v5257, %v5322
  %v5328 = vmul.f32 %v5258, %v5322
  %v5329 = vmul.f32 %v5259, %v5322
  %v5330 = vmul.f32 %v5260, %v5322
  %v5331 = vmul.f32 %v5261, %v5322
  %v5332 = vmul.f32 %v5262, %v5322
  %v5333 = vmul.f32 %v5263, %v5322
  %v5334 = vmul.f32 %v5264, %v5322
  %v5335 = vmul.f32 %v5265, %v5322
  %v5336 = vmul.f32 %v5266, %v5322
  %v5337 = vmul.f32 %v5267, %v5322
  %v5338 = vmul.f32 %v5268, %v5322
  %v5339 = vmul.f32 %v5269, %v5322
  %v5340 = vmul.f32 %v5270, %v5322
  %v5341 = vmul.f32 %v5271, %v5322
  %v5342 = vmul.f32 %v5272, %v5322
  %v5343 = vmul.f32 %v5273, %v5322
  %v5344 = vmul.f32 %v5274, %v5322
  %v5345 = vmul.f32 %v5275, %v5322
  %v5346 = vmul.f32 %v5276, %v5322
  %v5347 = vmul.f32 %v5277, %v5322
  %v5348 = vmul.f32 %v5278, %v5322
  %v5349 = vmul.f32 %v5279, %v5322
  %v5350 = vmul.f32 %v5280, %v5322
  %v5351 = vmul.f32 %v5281, %v5322
  %v5352 = vmul.f32 %v5282, %v5322
  %v5353 = vmul.f32 %v5283, %v5322
  %v5354 = vmul.f32 %v5284, %v5322
  %v5355 = vmul.f32 %v5285, %v5322
  %v5356 = vmul.f32 %v5286, %v5322
  %v5357 = vmul.f32 %v5287, %v5322
  %v5358 = vmul.f32 %v5288, %v5322
  %v5359 = vmul.f32 %v5289, %v5322
  %v5360 = vmul.f32 %v5290, %v5322
  %v5361 = vmul.f32 %v5291, %v5322
  %v5362 = vmul.f32 %v5292, %v5322
  %v5363 = vmul.f32 %v5293, %v5322
  %v5364 = vmul.f32 %v5294, %v5322
  %v5365 = vmul.f32 %v5295, %v5322
  %v5366 = vmul.f32 %v5296, %v5322
  %v5367 = vmul.f32 %v5297, %v5322
  %v5368 = vmul.f32 %v5298, %v5322
  %v5369 = vmul.f32 %v5299, %v5322
  %v5370 = vmul.f32 %v5300, %v5322
  %v5371 = vmul.f32 %v5301, %v5322
  %v5372 = vmul.f32 %v5302, %v5322
  %v5373 = vmul.f32 %v5303, %v5322
  %v5374 = vmul.f32 %v5304, %v5322
  %v5375 = vmul.f32 %v5305, %v5322
  %v5376 = vmul.f32 %v5306, %v5322
  %v5377 = vmul.f32 %v5307, %v5322
  %v5378 = vmul.f32 %v5308, %v5322
  %v5379 = vmul.f32 %v5309, %v5322
  %v5380 = vmul.f32 %v5310, %v5322
  %v5381 = vmul.f32 %v5311, %v5322
  %v5382 = vmul.f32 %v5312, %v5322
  %v5383 = vmul.f32 %v5313, %v5322
  %v5384 = vmul.f32 %v5314, %v5322
  %v5385 = vmul.f32 %v5315, %v5322
  %v5386 = vmul.f32 %v5316, %v5322
  %v5387 = vmul.f32 %v5317, %v5322
  %v5389 = vlaneseq
  %v5390 = vshrl.u32 %v5389, 7
  %v5391 = vsub.s32 0, %v5390
  %v5392 = vrot.slane %v4853, %v5391
  %v5394 = vadd.f32 %v5324, %v5392
  %v5395 = vadd.f32 %v5325, %v5392
  %v5396 = vadd.f32 %v5326, %v5392
  %v5397 = vadd.f32 %v5327, %v5392
  %v5398 = vadd.f32 %v5328, %v5392
  %v5399 = vadd.f32 %v5329, %v5392
  %v5400 = vadd.f32 %v5330, %v5392
  %v5401 = vadd.f32 %v5331, %v5392
  %v5402 = vadd.f32 %v5332, %v5392
  %v5403 = vadd.f32 %v5333, %v5392
  %v5404 = vadd.f32 %v5334, %v5392
  %v5405 = vadd.f32 %v5335, %v5392
  %v5406 = vadd.f32 %v5336, %v5392
  %v5407 = vadd.f32 %v5337, %v5392
  %v5408 = vadd.f32 %v5338, %v5392
  %v5409 = vadd.f32 %v5339, %v5392
  %v5410 = vadd.f32 %v5340, %v5392
  %v5411 = vadd.f32 %v5341, %v5392
  %v5412 = vadd.f32 %v5342, %v5392
  %v5413 = vadd.f32 %v5343, %v5392
  %v5414 = vadd.f32 %v5344, %v5392
  %v5415 = vadd.f32 %v5345, %v5392
  %v5416 = vadd.f32 %v5346, %v5392
  %v5417 = vadd.f32 %v5347, %v5392
  %v5418 = vadd.f32 %v5348, %v5392
  %v5419 = vadd.f32 %v5349, %v5392
  %v5420 = vadd.f32 %v5350, %v5392
  %v5421 = vadd.f32 %v5351, %v5392
  %v5422 = vadd.f32 %v5352, %v5392
  %v5423 = vadd.f32 %v5353, %v5392
  %v5424 = vadd.f32 %v5354, %v5392
  %v5425 = vadd.f32 %v5355, %v5392
  %v5426 = vadd.f32 %v5356, %v5392
  %v5427 = vadd.f32 %v5357, %v5392
  %v5428 = vadd.f32 %v5358, %v5392
  %v5429 = vadd.f32 %v5359, %v5392
  %v5430 = vadd.f32 %v5360, %v5392
  %v5431 = vadd.f32 %v5361, %v5392
  %v5432 = vadd.f32 %v5362, %v5392
  %v5433 = vadd.f32 %v5363, %v5392
  %v5434 = vadd.f32 %v5364, %v5392
  %v5435 = vadd.f32 %v5365, %v5392
  %v5436 = vadd.f32 %v5366, %v5392
  %v5437 = vadd.f32 %v5367, %v5392
  %v5438 = vadd.f32 %v5368, %v5392
  %v5439 = vadd.f32 %v5369, %v5392
  %v5440 = vadd.f32 %v5370, %v5392
  %v5441 = vadd.f32 %v5371, %v5392
  %v5442 = vadd.f32 %v5372, %v5392
  %v5443 = vadd.f32 %v5373, %v5392
  %v5444 = vadd.f32 %v5374, %v5392
  %v5445 = vadd.f32 %v5375, %v5392
  %v5446 = vadd.f32 %v5376, %v5392
  %v5447 = vadd.f32 %v5377, %v5392
  %v5448 = vadd.f32 %v5378, %v5392
  %v5449 = vadd.f32 %v5379, %v5392
  %v5450 = vadd.f32 %v5380, %v5392
  %v5451 = vadd.f32 %v5381, %v5392
  %v5452 = vadd.f32 %v5382, %v5392
  %v5453 = vadd.f32 %v5383, %v5392
  %v5454 = vadd.f32 %v5384, %v5392
  %v5455 = vadd.f32 %v5385, %v5392
  %v5456 = vadd.f32 %v5386, %v5392
  %v5457 = vadd.f32 %v5387, %v5392
  %vm5458 = vcmp.gt.f32.partialorder %v5394, 0.0
  %vm5459 = vcmp.gt.f32.partialorder %v5395, 0.0
  %vm5460 = vcmp.gt.f32.partialorder %v5396, 0.0
  %vm5461 = vcmp.gt.f32.partialorder %v5397, 0.0
  %vm5462 = vcmp.gt.f32.partialorder %v5398, 0.0
  %vm5463 = vcmp.gt.f32.partialorder %v5399, 0.0
  %vm5464 = vcmp.gt.f32.partialorder %v5400, 0.0
  %vm5465 = vcmp.gt.f32.partialorder %v5401, 0.0
  %vm5466 = vcmp.gt.f32.partialorder %v5402, 0.0
  %vm5467 = vcmp.gt.f32.partialorder %v5403, 0.0
  %vm5468 = vcmp.gt.f32.partialorder %v5404, 0.0
  %vm5469 = vcmp.gt.f32.partialorder %v5405, 0.0
  %vm5470 = vcmp.gt.f32.partialorder %v5406, 0.0
  %vm5471 = vcmp.gt.f32.partialorder %v5407, 0.0
  %vm5472 = vcmp.gt.f32.partialorder %v5408, 0.0
  %vm5473 = vcmp.gt.f32.partialorder %v5409, 0.0
  %vm5474 = vcmp.gt.f32.partialorder %v5410, 0.0
  %vm5475 = vcmp.gt.f32.partialorder %v5411, 0.0
  %vm5476 = vcmp.gt.f32.partialorder %v5412, 0.0
  %vm5477 = vcmp.gt.f32.partialorder %v5413, 0.0
  %vm5478 = vcmp.gt.f32.partialorder %v5414, 0.0
  %vm5479 = vcmp.gt.f32.partialorder %v5415, 0.0
  %vm5480 = vcmp.gt.f32.partialorder %v5416, 0.0
  %vm5481 = vcmp.gt.f32.partialorder %v5417, 0.0
  %vm5482 = vcmp.gt.f32.partialorder %v5418, 0.0
  %vm5483 = vcmp.gt.f32.partialorder %v5419, 0.0
  %vm5484 = vcmp.gt.f32.partialorder %v5420, 0.0
  %vm5485 = vcmp.gt.f32.partialorder %v5421, 0.0
  %vm5486 = vcmp.gt.f32.partialorder %v5422, 0.0
  %vm5487 = vcmp.gt.f32.partialorder %v5423, 0.0
  %vm5488 = vcmp.gt.f32.partialorder %v5424, 0.0
  %vm5489 = vcmp.gt.f32.partialorder %v5425, 0.0
  %vm5490 = vcmp.gt.f32.partialorder %v5426, 0.0
  %vm5491 = vcmp.gt.f32.partialorder %v5427, 0.0
  %vm5492 = vcmp.gt.f32.partialorder %v5428, 0.0
  %vm5493 = vcmp.gt.f32.partialorder %v5429, 0.0
  %vm5494 = vcmp.gt.f32.partialorder %v5430, 0.0
  %vm5495 = vcmp.gt.f32.partialorder %v5431, 0.0
  %vm5496 = vcmp.gt.f32.partialorder %v5432, 0.0
  %vm5497 = vcmp.gt.f32.partialorder %v5433, 0.0
  %vm5498 = vcmp.gt.f32.partialorder %v5434, 0.0
  %vm5499 = vcmp.gt.f32.partialorder %v5435, 0.0
  %vm5500 = vcmp.gt.f32.partialorder %v5436, 0.0
  %vm5501 = vcmp.gt.f32.partialorder %v5437, 0.0
  %vm5502 = vcmp.gt.f32.partialorder %v5438, 0.0
  %vm5503 = vcmp.gt.f32.partialorder %v5439, 0.0
  %vm5504 = vcmp.gt.f32.partialorder %v5440, 0.0
  %vm5505 = vcmp.gt.f32.partialorder %v5441, 0.0
  %vm5506 = vcmp.gt.f32.partialorder %v5442, 0.0
  %vm5507 = vcmp.gt.f32.partialorder %v5443, 0.0
  %vm5508 = vcmp.gt.f32.partialorder %v5444, 0.0
  %vm5509 = vcmp.gt.f32.partialorder %v5445, 0.0
  %vm5510 = vcmp.gt.f32.partialorder %v5446, 0.0
  %vm5511 = vcmp.gt.f32.partialorder %v5447, 0.0
  %vm5512 = vcmp.gt.f32.partialorder %v5448, 0.0
  %vm5513 = vcmp.gt.f32.partialorder %v5449, 0.0
  %vm5514 = vcmp.gt.f32.partialorder %v5450, 0.0
  %vm5515 = vcmp.gt.f32.partialorder %v5451, 0.0
  %vm5516 = vcmp.gt.f32.partialorder %v5452, 0.0
  %vm5517 = vcmp.gt.f32.partialorder %v5453, 0.0
  %vm5518 = vcmp.gt.f32.partialorder %v5454, 0.0
  %vm5519 = vcmp.gt.f32.partialorder %v5455, 0.0
  %vm5520 = vcmp.gt.f32.partialorder %v5456, 0.0
  %vm5521 = vcmp.gt.f32.partialorder %v5457, 0.0
  %v5522 = vmin.f32 %v5394, 0.0
  %v5523 = vmin.f32 %v5395, 0.0
  %v5524 = vmin.f32 %v5396, 0.0
  %v5525 = vmin.f32 %v5397, 0.0
  %v5526 = vmin.f32 %v5398, 0.0
  %v5527 = vmin.f32 %v5399, 0.0
  %v5528 = vmin.f32 %v5400, 0.0
  %v5529 = vmin.f32 %v5401, 0.0
  %v5530 = vmin.f32 %v5402, 0.0
  %v5531 = vmin.f32 %v5403, 0.0
  %v5532 = vmin.f32 %v5404, 0.0
  %v5533 = vmin.f32 %v5405, 0.0
  %v5534 = vmin.f32 %v5406, 0.0
  %v5535 = vmin.f32 %v5407, 0.0
  %v5536 = vmin.f32 %v5408, 0.0
  %v5537 = vmin.f32 %v5409, 0.0
  %v5538 = vmin.f32 %v5410, 0.0
  %v5539 = vmin.f32 %v5411, 0.0
  %v5540 = vmin.f32 %v5412, 0.0
  %v5541 = vmin.f32 %v5413, 0.0
  %v5542 = vmin.f32 %v5414, 0.0
  %v5543 = vmin.f32 %v5415, 0.0
  %v5544 = vmin.f32 %v5416, 0.0
  %v5545 = vmin.f32 %v5417, 0.0
  %v5546 = vmin.f32 %v5418, 0.0
  %v5547 = vmin.f32 %v5419, 0.0
  %v5548 = vmin.f32 %v5420, 0.0
  %v5549 = vmin.f32 %v5421, 0.0
  %v5550 = vmin.f32 %v5422, 0.0
  %v5551 = vmin.f32 %v5423, 0.0
  %v5552 = vmin.f32 %v5424, 0.0
  %v5553 = vmin.f32 %v5425, 0.0
  %v5554 = vmin.f32 %v5426, 0.0
  %v5555 = vmin.f32 %v5427, 0.0
  %v5556 = vmin.f32 %v5428, 0.0
  %v5557 = vmin.f32 %v5429, 0.0
  %v5558 = vmin.f32 %v5430, 0.0
  %v5559 = vmin.f32 %v5431, 0.0
  %v5560 = vmin.f32 %v5432, 0.0
  %v5561 = vmin.f32 %v5433, 0.0
  %v5562 = vmin.f32 %v5434, 0.0
  %v5563 = vmin.f32 %v5435, 0.0
  %v5564 = vmin.f32 %v5436, 0.0
  %v5565 = vmin.f32 %v5437, 0.0
  %v5566 = vmin.f32 %v5438, 0.0
  %v5567 = vmin.f32 %v5439, 0.0
  %v5568 = vmin.f32 %v5440, 0.0
  %v5569 = vmin.f32 %v5441, 0.0
  %v5570 = vmin.f32 %v5442, 0.0
  %v5571 = vmin.f32 %v5443, 0.0
  %v5572 = vmin.f32 %v5444, 0.0
  %v5573 = vmin.f32 %v5445, 0.0
  %v5574 = vmin.f32 %v5446, 0.0
  %v5575 = vmin.f32 %v5447, 0.0
  %v5576 = vmin.f32 %v5448, 0.0
  %v5577 = vmin.f32 %v5449, 0.0
  %v5578 = vmin.f32 %v5450, 0.0
  %v5579 = vmin.f32 %v5451, 0.0
  %v5580 = vmin.f32 %v5452, 0.0
  %v5581 = vmin.f32 %v5453, 0.0
  %v5582 = vmin.f32 %v5454, 0.0
  %v5583 = vmin.f32 %v5455, 0.0
  %v5584 = vmin.f32 %v5456, 0.0
  %v5585 = vmin.f32 %v5457, 0.0
  %v5586 = vmul.f32 %v5522, 1.442695
  %v5587 = vpow.pop %v5586
  %v5588 = vmul.f32 %v5523, 1.442695
  %v5589 = vpow.pop %v5588
  %v5590 = vmul.f32 %v5524, 1.442695
  %v5591 = vpow.pop %v5590
  %v5592 = vmul.f32 %v5525, 1.442695
  %v5593 = vpow.pop %v5592
  %v5594 = vmul.f32 %v5526, 1.442695
  %v5595 = vpow.pop %v5594
  %v5596 = vmul.f32 %v5527, 1.442695
  %v5597 = vpow.pop %v5596
  %v5598 = vmul.f32 %v5528, 1.442695
  %v5599 = vpow.pop %v5598
  %v5600 = vmul.f32 %v5529, 1.442695
  %v5601 = vpow.pop %v5600
  %v5602 = vmul.f32 %v5530, 1.442695
  %v5603 = vpow.pop %v5602
  %v5604 = vmul.f32 %v5531, 1.442695
  %v5605 = vpow.pop %v5604
  %v5606 = vmul.f32 %v5532, 1.442695
  %v5607 = vpow.pop %v5606
  %v5608 = vmul.f32 %v5533, 1.442695
  %v5609 = vpow.pop %v5608
  %v5610 = vmul.f32 %v5534, 1.442695
  %v5611 = vpow.pop %v5610
  %v5612 = vmul.f32 %v5535, 1.442695
  %v5613 = vpow.pop %v5612
  %v5614 = vmul.f32 %v5536, 1.442695
  %v5615 = vpow.pop %v5614
  %v5616 = vmul.f32 %v5537, 1.442695
  %v5617 = vpow.pop %v5616
  %v5618 = vmul.f32 %v5538, 1.442695
  %v5619 = vpow.pop %v5618
  %v5620 = vmul.f32 %v5539, 1.442695
  %v5621 = vpow.pop %v5620
  %v5622 = vmul.f32 %v5540, 1.442695
  %v5623 = vpow.pop %v5622
  %v5624 = vmul.f32 %v5541, 1.442695
  %v5625 = vpow.pop %v5624
  %v5626 = vmul.f32 %v5542, 1.442695
  %v5627 = vpow.pop %v5626
  %v5628 = vmul.f32 %v5543, 1.442695
  %v5629 = vpow.pop %v5628
  %v5630 = vmul.f32 %v5544, 1.442695
  %v5631 = vpow.pop %v5630
  %v5632 = vmul.f32 %v5545, 1.442695
  %v5633 = vpow.pop %v5632
  %v5634 = vmul.f32 %v5546, 1.442695
  %v5635 = vpow.pop %v5634
  %v5636 = vmul.f32 %v5547, 1.442695
  %v5637 = vpow.pop %v5636
  %v5638 = vmul.f32 %v5548, 1.442695
  %v5639 = vpow.pop %v5638
  %v5640 = vmul.f32 %v5549, 1.442695
  %v5641 = vpow.pop %v5640
  %v5642 = vmul.f32 %v5550, 1.442695
  %v5643 = vpow.pop %v5642
  %v5644 = vmul.f32 %v5551, 1.442695
  %v5645 = vpow.pop %v5644
  %v5646 = vmul.f32 %v5552, 1.442695
  %v5647 = vpow.pop %v5646
  %v5648 = vmul.f32 %v5553, 1.442695
  %v5649 = vpow.pop %v5648
  %v5650 = vmul.f32 %v5554, 1.442695
  %v5651 = vpow.pop %v5650
  %v5652 = vmul.f32 %v5555, 1.442695
  %v5653 = vpow.pop %v5652
  %v5654 = vmul.f32 %v5556, 1.442695
  %v5655 = vpow.pop %v5654
  %v5656 = vmul.f32 %v5557, 1.442695
  %v5657 = vpow.pop %v5656
  %v5658 = vmul.f32 %v5558, 1.442695
  %v5659 = vpow.pop %v5658
  %v5660 = vmul.f32 %v5559, 1.442695
  %v5661 = vpow.pop %v5660
  %v5662 = vmul.f32 %v5560, 1.442695
  %v5663 = vpow.pop %v5662
  %v5664 = vmul.f32 %v5561, 1.442695
  %v5665 = vpow.pop %v5664
  %v5666 = vmul.f32 %v5562, 1.442695
  %v5667 = vpow.pop %v5666
  %v5668 = vmul.f32 %v5563, 1.442695
  %v5669 = vpow.pop %v5668
  %v5670 = vmul.f32 %v5564, 1.442695
  %v5671 = vpow.pop %v5670
  %v5672 = vmul.f32 %v5565, 1.442695
  %v5673 = vpow.pop %v5672
  %v5674 = vmul.f32 %v5566, 1.442695
  %v5675 = vpow.pop %v5674
  %v5676 = vmul.f32 %v5567, 1.442695
  %v5677 = vpow.pop %v5676
  %v5678 = vmul.f32 %v5568, 1.442695
  %v5679 = vpow.pop %v5678
  %v5680 = vmul.f32 %v5569, 1.442695
  %v5681 = vpow.pop %v5680
  %v5682 = vmul.f32 %v5570, 1.442695
  %v5683 = vpow.pop %v5682
  %v5684 = vmul.f32 %v5571, 1.442695
  %v5685 = vpow.pop %v5684
  %v5686 = vmul.f32 %v5572, 1.442695
  %v5687 = vpow.pop %v5686
  %v5688 = vmul.f32 %v5573, 1.442695
  %v5689 = vpow.pop %v5688
  %v5690 = vmul.f32 %v5574, 1.442695
  %v5691 = vpow.pop %v5690
  %v5692 = vmul.f32 %v5575, 1.442695
  %v5693 = vpow.pop %v5692
  %v5694 = vmul.f32 %v5576, 1.442695
  %v5695 = vpow.pop %v5694
  %v5696 = vmul.f32 %v5577, 1.442695
  %v5697 = vpow.pop %v5696
  %v5698 = vmul.f32 %v5578, 1.442695
  %v5699 = vpow.pop %v5698
  %v5700 = vmul.f32 %v5579, 1.442695
  %v5701 = vpow.pop %v5700
  %v5702 = vmul.f32 %v5580, 1.442695
  %v5703 = vpow.pop %v5702
  %v5704 = vmul.f32 %v5581, 1.442695
  %v5705 = vpow.pop %v5704
  %v5706 = vmul.f32 %v5582, 1.442695
  %v5707 = vpow.pop %v5706
  %v5708 = vmul.f32 %v5583, 1.442695
  %v5709 = vpow.pop %v5708
  %v5710 = vmul.f32 %v5584, 1.442695
  %v5711 = vpow.pop %v5710
  %v5712 = vmul.f32 %v5585, 1.442695
  %v5713 = vpow.pop %v5712
  %v5714 = vsub.f32 %v5587, 1.0
  %v5715 = vsub.f32 %v5589, 1.0
  %v5716 = vsub.f32 %v5591, 1.0
  %v5717 = vsub.f32 %v5593, 1.0
  %v5718 = vsub.f32 %v5595, 1.0
  %v5719 = vsub.f32 %v5597, 1.0
  %v5720 = vsub.f32 %v5599, 1.0
  %v5721 = vsub.f32 %v5601, 1.0
  %v5722 = vsub.f32 %v5603, 1.0
  %v5723 = vsub.f32 %v5605, 1.0
  %v5724 = vsub.f32 %v5607, 1.0
  %v5725 = vsub.f32 %v5609, 1.0
  %v5726 = vsub.f32 %v5611, 1.0
  %v5727 = vsub.f32 %v5613, 1.0
  %v5728 = vsub.f32 %v5615, 1.0
  %v5729 = vsub.f32 %v5617, 1.0
  %v5730 = vsub.f32 %v5619, 1.0
  %v5731 = vsub.f32 %v5621, 1.0
  %v5732 = vsub.f32 %v5623, 1.0
  %v5733 = vsub.f32 %v5625, 1.0
  %v5734 = vsub.f32 %v5627, 1.0
  %v5735 = vsub.f32 %v5629, 1.0
  %v5736 = vsub.f32 %v5631, 1.0
  %v5737 = vsub.f32 %v5633, 1.0
  %v5738 = vsub.f32 %v5635, 1.0
  %v5739 = vsub.f32 %v5637, 1.0
  %v5740 = vsub.f32 %v5639, 1.0
  %v5741 = vsub.f32 %v5641, 1.0
  %v5742 = vsub.f32 %v5643, 1.0
  %v5743 = vsub.f32 %v5645, 1.0
  %v5744 = vsub.f32 %v5647, 1.0
  %v5745 = vsub.f32 %v5649, 1.0
  %v5746 = vsub.f32 %v5651, 1.0
  %v5747 = vsub.f32 %v5653, 1.0
  %v5748 = vsub.f32 %v5655, 1.0
  %v5749 = vsub.f32 %v5657, 1.0
  %v5750 = vsub.f32 %v5659, 1.0
  %v5751 = vsub.f32 %v5661, 1.0
  %v5752 = vsub.f32 %v5663, 1.0
  %v5753 = vsub.f32 %v5665, 1.0
  %v5754 = vsub.f32 %v5667, 1.0
  %v5755 = vsub.f32 %v5669, 1.0
  %v5756 = vsub.f32 %v5671, 1.0
  %v5757 = vsub.f32 %v5673, 1.0
  %v5758 = vsub.f32 %v5675, 1.0
  %v5759 = vsub.f32 %v5677, 1.0
  %v5760 = vsub.f32 %v5679, 1.0
  %v5761 = vsub.f32 %v5681, 1.0
  %v5762 = vsub.f32 %v5683, 1.0
  %v5763 = vsub.f32 %v5685, 1.0
  %v5764 = vsub.f32 %v5687, 1.0
  %v5765 = vsub.f32 %v5689, 1.0
  %v5766 = vsub.f32 %v5691, 1.0
  %v5767 = vsub.f32 %v5693, 1.0
  %v5768 = vsub.f32 %v5695, 1.0
  %v5769 = vsub.f32 %v5697, 1.0
  %v5770 = vsub.f32 %v5699, 1.0
  %v5771 = vsub.f32 %v5701, 1.0
  %v5772 = vsub.f32 %v5703, 1.0
  %v5773 = vsub.f32 %v5705, 1.0
  %v5774 = vsub.f32 %v5707, 1.0
  %v5775 = vsub.f32 %v5709, 1.0
  %v5776 = vsub.f32 %v5711, 1.0
  %v5777 = vsub.f32 %v5713, 1.0
  %v5778 = vsel %vm5458, %v5394, %v5714
  %v5779 = vsel %vm5459, %v5395, %v5715
  %v5780 = vsel %vm5460, %v5396, %v5716
  %v5781 = vsel %vm5461, %v5397, %v5717
  %v5782 = vsel %vm5462, %v5398, %v5718
  %v5783 = vsel %vm5463, %v5399, %v5719
  %v5784 = vsel %vm5464, %v5400, %v5720
  %v5785 = vsel %vm5465, %v5401, %v5721
  %v5786 = vsel %vm5466, %v5402, %v5722
  %v5787 = vsel %vm5467, %v5403, %v5723
  %v5788 = vsel %vm5468, %v5404, %v5724
  %v5789 = vsel %vm5469, %v5405, %v5725
  %v5790 = vsel %vm5470, %v5406, %v5726
  %v5791 = vsel %vm5471, %v5407, %v5727
  %v5792 = vsel %vm5472, %v5408, %v5728
  %v5793 = vsel %vm5473, %v5409, %v5729
  %v5794 = vsel %vm5474, %v5410, %v5730
  %v5795 = vsel %vm5475, %v5411, %v5731
  %v5796 = vsel %vm5476, %v5412, %v5732
  %v5797 = vsel %vm5477, %v5413, %v5733
  %v5798 = vsel %vm5478, %v5414, %v5734
  %v5799 = vsel %vm5479, %v5415, %v5735
  %v5800 = vsel %vm5480, %v5416, %v5736
  %v5801 = vsel %vm5481, %v5417, %v5737
  %v5802 = vsel %vm5482, %v5418, %v5738
  %v5803 = vsel %vm5483, %v5419, %v5739
  %v5804 = vsel %vm5484, %v5420, %v5740
  %v5805 = vsel %vm5485, %v5421, %v5741
  %v5806 = vsel %vm5486, %v5422, %v5742
  %v5807 = vsel %vm5487, %v5423, %v5743
  %v5808 = vsel %vm5488, %v5424, %v5744
  %v5809 = vsel %vm5489, %v5425, %v5745
  %v5810 = vsel %vm5490, %v5426, %v5746
  %v5811 = vsel %vm5491, %v5427, %v5747
  %v5812 = vsel %vm5492, %v5428, %v5748
  %v5813 = vsel %vm5493, %v5429, %v5749
  %v5814 = vsel %vm5494, %v5430, %v5750
  %v5815 = vsel %vm5495, %v5431, %v5751
  %v5816 = vsel %vm5496, %v5432, %v5752
  %v5817 = vsel %vm5497, %v5433, %v5753
  %v5818 = vsel %vm5498, %v5434, %v5754
  %v5819 = vsel %vm5499, %v5435, %v5755
  %v5820 = vsel %vm5500, %v5436, %v5756
  %v5821 = vsel %vm5501, %v5437, %v5757
  %v5822 = vsel %vm5502, %v5438, %v5758
  %v5823 = vsel %vm5503, %v5439, %v5759
  %v5824 = vsel %vm5504, %v5440, %v5760
  %v5825 = vsel %vm5505, %v5441, %v5761
  %v5826 = vsel %vm5506, %v5442, %v5762
  %v5827 = vsel %vm5507, %v5443, %v5763
  %v5828 = vsel %vm5508, %v5444, %v5764
  %v5829 = vsel %vm5509, %v5445, %v5765
  %v5830 = vsel %vm5510, %v5446, %v5766
  %v5831 = vsel %vm5511, %v5447, %v5767
  %v5832 = vsel %vm5512, %v5448, %v5768
  %v5833 = vsel %vm5513, %v5449, %v5769
  %v5834 = vsel %vm5514, %v5450, %v5770
  %v5835 = vsel %vm5515, %v5451, %v5771
  %v5836 = vsel %vm5516, %v5452, %v5772
  %v5837 = vsel %vm5517, %v5453, %v5773
  %v5838 = vsel %vm5518, %v5454, %v5774
  %v5839 = vsel %vm5519, %v5455, %v5775
  %v5840 = vsel %vm5520, %v5456, %v5776
  %v5841 = vsel %vm5521, %v5457, %v5777
  %v5842 = vmax.f32 %v5778, %v5780
  %v5843 = vmax.f32 %v5779, %v5781
  %v5844 = vmax.f32 %v5782, %v5784
  %v5845 = vmax.f32 %v5783, %v5785
  %v5846 = vmax.f32 %v5786, %v5788
  %v5847 = vmax.f32 %v5787, %v5789
  %v5848 = vmax.f32 %v5790, %v5792
  %v5849 = vmax.f32 %v5791, %v5793
  %v5850 = vmax.f32 %v5794, %v5796
  %v5851 = vmax.f32 %v5795, %v5797
  %v5852 = vmax.f32 %v5798, %v5800
  %v5853 = vmax.f32 %v5799, %v5801
  %v5854 = vmax.f32 %v5802, %v5804
  %v5855 = vmax.f32 %v5803, %v5805
  %v5856 = vmax.f32 %v5806, %v5808
  %v5857 = vmax.f32 %v5807, %v5809
  %v5858 = vmax.f32 %v5810, %v5812
  %v5859 = vmax.f32 %v5811, %v5813
  %v5860 = vmax.f32 %v5814, %v5816
  %v5861 = vmax.f32 %v5815, %v5817
  %v5862 = vmax.f32 %v5818, %v5820
  %v5863 = vmax.f32 %v5819, %v5821
  %v5864 = vmax.f32 %v5822, %v5824
  %v5865 = vmax.f32 %v5823, %v5825
  %v5866 = vmax.f32 %v5826, %v5828
  %v5867 = vmax.f32 %v5827, %v5829
  %v5868 = vmax.f32 %v5830, %v5832
  %v5869 = vmax.f32 %v5831, %v5833
  %v5870 = vmax.f32 %v5834, %v5836
  %v5871 = vmax.f32 %v5835, %v5837
  %v5872 = vmax.f32 %v5838, %v5840
  %v5873 = vmax.f32 %v5839, %v5841
  %5874 = vst.msk [vmem:[#allocation2] sm:$0xff] %vm4854, %v5842
  %5875 = vst.msk [vmem:[#allocation2 + $0x8] sm:$0xff] %vm4854, %v5843
  %5876 = vst.msk [vmem:[#allocation2 + $0x10] sm:$0xff] %vm4854, %v5844
  %5877 = vst.msk [vmem:[#allocation2 + $0x18] sm:$0xff] %vm4854, %v5845
  %5878 = vst.msk [vmem:[#allocation2 + $0x20] sm:$0xff] %vm4854, %v5846
  %5879 = vst.msk [vmem:[#allocation2 + $0x28] sm:$0xff] %vm4854, %v5847
  %5880 = vst.msk [vmem:[#allocation2 + $0x30] sm:$0xff] %vm4854, %v5848
  %5881 = vst.msk [vmem:[#allocation2 + $0x38] sm:$0xff] %vm4854, %v5849
  %5882 = vst.msk [vmem:[#allocation2 + $0x40] sm:$0xff] %vm4854, %v5850
  %5883 = vst.msk [vmem:[#allocation2 + $0x48] sm:$0xff] %vm4854, %v5851
  %5884 = vst.msk [vmem:[#allocation2 + $0x50] sm:$0xff] %vm4854, %v5852
  %5885 = vst.msk [vmem:[#allocation2 + $0x58] sm:$0xff] %vm4854, %v5853
  %5886 = vst.msk [vmem:[#allocation2 + $0x60] sm:$0xff] %vm4854, %v5854
  %5887 = vst.msk [vmem:[#allocation2 + $0x68] sm:$0xff] %vm4854, %v5855
  %5888 = vst.msk [vmem:[#allocation2 + $0x70] sm:$0xff] %vm4854, %v5856
  %5889 = vst.msk [vmem:[#allocation2 + $0x78] sm:$0xff] %vm4854, %v5857
  %5890 = vst.msk [vmem:[#allocation2 + $0x80] sm:$0xff] %vm4854, %v5858
  %5891 = vst.msk [vmem:[#allocation2 + $0x88] sm:$0xff] %vm4854, %v5859
  %5892 = vst.msk [vmem:[#allocation2 + $0x90] sm:$0xff] %vm4854, %v5860
  %5893 = vst.msk [vmem:[#allocation2 + $0x98] sm:$0xff] %vm4854, %v5861
  %5894 = vst.msk [vmem:[#allocation2 + $0xa0] sm:$0xff] %vm4854, %v5862
  %5895 = vst.msk [vmem:[#allocation2 + $0xa8] sm:$0xff] %vm4854, %v5863
  %5896 = vst.msk [vmem:[#allocation2 + $0xb0] sm:$0xff] %vm4854, %v5864
  %5897 = vst.msk [vmem:[#allocation2 + $0xb8] sm:$0xff] %vm4854, %v5865
  %5898 = vst.msk [vmem:[#allocation2 + $0xc0] sm:$0xff] %vm4854, %v5866
  %5899 = vst.msk [vmem:[#allocation2 + $0xc8] sm:$0xff] %vm4854, %v5867
  %5900 = vst.msk [vmem:[#allocation2 + $0xd0] sm:$0xff] %vm4854, %v5868
  %5901 = vst.msk [vmem:[#allocation2 + $0xd8] sm:$0xff] %vm4854, %v5869
  %5902 = vst.msk [vmem:[#allocation2 + $0xe0] sm:$0xff] %vm4854, %v5870
  %5903 = vst.msk [vmem:[#allocation2 + $0xe8] sm:$0xff] %vm4854, %v5871
  %5904 = vst.msk [vmem:[#allocation2 + $0xf0] sm:$0xff] %vm4854, %v5872
  %5905 = vst.msk [vmem:[#allocation2 + $0xf8] sm:$0xff] %vm4854, %v5873
  %v5906 = vld [vmem:[#allocation2] ss:$2 sm:$0xff]
  %s5907 = scalar_lea.vmem [#allocation2], 16
  %v5908 = vld [vmem:[%s5907] ss:$2 sm:$0xff]
  %s5909 = scalar_lea.vmem [#allocation2], 32
  %v5910 = vld [vmem:[%s5909] ss:$2 sm:$0xff]
  %s5911 = scalar_lea.vmem [#allocation2], 48
  %v5912 = vld [vmem:[%s5911] ss:$2 sm:$0xff]
  %s5913 = scalar_lea.vmem [#allocation2], 64
  %v5914 = vld [vmem:[%s5913] ss:$2 sm:$0xff]
  %s5915 = scalar_lea.vmem [#allocation2], 80
  %v5916 = vld [vmem:[%s5915] ss:$2 sm:$0xff]
  %s5917 = scalar_lea.vmem [#allocation2], 96
  %v5918 = vld [vmem:[%s5917] ss:$2 sm:$0xff]
  %s5919 = scalar_lea.vmem [#allocation2], 112
  %v5920 = vld [vmem:[%s5919] ss:$2 sm:$0xff]
  %s5921 = scalar_lea.vmem [#allocation2], 128
  %v5922 = vld [vmem:[%s5921] ss:$2 sm:$0xff]
  %s5923 = scalar_lea.vmem [#allocation2], 144
  %v5924 = vld [vmem:[%s5923] ss:$2 sm:$0xff]
  %s5925 = scalar_lea.vmem [#allocation2], 160
  %v5926 = vld [vmem:[%s5925] ss:$2 sm:$0xff]
  %s5927 = scalar_lea.vmem [#allocation2], 176
  %v5928 = vld [vmem:[%s5927] ss:$2 sm:$0xff]
  %s5929 = scalar_lea.vmem [#allocation2], 192
  %v5930 = vld [vmem:[%s5929] ss:$2 sm:$0xff]
  %s5931 = scalar_lea.vmem [#allocation2], 208
  %v5932 = vld [vmem:[%s5931] ss:$2 sm:$0xff]
  %s5933 = scalar_lea.vmem [#allocation2], 224
  %v5934 = vld [vmem:[%s5933] ss:$2 sm:$0xff]
  %s5935 = scalar_lea.vmem [#allocation2], 240
  %v5936 = vld [vmem:[%s5935] ss:$2 sm:$0xff]
  %s5937 = scalar_lea.vmem [#allocation2], 1
  %v5938 = vld [vmem:[%s5937] ss:$2 sm:$0xff]
  %s5939 = scalar_lea.vmem [#allocation2], 17
  %v5940 = vld [vmem:[%s5939] ss:$2 sm:$0xff]
  %s5941 = scalar_lea.vmem [#allocation2], 33
  %v5942 = vld [vmem:[%s5941] ss:$2 sm:$0xff]
  %s5943 = scalar_lea.vmem [#allocation2], 49
  %v5944 = vld [vmem:[%s5943] ss:$2 sm:$0xff]
  %s5945 = scalar_lea.vmem [#allocation2], 65
  %v5946 = vld [vmem:[%s5945] ss:$2 sm:$0xff]
  %s5947 = scalar_lea.vmem [#allocation2], 81
  %v5948 = vld [vmem:[%s5947] ss:$2 sm:$0xff]
  %s5949 = scalar_lea.vmem [#allocation2], 97
  %v5950 = vld [vmem:[%s5949] ss:$2 sm:$0xff]
  %s5951 = scalar_lea.vmem [#allocation2], 113
  %v5952 = vld [vmem:[%s5951] ss:$2 sm:$0xff]
  %s5953 = scalar_lea.vmem [#allocation2], 129
  %v5954 = vld [vmem:[%s5953] ss:$2 sm:$0xff]
  %s5955 = scalar_lea.vmem [#allocation2], 145
  %v5956 = vld [vmem:[%s5955] ss:$2 sm:$0xff]
  %s5957 = scalar_lea.vmem [#allocation2], 161
  %v5958 = vld [vmem:[%s5957] ss:$2 sm:$0xff]
  %s5959 = scalar_lea.vmem [#allocation2], 177
  %v5960 = vld [vmem:[%s5959] ss:$2 sm:$0xff]
  %s5961 = scalar_lea.vmem [#allocation2], 193
  %v5962 = vld [vmem:[%s5961] ss:$2 sm:$0xff]
  %s5963 = scalar_lea.vmem [#allocation2], 209
  %v5964 = vld [vmem:[%s5963] ss:$2 sm:$0xff]
  %s5965 = scalar_lea.vmem [#allocation2], 225
  %v5966 = vld [vmem:[%s5965] ss:$2 sm:$0xff]
  %s5967 = scalar_lea.vmem [#allocation2], 241
  %v5968 = vld [vmem:[%s5967] ss:$2 sm:$0xff]
  %v5969 = vmax.f32 %v5906, %v5938
  %v5970 = vmax.f32 %v5908, %v5940
  %v5971 = vmax.f32 %v5910, %v5942
  %v5972 = vmax.f32 %v5912, %v5944
  %v5973 = vmax.f32 %v5914, %v5946
  %v5974 = vmax.f32 %v5916, %v5948
  %v5975 = vmax.f32 %v5918, %v5950
  %v5976 = vmax.f32 %v5920, %v5952
  %v5977 = vmax.f32 %v5922, %v5954
  %v5978 = vmax.f32 %v5924, %v5956
  %v5979 = vmax.f32 %v5926, %v5958
  %v5980 = vmax.f32 %v5928, %v5960
  %v5981 = vmax.f32 %v5930, %v5962
  %v5982 = vmax.f32 %v5932, %v5964
  %v5983 = vmax.f32 %v5934, %v5966
  %v5984 = vmax.f32 %v5936, %v5968
  %5985 = vst.msk [vmem:[#allocation3] sm:$0xff] %vm4854, 0.0
  %vm5986 = vcmask 517120
  %5987 = vst.msk [vmem:[#allocation3 + $0x8] sm:$0x3] %vm5986, 0.0
  %5988 = vst.msk [vmem:[#allocation3 + $0x10] sm:$0xff] %vm4854, 0.0
  %5989 = vst.msk [vmem:[#allocation3 + $0x18] sm:$0x3] %vm5986, 0.0
  %5990 = vst.msk [vmem:[#allocation3 + $0x20] sm:$0xff] %vm4854, 0.0
  %5991 = vst.msk [vmem:[#allocation3 + $0x28] sm:$0x3] %vm5986, 0.0
  %5992 = vst.msk [vmem:[#allocation3 + $0x30] sm:$0xff] %vm4854, 0.0
  %5993 = vst.msk [vmem:[#allocation3 + $0x38] sm:$0x3] %vm5986, 0.0
  %5994 = vst.msk [vmem:[#allocation3 + $0x40] sm:$0xff] %vm4854, 0.0
  %5995 = vst.msk [vmem:[#allocation3 + $0x48] sm:$0x3] %vm5986, 0.0
  %5996 = vst.msk [vmem:[#allocation3 + $0x50] sm:$0xff] %vm4854, 0.0
  %5997 = vst.msk [vmem:[#allocation3 + $0x58] sm:$0x3] %vm5986, 0.0
  %5998 = vst.msk [vmem:[#allocation3 + $0x60] sm:$0xff] %vm4854, 0.0
  %5999 = vst.msk [vmem:[#allocation3 + $0x68] sm:$0x3] %vm5986, 0.0
  %6000 = vst.msk [vmem:[#allocation3 + $0x70] sm:$0xff] %vm4854, 0.0
  %6001 = vst.msk [vmem:[#allocation3 + $0x78] sm:$0x3] %vm5986, 0.0
  %6002 = vst.msk [vmem:[#allocation3 + $0x80] sm:$0xff] %vm4854, 0.0
  %6003 = vst.msk [vmem:[#allocation3 + $0x88] sm:$0x3] %vm5986, 0.0
  %6004 = vst.msk [vmem:[#allocation3 + $0x90] sm:$0xff] %vm4854, 0.0
  %6005 = vst.msk [vmem:[#allocation3 + $0x98] sm:$0x3] %vm5986, 0.0
  %6006 = vst.msk [vmem:[#allocation3 + $0xa0] sm:$0xff] %vm4854, 0.0
  %6007 = vst.msk [vmem:[#allocation3 + $0xa8] sm:$0x3] %vm5986, 0.0
  %6008 = vst.msk [vmem:[#allocation3 + $0xb0] sm:$0xff] %vm4854, 0.0
  %6009 = vst.msk [vmem:[#allocation3 + $0xb8] sm:$0x3] %vm5986, 0.0
  %6010 = vst.msk [vmem:[#allocation3 + $0xc0] sm:$0xff] %vm4854, 0.0
  %6011 = vst.msk [vmem:[#allocation3 + $0xc8] sm:$0x3] %vm5986, 0.0
  %6012 = vst.msk [vmem:[#allocation3 + $0xd0] sm:$0xff] %vm4854, 0.0
  %6013 = vst.msk [vmem:[#allocation3 + $0xd8] sm:$0x3] %vm5986, 0.0
  %6014 = vst.msk [vmem:[#allocation3 + $0xe0] sm:$0xff] %vm4854, 0.0
  %6015 = vst.msk [vmem:[#allocation3 + $0xe8] sm:$0x3] %vm5986, 0.0
  %6016 = vst.msk [vmem:[#allocation3 + $0xf0] sm:$0xff] %vm4854, 0.0
  %6017 = vst.msk [vmem:[#allocation3 + $0xf8] sm:$0x3] %vm5986, 0.0
  %6018 = vst.msk [vmem:[#allocation3 + $0x100] sm:$0xff] %vm4854, 0.0
  %6019 = vst.msk [vmem:[#allocation3 + $0x108] sm:$0x3] %vm5986, 0.0
  %6020 = vst.msk [vmem:[#allocation3 + $0x110] sm:$0xff] %vm4854, 0.0
  %6021 = vst.msk [vmem:[#allocation3 + $0x118] sm:$0x3] %vm5986, 0.0
  %6022 = vst.msk [vmem:[#allocation3 + $0x120] sm:$0xff] %vm4854, 0.0
  %6023 = vst.msk [vmem:[#allocation3 + $0x128] sm:$0x3] %vm5986, 0.0
  %6024 = vst.msk [vmem:[#allocation3 + $0x130] sm:$0xff] %vm4854, 0.0
  %6025 = vst.msk [vmem:[#allocation3 + $0x138] sm:$0x3] %vm5986, 0.0
  %s6026 = scalar_lea.vmem [#allocation3], 16
  %6027 = vst.msk [vmem:[%s6026 + $0x1] sm:$0xff] %vm4854, %v5969
  %6028 = vst.msk [vmem:[%s6026 + $0x11] sm:$0xff] %vm4854, %v5970
  %6029 = vst.msk [vmem:[%s6026 + $0x21] sm:$0xff] %vm4854, %v5971
  %6030 = vst.msk [vmem:[%s6026 + $0x31] sm:$0xff] %vm4854, %v5972
  %6031 = vst.msk [vmem:[%s6026 + $0x41] sm:$0xff] %vm4854, %v5973
  %6032 = vst.msk [vmem:[%s6026 + $0x51] sm:$0xff] %vm4854, %v5974
  %6033 = vst.msk [vmem:[%s6026 + $0x61] sm:$0xff] %vm4854, %v5975
  %6034 = vst.msk [vmem:[%s6026 + $0x71] sm:$0xff] %vm4854, %v5976
  %6035 = vst.msk [vmem:[%s6026 + $0xa1] sm:$0xff] %vm4854, %v5977
  %6036 = vst.msk [vmem:[%s6026 + $0xb1] sm:$0xff] %vm4854, %v5978
  %6037 = vst.msk [vmem:[%s6026 + $0xc1] sm:$0xff] %vm4854, %v5979
  %6038 = vst.msk [vmem:[%s6026 + $0xd1] sm:$0xff] %vm4854, %v5980
  %6039 = vst.msk [vmem:[%s6026 + $0xe1] sm:$0xff] %vm4854, %v5981
  %6040 = vst.msk [vmem:[%s6026 + $0xf1] sm:$0xff] %vm4854, %v5982
  %6041 = vst.msk [vmem:[%s6026 + $0x101] sm:$0xff] %vm4854, %v5983
  %6042 = vst.msk [vmem:[%s6026 + $0x111] sm:$0xff] %vm4854, %v5984
  %v6043 = vld [vmem:[#allocation3] sm:$0xff]
  %v6044 = vld [vmem:[#allocation3 + $0x10] sm:$0xff]
  %v6045 = vld [vmem:[#allocation3 + $0x20] sm:$0xff]
  %v6046 = vld [vmem:[#allocation3 + $0x30] sm:$0xff]
  %v6047 = vld [vmem:[#allocation3 + $0x40] sm:$0xff]
  %v6048 = vld [vmem:[#allocation3 + $0x50] sm:$0xff]
  %v6049 = vld [vmem:[#allocation3 + $0x60] sm:$0xff]
  %v6050 = vld [vmem:[#allocation3 + $0x70] sm:$0xff]
  %v6051 = vld [vmem:[#allocation3 + $0xa0] sm:$0xff]
  %v6052 = vld [vmem:[#allocation3 + $0xb0] sm:$0xff]
  %v6053 = vld [vmem:[#allocation3 + $0xc0] sm:$0xff]
  %v6054 = vld [vmem:[#allocation3 + $0xd0] sm:$0xff]
  %v6055 = vld [vmem:[#allocation3 + $0xe0] sm:$0xff]
  %v6056 = vld [vmem:[#allocation3 + $0xf0] sm:$0xff]
  %v6057 = vld [vmem:[#allocation3 + $0x100] sm:$0xff]
  %v6058 = vld [vmem:[#allocation3 + $0x110] sm:$0xff]
  %v6059 = vpack.c.bf16 %v6044, %v6043
  %v6060 = vpack.c.bf16 %v6046, %v6045
  %v6061 = vpack.c.bf16 %v6048, %v6047
  %v6062 = vpack.c.bf16 %v6050, %v6049
  %v6063 = vpack.c.bf16 %v6052, %v6051
  %v6064 = vpack.c.bf16 %v6054, %v6053
  %v6065 = vpack.c.bf16 %v6056, %v6055
  %v6066 = vpack.c.bf16 %v6058, %v6057
  %v6067 = vld [vmem:[%s4] sm:$0xf]
  %v6068 = vld [vmem:[%s4 + $0x4] sm:$0xf]
  %v6069 = vld [vmem:[%s4 + $0x8] sm:$0xf]
  %v6070 = vld [vmem:[%s4 + $0xc] sm:$0xf]
  %v6071 = vld [vmem:[%s4 + $0x10] sm:$0xf]
  %v6072 = vld [vmem:[%s4 + $0x14] sm:$0xf]
  %v6073 = vld [vmem:[%s4 + $0x18] sm:$0xf]
  %v6074 = vld [vmem:[%s4 + $0x1c] sm:$0xf]
  %v6075 = vld [vmem:[#allocation3 + $0x1] sm:$0xff]
  %v6076 = vld [vmem:[#allocation3 + $0x11] sm:$0xff]
  %v6077 = vld [vmem:[#allocation3 + $0x21] sm:$0xff]
  %v6078 = vld [vmem:[#allocation3 + $0x31] sm:$0xff]
  %v6079 = vld [vmem:[#allocation3 + $0x41] sm:$0xff]
  %v6080 = vld [vmem:[#allocation3 + $0x51] sm:$0xff]
  %v6081 = vld [vmem:[#allocation3 + $0x61] sm:$0xff]
  %v6082 = vld [vmem:[#allocation3 + $0x71] sm:$0xff]
  %v6083 = vld [vmem:[#allocation3 + $0xa1] sm:$0xff]
  %v6084 = vld [vmem:[#allocation3 + $0xb1] sm:$0xff]
  %v6085 = vld [vmem:[#allocation3 + $0xc1] sm:$0xff]
  %v6086 = vld [vmem:[#allocation3 + $0xd1] sm:$0xff]
  %v6087 = vld [vmem:[#allocation3 + $0xe1] sm:$0xff]
  %v6088 = vld [vmem:[#allocation3 + $0xf1] sm:$0xff]
  %v6089 = vld [vmem:[#allocation3 + $0x101] sm:$0xff]
  %v6090 = vld [vmem:[#allocation3 + $0x111] sm:$0xff]
  %v6091 = vpack.c.bf16 %v6076, %v6075
  %v6092 = vpack.c.bf16 %v6078, %v6077
  %v6093 = vpack.c.bf16 %v6080, %v6079
  %v6094 = vpack.c.bf16 %v6082, %v6081
  %v6095 = vpack.c.bf16 %v6084, %v6083
  %v6096 = vpack.c.bf16 %v6086, %v6085
  %v6097 = vpack.c.bf16 %v6088, %v6087
  %v6098 = vpack.c.bf16 %v6090, %v6089
  %s6099 = scalar_lea.vmem %s4, 32
  %v6100 = vld [vmem:[%s6099] sm:$0xf]
  %v6101 = vld [vmem:[%s6099 + $0x4] sm:$0xf]
  %v6102 = vld [vmem:[%s6099 + $0x8] sm:$0xf]
  %v6103 = vld [vmem:[%s6099 + $0xc] sm:$0xf]
  %v6104 = vld [vmem:[%s6099 + $0x10] sm:$0xf]
  %v6105 = vld [vmem:[%s6099 + $0x14] sm:$0xf]
  %v6106 = vld [vmem:[%s6099 + $0x18] sm:$0xf]
  %v6107 = vld [vmem:[%s6099 + $0x1c] sm:$0xf]
  %v6116 = vunpack.c.l.b16 %v6100
  %v6117 = vunpack.c.l.b16 %v6101
  %v6118 = vunpack.c.l.b16 %v6102
  %v6119 = vunpack.c.l.b16 %v6103
  %v6120 = vunpack.c.l.b16 %v6104
  %v6121 = vunpack.c.l.b16 %v6105
  %v6122 = vunpack.c.l.b16 %v6106
  %v6123 = vunpack.c.l.b16 %v6107
  %v6124 = vpack.c.b16 %v6117, %v6116
  %v6125 = vpack.c.b16 %v6119, %v6118
  %v6126 = vpack.c.b16 %v6121, %v6120
  %v6127 = vpack.c.b16 %v6123, %v6122
  %v6133 = vsel %vm4854, %v6091, 0
  %v6136 = vsel %vm4854, %v6092, 0
  %v6139 = vsel %vm4854, %v6093, 0
  %v6142 = vsel %vm4854, %v6094, 0
  %v6145 = vsel %vm4854, %v6095, 0
  %v6148 = vsel %vm4854, %v6096, 0
  %v6151 = vsel %vm4854, %v6097, 0
  %v6154 = vsel %vm4854, %v6098, 0
  %6156 = vmatprep.subr.bf16.mxu0 0
  %6157 = vmatpush1.bf16.msra.mxu0 %v6124
  %6158 = vmatprep.subr.bf16.mxu0 0
  %6159 = vmatpush1.bf16.msra.mxu0 %v6125
  %6160 = vmatprep.subr.bf16.mxu0 0
  %6161 = vmatpush1.bf16.msra.mxu0 %v6126
  %6162 = vmatprep.subr.bf16.mxu0 0
  %6163 = vmatpush1.bf16.msra.mxu0 %v6127
  %6164 = vmatprep.subr.bf16.mxu0 0
  %6165 = vmatpush1.bf16.msra.mxu0 0
  %6166 = vmatprep.subr.bf16.mxu0 0
  %6167 = vmatpush1.bf16.msra.mxu0 0
  %6168 = vmatprep.subr.bf16.mxu0 0
  %6169 = vmatpush1.bf16.msra.mxu0 0
  %6170 = vmatprep.subr.bf16.mxu0 0
  %6171 = vmatpush1.bf16.msra.mxu0 0
  %6172 = vmatprep.subr.bf16.mxu0 0
  %6173 = vmatpush1.bf16.msra.mxu0 0
  %6174 = vmatprep.subr.bf16.mxu0 0
  %6175 = vmatpush1.bf16.msra.mxu0 0
  %6176 = vmatprep.subr.bf16.mxu0 0
  %6177 = vmatpush1.bf16.msra.mxu0 0
  %6178 = vmatprep.subr.bf16.mxu0 0
  %6179 = vmatpush1.bf16.msra.mxu0 0
  %6180 = vmatprep.subr.bf16.mxu0 0
  %6181 = vmatpush1.bf16.msra.mxu0 0
  %6182 = vmatprep.subr.bf16.mxu0 0
  %6183 = vmatpush1.bf16.msra.mxu0 0
  %6184 = vmatprep.subr.bf16.mxu0 0
  %6185 = vmatpush1.bf16.msra.mxu0 0
  %6186 = vmatprep.subr.bf16.mxu0 0
  %6187 = vmatpush1.bf16.msra.mxu0 0
  %6188 = vmatprep.mubr.bf16.mxu0 0
  %6189 = vmatmul.mubr.bf16.gmra.mrb[0].mxu0 %v6133
  %v6190 = vpop.f32.mrb[0].mxu0
  %v6191 = vadd.f32 0.0, %v6190
  %v6192 = vpop.f32.mrb[0].mxu0
  %v6193 = vpop.f32.mrb[0].mxu0
  %v6194 = vadd.f32 0.0, %v6193
  %v6195 = vpop.f32.mrb[0].mxu0
  %6196 = vmatprep.mubr.bf16.mxu0 0
  %6197 = vmatmul.mubr.bf16.gmra.mrb[0].mxu0 %v6136
  %v6198 = vpop.f32.mrb[0].mxu0
  %v6199 = vadd.f32 0.0, %v6198
  %v6200 = vpop.f32.mrb[0].mxu0
  %v6201 = vpop.f32.mrb[0].mxu0
  %v6202 = vadd.f32 0.0, %v6201
  %v6203 = vpop.f32.mrb[0].mxu0
  %6204 = vmatprep.mubr.bf16.mxu0 0
  %6205 = vmatmul.mubr.bf16.gmra.mrb[0].mxu0 %v6139
  %v6206 = vpop.f32.mrb[0].mxu0
  %v6207 = vadd.f32 0.0, %v6206
  %v6208 = vpop.f32.mrb[0].mxu0
  %v6209 = vpop.f32.mrb[0].mxu0
  %v6210 = vadd.f32 0.0, %v6209
  %v6211 = vpop.f32.mrb[0].mxu0
  %6212 = vmatprep.mubr.bf16.mxu0 0
  %6213 = vmatmul.mubr.bf16.gmra.mrb[0].mxu0 %v6142
  %v6214 = vpop.f32.mrb[0].mxu0
  %v6215 = vadd.f32 0.0, %v6214
  %v6216 = vpop.f32.mrb[0].mxu0
  %v6217 = vpop.f32.mrb[0].mxu0
  %v6218 = vadd.f32 0.0, %v6217
  %v6219 = vpop.f32.mrb[0].mxu0
  %6220 = vmatprep.mubr.bf16.mxu0 0
  %6221 = vmatmul.mubr.bf16.gmra.mrb[0].mxu0 %v6145
  %v6222 = vpop.f32.mrb[0].mxu0
  %v6223 = vadd.f32 0.0, %v6222
  %v6224 = vpop.f32.mrb[0].mxu0
  %v6225 = vpop.f32.mrb[0].mxu0
  %v6226 = vadd.f32 0.0, %v6225
  %v6227 = vpop.f32.mrb[0].mxu0
  %6228 = vmatprep.mubr.bf16.mxu0 0
  %6229 = vmatmul.mubr.bf16.gmra.mrb[0].mxu0 %v6148
  %v6230 = vpop.f32.mrb[0].mxu0
  %v6231 = vadd.f32 0.0, %v6230
  %v6232 = vpop.f32.mrb[0].mxu0
  %v6233 = vpop.f32.mrb[0].mxu0
  %v6234 = vadd.f32 0.0, %v6233
  %v6235 = vpop.f32.mrb[0].mxu0
  %6236 = vmatprep.mubr.bf16.mxu0 0
  %6237 = vmatmul.mubr.bf16.gmra.mrb[0].mxu0 %v6151
  %v6238 = vpop.f32.mrb[0].mxu0
  %v6239 = vadd.f32 0.0, %v6238
  %v6240 = vpop.f32.mrb[0].mxu0
  %v6241 = vpop.f32.mrb[0].mxu0
  %v6242 = vadd.f32 0.0, %v6241
  %v6243 = vpop.f32.mrb[0].mxu0
  %6244 = vmatprep.mubr.bf16.mxu0 0
  %6245 = vmatmul.mubr.bf16.gmra.mrb[0].mxu0 %v6154
  %v6246 = vpop.f32.mrb[0].mxu0
  %v6247 = vadd.f32 0.0, %v6246
  %v6248 = vpop.f32.mrb[0].mxu0
  %v6249 = vpop.f32.mrb[0].mxu0
  %v6250 = vadd.f32 0.0, %v6249
  %v6251 = vpop.f32.mrb[0].mxu0
  %6252 = vdwg.mxu0
  %v6261 = vunpack.c.l.b16 %v6067
  %v6262 = vunpack.c.l.b16 %v6068
  %v6263 = vunpack.c.l.b16 %v6069
  %v6264 = vunpack.c.l.b16 %v6070
  %v6265 = vunpack.c.l.b16 %v6071
  %v6266 = vunpack.c.l.b16 %v6072
  %v6267 = vunpack.c.l.b16 %v6073
  %v6268 = vunpack.c.l.b16 %v6074
  %v6269 = vpack.c.b16 %v6262, %v6261
  %v6270 = vpack.c.b16 %v6264, %v6263
  %v6271 = vpack.c.b16 %v6266, %v6265
  %v6272 = vpack.c.b16 %v6268, %v6267
  %v6278 = vsel %vm4854, %v6059, 0
  %v6281 = vsel %vm4854, %v6060, 0
  %v6284 = vsel %vm4854, %v6061, 0
  %v6287 = vsel %vm4854, %v6062, 0
  %v6290 = vsel %vm4854, %v6063, 0
  %v6293 = vsel %vm4854, %v6064, 0
  %v6296 = vsel %vm4854, %v6065, 0
  %v6299 = vsel %vm4854, %v6066, 0
  %6301 = vmatprep.subr.bf16.mxu0 0
  %6302 = vmatpush1.bf16.msra.mxu0 %v6269
  %6303 = vmatprep.subr.bf16.mxu0 0
  %6304 = vmatpush1.bf16.msra.mxu0 %v6270
  %6305 = vmatprep.subr.bf16.mxu0 0
  %6306 = vmatpush1.bf16.msra.mxu0 %v6271
  %6307 = vmatprep.subr.bf16.mxu0 0
  %6308 = vmatpush1.bf16.msra.mxu0 %v6272
  %6309 = vmatprep.subr.bf16.mxu0 0
  %6310 = vmatpush1.bf16.msra.mxu0 0
  %6311 = vmatprep.subr.bf16.mxu0 0
  %6312 = vmatpush1.bf16.msra.mxu0 0
  %6313 = vmatprep.subr.bf16.mxu0 0
  %6314 = vmatpush1.bf16.msra.mxu0 0
  %6315 = vmatprep.subr.bf16.mxu0 0
  %6316 = vmatpush1.bf16.msra.mxu0 0
  %6317 = vmatprep.subr.bf16.mxu0 0
  %6318 = vmatpush1.bf16.msra.mxu0 0
  %6319 = vmatprep.subr.bf16.mxu0 0
  %6320 = vmatpush1.bf16.msra.mxu0 0
  %6321 = vmatprep.subr.bf16.mxu0 0
  %6322 = vmatpush1.bf16.msra.mxu0 0
  %6323 = vmatprep.subr.bf16.mxu0 0
  %6324 = vmatpush1.bf16.msra.mxu0 0
  %6325 = vmatprep.subr.bf16.mxu0 0
  %6326 = vmatpush1.bf16.msra.mxu0 0
  %6327 = vmatprep.subr.bf16.mxu0 0
  %6328 = vmatpush1.bf16.msra.mxu0 0
  %6329 = vmatprep.subr.bf16.mxu0 0
  %6330 = vmatpush1.bf16.msra.mxu0 0
  %6331 = vmatprep.subr.bf16.mxu0 0
  %6332 = vmatpush1.bf16.msra.mxu0 0
  %6333 = vmatprep.mubr.bf16.mxu0 0
  %6334 = vmatmul.mubr.bf16.gmra.mrb[0].mxu0 %v6278
  %v6335 = vpop.f32.mrb[0].mxu0
  %v6336 = vadd.f32 %v6191, %v6335
  %v6337 = vpop.f32.mrb[0].mxu0
  %v6338 = vpop.f32.mrb[0].mxu0
  %v6339 = vadd.f32 %v6194, %v6338
  %v6340 = vpop.f32.mrb[0].mxu0
  %6341 = vmatprep.mubr.bf16.mxu0 0
  %6342 = vmatmul.mubr.bf16.gmra.mrb[0].mxu0 %v6281
  %v6343 = vpop.f32.mrb[0].mxu0
  %v6344 = vadd.f32 %v6199, %v6343
  %v6345 = vpop.f32.mrb[0].mxu0
  %v6346 = vpop.f32.mrb[0].mxu0
  %v6347 = vadd.f32 %v6202, %v6346
  %v6348 = vpop.f32.mrb[0].mxu0
  %6349 = vmatprep.mubr.bf16.mxu0 0
  %6350 = vmatmul.mubr.bf16.gmra.mrb[0].mxu0 %v6284
  %v6351 = vpop.f32.mrb[0].mxu0
  %v6352 = vadd.f32 %v6207, %v6351
  %v6353 = vpop.f32.mrb[0].mxu0
  %v6354 = vpop.f32.mrb[0].mxu0
  %v6355 = vadd.f32 %v6210, %v6354
  %v6356 = vpop.f32.mrb[0].mxu0
  %6357 = vmatprep.mubr.bf16.mxu0 0
  %6358 = vmatmul.mubr.bf16.gmra.mrb[0].mxu0 %v6287
  %v6359 = vpop.f32.mrb[0].mxu0
  %v6360 = vadd.f32 %v6215, %v6359
  %v6361 = vpop.f32.mrb[0].mxu0
  %v6362 = vpop.f32.mrb[0].mxu0
  %v6363 = vadd.f32 %v6218, %v6362
  %v6364 = vpop.f32.mrb[0].mxu0
  %6365 = vmatprep.mubr.bf16.mxu0 0
  %6366 = vmatmul.mubr.bf16.gmra.mrb[0].mxu0 %v6290
  %v6367 = vpop.f32.mrb[0].mxu0
  %v6368 = vadd.f32 %v6223, %v6367
  %v6369 = vpop.f32.mrb[0].mxu0
  %v6370 = vpop.f32.mrb[0].mxu0
  %v6371 = vadd.f32 %v6226, %v6370
  %v6372 = vpop.f32.mrb[0].mxu0
  %6373 = vmatprep.mubr.bf16.mxu0 0
  %6374 = vmatmul.mubr.bf16.gmra.mrb[0].mxu0 %v6293
  %v6375 = vpop.f32.mrb[0].mxu0
  %v6376 = vadd.f32 %v6231, %v6375
  %v6377 = vpop.f32.mrb[0].mxu0
  %v6378 = vpop.f32.mrb[0].mxu0
  %v6379 = vadd.f32 %v6234, %v6378
  %v6380 = vpop.f32.mrb[0].mxu0
  %6381 = vmatprep.mubr.bf16.mxu0 0
  %6382 = vmatmul.mubr.bf16.gmra.mrb[0].mxu0 %v6296
  %v6383 = vpop.f32.mrb[0].mxu0
  %v6384 = vadd.f32 %v6239, %v6383
  %v6385 = vpop.f32.mrb[0].mxu0
  %v6386 = vpop.f32.mrb[0].mxu0
  %v6387 = vadd.f32 %v6242, %v6386
  %v6388 = vpop.f32.mrb[0].mxu0
  %6389 = vmatprep.mubr.bf16.mxu0 0
  %6390 = vmatmul.mubr.bf16.gmra.mrb[0].mxu0 %v6299
  %v6391 = vpop.f32.mrb[0].mxu0
  %v6392 = vadd.f32 %v6247, %v6391
  %v6393 = vpop.f32.mrb[0].mxu0
  %v6394 = vpop.f32.mrb[0].mxu0
  %v6395 = vadd.f32 %v6250, %v6394
  %v6396 = vpop.f32.mrb[0].mxu0
  %6397 = vdwg.mxu0
  %v6398 = vld [vmem:[#allocation3 + $0x2] sm:$0xff]
  %v6399 = vld [vmem:[#allocation3 + $0x12] sm:$0xff]
  %v6400 = vld [vmem:[#allocation3 + $0x22] sm:$0xff]
  %v6401 = vld [vmem:[#allocation3 + $0x32] sm:$0xff]
  %v6402 = vld [vmem:[#allocation3 + $0x42] sm:$0xff]
  %v6403 = vld [vmem:[#allocation3 + $0x52] sm:$0xff]
  %v6404 = vld [vmem:[#allocation3 + $0x62] sm:$0xff]
  %v6405 = vld [vmem:[#allocation3 + $0x72] sm:$0xff]
  %v6406 = vld [vmem:[#allocation3 + $0xa2] sm:$0xff]
  %v6407 = vld [vmem:[#allocation3 + $0xb2] sm:$0xff]
  %v6408 = vld [vmem:[#allocation3 + $0xc2] sm:$0xff]
  %v6409 = vld [vmem:[#allocation3 + $0xd2] sm:$0xff]
  %v6410 = vld [vmem:[#allocation3 + $0xe2] sm:$0xff]
  %v6411 = vld [vmem:[#allocation3 + $0xf2] sm:$0xff]
  %v6412 = vld [vmem:[#allocation3 + $0x102] sm:$0xff]
  %v6413 = vld [vmem:[#allocation3 + $0x112] sm:$0xff]
  %v6414 = vpack.c.bf16 %v6399, %v6398
  %v6415 = vpack.c.bf16 %v6401, %v6400
  %v6416 = vpack.c.bf16 %v6403, %v6402
  %v6417 = vpack.c.bf16 %v6405, %v6404
  %v6418 = vpack.c.bf16 %v6407, %v6406
  %v6419 = vpack.c.bf16 %v6409, %v6408
  %v6420 = vpack.c.bf16 %v6411, %v6410
  %v6421 = vpack.c.bf16 %v6413, %v6412
  %s6422 = scalar_lea.vmem %s4, 64
  %v6423 = vld [vmem:[%s6422] sm:$0xf]
  %v6424 = vld [vmem:[%s6422 + $0x4] sm:$0xf]
  %v6425 = vld [vmem:[%s6422 + $0x8] sm:$0xf]
  %v6426 = vld [vmem:[%s6422 + $0xc] sm:$0xf]
  %v6427 = vld [vmem:[%s6422 + $0x10] sm:$0xf]
  %v6428 = vld [vmem:[%s6422 + $0x14] sm:$0xf]
  %v6429 = vld [vmem:[%s6422 + $0x18] sm:$0xf]
  %v6430 = vld [vmem:[%s6422 + $0x1c] sm:$0xf]
  %v6439 = vunpack.c.l.b16 %v6423
  %v6440 = vunpack.c.l.b16 %v6424
  %v6441 = vunpack.c.l.b16 %v6425
  %v6442 = vunpack.c.l.b16 %v6426
  %v6443 = vunpack.c.l.b16 %v6427
  %v6444 = vunpack.c.l.b16 %v6428
  %v6445 = vunpack.c.l.b16 %v6429
  %v6446 = vunpack.c.l.b16 %v6430
  %v6447 = vpack.c.b16 %v6440, %v6439
  %v6448 = vpack.c.b16 %v6442, %v6441
  %v6449 = vpack.c.b16 %v6444, %v6443
  %v6450 = vpack.c.b16 %v6446, %v6445
  %v6456 = vsel %vm4854, %v6414, 0
  %v6459 = vsel %vm4854, %v6415, 0
  %v6462 = vsel %vm4854, %v6416, 0
  %v6465 = vsel %vm4854, %v6417, 0
  %v6468 = vsel %vm4854, %v6418, 0
  %v6471 = vsel %vm4854, %v6419, 0
  %v6474 = vsel %vm4854, %v6420, 0
  %v6477 = vsel %vm4854, %v6421, 0
  %6479 = vmatprep.subr.bf16.mxu0 0
  %6480 = vmatpush1.bf16.msra.mxu0 %v6447
  %6481 = vmatprep.subr.bf16.mxu0 0
  %6482 = vmatpush1.bf16.msra.mxu0 %v6448
  %6483 = vmatprep.subr.bf16.mxu0 0
  %6484 = vmatpush1.bf16.msra.mxu0 %v6449
  %6485 = vmatprep.subr.bf16.mxu0 0
  %6486 = vmatpush1.bf16.msra.mxu0 %v6450
  %6487 = vmatprep.subr.bf16.mxu0 0
  %6488 = vmatpush1.bf16.msra.mxu0 0
  %6489 = vmatprep.subr.bf16.mxu0 0
  %6490 = vmatpush1.bf16.msra.mxu0 0
  %6491 = vmatprep.subr.bf16.mxu0 0
  %6492 = vmatpush1.bf16.msra.mxu0 0
  %6493 = vmatprep.subr.bf16.mxu0 0
  %6494 = vmatpush1.bf16.msra.mxu0 0
  %6495 = vmatprep.subr.bf16.mxu0 0
  %6496 = vmatpush1.bf16.msra.mxu0 0
  %6497 = vmatprep.subr.bf16.mxu0 0
  %6498 = vmatpush1.bf16.msra.mxu0 0
  %6499 = vmatprep.subr.bf16.mxu0 0
  %6500 = vmatpush1.bf16.msra.mxu0 0
  %6501 = vmatprep.subr.bf16.mxu0 0
  %6502 = vmatpush1.bf16.msra.mxu0 0
  %6503 = vmatprep.subr.bf16.mxu0 0
  %6504 = vmatpush1.bf16.msra.mxu0 0
  %6505 = vmatprep.subr.bf16.mxu0 0
  %6506 = vmatpush1.bf16.msra.mxu0 0
  %6507 = vmatprep.subr.bf16.mxu0 0
  %6508 = vmatpush1.bf16.msra.mxu0 0
  %6509 = vmatprep.subr.bf16.mxu0 0
  %6510 = vmatpush1.bf16.msra.mxu0 0
  %6511 = vmatprep.mubr.bf16.mxu0 0
  %6512 = vmatmul.mubr.bf16.gmra.mrb[0].mxu0 %v6456
  %v6513 = vpop.f32.mrb[0].mxu0
  %v6514 = vadd.f32 0.0, %v6513
  %v6515 = vpop.f32.mrb[0].mxu0
  %v6516 = vpop.f32.mrb[0].mxu0
  %v6517 = vadd.f32 0.0, %v6516
  %v6518 = vpop.f32.mrb[0].mxu0
  %6519 = vmatprep.mubr.bf16.mxu0 0
  %6520 = vmatmul.mubr.bf16.gmra.mrb[0].mxu0 %v6459
  %v6521 = vpop.f32.mrb[0].mxu0
  %v6522 = vadd.f32 0.0, %v6521
  %v6523 = vpop.f32.mrb[0].mxu0
  %v6524 = vpop.f32.mrb[0].mxu0
  %v6525 = vadd.f32 0.0, %v6524
  %v6526 = vpop.f32.mrb[0].mxu0
  %6527 = vmatprep.mubr.bf16.mxu0 0
  %6528 = vmatmul.mubr.bf16.gmra.mrb[0].mxu0 %v6462
  %v6529 = vpop.f32.mrb[0].mxu0
  %v6530 = vadd.f32 0.0, %v6529
  %v6531 = vpop.f32.mrb[0].mxu0
  %v6532 = vpop.f32.mrb[0].mxu0
  %v6533 = vadd.f32 0.0, %v6532
  %v6534 = vpop.f32.mrb[0].mxu0
  %6535 = vmatprep.mubr.bf16.mxu0 0
  %6536 = vmatmul.mubr.bf16.gmra.mrb[0].mxu0 %v6465
  %v6537 = vpop.f32.mrb[0].mxu0
  %v6538 = vadd.f32 0.0, %v6537
  %v6539 = vpop.f32.mrb[0].mxu0
  %v6540 = vpop.f32.mrb[0].mxu0
  %v6541 = vadd.f32 0.0, %v6540
  %v6542 = vpop.f32.mrb[0].mxu0
  %6543 = vmatprep.mubr.bf16.mxu0 0
  %6544 = vmatmul.mubr.bf16.gmra.mrb[0].mxu0 %v6468
  %v6545 = vpop.f32.mrb[0].mxu0
  %v6546 = vadd.f32 0.0, %v6545
  %v6547 = vpop.f32.mrb[0].mxu0
  %v6548 = vpop.f32.mrb[0].mxu0
  %v6549 = vadd.f32 0.0, %v6548
  %v6550 = vpop.f32.mrb[0].mxu0
  %6551 = vmatprep.mubr.bf16.mxu0 0
  %6552 = vmatmul.mubr.bf16.gmra.mrb[0].mxu0 %v6471
  %v6553 = vpop.f32.mrb[0].mxu0
  %v6554 = vadd.f32 0.0, %v6553
  %v6555 = vpop.f32.mrb[0].mxu0
  %v6556 = vpop.f32.mrb[0].mxu0
  %v6557 = vadd.f32 0.0, %v6556
  %v6558 = vpop.f32.mrb[0].mxu0
  %6559 = vmatprep.mubr.bf16.mxu0 0
  %6560 = vmatmul.mubr.bf16.gmra.mrb[0].mxu0 %v6474
  %v6561 = vpop.f32.mrb[0].mxu0
  %v6562 = vadd.f32 0.0, %v6561
  %v6563 = vpop.f32.mrb[0].mxu0
  %v6564 = vpop.f32.mrb[0].mxu0
  %v6565 = vadd.f32 0.0, %v6564
  %v6566 = vpop.f32.mrb[0].mxu0
  %6567 = vmatprep.mubr.bf16.mxu0 0
  %6568 = vmatmul.mubr.bf16.gmra.mrb[0].mxu0 %v6477
  %v6569 = vpop.f32.mrb[0].mxu0
  %v6570 = vadd.f32 0.0, %v6569
  %v6571 = vpop.f32.mrb[0].mxu0
  %v6572 = vpop.f32.mrb[0].mxu0
  %v6573 = vadd.f32 0.0, %v6572
  %v6574 = vpop.f32.mrb[0].mxu0
  %6575 = vdwg.mxu0
  %v6576 = vadd.f32 %v6336, %v6514
  %v6577 = vadd.f32 %v6339, %v6517
  %v6578 = vadd.f32 %v6344, %v6522
  %v6579 = vadd.f32 %v6347, %v6525
  %v6580 = vadd.f32 %v6352, %v6530
  %v6581 = vadd.f32 %v6355, %v6533
  %v6582 = vadd.f32 %v6360, %v6538
  %v6583 = vadd.f32 %v6363, %v6541
  %v6584 = vadd.f32 %v6368, %v6546
  %v6585 = vadd.f32 %v6371, %v6549
  %v6586 = vadd.f32 %v6376, %v6554
  %v6587 = vadd.f32 %v6379, %v6557
  %v6588 = vadd.f32 %v6384, %v6562
  %v6589 = vadd.f32 %v6387, %v6565
  %v6590 = vadd.f32 %v6392, %v6570
  %v6591 = vadd.f32 %v6395, %v6573
  %v6592 = vld [vmem:[%s6026] sm:$0xff]
  %v6593 = vld [vmem:[%s6026 + $0x10] sm:$0xff]
  %v6594 = vld [vmem:[%s6026 + $0x20] sm:$0xff]
  %v6595 = vld [vmem:[%s6026 + $0x30] sm:$0xff]
  %v6596 = vld [vmem:[%s6026 + $0x40] sm:$0xff]
  %v6597 = vld [vmem:[%s6026 + $0x50] sm:$0xff]
  %v6598 = vld [vmem:[%s6026 + $0x60] sm:$0xff]
  %v6599 = vld [vmem:[%s6026 + $0x70] sm:$0xff]
  %v6600 = vld [vmem:[%s6026 + $0xa0] sm:$0xff]
  %v6601 = vld [vmem:[%s6026 + $0xb0] sm:$0xff]
  %v6602 = vld [vmem:[%s6026 + $0xc0] sm:$0xff]
  %v6603 = vld [vmem:[%s6026 + $0xd0] sm:$0xff]
  %v6604 = vld [vmem:[%s6026 + $0xe0] sm:$0xff]
  %v6605 = vld [vmem:[%s6026 + $0xf0] sm:$0xff]
  %v6606 = vld [vmem:[%s6026 + $0x100] sm:$0xff]
  %v6607 = vld [vmem:[%s6026 + $0x110] sm:$0xff]
  %v6608 = vpack.c.bf16 %v6593, %v6592
  %v6609 = vpack.c.bf16 %v6595, %v6594
  %v6610 = vpack.c.bf16 %v6597, %v6596
  %v6611 = vpack.c.bf16 %v6599, %v6598
  %v6612 = vpack.c.bf16 %v6601, %v6600
  %v6613 = vpack.c.bf16 %v6603, %v6602
  %v6614 = vpack.c.bf16 %v6605, %v6604
  %v6615 = vpack.c.bf16 %v6607, %v6606
  %s6616 = scalar_lea.vmem %s4, 96
  %v6617 = vld [vmem:[%s6616] sm:$0xf]
  %v6618 = vld [vmem:[%s6616 + $0x4] sm:$0xf]
  %v6619 = vld [vmem:[%s6616 + $0x8] sm:$0xf]
  %v6620 = vld [vmem:[%s6616 + $0xc] sm:$0xf]
  %v6621 = vld [vmem:[%s6616 + $0x10] sm:$0xf]
  %v6622 = vld [vmem:[%s6616 + $0x14] sm:$0xf]
  %v6623 = vld [vmem:[%s6616 + $0x18] sm:$0xf]
  %v6624 = vld [vmem:[%s6616 + $0x1c] sm:$0xf]
  %v6633 = vunpack.c.l.b16 %v6617
  %v6634 = vunpack.c.l.b16 %v6618
  %v6635 = vunpack.c.l.b16 %v6619
  %v6636 = vunpack.c.l.b16 %v6620
  %v6637 = vunpack.c.l.b16 %v6621
  %v6638 = vunpack.c.l.b16 %v6622
  %v6639 = vunpack.c.l.b16 %v6623
  %v6640 = vunpack.c.l.b16 %v6624
  %v6641 = vpack.c.b16 %v6634, %v6633
  %v6642 = vpack.c.b16 %v6636, %v6635
  %v6643 = vpack.c.b16 %v6638, %v6637
  %v6644 = vpack.c.b16 %v6640, %v6639
  %v6650 = vsel %vm4854, %v6608, 0
  %v6653 = vsel %vm4854, %v6609, 0
  %v6656 = vsel %vm4854, %v6610, 0
  %v6659 = vsel %vm4854, %v6611, 0
  %v6662 = vsel %vm4854, %v6612, 0
  %v6665 = vsel %vm4854, %v6613, 0
  %v6668 = vsel %vm4854, %v6614, 0
  %v6671 = vsel %vm4854, %v6615, 0
  %6673 = vmatprep.subr.bf16.mxu0 0
  %6674 = vmatpush1.bf16.msra.mxu0 %v6641
  %6675 = vmatprep.subr.bf16.mxu0 0
  %6676 = vmatpush1.bf16.msra.mxu0 %v6642
  %6677 = vmatprep.subr.bf16.mxu0 0
  %6678 = vmatpush1.bf16.msra.mxu0 %v6643
  %6679 = vmatprep.subr.bf16.mxu0 0
  %6680 = vmatpush1.bf16.msra.mxu0 %v6644
  %6681 = vmatprep.subr.bf16.mxu0 0
  %6682 = vmatpush1.bf16.msra.mxu0 0
  %6683 = vmatprep.subr.bf16.mxu0 0
  %6684 = vmatpush1.bf16.msra.mxu0 0
  %6685 = vmatprep.subr.bf16.mxu0 0
  %6686 = vmatpush1.bf16.msra.mxu0 0
  %6687 = vmatprep.subr.bf16.mxu0 0
  %6688 = vmatpush1.bf16.msra.mxu0 0
  %6689 = vmatprep.subr.bf16.mxu0 0
  %6690 = vmatpush1.bf16.msra.mxu0 0
  %6691 = vmatprep.subr.bf16.mxu0 0
  %6692 = vmatpush1.bf16.msra.mxu0 0
  %6693 = vmatprep.subr.bf16.mxu0 0
  %6694 = vmatpush1.bf16.msra.mxu0 0
  %6695 = vmatprep.subr.bf16.mxu0 0
  %6696 = vmatpush1.bf16.msra.mxu0 0
  %6697 = vmatprep.subr.bf16.mxu0 0
  %6698 = vmatpush1.bf16.msra.mxu0 0
  %6699 = vmatprep.subr.bf16.mxu0 0
  %6700 = vmatpush1.bf16.msra.mxu0 0
  %6701 = vmatprep.subr.bf16.mxu0 0
  %6702 = vmatpush1.bf16.msra.mxu0 0
  %6703 = vmatprep.subr.bf16.mxu0 0
  %6704 = vmatpush1.bf16.msra.mxu0 0
  %6705 = vmatprep.mubr.bf16.mxu0 0
  %6706 = vmatmul.mubr.bf16.gmra.mrb[0].mxu0 %v6650
  %v6707 = vpop.f32.mrb[0].mxu0
  %v6708 = vadd.f32 0.0, %v6707
  %v6709 = vpop.f32.mrb[0].mxu0
  %v6710 = vpop.f32.mrb[0].mxu0
  %v6711 = vadd.f32 0.0, %v6710
  %v6712 = vpop.f32.mrb[0].mxu0
  %6713 = vmatprep.mubr.bf16.mxu0 0
  %6714 = vmatmul.mubr.bf16.gmra.mrb[0].mxu0 %v6653
  %v6715 = vpop.f32.mrb[0].mxu0
  %v6716 = vadd.f32 0.0, %v6715
  %v6717 = vpop.f32.mrb[0].mxu0
  %v6718 = vpop.f32.mrb[0].mxu0
  %v6719 = vadd.f32 0.0, %v6718
  %v6720 = vpop.f32.mrb[0].mxu0
  %6721 = vmatprep.mubr.bf16.mxu0 0
  %6722 = vmatmul.mubr.bf16.gmra.mrb[0].mxu0 %v6656
  %v6723 = vpop.f32.mrb[0].mxu0
  %v6724 = vadd.f32 0.0, %v6723
  %v6725 = vpop.f32.mrb[0].mxu0
  %v6726 = vpop.f32.mrb[0].mxu0
  %v6727 = vadd.f32 0.0, %v6726
  %v6728 = vpop.f32.mrb[0].mxu0
  %6729 = vmatprep.mubr.bf16.mxu0 0
  %6730 = vmatmul.mubr.bf16.gmra.mrb[0].mxu0 %v6659
  %v6731 = vpop.f32.mrb[0].mxu0
  %v6732 = vadd.f32 0.0, %v6731
  %v6733 = vpop.f32.mrb[0].mxu0
  %v6734 = vpop.f32.mrb[0].mxu0
  %v6735 = vadd.f32 0.0, %v6734
  %v6736 = vpop.f32.mrb[0].mxu0
  %6737 = vmatprep.mubr.bf16.mxu0 0
  %6738 = vmatmul.mubr.bf16.gmra.mrb[0].mxu0 %v6662
  %v6739 = vpop.f32.mrb[0].mxu0
  %v6740 = vadd.f32 0.0, %v6739
  %v6741 = vpop.f32.mrb[0].mxu0
  %v6742 = vpop.f32.mrb[0].mxu0
  %v6743 = vadd.f32 0.0, %v6742
  %v6744 = vpop.f32.mrb[0].mxu0
  %6745 = vmatprep.mubr.bf16.mxu0 0
  %6746 = vmatmul.mubr.bf16.gmra.mrb[0].mxu0 %v6665
  %v6747 = vpop.f32.mrb[0].mxu0
  %v6748 = vadd.f32 0.0, %v6747
  %v6749 = vpop.f32.mrb[0].mxu0
  %v6750 = vpop.f32.mrb[0].mxu0
  %v6751 = vadd.f32 0.0, %v6750
  %v6752 = vpop.f32.mrb[0].mxu0
  %6753 = vmatprep.mubr.bf16.mxu0 0
  %6754 = vmatmul.mubr.bf16.gmra.mrb[0].mxu0 %v6668
  %v6755 = vpop.f32.mrb[0].mxu0
  %v6756 = vadd.f32 0.0, %v6755
  %v6757 = vpop.f32.mrb[0].mxu0
  %v6758 = vpop.f32.mrb[0].mxu0
  %v6759 = vadd.f32 0.0, %v6758
  %v6760 = vpop.f32.mrb[0].mxu0
  %6761 = vmatprep.mubr.bf16.mxu0 0
  %6762 = vmatmul.mubr.bf16.gmra.mrb[0].mxu0 %v6671
  %v6763 = vpop.f32.mrb[0].mxu0
  %v6764 = vadd.f32 0.0, %v6763
  %v6765 = vpop.f32.mrb[0].mxu0
  %v6766 = vpop.f32.mrb[0].mxu0
  %v6767 = vadd.f32 0.0, %v6766
  %v6768 = vpop.f32.mrb[0].mxu0
  %6769 = vdwg.mxu0
  %v6770 = vadd.f32 %v6576, %v6708
  %v6771 = vadd.f32 %v6577, %v6711
  %v6772 = vadd.f32 %v6578, %v6716
  %v6773 = vadd.f32 %v6579, %v6719
  %v6774 = vadd.f32 %v6580, %v6724
  %v6775 = vadd.f32 %v6581, %v6727
  %v6776 = vadd.f32 %v6582, %v6732
  %v6777 = vadd.f32 %v6583, %v6735
  %v6778 = vadd.f32 %v6584, %v6740
  %v6779 = vadd.f32 %v6585, %v6743
  %v6780 = vadd.f32 %v6586, %v6748
  %v6781 = vadd.f32 %v6587, %v6751
  %v6782 = vadd.f32 %v6588, %v6756
  %v6783 = vadd.f32 %v6589, %v6759
  %v6784 = vadd.f32 %v6590, %v6764
  %v6785 = vadd.f32 %v6591, %v6767
  %v6786 = vld [vmem:[%s6026 + $0x1] sm:$0xff]
  %v6787 = vld [vmem:[%s6026 + $0x11] sm:$0xff]
  %v6788 = vld [vmem:[%s6026 + $0x21] sm:$0xff]
  %v6789 = vld [vmem:[%s6026 + $0x31] sm:$0xff]
  %v6790 = vld [vmem:[%s6026 + $0x41] sm:$0xff]
  %v6791 = vld [vmem:[%s6026 + $0x51] sm:$0xff]
  %v6792 = vld [vmem:[%s6026 + $0x61] sm:$0xff]
  %v6793 = vld [vmem:[%s6026 + $0x71] sm:$0xff]
  %v6794 = vld [vmem:[%s6026 + $0xa1] sm:$0xff]
  %v6795 = vld [vmem:[%s6026 + $0xb1] sm:$0xff]
  %v6796 = vld [vmem:[%s6026 + $0xc1] sm:$0xff]
  %v6797 = vld [vmem:[%s6026 + $0xd1] sm:$0xff]
  %v6798 = vld [vmem:[%s6026 + $0xe1] sm:$0xff]
  %v6799 = vld [vmem:[%s6026 + $0xf1] sm:$0xff]
  %v6800 = vld [vmem:[%s6026 + $0x101] sm:$0xff]
  %v6801 = vld [vmem:[%s6026 + $0x111] sm:$0xff]
  %v6802 = vpack.c.bf16 %v6787, %v6786
  %v6803 = vpack.c.bf16 %v6789, %v6788
  %v6804 = vpack.c.bf16 %v6791, %v6790
  %v6805 = vpack.c.bf16 %v6793, %v6792
  %v6806 = vpack.c.bf16 %v6795, %v6794
  %v6807 = vpack.c.bf16 %v6797, %v6796
  %v6808 = vpack.c.bf16 %v6799, %v6798
  %v6809 = vpack.c.bf16 %v6801, %v6800
  %s6810 = scalar_lea.vmem %s4, 128
  %v6811 = vld [vmem:[%s6810] sm:$0xf]
  %v6812 = vld [vmem:[%s6810 + $0x4] sm:$0xf]
  %v6813 = vld [vmem:[%s6810 + $0x8] sm:$0xf]
  %v6814 = vld [vmem:[%s6810 + $0xc] sm:$0xf]
  %v6815 = vld [vmem:[%s6810 + $0x10] sm:$0xf]
  %v6816 = vld [vmem:[%s6810 + $0x14] sm:$0xf]
  %v6817 = vld [vmem:[%s6810 + $0x18] sm:$0xf]
  %v6818 = vld [vmem:[%s6810 + $0x1c] sm:$0xf]
  %v6827 = vunpack.c.l.b16 %v6811
  %v6828 = vunpack.c.l.b16 %v6812
  %v6829 = vunpack.c.l.b16 %v6813
  %v6830 = vunpack.c.l.b16 %v6814
  %v6831 = vunpack.c.l.b16 %v6815
  %v6832 = vunpack.c.l.b16 %v6816
  %v6833 = vunpack.c.l.b16 %v6817
  %v6834 = vunpack.c.l.b16 %v6818
  %v6835 = vpack.c.b16 %v6828, %v6827
  %v6836 = vpack.c.b16 %v6830, %v6829
  %v6837 = vpack.c.b16 %v6832, %v6831
  %v6838 = vpack.c.b16 %v6834, %v6833
  %v6844 = vsel %vm4854, %v6802, 0
  %v6847 = vsel %vm4854, %v6803, 0
  %v6850 = vsel %vm4854, %v6804, 0
  %v6853 = vsel %vm4854, %v6805, 0
  %v6856 = vsel %vm4854, %v6806, 0
  %v6859 = vsel %vm4854, %v6807, 0
  %v6862 = vsel %vm4854, %v6808, 0
  %v6865 = vsel %vm4854, %v6809, 0
  %6867 = vmatprep.subr.bf16.mxu0 0
  %6868 = vmatpush1.bf16.msra.mxu0 %v6835
  %6869 = vmatprep.subr.bf16.mxu0 0
  %6870 = vmatpush1.bf16.msra.mxu0 %v6836
  %6871 = vmatprep.subr.bf16.mxu0 0
  %6872 = vmatpush1.bf16.msra.mxu0 %v6837
  %6873 = vmatprep.subr.bf16.mxu0 0
  %6874 = vmatpush1.bf16.msra.mxu0 %v6838
  %6875 = vmatprep.subr.bf16.mxu0 0
  %6876 = vmatpush1.bf16.msra.mxu0 0
  %6877 = vmatprep.subr.bf16.mxu0 0
  %6878 = vmatpush1.bf16.msra.mxu0 0
  %6879 = vmatprep.subr.bf16.mxu0 0
  %6880 = vmatpush1.bf16.msra.mxu0 0
  %6881 = vmatprep.subr.bf16.mxu0 0
  %6882 = vmatpush1.bf16.msra.mxu0 0
  %6883 = vmatprep.subr.bf16.mxu0 0
  %6884 = vmatpush1.bf16.msra.mxu0 0
  %6885 = vmatprep.subr.bf16.mxu0 0
  %6886 = vmatpush1.bf16.msra.mxu0 0
  %6887 = vmatprep.subr.bf16.mxu0 0
  %6888 = vmatpush1.bf16.msra.mxu0 0
  %6889 = vmatprep.subr.bf16.mxu0 0
  %6890 = vmatpush1.bf16.msra.mxu0 0
  %6891 = vmatprep.subr.bf16.mxu0 0
  %6892 = vmatpush1.bf16.msra.mxu0 0
  %6893 = vmatprep.subr.bf16.mxu0 0
  %6894 = vmatpush1.bf16.msra.mxu0 0
  %6895 = vmatprep.subr.bf16.mxu0 0
  %6896 = vmatpush1.bf16.msra.mxu0 0
  %6897 = vmatprep.subr.bf16.mxu0 0
  %6898 = vmatpush1.bf16.msra.mxu0 0
  %6899 = vmatprep.mubr.bf16.mxu0 0
  %6900 = vmatmul.mubr.bf16.gmra.mrb[0].mxu0 %v6844
  %v6901 = vpop.f32.mrb[0].mxu0
  %v6902 = vadd.f32 0.0, %v6901
  %v6903 = vpop.f32.mrb[0].mxu0
  %v6904 = vpop.f32.mrb[0].mxu0
  %v6905 = vadd.f32 0.0, %v6904
  %v6906 = vpop.f32.mrb[0].mxu0
  %6907 = vmatprep.mubr.bf16.mxu0 0
  %6908 = vmatmul.mubr.bf16.gmra.mrb[0].mxu0 %v6847
  %v6909 = vpop.f32.mrb[0].mxu0
  %v6910 = vadd.f32 0.0, %v6909
  %v6911 = vpop.f32.mrb[0].mxu0
  %v6912 = vpop.f32.mrb[0].mxu0
  %v6913 = vadd.f32 0.0, %v6912
  %v6914 = vpop.f32.mrb[0].mxu0
  %6915 = vmatprep.mubr.bf16.mxu0 0
  %6916 = vmatmul.mubr.bf16.gmra.mrb[0].mxu0 %v6850
  %v6917 = vpop.f32.mrb[0].mxu0
  %v6918 = vadd.f32 0.0, %v6917
  %v6919 = vpop.f32.mrb[0].mxu0
  %v6920 = vpop.f32.mrb[0].mxu0
  %v6921 = vadd.f32 0.0, %v6920
  %v6922 = vpop.f32.mrb[0].mxu0
  %6923 = vmatprep.mubr.bf16.mxu0 0
  %6924 = vmatmul.mubr.bf16.gmra.mrb[0].mxu0 %v6853
  %v6925 = vpop.f32.mrb[0].mxu0
  %v6926 = vadd.f32 0.0, %v6925
  %v6927 = vpop.f32.mrb[0].mxu0
  %v6928 = vpop.f32.mrb[0].mxu0
  %v6929 = vadd.f32 0.0, %v6928
  %v6930 = vpop.f32.mrb[0].mxu0
  %6931 = vmatprep.mubr.bf16.mxu0 0
  %6932 = vmatmul.mubr.bf16.gmra.mrb[0].mxu0 %v6856
  %v6933 = vpop.f32.mrb[0].mxu0
  %v6934 = vadd.f32 0.0, %v6933
  %v6935 = vpop.f32.mrb[0].mxu0
  %v6936 = vpop.f32.mrb[0].mxu0
  %v6937 = vadd.f32 0.0, %v6936
  %v6938 = vpop.f32.mrb[0].mxu0
  %6939 = vmatprep.mubr.bf16.mxu0 0
  %6940 = vmatmul.mubr.bf16.gmra.mrb[0].mxu0 %v6859
  %v6941 = vpop.f32.mrb[0].mxu0
  %v6942 = vadd.f32 0.0, %v6941
  %v6943 = vpop.f32.mrb[0].mxu0
  %v6944 = vpop.f32.mrb[0].mxu0
  %v6945 = vadd.f32 0.0, %v6944
  %v6946 = vpop.f32.mrb[0].mxu0
  %6947 = vmatprep.mubr.bf16.mxu0 0
  %6948 = vmatmul.mubr.bf16.gmra.mrb[0].mxu0 %v6862
  %v6949 = vpop.f32.mrb[0].mxu0
  %v6950 = vadd.f32 0.0, %v6949
  %v6951 = vpop.f32.mrb[0].mxu0
  %v6952 = vpop.f32.mrb[0].mxu0
  %v6953 = vadd.f32 0.0, %v6952
  %v6954 = vpop.f32.mrb[0].mxu0
  %6955 = vmatprep.mubr.bf16.mxu0 0
  %6956 = vmatmul.mubr.bf16.gmra.mrb[0].mxu0 %v6865
  %v6957 = vpop.f32.mrb[0].mxu0
  %v6958 = vadd.f32 0.0, %v6957
  %v6959 = vpop.f32.mrb[0].mxu0
  %v6960 = vpop.f32.mrb[0].mxu0
  %v6961 = vadd.f32 0.0, %v6960
  %v6962 = vpop.f32.mrb[0].mxu0
  %6963 = vdwg.mxu0
  %v6964 = vadd.f32 %v6770, %v6902
  %v6965 = vadd.f32 %v6771, %v6905
  %v6966 = vadd.f32 %v6772, %v6910
  %v6967 = vadd.f32 %v6773, %v6913
  %v6968 = vadd.f32 %v6774, %v6918
  %v6969 = vadd.f32 %v6775, %v6921
  %v6970 = vadd.f32 %v6776, %v6926
  %v6971 = vadd.f32 %v6777, %v6929
  %v6972 = vadd.f32 %v6778, %v6934
  %v6973 = vadd.f32 %v6779, %v6937
  %v6974 = vadd.f32 %v6780, %v6942
  %v6975 = vadd.f32 %v6781, %v6945
  %v6976 = vadd.f32 %v6782, %v6950
  %v6977 = vadd.f32 %v6783, %v6953
  %v6978 = vadd.f32 %v6784, %v6958
  %v6979 = vadd.f32 %v6785, %v6961
  %v6980 = vld [vmem:[%s6026 + $0x2] sm:$0xff]
  %v6981 = vld [vmem:[%s6026 + $0x12] sm:$0xff]
  %v6982 = vld [vmem:[%s6026 + $0x22] sm:$0xff]
  %v6983 = vld [vmem:[%s6026 + $0x32] sm:$0xff]
  %v6984 = vld [vmem:[%s6026 + $0x42] sm:$0xff]
  %v6985 = vld [vmem:[%s6026 + $0x52] sm:$0xff]
  %v6986 = vld [vmem:[%s6026 + $0x62] sm:$0xff]
  %v6987 = vld [vmem:[%s6026 + $0x72] sm:$0xff]
  %v6988 = vld [vmem:[%s6026 + $0xa2] sm:$0xff]
  %v6989 = vld [vmem:[%s6026 + $0xb2] sm:$0xff]
  %v6990 = vld [vmem:[%s6026 + $0xc2] sm:$0xff]
  %v6991 = vld [vmem:[%s6026 + $0xd2] sm:$0xff]
  %v6992 = vld [vmem:[%s6026 + $0xe2] sm:$0xff]
  %v6993 = vld [vmem:[%s6026 + $0xf2] sm:$0xff]
  %v6994 = vld [vmem:[%s6026 + $0x102] sm:$0xff]
  %v6995 = vld [vmem:[%s6026 + $0x112] sm:$0xff]
  %v6996 = vpack.c.bf16 %v6981, %v6980
  %v6997 = vpack.c.bf16 %v6983, %v6982
  %v6998 = vpack.c.bf16 %v6985, %v6984
  %v6999 = vpack.c.bf16 %v6987, %v6986
  %v7000 = vpack.c.bf16 %v6989, %v6988
  %v7001 = vpack.c.bf16 %v6991, %v6990
  %v7002 = vpack.c.bf16 %v6993, %v6992
  %v7003 = vpack.c.bf16 %v6995, %v6994
  %s7004 = scalar_lea.vmem %s4, 160
  %v7005 = vld [vmem:[%s7004] sm:$0xf]
  %v7006 = vld [vmem:[%s7004 + $0x4] sm:$0xf]
  %v7007 = vld [vmem:[%s7004 + $0x8] sm:$0xf]
  %v7008 = vld [vmem:[%s7004 + $0xc] sm:$0xf]
  %v7009 = vld [vmem:[%s7004 + $0x10] sm:$0xf]
  %v7010 = vld [vmem:[%s7004 + $0x14] sm:$0xf]
  %v7011 = vld [vmem:[%s7004 + $0x18] sm:$0xf]
  %v7012 = vld [vmem:[%s7004 + $0x1c] sm:$0xf]
  %v7021 = vunpack.c.l.b16 %v7005
  %v7022 = vunpack.c.l.b16 %v7006
  %v7023 = vunpack.c.l.b16 %v7007
  %v7024 = vunpack.c.l.b16 %v7008
  %v7025 = vunpack.c.l.b16 %v7009
  %v7026 = vunpack.c.l.b16 %v7010
  %v7027 = vunpack.c.l.b16 %v7011
  %v7028 = vunpack.c.l.b16 %v7012
  %v7029 = vpack.c.b16 %v7022, %v7021
  %v7030 = vpack.c.b16 %v7024, %v7023
  %v7031 = vpack.c.b16 %v7026, %v7025
  %v7032 = vpack.c.b16 %v7028, %v7027
  %v7038 = vsel %vm4854, %v6996, 0
  %v7041 = vsel %vm4854, %v6997, 0
  %v7044 = vsel %vm4854, %v6998, 0
  %v7047 = vsel %vm4854, %v6999, 0
  %v7050 = vsel %vm4854, %v7000, 0
  %v7053 = vsel %vm4854, %v7001, 0
  %v7056 = vsel %vm4854, %v7002, 0
  %v7059 = vsel %vm4854, %v7003, 0
  %7061 = vmatprep.subr.bf16.mxu0 0
  %7062 = vmatpush1.bf16.msra.mxu0 %v7029
  %7063 = vmatprep.subr.bf16.mxu0 0
  %7064 = vmatpush1.bf16.msra.mxu0 %v7030
  %7065 = vmatprep.subr.bf16.mxu0 0
  %7066 = vmatpush1.bf16.msra.mxu0 %v7031
  %7067 = vmatprep.subr.bf16.mxu0 0
  %7068 = vmatpush1.bf16.msra.mxu0 %v7032
  %7069 = vmatprep.subr.bf16.mxu0 0
  %7070 = vmatpush1.bf16.msra.mxu0 0
  %7071 = vmatprep.subr.bf16.mxu0 0
  %7072 = vmatpush1.bf16.msra.mxu0 0
  %7073 = vmatprep.subr.bf16.mxu0 0
  %7074 = vmatpush1.bf16.msra.mxu0 0
  %7075 = vmatprep.subr.bf16.mxu0 0
  %7076 = vmatpush1.bf16.msra.mxu0 0
  %7077 = vmatprep.subr.bf16.mxu0 0
  %7078 = vmatpush1.bf16.msra.mxu0 0
  %7079 = vmatprep.subr.bf16.mxu0 0
  %7080 = vmatpush1.bf16.msra.mxu0 0
  %7081 = vmatprep.subr.bf16.mxu0 0
  %7082 = vmatpush1.bf16.msra.mxu0 0
  %7083 = vmatprep.subr.bf16.mxu0 0
  %7084 = vmatpush1.bf16.msra.mxu0 0
  %7085 = vmatprep.subr.bf16.mxu0 0
  %7086 = vmatpush1.bf16.msra.mxu0 0
  %7087 = vmatprep.subr.bf16.mxu0 0
  %7088 = vmatpush1.bf16.msra.mxu0 0
  %7089 = vmatprep.subr.bf16.mxu0 0
  %7090 = vmatpush1.bf16.msra.mxu0 0
  %7091 = vmatprep.subr.bf16.mxu0 0
  %7092 = vmatpush1.bf16.msra.mxu0 0
  %7093 = vmatprep.mubr.bf16.mxu0 0
  %7094 = vmatmul.mubr.bf16.gmra.mrb[0].mxu0 %v7038
  %v7095 = vpop.f32.mrb[0].mxu0
  %v7096 = vadd.f32 0.0, %v7095
  %v7097 = vpop.f32.mrb[0].mxu0
  %v7098 = vpop.f32.mrb[0].mxu0
  %v7099 = vadd.f32 0.0, %v7098
  %v7100 = vpop.f32.mrb[0].mxu0
  %7101 = vmatprep.mubr.bf16.mxu0 0
  %7102 = vmatmul.mubr.bf16.gmra.mrb[0].mxu0 %v7041
  %v7103 = vpop.f32.mrb[0].mxu0
  %v7104 = vadd.f32 0.0, %v7103
  %v7105 = vpop.f32.mrb[0].mxu0
  %v7106 = vpop.f32.mrb[0].mxu0
  %v7107 = vadd.f32 0.0, %v7106
  %v7108 = vpop.f32.mrb[0].mxu0
  %7109 = vmatprep.mubr.bf16.mxu0 0
  %7110 = vmatmul.mubr.bf16.gmra.mrb[0].mxu0 %v7044
  %v7111 = vpop.f32.mrb[0].mxu0
  %v7112 = vadd.f32 0.0, %v7111
  %v7113 = vpop.f32.mrb[0].mxu0
  %v7114 = vpop.f32.mrb[0].mxu0
  %v7115 = vadd.f32 0.0, %v7114
  %v7116 = vpop.f32.mrb[0].mxu0
  %7117 = vmatprep.mubr.bf16.mxu0 0
  %7118 = vmatmul.mubr.bf16.gmra.mrb[0].mxu0 %v7047
  %v7119 = vpop.f32.mrb[0].mxu0
  %v7120 = vadd.f32 0.0, %v7119
  %v7121 = vpop.f32.mrb[0].mxu0
  %v7122 = vpop.f32.mrb[0].mxu0
  %v7123 = vadd.f32 0.0, %v7122
  %v7124 = vpop.f32.mrb[0].mxu0
  %7125 = vmatprep.mubr.bf16.mxu0 0
  %7126 = vmatmul.mubr.bf16.gmra.mrb[0].mxu0 %v7050
  %v7127 = vpop.f32.mrb[0].mxu0
  %v7128 = vadd.f32 0.0, %v7127
  %v7129 = vpop.f32.mrb[0].mxu0
  %v7130 = vpop.f32.mrb[0].mxu0
  %v7131 = vadd.f32 0.0, %v7130
  %v7132 = vpop.f32.mrb[0].mxu0
  %7133 = vmatprep.mubr.bf16.mxu0 0
  %7134 = vmatmul.mubr.bf16.gmra.mrb[0].mxu0 %v7053
  %v7135 = vpop.f32.mrb[0].mxu0
  %v7136 = vadd.f32 0.0, %v7135
  %v7137 = vpop.f32.mrb[0].mxu0
  %v7138 = vpop.f32.mrb[0].mxu0
  %v7139 = vadd.f32 0.0, %v7138
  %v7140 = vpop.f32.mrb[0].mxu0
  %7141 = vmatprep.mubr.bf16.mxu0 0
  %7142 = vmatmul.mubr.bf16.gmra.mrb[0].mxu0 %v7056
  %v7143 = vpop.f32.mrb[0].mxu0
  %v7144 = vadd.f32 0.0, %v7143
  %v7145 = vpop.f32.mrb[0].mxu0
  %v7146 = vpop.f32.mrb[0].mxu0
  %v7147 = vadd.f32 0.0, %v7146
  %v7148 = vpop.f32.mrb[0].mxu0
  %7149 = vmatprep.mubr.bf16.mxu0 0
  %7150 = vmatmul.mubr.bf16.gmra.mrb[0].mxu0 %v7059
  %v7151 = vpop.f32.mrb[0].mxu0
  %v7152 = vadd.f32 0.0, %v7151
  %v7153 = vpop.f32.mrb[0].mxu0
  %v7154 = vpop.f32.mrb[0].mxu0
  %v7155 = vadd.f32 0.0, %v7154
  %v7156 = vpop.f32.mrb[0].mxu0
  %7157 = vdwg.mxu0
  %v7158 = vadd.f32 %v6964, %v7096
  %v7159 = vadd.f32 %v6965, %v7099
  %v7160 = vadd.f32 %v6966, %v7104
  %v7161 = vadd.f32 %v6967, %v7107
  %v7162 = vadd.f32 %v6968, %v7112
  %v7163 = vadd.f32 %v6969, %v7115
  %v7164 = vadd.f32 %v6970, %v7120
  %v7165 = vadd.f32 %v6971, %v7123
  %v7166 = vadd.f32 %v6972, %v7128
  %v7167 = vadd.f32 %v6973, %v7131
  %v7168 = vadd.f32 %v6974, %v7136
  %v7169 = vadd.f32 %v6975, %v7139
  %v7170 = vadd.f32 %v6976, %v7144
  %v7171 = vadd.f32 %v6977, %v7147
  %v7172 = vadd.f32 %v6978, %v7152
  %v7173 = vadd.f32 %v6979, %v7155
  %s7174 = scalar_lea.vmem [#allocation3], 32
  %v7175 = vld [vmem:[%s7174] sm:$0xff]
  %v7176 = vld [vmem:[%s7174 + $0x10] sm:$0xff]
  %v7177 = vld [vmem:[%s7174 + $0x20] sm:$0xff]
  %v7178 = vld [vmem:[%s7174 + $0x30] sm:$0xff]
  %v7179 = vld [vmem:[%s7174 + $0x40] sm:$0xff]
  %v7180 = vld [vmem:[%s7174 + $0x50] sm:$0xff]
  %v7181 = vld [vmem:[%s7174 + $0x60] sm:$0xff]
  %v7182 = vld [vmem:[%s7174 + $0x70] sm:$0xff]
  %v7183 = vld [vmem:[%s7174 + $0xa0] sm:$0xff]
  %v7184 = vld [vmem:[%s7174 + $0xb0] sm:$0xff]
  %v7185 = vld [vmem:[%s7174 + $0xc0] sm:$0xff]
  %v7186 = vld [vmem:[%s7174 + $0xd0] sm:$0xff]
  %v7187 = vld [vmem:[%s7174 + $0xe0] sm:$0xff]
  %v7188 = vld [vmem:[%s7174 + $0xf0] sm:$0xff]
  %v7189 = vld [vmem:[%s7174 + $0x100] sm:$0xff]
  %v7190 = vld [vmem:[%s7174 + $0x110] sm:$0xff]
  %v7191 = vpack.c.bf16 %v7176, %v7175
  %v7192 = vpack.c.bf16 %v7178, %v7177
  %v7193 = vpack.c.bf16 %v7180, %v7179
  %v7194 = vpack.c.bf16 %v7182, %v7181
  %v7195 = vpack.c.bf16 %v7184, %v7183
  %v7196 = vpack.c.bf16 %v7186, %v7185
  %v7197 = vpack.c.bf16 %v7188, %v7187
  %v7198 = vpack.c.bf16 %v7190, %v7189
  %s7199 = scalar_lea.vmem %s4, 192
  %v7200 = vld [vmem:[%s7199] sm:$0xf]
  %v7201 = vld [vmem:[%s7199 + $0x4] sm:$0xf]
  %v7202 = vld [vmem:[%s7199 + $0x8] sm:$0xf]
  %v7203 = vld [vmem:[%s7199 + $0xc] sm:$0xf]
  %v7204 = vld [vmem:[%s7199 + $0x10] sm:$0xf]
  %v7205 = vld [vmem:[%s7199 + $0x14] sm:$0xf]
  %v7206 = vld [vmem:[%s7199 + $0x18] sm:$0xf]
  %v7207 = vld [vmem:[%s7199 + $0x1c] sm:$0xf]
  %v7216 = vunpack.c.l.b16 %v7200
  %v7217 = vunpack.c.l.b16 %v7201
  %v7218 = vunpack.c.l.b16 %v7202
  %v7219 = vunpack.c.l.b16 %v7203
  %v7220 = vunpack.c.l.b16 %v7204
  %v7221 = vunpack.c.l.b16 %v7205
  %v7222 = vunpack.c.l.b16 %v7206
  %v7223 = vunpack.c.l.b16 %v7207
  %v7224 = vpack.c.b16 %v7217, %v7216
  %v7225 = vpack.c.b16 %v7219, %v7218
  %v7226 = vpack.c.b16 %v7221, %v7220
  %v7227 = vpack.c.b16 %v7223, %v7222
  %v7233 = vsel %vm4854, %v7191, 0
  %v7236 = vsel %vm4854, %v7192, 0
  %v7239 = vsel %vm4854, %v7193, 0
  %v7242 = vsel %vm4854, %v7194, 0
  %v7245 = vsel %vm4854, %v7195, 0
  %v7248 = vsel %vm4854, %v7196, 0
  %v7251 = vsel %vm4854, %v7197, 0
  %v7254 = vsel %vm4854, %v7198, 0
  %7256 = vmatprep.subr.bf16.mxu0 0
  %7257 = vmatpush1.bf16.msra.mxu0 %v7224
  %7258 = vmatprep.subr.bf16.mxu0 0
  %7259 = vmatpush1.bf16.msra.mxu0 %v7225
  %7260 = vmatprep.subr.bf16.mxu0 0
  %7261 = vmatpush1.bf16.msra.mxu0 %v7226
  %7262 = vmatprep.subr.bf16.mxu0 0
  %7263 = vmatpush1.bf16.msra.mxu0 %v7227
  %7264 = vmatprep.subr.bf16.mxu0 0
  %7265 = vmatpush1.bf16.msra.mxu0 0
  %7266 = vmatprep.subr.bf16.mxu0 0
  %7267 = vmatpush1.bf16.msra.mxu0 0
  %7268 = vmatprep.subr.bf16.mxu0 0
  %7269 = vmatpush1.bf16.msra.mxu0 0
  %7270 = vmatprep.subr.bf16.mxu0 0
  %7271 = vmatpush1.bf16.msra.mxu0 0
  %7272 = vmatprep.subr.bf16.mxu0 0
  %7273 = vmatpush1.bf16.msra.mxu0 0
  %7274 = vmatprep.subr.bf16.mxu0 0
  %7275 = vmatpush1.bf16.msra.mxu0 0
  %7276 = vmatprep.subr.bf16.mxu0 0
  %7277 = vmatpush1.bf16.msra.mxu0 0
  %7278 = vmatprep.subr.bf16.mxu0 0
  %7279 = vmatpush1.bf16.msra.mxu0 0
  %7280 = vmatprep.subr.bf16.mxu0 0
  %7281 = vmatpush1.bf16.msra.mxu0 0
  %7282 = vmatprep.subr.bf16.mxu0 0
  %7283 = vmatpush1.bf16.msra.mxu0 0
  %7284 = vmatprep.subr.bf16.mxu0 0
  %7285 = vmatpush1.bf16.msra.mxu0 0
  %7286 = vmatprep.subr.bf16.mxu0 0
  %7287 = vmatpush1.bf16.msra.mxu0 0
  %7288 = vmatprep.mubr.bf16.mxu0 0
  %7289 = vmatmul.mubr.bf16.gmra.mrb[0].mxu0 %v7233
  %v7290 = vpop.f32.mrb[0].mxu0
  %v7291 = vadd.f32 0.0, %v7290
  %v7292 = vpop.f32.mrb[0].mxu0
  %v7293 = vpop.f32.mrb[0].mxu0
  %v7294 = vadd.f32 0.0, %v7293
  %v7295 = vpop.f32.mrb[0].mxu0
  %7296 = vmatprep.mubr.bf16.mxu0 0
  %7297 = vmatmul.mubr.bf16.gmra.mrb[0].mxu0 %v7236
  %v7298 = vpop.f32.mrb[0].mxu0
  %v7299 = vadd.f32 0.0, %v7298
  %v7300 = vpop.f32.mrb[0].mxu0
  %v7301 = vpop.f32.mrb[0].mxu0
  %v7302 = vadd.f32 0.0, %v7301
  %v7303 = vpop.f32.mrb[0].mxu0
  %7304 = vmatprep.mubr.bf16.mxu0 0
  %7305 = vmatmul.mubr.bf16.gmra.mrb[0].mxu0 %v7239
  %v7306 = vpop.f32.mrb[0].mxu0
  %v7307 = vadd.f32 0.0, %v7306
  %v7308 = vpop.f32.mrb[0].mxu0
  %v7309 = vpop.f32.mrb[0].mxu0
  %v7310 = vadd.f32 0.0, %v7309
  %v7311 = vpop.f32.mrb[0].mxu0
  %7312 = vmatprep.mubr.bf16.mxu0 0
  %7313 = vmatmul.mubr.bf16.gmra.mrb[0].mxu0 %v7242
  %v7314 = vpop.f32.mrb[0].mxu0
  %v7315 = vadd.f32 0.0, %v7314
  %v7316 = vpop.f32.mrb[0].mxu0
  %v7317 = vpop.f32.mrb[0].mxu0
  %v7318 = vadd.f32 0.0, %v7317
  %v7319 = vpop.f32.mrb[0].mxu0
  %7320 = vmatprep.mubr.bf16.mxu0 0
  %7321 = vmatmul.mubr.bf16.gmra.mrb[0].mxu0 %v7245
  %v7322 = vpop.f32.mrb[0].mxu0
  %v7323 = vadd.f32 0.0, %v7322
  %v7324 = vpop.f32.mrb[0].mxu0
  %v7325 = vpop.f32.mrb[0].mxu0
  %v7326 = vadd.f32 0.0, %v7325
  %v7327 = vpop.f32.mrb[0].mxu0
  %7328 = vmatprep.mubr.bf16.mxu0 0
  %7329 = vmatmul.mubr.bf16.gmra.mrb[0].mxu0 %v7248
  %v7330 = vpop.f32.mrb[0].mxu0
  %v7331 = vadd.f32 0.0, %v7330
  %v7332 = vpop.f32.mrb[0].mxu0
  %v7333 = vpop.f32.mrb[0].mxu0
  %v7334 = vadd.f32 0.0, %v7333
  %v7335 = vpop.f32.mrb[0].mxu0
  %7336 = vmatprep.mubr.bf16.mxu0 0
  %7337 = vmatmul.mubr.bf16.gmra.mrb[0].mxu0 %v7251
  %v7338 = vpop.f32.mrb[0].mxu0
  %v7339 = vadd.f32 0.0, %v7338
  %v7340 = vpop.f32.mrb[0].mxu0
  %v7341 = vpop.f32.mrb[0].mxu0
  %v7342 = vadd.f32 0.0, %v7341
  %v7343 = vpop.f32.mrb[0].mxu0
  %7344 = vmatprep.mubr.bf16.mxu0 0
  %7345 = vmatmul.mubr.bf16.gmra.mrb[0].mxu0 %v7254
  %v7346 = vpop.f32.mrb[0].mxu0
  %v7347 = vadd.f32 0.0, %v7346
  %v7348 = vpop.f32.mrb[0].mxu0
  %v7349 = vpop.f32.mrb[0].mxu0
  %v7350 = vadd.f32 0.0, %v7349
  %v7351 = vpop.f32.mrb[0].mxu0
  %7352 = vdwg.mxu0
  %v7353 = vadd.f32 %v7158, %v7291
  %v7354 = vadd.f32 %v7159, %v7294
  %v7355 = vadd.f32 %v7160, %v7299
  %v7356 = vadd.f32 %v7161, %v7302
  %v7357 = vadd.f32 %v7162, %v7307
  %v7358 = vadd.f32 %v7163, %v7310
  %v7359 = vadd.f32 %v7164, %v7315
  %v7360 = vadd.f32 %v7165, %v7318
  %v7361 = vadd.f32 %v7166, %v7323
  %v7362 = vadd.f32 %v7167, %v7326
  %v7363 = vadd.f32 %v7168, %v7331
  %v7364 = vadd.f32 %v7169, %v7334
  %v7365 = vadd.f32 %v7170, %v7339
  %v7366 = vadd.f32 %v7171, %v7342
  %v7367 = vadd.f32 %v7172, %v7347
  %v7368 = vadd.f32 %v7173, %v7350
  %v7369 = vld [vmem:[%s7174 + $0x1] sm:$0xff]
  %v7370 = vld [vmem:[%s7174 + $0x11] sm:$0xff]
  %v7371 = vld [vmem:[%s7174 + $0x21] sm:$0xff]
  %v7372 = vld [vmem:[%s7174 + $0x31] sm:$0xff]
  %v7373 = vld [vmem:[%s7174 + $0x41] sm:$0xff]
  %v7374 = vld [vmem:[%s7174 + $0x51] sm:$0xff]
  %v7375 = vld [vmem:[%s7174 + $0x61] sm:$0xff]
  %v7376 = vld [vmem:[%s7174 + $0x71] sm:$0xff]
  %v7377 = vld [vmem:[%s7174 + $0xa1] sm:$0xff]
  %v7378 = vld [vmem:[%s7174 + $0xb1] sm:$0xff]
  %v7379 = vld [vmem:[%s7174 + $0xc1] sm:$0xff]
  %v7380 = vld [vmem:[%s7174 + $0xd1] sm:$0xff]
  %v7381 = vld [vmem:[%s7174 + $0xe1] sm:$0xff]
  %v7382 = vld [vmem:[%s7174 + $0xf1] sm:$0xff]
  %v7383 = vld [vmem:[%s7174 + $0x101] sm:$0xff]
  %v7384 = vld [vmem:[%s7174 + $0x111] sm:$0xff]
  %v7385 = vpack.c.bf16 %v7370, %v7369
  %v7386 = vpack.c.bf16 %v7372, %v7371
  %v7387 = vpack.c.bf16 %v7374, %v7373
  %v7388 = vpack.c.bf16 %v7376, %v7375
  %v7389 = vpack.c.bf16 %v7378, %v7377
  %v7390 = vpack.c.bf16 %v7380, %v7379
  %v7391 = vpack.c.bf16 %v7382, %v7381
  %v7392 = vpack.c.bf16 %v7384, %v7383
  %s7393 = scalar_lea.vmem %s4, 224
  %v7394 = vld [vmem:[%s7393] sm:$0xf]
  %v7395 = vld [vmem:[%s7393 + $0x4] sm:$0xf]
  %v7396 = vld [vmem:[%s7393 + $0x8] sm:$0xf]
  %v7397 = vld [vmem:[%s7393 + $0xc] sm:$0xf]
  %v7398 = vld [vmem:[%s7393 + $0x10] sm:$0xf]
  %v7399 = vld [vmem:[%s7393 + $0x14] sm:$0xf]
  %v7400 = vld [vmem:[%s7393 + $0x18] sm:$0xf]
  %v7401 = vld [vmem:[%s7393 + $0x1c] sm:$0xf]
  %v7410 = vunpack.c.l.b16 %v7394
  %v7411 = vunpack.c.l.b16 %v7395
  %v7412 = vunpack.c.l.b16 %v7396
  %v7413 = vunpack.c.l.b16 %v7397
  %v7414 = vunpack.c.l.b16 %v7398
  %v7415 = vunpack.c.l.b16 %v7399
  %v7416 = vunpack.c.l.b16 %v7400
  %v7417 = vunpack.c.l.b16 %v7401
  %v7418 = vpack.c.b16 %v7411, %v7410
  %v7419 = vpack.c.b16 %v7413, %v7412
  %v7420 = vpack.c.b16 %v7415, %v7414
  %v7421 = vpack.c.b16 %v7417, %v7416
  %v7427 = vsel %vm4854, %v7385, 0
  %v7430 = vsel %vm4854, %v7386, 0
  %v7433 = vsel %vm4854, %v7387, 0
  %v7436 = vsel %vm4854, %v7388, 0
  %v7439 = vsel %vm4854, %v7389, 0
  %v7442 = vsel %vm4854, %v7390, 0
  %v7445 = vsel %vm4854, %v7391, 0
  %v7448 = vsel %vm4854, %v7392, 0
  %7450 = vmatprep.subr.bf16.mxu0 0
  %7451 = vmatpush1.bf16.msra.mxu0 %v7418
  %7452 = vmatprep.subr.bf16.mxu0 0
  %7453 = vmatpush1.bf16.msra.mxu0 %v7419
  %7454 = vmatprep.subr.bf16.mxu0 0
  %7455 = vmatpush1.bf16.msra.mxu0 %v7420
  %7456 = vmatprep.subr.bf16.mxu0 0
  %7457 = vmatpush1.bf16.msra.mxu0 %v7421
  %7458 = vmatprep.subr.bf16.mxu0 0
  %7459 = vmatpush1.bf16.msra.mxu0 0
  %7460 = vmatprep.subr.bf16.mxu0 0
  %7461 = vmatpush1.bf16.msra.mxu0 0
  %7462 = vmatprep.subr.bf16.mxu0 0
  %7463 = vmatpush1.bf16.msra.mxu0 0
  %7464 = vmatprep.subr.bf16.mxu0 0
  %7465 = vmatpush1.bf16.msra.mxu0 0
  %7466 = vmatprep.subr.bf16.mxu0 0
  %7467 = vmatpush1.bf16.msra.mxu0 0
  %7468 = vmatprep.subr.bf16.mxu0 0
  %7469 = vmatpush1.bf16.msra.mxu0 0
  %7470 = vmatprep.subr.bf16.mxu0 0
  %7471 = vmatpush1.bf16.msra.mxu0 0
  %7472 = vmatprep.subr.bf16.mxu0 0
  %7473 = vmatpush1.bf16.msra.mxu0 0
  %7474 = vmatprep.subr.bf16.mxu0 0
  %7475 = vmatpush1.bf16.msra.mxu0 0
  %7476 = vmatprep.subr.bf16.mxu0 0
  %7477 = vmatpush1.bf16.msra.mxu0 0
  %7478 = vmatprep.subr.bf16.mxu0 0
  %7479 = vmatpush1.bf16.msra.mxu0 0
  %7480 = vmatprep.subr.bf16.mxu0 0
  %7481 = vmatpush1.bf16.msra.mxu0 0
  %7482 = vmatprep.mubr.bf16.mxu0 0
  %7483 = vmatmul.mubr.bf16.gmra.mrb[0].mxu0 %v7427
  %v7484 = vpop.f32.mrb[0].mxu0
  %v7485 = vadd.f32 0.0, %v7484
  %v7486 = vpop.f32.mrb[0].mxu0
  %v7487 = vpop.f32.mrb[0].mxu0
  %v7488 = vadd.f32 0.0, %v7487
  %v7489 = vpop.f32.mrb[0].mxu0
  %7490 = vmatprep.mubr.bf16.mxu0 0
  %7491 = vmatmul.mubr.bf16.gmra.mrb[0].mxu0 %v7430
  %v7492 = vpop.f32.mrb[0].mxu0
  %v7493 = vadd.f32 0.0, %v7492
  %v7494 = vpop.f32.mrb[0].mxu0
  %v7495 = vpop.f32.mrb[0].mxu0
  %v7496 = vadd.f32 0.0, %v7495
  %v7497 = vpop.f32.mrb[0].mxu0
  %7498 = vmatprep.mubr.bf16.mxu0 0
  %7499 = vmatmul.mubr.bf16.gmra.mrb[0].mxu0 %v7433
  %v7500 = vpop.f32.mrb[0].mxu0
  %v7501 = vadd.f32 0.0, %v7500
  %v7502 = vpop.f32.mrb[0].mxu0
  %v7503 = vpop.f32.mrb[0].mxu0
  %v7504 = vadd.f32 0.0, %v7503
  %v7505 = vpop.f32.mrb[0].mxu0
  %7506 = vmatprep.mubr.bf16.mxu0 0
  %7507 = vmatmul.mubr.bf16.gmra.mrb[0].mxu0 %v7436
  %v7508 = vpop.f32.mrb[0].mxu0
  %v7509 = vadd.f32 0.0, %v7508
  %v7510 = vpop.f32.mrb[0].mxu0
  %v7511 = vpop.f32.mrb[0].mxu0
  %v7512 = vadd.f32 0.0, %v7511
  %v7513 = vpop.f32.mrb[0].mxu0
  %7514 = vmatprep.mubr.bf16.mxu0 0
  %7515 = vmatmul.mubr.bf16.gmra.mrb[0].mxu0 %v7439
  %v7516 = vpop.f32.mrb[0].mxu0
  %v7517 = vadd.f32 0.0, %v7516
  %v7518 = vpop.f32.mrb[0].mxu0
  %v7519 = vpop.f32.mrb[0].mxu0
  %v7520 = vadd.f32 0.0, %v7519
  %v7521 = vpop.f32.mrb[0].mxu0
  %7522 = vmatprep.mubr.bf16.mxu0 0
  %7523 = vmatmul.mubr.bf16.gmra.mrb[0].mxu0 %v7442
  %v7524 = vpop.f32.mrb[0].mxu0
  %v7525 = vadd.f32 0.0, %v7524
  %v7526 = vpop.f32.mrb[0].mxu0
  %v7527 = vpop.f32.mrb[0].mxu0
  %v7528 = vadd.f32 0.0, %v7527
  %v7529 = vpop.f32.mrb[0].mxu0
  %7530 = vmatprep.mubr.bf16.mxu0 0
  %7531 = vmatmul.mubr.bf16.gmra.mrb[0].mxu0 %v7445
  %v7532 = vpop.f32.mrb[0].mxu0
  %v7533 = vadd.f32 0.0, %v7532
  %v7534 = vpop.f32.mrb[0].mxu0
  %v7535 = vpop.f32.mrb[0].mxu0
  %v7536 = vadd.f32 0.0, %v7535
  %v7537 = vpop.f32.mrb[0].mxu0
  %7538 = vmatprep.mubr.bf16.mxu0 0
  %7539 = vmatmul.mubr.bf16.gmra.mrb[0].mxu0 %v7448
  %v7540 = vpop.f32.mrb[0].mxu0
  %v7541 = vadd.f32 0.0, %v7540
  %v7542 = vpop.f32.mrb[0].mxu0
  %v7543 = vpop.f32.mrb[0].mxu0
  %v7544 = vadd.f32 0.0, %v7543
  %v7545 = vpop.f32.mrb[0].mxu0
  %7546 = vdwg.mxu0
  %v7547 = vadd.f32 %v7353, %v7485
  %v7548 = vadd.f32 %v7354, %v7488
  %v7549 = vadd.f32 %v7355, %v7493
  %v7550 = vadd.f32 %v7356, %v7496
  %v7551 = vadd.f32 %v7357, %v7501
  %v7552 = vadd.f32 %v7358, %v7504
  %v7553 = vadd.f32 %v7359, %v7509
  %v7554 = vadd.f32 %v7360, %v7512
  %v7555 = vadd.f32 %v7361, %v7517
  %v7556 = vadd.f32 %v7362, %v7520
  %v7557 = vadd.f32 %v7363, %v7525
  %v7558 = vadd.f32 %v7364, %v7528
  %v7559 = vadd.f32 %v7365, %v7533
  %v7560 = vadd.f32 %v7366, %v7536
  %v7561 = vadd.f32 %v7367, %v7541
  %v7562 = vadd.f32 %v7368, %v7544
  %v7563 = vld [vmem:[%s7174 + $0x2] sm:$0xff]
  %v7564 = vld [vmem:[%s7174 + $0x12] sm:$0xff]
  %v7565 = vld [vmem:[%s7174 + $0x22] sm:$0xff]
  %v7566 = vld [vmem:[%s7174 + $0x32] sm:$0xff]
  %v7567 = vld [vmem:[%s7174 + $0x42] sm:$0xff]
  %v7568 = vld [vmem:[%s7174 + $0x52] sm:$0xff]
  %v7569 = vld [vmem:[%s7174 + $0x62] sm:$0xff]
  %v7570 = vld [vmem:[%s7174 + $0x72] sm:$0xff]
  %v7571 = vld [vmem:[%s7174 + $0xa2] sm:$0xff]
  %v7572 = vld [vmem:[%s7174 + $0xb2] sm:$0xff]
  %v7573 = vld [vmem:[%s7174 + $0xc2] sm:$0xff]
  %v7574 = vld [vmem:[%s7174 + $0xd2] sm:$0xff]
  %v7575 = vld [vmem:[%s7174 + $0xe2] sm:$0xff]
  %v7576 = vld [vmem:[%s7174 + $0xf2] sm:$0xff]
  %v7577 = vld [vmem:[%s7174 + $0x102] sm:$0xff]
  %v7578 = vld [vmem:[%s7174 + $0x112] sm:$0xff]
  %v7579 = vpack.c.bf16 %v7564, %v7563
  %v7580 = vpack.c.bf16 %v7566, %v7565
  %v7581 = vpack.c.bf16 %v7568, %v7567
  %v7582 = vpack.c.bf16 %v7570, %v7569
  %v7583 = vpack.c.bf16 %v7572, %v7571
  %v7584 = vpack.c.bf16 %v7574, %v7573
  %v7585 = vpack.c.bf16 %v7576, %v7575
  %v7586 = vpack.c.bf16 %v7578, %v7577
  %s7587 = scalar_lea.vmem %s4, 256
  %v7588 = vld [vmem:[%s7587] sm:$0xf]
  %v7589 = vld [vmem:[%s7587 + $0x4] sm:$0xf]
  %v7590 = vld [vmem:[%s7587 + $0x8] sm:$0xf]
  %v7591 = vld [vmem:[%s7587 + $0xc] sm:$0xf]
  %v7592 = vld [vmem:[%s7587 + $0x10] sm:$0xf]
  %v7593 = vld [vmem:[%s7587 + $0x14] sm:$0xf]
  %v7594 = vld [vmem:[%s7587 + $0x18] sm:$0xf]
  %v7595 = vld [vmem:[%s7587 + $0x1c] sm:$0xf]
  %v7604 = vunpack.c.l.b16 %v7588
  %v7605 = vunpack.c.l.b16 %v7589
  %v7606 = vunpack.c.l.b16 %v7590
  %v7607 = vunpack.c.l.b16 %v7591
  %v7608 = vunpack.c.l.b16 %v7592
  %v7609 = vunpack.c.l.b16 %v7593
  %v7610 = vunpack.c.l.b16 %v7594
  %v7611 = vunpack.c.l.b16 %v7595
  %v7612 = vpack.c.b16 %v7605, %v7604
  %v7613 = vpack.c.b16 %v7607, %v7606
  %v7614 = vpack.c.b16 %v7609, %v7608
  %v7615 = vpack.c.b16 %v7611, %v7610
  %v7621 = vsel %vm4854, %v7579, 0
  %v7624 = vsel %vm4854, %v7580, 0
  %v7627 = vsel %vm4854, %v7581, 0
  %v7630 = vsel %vm4854, %v7582, 0
  %v7633 = vsel %vm4854, %v7583, 0
  %v7636 = vsel %vm4854, %v7584, 0
  %v7639 = vsel %vm4854, %v7585, 0
  %v7642 = vsel %vm4854, %v7586, 0
  %7644 = vmatprep.subr.bf16.mxu0 0
  %7645 = vmatpush1.bf16.msra.mxu0 %v7612
  %7646 = vmatprep.subr.bf16.mxu0 0
  %7647 = vmatpush1.bf16.msra.mxu0 %v7613
  %7648 = vmatprep.subr.bf16.mxu0 0
  %7649 = vmatpush1.bf16.msra.mxu0 %v7614
  %7650 = vmatprep.subr.bf16.mxu0 0
  %7651 = vmatpush1.bf16.msra.mxu0 %v7615
  %7652 = vmatprep.subr.bf16.mxu0 0
  %7653 = vmatpush1.bf16.msra.mxu0 0
  %7654 = vmatprep.subr.bf16.mxu0 0
  %7655 = vmatpush1.bf16.msra.mxu0 0
  %7656 = vmatprep.subr.bf16.mxu0 0
  %7657 = vmatpush1.bf16.msra.mxu0 0
  %7658 = vmatprep.subr.bf16.mxu0 0
  %7659 = vmatpush1.bf16.msra.mxu0 0
  %7660 = vmatprep.subr.bf16.mxu0 0
  %7661 = vmatpush1.bf16.msra.mxu0 0
  %7662 = vmatprep.subr.bf16.mxu0 0
  %7663 = vmatpush1.bf16.msra.mxu0 0
  %7664 = vmatprep.subr.bf16.mxu0 0
  %7665 = vmatpush1.bf16.msra.mxu0 0
  %7666 = vmatprep.subr.bf16.mxu0 0
  %7667 = vmatpush1.bf16.msra.mxu0 0
  %7668 = vmatprep.subr.bf16.mxu0 0
  %7669 = vmatpush1.bf16.msra.mxu0 0
  %7670 = vmatprep.subr.bf16.mxu0 0
  %7671 = vmatpush1.bf16.msra.mxu0 0
  %7672 = vmatprep.subr.bf16.mxu0 0
  %7673 = vmatpush1.bf16.msra.mxu0 0
  %7674 = vmatprep.subr.bf16.mxu0 0
  %7675 = vmatpush1.bf16.msra.mxu0 0
  %7676 = vmatprep.mubr.bf16.mxu0 0
  %7677 = vmatmul.mubr.bf16.gmra.mrb[0].mxu0 %v7621
  %v7678 = vpop.f32.mrb[0].mxu0
  %v7679 = vadd.f32 0.0, %v7678
  %v7680 = vpop.f32.mrb[0].mxu0
  %v7681 = vpop.f32.mrb[0].mxu0
  %v7682 = vadd.f32 0.0, %v7681
  %v7683 = vpop.f32.mrb[0].mxu0
  %7684 = vmatprep.mubr.bf16.mxu0 0
  %7685 = vmatmul.mubr.bf16.gmra.mrb[0].mxu0 %v7624
  %v7686 = vpop.f32.mrb[0].mxu0
  %v7687 = vadd.f32 0.0, %v7686
  %v7688 = vpop.f32.mrb[0].mxu0
  %v7689 = vpop.f32.mrb[0].mxu0
  %v7690 = vadd.f32 0.0, %v7689
  %v7691 = vpop.f32.mrb[0].mxu0
  %7692 = vmatprep.mubr.bf16.mxu0 0
  %7693 = vmatmul.mubr.bf16.gmra.mrb[0].mxu0 %v7627
  %v7694 = vpop.f32.mrb[0].mxu0
  %v7695 = vadd.f32 0.0, %v7694
  %v7696 = vpop.f32.mrb[0].mxu0
  %v7697 = vpop.f32.mrb[0].mxu0
  %v7698 = vadd.f32 0.0, %v7697
  %v7699 = vpop.f32.mrb[0].mxu0
  %7700 = vmatprep.mubr.bf16.mxu0 0
  %7701 = vmatmul.mubr.bf16.gmra.mrb[0].mxu0 %v7630
  %v7702 = vpop.f32.mrb[0].mxu0
  %v7703 = vadd.f32 0.0, %v7702
  %v7704 = vpop.f32.mrb[0].mxu0
  %v7705 = vpop.f32.mrb[0].mxu0
  %v7706 = vadd.f32 0.0, %v7705
  %v7707 = vpop.f32.mrb[0].mxu0
  %7708 = vmatprep.mubr.bf16.mxu0 0
  %7709 = vmatmul.mubr.bf16.gmra.mrb[0].mxu0 %v7633
  %v7710 = vpop.f32.mrb[0].mxu0
  %v7711 = vadd.f32 0.0, %v7710
  %v7712 = vpop.f32.mrb[0].mxu0
  %v7713 = vpop.f32.mrb[0].mxu0
  %v7714 = vadd.f32 0.0, %v7713
  %v7715 = vpop.f32.mrb[0].mxu0
  %7716 = vmatprep.mubr.bf16.mxu0 0
  %7717 = vmatmul.mubr.bf16.gmra.mrb[0].mxu0 %v7636
  %v7718 = vpop.f32.mrb[0].mxu0
  %v7719 = vadd.f32 0.0, %v7718
  %v7720 = vpop.f32.mrb[0].mxu0
  %v7721 = vpop.f32.mrb[0].mxu0
  %v7722 = vadd.f32 0.0, %v7721
  %v7723 = vpop.f32.mrb[0].mxu0
  %7724 = vmatprep.mubr.bf16.mxu0 0
  %7725 = vmatmul.mubr.bf16.gmra.mrb[0].mxu0 %v7639
  %v7726 = vpop.f32.mrb[0].mxu0
  %v7727 = vadd.f32 0.0, %v7726
  %v7728 = vpop.f32.mrb[0].mxu0
  %v7729 = vpop.f32.mrb[0].mxu0
  %v7730 = vadd.f32 0.0, %v7729
  %v7731 = vpop.f32.mrb[0].mxu0
  %7732 = vmatprep.mubr.bf16.mxu0 0
  %7733 = vmatmul.mubr.bf16.gmra.mrb[0].mxu0 %v7642
  %v7734 = vpop.f32.mrb[0].mxu0
  %v7735 = vadd.f32 0.0, %v7734
  %v7736 = vpop.f32.mrb[0].mxu0
  %v7737 = vpop.f32.mrb[0].mxu0
  %v7738 = vadd.f32 0.0, %v7737
  %v7739 = vpop.f32.mrb[0].mxu0
  %7740 = vdwg.mxu0
  %v7741 = vadd.f32 %v7547, %v7679
  %v7742 = vadd.f32 %v7548, %v7682
  %v7743 = vadd.f32 %v7549, %v7687
  %v7744 = vadd.f32 %v7550, %v7690
  %v7745 = vadd.f32 %v7551, %v7695
  %v7746 = vadd.f32 %v7552, %v7698
  %v7747 = vadd.f32 %v7553, %v7703
  %v7748 = vadd.f32 %v7554, %v7706
  %v7749 = vadd.f32 %v7555, %v7711
  %v7750 = vadd.f32 %v7556, %v7714
  %v7751 = vadd.f32 %v7557, %v7719
  %v7752 = vadd.f32 %v7558, %v7722
  %v7753 = vadd.f32 %v7559, %v7727
  %v7754 = vadd.f32 %v7560, %v7730
  %v7755 = vadd.f32 %v7561, %v7735
  %v7756 = vadd.f32 %v7562, %v7738
  %v7757 = vld [vmem:[%s5] sm:$0x1]
  %v7758 = vld [vmem:[%s6] sm:$0x1]
  %v7759 = vsel %vm4854, %v7741, 0.0
  %v7760 = vsel %vm4854, %v7742, 0.0
  %v7761 = vadd.f32 %v7759, %v7760
  %v7762 = vsel %vm4854, %v7743, 0.0
  %v7763 = vadd.f32 %v7761, %v7762
  %v7764 = vsel %vm4854, %v7744, 0.0
  %v7765 = vadd.f32 %v7763, %v7764
  %v7766 = vsel %vm4854, %v7745, 0.0
  %v7767 = vadd.f32 %v7765, %v7766
  %v7768 = vsel %vm4854, %v7746, 0.0
  %v7769 = vadd.f32 %v7767, %v7768
  %v7770 = vsel %vm4854, %v7747, 0.0
  %v7771 = vadd.f32 %v7769, %v7770
  %v7772 = vsel %vm4854, %v7748, 0.0
  %v7773 = vadd.f32 %v7771, %v7772
  %v7774 = vsel %vm4854, %v7749, 0.0
  %v7775 = vadd.f32 %v7773, %v7774
  %v7776 = vsel %vm4854, %v7750, 0.0
  %v7777 = vadd.f32 %v7775, %v7776
  %v7778 = vsel %vm4854, %v7751, 0.0
  %v7779 = vadd.f32 %v7777, %v7778
  %v7780 = vsel %vm4854, %v7752, 0.0
  %v7781 = vadd.f32 %v7779, %v7780
  %v7782 = vsel %vm4854, %v7753, 0.0
  %v7783 = vadd.f32 %v7781, %v7782
  %v7784 = vsel %vm4854, %v7754, 0.0
  %v7785 = vadd.f32 %v7783, %v7784
  %v7786 = vsel %vm4854, %v7755, 0.0
  %v7787 = vadd.f32 %v7785, %v7786
  %v7788 = vsel %vm4854, %v7756, 0.0
  %v7789 = vadd.f32 %v7787, %v7788
  %v7790 = vrot.slane %v7789, 4
  %v7791 = vadd.f32 %v7789, %v7790
  %v7792 = vrot.slane %v7791, 2
  %v7793 = vadd.f32 %v7791, %v7792
  %v7794 = vrot.slane %v7793, 1
  %v7795 = vadd.f32 %v7793, %v7794
  %v7796 = vrcp.pop 128.0
  %v7797 = vmul.f32 %v7795, %v7796
  %v7798 = vsub.f32 %v7741, %v7797
  %v7799 = vsub.f32 %v7742, %v7797
  %v7800 = vsub.f32 %v7743, %v7797
  %v7801 = vsub.f32 %v7744, %v7797
  %v7802 = vsub.f32 %v7745, %v7797
  %v7803 = vsub.f32 %v7746, %v7797
  %v7804 = vsub.f32 %v7747, %v7797
  %v7805 = vsub.f32 %v7748, %v7797
  %v7806 = vsub.f32 %v7749, %v7797
  %v7807 = vsub.f32 %v7750, %v7797
  %v7808 = vsub.f32 %v7751, %v7797
  %v7809 = vsub.f32 %v7752, %v7797
  %v7810 = vsub.f32 %v7753, %v7797
  %v7811 = vsub.f32 %v7754, %v7797
  %v7812 = vsub.f32 %v7755, %v7797
  %v7813 = vsub.f32 %v7756, %v7797
  %v7814 = vmul.f32 %v7798, %v7798
  %v7815 = vmul.f32 %v7799, %v7799
  %v7816 = vmul.f32 %v7800, %v7800
  %v7817 = vmul.f32 %v7801, %v7801
  %v7818 = vmul.f32 %v7802, %v7802
  %v7819 = vmul.f32 %v7803, %v7803
  %v7820 = vmul.f32 %v7804, %v7804
  %v7821 = vmul.f32 %v7805, %v7805
  %v7822 = vmul.f32 %v7806, %v7806
  %v7823 = vmul.f32 %v7807, %v7807
  %v7824 = vmul.f32 %v7808, %v7808
  %v7825 = vmul.f32 %v7809, %v7809
  %v7826 = vmul.f32 %v7810, %v7810
  %v7827 = vmul.f32 %v7811, %v7811
  %v7828 = vmul.f32 %v7812, %v7812
  %v7829 = vmul.f32 %v7813, %v7813
  %v7830 = vsel %vm4854, %v7814, 0.0
  %v7831 = vsel %vm4854, %v7815, 0.0
  %v7832 = vadd.f32 %v7830, %v7831
  %v7833 = vsel %vm4854, %v7816, 0.0
  %v7834 = vadd.f32 %v7832, %v7833
  %v7835 = vsel %vm4854, %v7817, 0.0
  %v7836 = vadd.f32 %v7834, %v7835
  %v7837 = vsel %vm4854, %v7818, 0.0
  %v7838 = vadd.f32 %v7836, %v7837
  %v7839 = vsel %vm4854, %v7819, 0.0
  %v7840 = vadd.f32 %v7838, %v7839
  %v7841 = vsel %vm4854, %v7820, 0.0
  %v7842 = vadd.f32 %v7840, %v7841
  %v7843 = vsel %vm4854, %v7821, 0.0
  %v7844 = vadd.f32 %v7842, %v7843
  %v7845 = vsel %vm4854, %v7822, 0.0
  %v7846 = vadd.f32 %v7844, %v7845
  %v7847 = vsel %vm4854, %v7823, 0.0
  %v7848 = vadd.f32 %v7846, %v7847
  %v7849 = vsel %vm4854, %v7824, 0.0
  %v7850 = vadd.f32 %v7848, %v7849
  %v7851 = vsel %vm4854, %v7825, 0.0
  %v7852 = vadd.f32 %v7850, %v7851
  %v7853 = vsel %vm4854, %v7826, 0.0
  %v7854 = vadd.f32 %v7852, %v7853
  %v7855 = vsel %vm4854, %v7827, 0.0
  %v7856 = vadd.f32 %v7854, %v7855
  %v7857 = vsel %vm4854, %v7828, 0.0
  %v7858 = vadd.f32 %v7856, %v7857
  %v7859 = vsel %vm4854, %v7829, 0.0
  %v7860 = vadd.f32 %v7858, %v7859
  %v7861 = vrot.slane %v7860, 4
  %v7862 = vadd.f32 %v7860, %v7861
  %v7863 = vrot.slane %v7862, 2
  %v7864 = vadd.f32 %v7862, %v7863
  %v7865 = vrot.slane %v7864, 1
  %v7866 = vadd.f32 %v7864, %v7865
  %v7867 = vmul.f32 %v7866, %v7796
  %v7868 = vadd.f32 %v7867, 1e-05
  %v7869 = vrsqrt.pop %v7868
  %v7870 = vmul.f32 %v7798, %v7869
  %v7871 = vmul.f32 %v7799, %v7869
  %v7872 = vmul.f32 %v7800, %v7869
  %v7873 = vmul.f32 %v7801, %v7869
  %v7874 = vmul.f32 %v7802, %v7869
  %v7875 = vmul.f32 %v7803, %v7869
  %v7876 = vmul.f32 %v7804, %v7869
  %v7877 = vmul.f32 %v7805, %v7869
  %v7878 = vmul.f32 %v7806, %v7869
  %v7879 = vmul.f32 %v7807, %v7869
  %v7880 = vmul.f32 %v7808, %v7869
  %v7881 = vmul.f32 %v7809, %v7869
  %v7882 = vmul.f32 %v7810, %v7869
  %v7883 = vmul.f32 %v7811, %v7869
  %v7884 = vmul.f32 %v7812, %v7869
  %v7885 = vmul.f32 %v7813, %v7869
  %v7887 = vlaneseq
  %v7888 = vshrl.u32 %v7887, 7
  %v7889 = vsub.s32 0, %v7888
  %v7890 = vrot.slane %v7757, %v7889
  %v7892 = vmul.f32 %v7870, %v7890
  %v7893 = vmul.f32 %v7871, %v7890
  %v7894 = vmul.f32 %v7872, %v7890
  %v7895 = vmul.f32 %v7873, %v7890
  %v7896 = vmul.f32 %v7874, %v7890
  %v7897 = vmul.f32 %v7875, %v7890
  %v7898 = vmul.f32 %v7876, %v7890
  %v7899 = vmul.f32 %v7877, %v7890
  %v7900 = vmul.f32 %v7878, %v7890
  %v7901 = vmul.f32 %v7879, %v7890
  %v7902 = vmul.f32 %v7880, %v7890
  %v7903 = vmul.f32 %v7881, %v7890
  %v7904 = vmul.f32 %v7882, %v7890
  %v7905 = vmul.f32 %v7883, %v7890
  %v7906 = vmul.f32 %v7884, %v7890
  %v7907 = vmul.f32 %v7885, %v7890
  %v7909 = vlaneseq
  %v7910 = vshrl.u32 %v7909, 7
  %v7911 = vsub.s32 0, %v7910
  %v7912 = vrot.slane %v7758, %v7911
  %v7914 = vadd.f32 %v7892, %v7912
  %v7915 = vadd.f32 %v7893, %v7912
  %v7916 = vadd.f32 %v7894, %v7912
  %v7917 = vadd.f32 %v7895, %v7912
  %v7918 = vadd.f32 %v7896, %v7912
  %v7919 = vadd.f32 %v7897, %v7912
  %v7920 = vadd.f32 %v7898, %v7912
  %v7921 = vadd.f32 %v7899, %v7912
  %v7922 = vadd.f32 %v7900, %v7912
  %v7923 = vadd.f32 %v7901, %v7912
  %v7924 = vadd.f32 %v7902, %v7912
  %v7925 = vadd.f32 %v7903, %v7912
  %v7926 = vadd.f32 %v7904, %v7912
  %v7927 = vadd.f32 %v7905, %v7912
  %v7928 = vadd.f32 %v7906, %v7912
  %v7929 = vadd.f32 %v7907, %v7912
  %vm7930 = vcmp.gt.f32.partialorder %v7914, 0.0
  %vm7931 = vcmp.gt.f32.partialorder %v7915, 0.0
  %vm7932 = vcmp.gt.f32.partialorder %v7916, 0.0
  %vm7933 = vcmp.gt.f32.partialorder %v7917, 0.0
  %vm7934 = vcmp.gt.f32.partialorder %v7918, 0.0
  %vm7935 = vcmp.gt.f32.partialorder %v7919, 0.0
  %vm7936 = vcmp.gt.f32.partialorder %v7920, 0.0
  %vm7937 = vcmp.gt.f32.partialorder %v7921, 0.0
  %vm7938 = vcmp.gt.f32.partialorder %v7922, 0.0
  %vm7939 = vcmp.gt.f32.partialorder %v7923, 0.0
  %vm7940 = vcmp.gt.f32.partialorder %v7924, 0.0
  %vm7941 = vcmp.gt.f32.partialorder %v7925, 0.0
  %vm7942 = vcmp.gt.f32.partialorder %v7926, 0.0
  %vm7943 = vcmp.gt.f32.partialorder %v7927, 0.0
  %vm7944 = vcmp.gt.f32.partialorder %v7928, 0.0
  %vm7945 = vcmp.gt.f32.partialorder %v7929, 0.0
  %v7946 = vmin.f32 %v7914, 0.0
  %v7947 = vmin.f32 %v7915, 0.0
  %v7948 = vmin.f32 %v7916, 0.0
  %v7949 = vmin.f32 %v7917, 0.0
  %v7950 = vmin.f32 %v7918, 0.0
  %v7951 = vmin.f32 %v7919, 0.0
  %v7952 = vmin.f32 %v7920, 0.0
  %v7953 = vmin.f32 %v7921, 0.0
  %v7954 = vmin.f32 %v7922, 0.0
  %v7955 = vmin.f32 %v7923, 0.0
  %v7956 = vmin.f32 %v7924, 0.0
  %v7957 = vmin.f32 %v7925, 0.0
  %v7958 = vmin.f32 %v7926, 0.0
  %v7959 = vmin.f32 %v7927, 0.0
  %v7960 = vmin.f32 %v7928, 0.0
  %v7961 = vmin.f32 %v7929, 0.0
  %v7962 = vmul.f32 %v7946, 1.442695
  %v7963 = vpow.pop %v7962
  %v7964 = vmul.f32 %v7947, 1.442695
  %v7965 = vpow.pop %v7964
  %v7966 = vmul.f32 %v7948, 1.442695
  %v7967 = vpow.pop %v7966
  %v7968 = vmul.f32 %v7949, 1.442695
  %v7969 = vpow.pop %v7968
  %v7970 = vmul.f32 %v7950, 1.442695
  %v7971 = vpow.pop %v7970
  %v7972 = vmul.f32 %v7951, 1.442695
  %v7973 = vpow.pop %v7972
  %v7974 = vmul.f32 %v7952, 1.442695
  %v7975 = vpow.pop %v7974
  %v7976 = vmul.f32 %v7953, 1.442695
  %v7977 = vpow.pop %v7976
  %v7978 = vmul.f32 %v7954, 1.442695
  %v7979 = vpow.pop %v7978
  %v7980 = vmul.f32 %v7955, 1.442695
  %v7981 = vpow.pop %v7980
  %v7982 = vmul.f32 %v7956, 1.442695
  %v7983 = vpow.pop %v7982
  %v7984 = vmul.f32 %v7957, 1.442695
  %v7985 = vpow.pop %v7984
  %v7986 = vmul.f32 %v7958, 1.442695
  %v7987 = vpow.pop %v7986
  %v7988 = vmul.f32 %v7959, 1.442695
  %v7989 = vpow.pop %v7988
  %v7990 = vmul.f32 %v7960, 1.442695
  %v7991 = vpow.pop %v7990
  %v7992 = vmul.f32 %v7961, 1.442695
  %v7993 = vpow.pop %v7992
  %v7994 = vsub.f32 %v7963, 1.0
  %v7995 = vsub.f32 %v7965, 1.0
  %v7996 = vsub.f32 %v7967, 1.0
  %v7997 = vsub.f32 %v7969, 1.0
  %v7998 = vsub.f32 %v7971, 1.0
  %v7999 = vsub.f32 %v7973, 1.0
  %v8000 = vsub.f32 %v7975, 1.0
  %v8001 = vsub.f32 %v7977, 1.0
  %v8002 = vsub.f32 %v7979, 1.0
  %v8003 = vsub.f32 %v7981, 1.0
  %v8004 = vsub.f32 %v7983, 1.0
  %v8005 = vsub.f32 %v7985, 1.0
  %v8006 = vsub.f32 %v7987, 1.0
  %v8007 = vsub.f32 %v7989, 1.0
  %v8008 = vsub.f32 %v7991, 1.0
  %v8009 = vsub.f32 %v7993, 1.0
  %v8010 = vsel %vm7930, %v7914, %v7994
  %v8011 = vsel %vm7931, %v7915, %v7995
  %v8012 = vsel %vm7932, %v7916, %v7996
  %v8013 = vsel %vm7933, %v7917, %v7997
  %v8014 = vsel %vm7934, %v7918, %v7998
  %v8015 = vsel %vm7935, %v7919, %v7999
  %v8016 = vsel %vm7936, %v7920, %v8000
  %v8017 = vsel %vm7937, %v7921, %v8001
  %v8018 = vsel %vm7938, %v7922, %v8002
  %v8019 = vsel %vm7939, %v7923, %v8003
  %v8020 = vsel %vm7940, %v7924, %v8004
  %v8021 = vsel %vm7941, %v7925, %v8005
  %v8022 = vsel %vm7942, %v7926, %v8006
  %v8023 = vsel %vm7943, %v7927, %v8007
  %v8024 = vsel %vm7944, %v7928, %v8008
  %v8025 = vsel %vm7945, %v7929, %v8009
  %8026 = vst.msk [vmem:[%s7] sm:$0xff] %vm4854, %v8010
  %8027 = vst.msk [vmem:[%s7 + $0x8] sm:$0xff] %vm4854, %v8011
  %8028 = vst.msk [vmem:[%s7 + $0x10] sm:$0xff] %vm4854, %v8012
  %8029 = vst.msk [vmem:[%s7 + $0x18] sm:$0xff] %vm4854, %v8013
  %8030 = vst.msk [vmem:[%s7 + $0x20] sm:$0xff] %vm4854, %v8014
  %8031 = vst.msk [vmem:[%s7 + $0x28] sm:$0xff] %vm4854, %v8015
  %8032 = vst.msk [vmem:[%s7 + $0x30] sm:$0xff] %vm4854, %v8016
  %8033 = vst.msk [vmem:[%s7 + $0x38] sm:$0xff] %vm4854, %v8017
  %8034 = vst.msk [vmem:[%s7 + $0x40] sm:$0xff] %vm4854, %v8018
  %8035 = vst.msk [vmem:[%s7 + $0x48] sm:$0xff] %vm4854, %v8019
  %8036 = vst.msk [vmem:[%s7 + $0x50] sm:$0xff] %vm4854, %v8020
  %8037 = vst.msk [vmem:[%s7 + $0x58] sm:$0xff] %vm4854, %v8021
  %8038 = vst.msk [vmem:[%s7 + $0x60] sm:$0xff] %vm4854, %v8022
  %8039 = vst.msk [vmem:[%s7 + $0x68] sm:$0xff] %vm4854, %v8023
  %8040 = vst.msk [vmem:[%s7 + $0x70] sm:$0xff] %vm4854, %v8024
  %8041 = vst.msk [vmem:[%s7 + $0x78] sm:$0xff] %vm4854, %v8025
  // Predicated region
  $region30: #{net_forward.2} parent=0 // pred_check
    _
  $region31: #{net_forward.2} parent=0 // pred_check_branch
    %8043 = sbr.rel (0) target = $region33
  $region32: #{net_forward.2} parent=0 // pred_region
    _
  $region33: #{net_forward.2} parent=0 // pred_fallthru
    _
  // Predicated region
  $region34: #{net_forward.2} parent=0 // pred_check
    _
  $region35: #{net_forward.2} parent=0 // pred_check_branch
    %8045 = sbr.rel (0) target = $region37
  $region36: #{net_forward.2} parent=0 // pred_region
    _
  $region37: #{net_forward.2} parent=0 // pred_fallthru
    _

</llo_original>
